<compile_context>
chip_gen: v5e
topology: v5e:2x2
jax: 0.10.0
libtpu: 0.0.40
codegen_flags: <defaults>
</compile_context>

<pallas_src>
import numpy as np
import jax
import jax.numpy as jnp
from jax import lax
from jax.experimental import pallas as pl
from jax.experimental.pallas import tpu as pltpu

# Small stand-ins for the module constants (original: M = N = 512).
# 128 keeps every matmul operand / output lane-dense (>= 128 lanes) on all TPU
# generations; see review item #5.
M = 128
N = 128

# MXU operand dtype for the DFT matmuls.  bf16 is the fast (and on v7x the only)
# MXU path; accumulation is always f32.  Set to jnp.float32 for reference-exact
# numerics at ~3-8x lower MXU throughput.
MXU_DTYPE = jnp.bfloat16


def _build_constants(h_nm, z):
    """Deterministic buffers from Decoder.__init__ plus DFT / crop matrices.

    Everything is computed on the host in float64.  Trig maps stay float32
    (phase accuracy); the matmul constants are stored directly in MXU_DTYPE.
    """
    h = h_nm * 1e-6
    pix = 0.008
    LM = M * pix
    LN = N * pix
    L0 = h * z / pix

    n = np.arange(N, dtype=np.float64)
    m = np.arange(M, dtype=np.float64)
    x0 = -L0 / 2 + L0 / M * m            # (M,)
    y0 = -L0 / 2 + L0 / N * n            # (N,)
    # torch.meshgrid(..., indexing='xy') -> shape (N, M); x varies along columns.
    L_img = (x0[None, :] ** 2 + y0[:, None] ** 2) / z
    x = -LM / 2 + LM / M * m
    y = -LN / 2 + LN / N * n
    L_slm = (x[None, :] ** 2 + y[:, None] ** 2) / z
    theta_img = (np.pi / h) * L_img
    theta_slm = (np.pi / h) * L_slm

    # Forward DFT:  fft2(U) = FN @ U @ FM   (U is (N, M)).
    # Spatial fftshift folded in by rolling FN rows / FM cols by half the size.
    kN = np.arange(N)
    FN = np.exp(-2j * np.pi * np.outer(kN, kN) / N)
    FN = np.roll(FN, N // 2, axis=0)
    kM = np.arange(M)
    FM = np.exp(-2j * np.pi * np.outer(kM, kM) / M)
    FM = np.roll(FM, M // 2, axis=1)

    # Reconstruction: zero-pad to (2N, 2M), ifft2 (scale 1/(2N*2M)), crop the same
    # center window.  Linear map  out = AN @ data @ AM^T  with
    #   AN[k, n] = exp(+2j*pi*(k+N//2)*(n+N//2)/(2N)) / (2N),  similarly AM.
    iN = np.arange(N) + N // 2
    AN = np.exp(2j * np.pi * np.outer(iN, iN) / (2 * N)) / (2 * N)
    iM = np.arange(M) + M // 2
    AM = np.exp(2j * np.pi * np.outer(iM, iM) / (2 * M)) / (2 * M)
    AMT = AM.T

    to_f32 = lambda a: jnp.asarray(np.asarray(a, np.float32))
    to_mxu = lambda a: jnp.asarray(np.asarray(a, np.float32), dtype=MXU_DTYPE)
    return dict(
        # host-f64 trig of the (large) constant phases; kept f32 for accuracy.
        ci_img=to_f32(np.cos(theta_img)), si_img=to_f32(np.sin(theta_img)),
        cs_slm=to_f32(np.cos(theta_slm)), ss_slm=to_f32(np.sin(theta_slm)),
        # Gauss-3-mult constant set.  *_in = NEGATED imaginary part so the
        # real-part combine is a pure add of two MXU results; *_s = real + imag.
        fnr=to_mxu(FN.real), fnin=to_mxu(-FN.imag), fns=to_mxu(FN.real + FN.imag),
        fmr=to_mxu(FM.real), fmin=to_mxu(-FM.imag), fms=to_mxu(FM.real + FM.imag),
        anr=to_mxu(AN.real), anin=to_mxu(-AN.imag), ans=to_mxu(AN.real + AN.imag),
        amtr=to_mxu(AMT.real), amtin=to_mxu(-AMT.imag),
        amts=to_mxu(AMT.real + AMT.imag),
    )


def _dot(a, b):
    # Constants are already MXU_DTYPE (host-side cast); only the data side casts.
    return jnp.dot(a.astype(MXU_DTYPE), b.astype(MXU_DTYPE),
                   preferred_element_type=jnp.float32)


# SLEEF atanf minimax coefficients (|x| <= 1), ~few-ulp f32 accuracy.
_ATAN_COEFFS = (
    0.00282363896258175373077393, -0.0159569028764963150024414,
    0.0425049886107444763183594, -0.0748900920152664184570312,
    0.106347933411598205566406, -0.142027363181114196777344,
    0.199926957488059997558594, -0.333331018686294555664062,
)


def _atan2(y, x):
    """atan2 built only from mul/add/div/abs/compare/select (always lowers)."""
    ax = jnp.abs(x)
    ay = jnp.abs(y)
    amax = jnp.maximum(ax, ay)
    amin = jnp.minimum(ax, ay)
    a = amin / jnp.maximum(amax, np.float32(1e-30))      # in [0, 1]
    s = a * a
    p = np.float32(_ATAN_COEFFS[0])
    for c in _ATAN_COEFFS[1:]:
        p = p * s + np.float32(c)
    r = a + a * (s * p)                                   # atan(a), a in [0, 1]
    r = jnp.where(ay > ax, np.float32(np.pi / 2) - r, r)  # |y| > |x| octant
    r = jnp.where(x < 0, np.float32(np.pi) - r, r)        # left half-plane
    return jnp.where(y < 0, -r, r)                        # sign of y


def decoder_kernel(img_ref, rnd_ref,
                   ci_ref, si_ref, cs_ref, ss_ref,
                   fnr_ref, fnin_ref, fns_ref,
                   fmr_ref, fmin_ref, fms_ref,
                   anr_ref, anin_ref, ans_ref,
                   amtr_ref, amtin_ref, amts_ref,
                   phase_ref, rec_ref):
    img = img_ref[0]                     # (N, M)
    th = rnd_ref[0]                      # (N, M) random phase (runtime input)
    ci, si = ci_ref[...], si_ref[...]    # cos/sin(theta_img), host-precomputed
    cs, ss = cs_ref[...], ss_ref[...]    # cos/sin(theta_slm), host-precomputed

    # ---- U = img * exp(i*(theta_rand + theta_img)); only 2 in-kernel trig arrays.
    cth = jnp.cos(th)
    sth = jnp.sin(th)
    ur = img * (cth * ci - sth * si)
    ui = img * (cth * si + sth * ci)

    # ---- fftshift(fft2(U)) = FN @ U @ FM as Gauss 3-mult complex matmuls.
    # Imag constants are pre-negated -> real combine is dot + dot (pure add).
    t1 = _dot(fnr_ref[...], ur)
    t2n = _dot(fnin_ref[...], ui)             # fnin = -FN.imag
    t3 = _dot(fns_ref[...], ur + ui)          # fns  =  FN.real + FN.imag
    ar = t1 + t2n
    ai = (t3 + t2n) - t1

    s1 = _dot(ar, fmr_ref[...])
    s2n = _dot(ai, fmin_ref[...])             # fmin = -FM.imag
    s3 = _dot(ar + ai, fms_ref[...])          # fms  =  FM.real + FM.imag
    uf_r = s1 + s2n
    uf_i = (s3 + s2n) - s1

    # ---- V = Uf * exp(i*theta_slm);  phase = atan2(V_i, V_r)  (in-kernel; the
    # vr/vi arrays never leave VMEM -> one output store instead of two + epilogue).
    vr = uf_r * cs - uf_i * ss
    vi = uf_r * ss + uf_i * cs
    phase_ref[0] = _atan2(vi, vr)

    # ---- reconstruction, fused:
    #   phase - theta_slm == angle(Uf)  (the exp(i*theta_slm) rotation cancels), so
    #   cos(phase - theta_slm) = uf_r/|Uf|,  sin(phase - theta_slm) = uf_i/|Uf|.
    # Zero guard: reference path gives atan2(0,0)=0 -> cos(-theta_slm), sin(-theta_slm).
    mag2 = uf_r * uf_r + uf_i * uf_i
    inv = lax.rsqrt(jnp.maximum(mag2, np.float32(1e-30)))   # EUP slot, ~free
    is_zero = mag2 == 0.0
    cr = jnp.where(is_zero, cs, uf_r * inv)
    cim = jnp.where(is_zero, -ss, uf_i * inv)

    # (zero-pad -> ifft2 -> center-crop) == AN @ (cr + i*cim) @ AM^T, Gauss 3-mult.
    p1 = _dot(anr_ref[...], cr)
    p2n = _dot(anin_ref[...], cim)            # anin = -AN.imag
    p3 = _dot(ans_ref[...], cr + cim)         # ans  =  AN.real + AN.imag
    t1r = p1 + p2n
    t1i = (p3 + p2n) - p1

    q1 = _dot(t1r, amtr_ref[...])
    q2n = _dot(t1i, amtin_ref[...])           # amtin = -AMT.imag
    q3 = _dot(t1r + t1i, amts_ref[...])       # amts  =  AMT.real + AMT.imag
    o_r = q1 + q2n
    o_i = (q3 + q2n) - q1

    rec_ref[0] = jnp.sqrt(o_r * o_r + o_i * o_i)


def decoder_forward(image, phase_rand, consts):
    """image, phase_rand: [B, 1, N, M] float32 -> (phase, reconstruction) same shape."""
    B = image.shape[0]
    img = image[:, 0]
    rnd = phase_rand[:, 0]

    batched_in = pl.BlockSpec((1, N, M), lambda b: (b, 0, 0))
    # torch.fft.fftshift(dim=None) also rolls the batch axis by B//2 (channel roll
    # is a no-op, size 1).  Fold that roll into the output placement: grid step b
    # writes its result into output batch slot (b + B//2) % B.  It commutes with
    # the per-image reconstruction math, so both outputs share the same map.
    rolled_out = pl.BlockSpec((1, N, M), lambda b: ((b + B // 2) % B, 0, 0))

    def shared(shape):
        # Grid-invariant constants: never re-fetched, so single-buffer them
        # (halves their VMEM footprint -- matters at 512x512 on v7x's 64 MiB/TC).
        idx = lambda b: (0, 0)
        if hasattr(pl, "Buffered"):
            try:
                return pl.BlockSpec(shape, idx, pipeline_mode=pl.Buffered(1))
            except TypeError:
                pass  # older BlockSpec signature without pipeline_mode
        return pl.BlockSpec(shape, idx)

    phase, rec = pl.pallas_call(
        decoder_kernel,
        out_shape=(jax.ShapeDtypeStruct((B, N, M), jnp.float32),
                   jax.ShapeDtypeStruct((B, N, M), jnp.float32)),
        grid=(B,),
        in_specs=[batched_in, batched_in,
                  shared((N, M)), shared((N, M)), shared((N, M)), shared((N, M)),
                  shared((N, N)), shared((N, N)), shared((N, N)),
                  shared((M, M)), shared((M, M)), shared((M, M)),
                  shared((N, N)), shared((N, N)), shared((N, N)),
                  shared((M, M)), shared((M, M)), shared((M, M))],
        out_specs=(rolled_out, rolled_out),
        compiler_params=pltpu.CompilerParams(
            dimension_semantics=("parallel",),
            # Below v7x's 64 MiB physical VMEM/TC to leave Mosaic scratch headroom.
            vmem_limit_bytes=48 * 1024 * 1024),
    )(img, rnd,
      consts["ci_img"], consts["si_img"], consts["cs_slm"], consts["ss_slm"],
      consts["fnr"], consts["fnin"], consts["fns"],
      consts["fmr"], consts["fmin"], consts["fms"],
      consts["anr"], consts["anin"], consts["ans"],
      consts["amtr"], consts["amtin"], consts["amts"])

    return phase[:, None], rec[:, None]


if __name__ == "__main__":
    consts = _build_constants(h_nm=532.0, z=300.0)   # h: lambda (nm), z: distance (mm)

    key = jax.random.PRNGKey(0)
    k1, k2 = jax.random.split(key)
    B = 4   # even and >= 2 grid steps per v7x TensorCore (review item #6)
    image = jax.random.uniform(k1, (B, 1, N, M), dtype=jnp.float32)
    phase_rand = jax.random.uniform(k2, (B, 1, N, M), dtype=jnp.float32,
                                    minval=0.0, maxval=2.0 * np.pi)

    fwd = jax.jit(lambda im, ph: decoder_forward(im, ph, consts))
    phase, recon = fwd(image, phase_rand)
    jax.block_until_ready((phase, recon))

    assert phase.shape == (B, 1, N, M) and phase.dtype == jnp.float32
    assert recon.shape == (B, 1, N, M) and recon.dtype == jnp.float32
    assert bool(jnp.all(jnp.isfinite(phase))) and bool(jnp.all(jnp.isfinite(recon)))
    print("KERNEL_OK")
</pallas_src>

<mosaic_0001>
module attributes {stable_mosaic.version = 11 : i64} {
  func.func @decoder_kernel(%arg0: i32, %arg1: memref<1x128x128xf32, #tpu.memory_space<vmem>>, %arg2: memref<1x128x128xf32, #tpu.memory_space<vmem>>, %arg3: memref<128x128xf32, #tpu.memory_space<vmem>>, %arg4: memref<128x128xf32, #tpu.memory_space<vmem>>, %arg5: memref<128x128xf32, #tpu.memory_space<vmem>>, %arg6: memref<128x128xf32, #tpu.memory_space<vmem>>, %arg7: memref<128x128xbf16, #tpu.memory_space<vmem>>, %arg8: memref<128x128xbf16, #tpu.memory_space<vmem>>, %arg9: memref<128x128xbf16, #tpu.memory_space<vmem>>, %arg10: memref<128x128xbf16, #tpu.memory_space<vmem>>, %arg11: memref<128x128xbf16, #tpu.memory_space<vmem>>, %arg12: memref<128x128xbf16, #tpu.memory_space<vmem>>, %arg13: memref<128x128xbf16, #tpu.memory_space<vmem>>, %arg14: memref<128x128xbf16, #tpu.memory_space<vmem>>, %arg15: memref<128x128xbf16, #tpu.memory_space<vmem>>, %arg16: memref<128x128xbf16, #tpu.memory_space<vmem>>, %arg17: memref<128x128xbf16, #tpu.memory_space<vmem>>, %arg18: memref<128x128xbf16, #tpu.memory_space<vmem>>, %arg19: memref<1x128x128xf32, #tpu.memory_space<vmem>>, %arg20: memref<1x128x128xf32, #tpu.memory_space<vmem>>) attributes {dimension_semantics = [#tpu.dimension_semantics<parallel>], iteration_bounds = array<i64: 4>, scalar_prefetch = 0 : i64, scratch_operands = 0 : i64, tpu.core_type = #tpu.core_type<tc>, window_params = [{transform_indices = @transform_0, window_bounds = array<i64: 1, 128, 128>}, {transform_indices = @transform_1, window_bounds = array<i64: 1, 128, 128>}, {pipeline_mode = #tpu.pipeline_mode<synchronous>, transform_indices = @transform_2, window_bounds = array<i64: 128, 128>}, {pipeline_mode = #tpu.pipeline_mode<synchronous>, transform_indices = @transform_3, window_bounds = array<i64: 128, 128>}, {pipeline_mode = #tpu.pipeline_mode<synchronous>, transform_indices = @transform_4, window_bounds = array<i64: 128, 128>}, {pipeline_mode = #tpu.pipeline_mode<synchronous>, transform_indices = @transform_5, window_bounds = array<i64: 128, 128>}, {pipeline_mode = #tpu.pipeline_mode<synchronous>, transform_indices = @transform_6, window_bounds = array<i64: 128, 128>}, {pipeline_mode = #tpu.pipeline_mode<synchronous>, transform_indices = @transform_7, window_bounds = array<i64: 128, 128>}, {pipeline_mode = #tpu.pipeline_mode<synchronous>, transform_indices = @transform_8, window_bounds = array<i64: 128, 128>}, {pipeline_mode = #tpu.pipeline_mode<synchronous>, transform_indices = @transform_9, window_bounds = array<i64: 128, 128>}, {pipeline_mode = #tpu.pipeline_mode<synchronous>, transform_indices = @transform_10, window_bounds = array<i64: 128, 128>}, {pipeline_mode = #tpu.pipeline_mode<synchronous>, transform_indices = @transform_11, window_bounds = array<i64: 128, 128>}, {pipeline_mode = #tpu.pipeline_mode<synchronous>, transform_indices = @transform_12, window_bounds = array<i64: 128, 128>}, {pipeline_mode = #tpu.pipeline_mode<synchronous>, transform_indices = @transform_13, window_bounds = array<i64: 128, 128>}, {pipeline_mode = #tpu.pipeline_mode<synchronous>, transform_indices = @transform_14, window_bounds = array<i64: 128, 128>}, {pipeline_mode = #tpu.pipeline_mode<synchronous>, transform_indices = @transform_15, window_bounds = array<i64: 128, 128>}, {pipeline_mode = #tpu.pipeline_mode<synchronous>, transform_indices = @transform_16, window_bounds = array<i64: 128, 128>}, {pipeline_mode = #tpu.pipeline_mode<synchronous>, transform_indices = @transform_17, window_bounds = array<i64: 128, 128>}, {transform_indices = @transform_18, window_bounds = array<i64: 1, 128, 128>}, {transform_indices = @transform_19, window_bounds = array<i64: 1, 128, 128>}]} {
    %c0 = arith.constant 0 : index
    %c0_0 = arith.constant 0 : index
    %c0_1 = arith.constant 0 : index
    %0 = vector.load %arg1[%c0, %c0_0, %c0_1] : memref<1x128x128xf32, #tpu.memory_space<vmem>>, vector<1x128x128xf32>
    %1 = vector.shape_cast %0 : vector<1x128x128xf32> to vector<128x128xf32>
    %c0_2 = arith.constant 0 : index
    %c0_3 = arith.constant 0 : index
    %c0_4 = arith.constant 0 : index
    %2 = vector.load %arg2[%c0_2, %c0_3, %c0_4] : memref<1x128x128xf32, #tpu.memory_space<vmem>>, vector<1x128x128xf32>
    %3 = vector.shape_cast %2 : vector<1x128x128xf32> to vector<128x128xf32>
    %c0_5 = arith.constant 0 : index
    %c0_6 = arith.constant 0 : index
    %4 = vector.load %arg3[%c0_5, %c0_6] : memref<128x128xf32, #tpu.memory_space<vmem>>, vector<128x128xf32>
    %c0_7 = arith.constant 0 : index
    %c0_8 = arith.constant 0 : index
    %5 = vector.load %arg4[%c0_7, %c0_8] : memref<128x128xf32, #tpu.memory_space<vmem>>, vector<128x128xf32>
    %c0_9 = arith.constant 0 : index
    %c0_10 = arith.constant 0 : index
    %6 = vector.load %arg5[%c0_9, %c0_10] : memref<128x128xf32, #tpu.memory_space<vmem>>, vector<128x128xf32>
    %c0_11 = arith.constant 0 : index
    %c0_12 = arith.constant 0 : index
    %7 = vector.load %arg6[%c0_11, %c0_12] : memref<128x128xf32, #tpu.memory_space<vmem>>, vector<128x128xf32>
    %8 = math.cos %3 : vector<128x128xf32>
    %9 = math.sin %3 : vector<128x128xf32>
    %10 = arith.mulf %8, %4 : vector<128x128xf32>
    %11 = arith.mulf %9, %5 : vector<128x128xf32>
    %12 = arith.subf %10, %11 : vector<128x128xf32>
    %13 = arith.mulf %1, %12 : vector<128x128xf32>
    %14 = arith.mulf %8, %5 : vector<128x128xf32>
    %15 = arith.mulf %9, %4 : vector<128x128xf32>
    %16 = arith.addf %14, %15 : vector<128x128xf32>
    %17 = arith.mulf %1, %16 : vector<128x128xf32>
    %c0_13 = arith.constant 0 : index
    %c0_14 = arith.constant 0 : index
    %18 = vector.load %arg7[%c0_13, %c0_14] : memref<128x128xbf16, #tpu.memory_space<vmem>>, vector<128x128xbf16>
    %19 = arith.truncf %13 : vector<128x128xf32> to vector<128x128xbf16>
    %cst = arith.constant dense<0.000000e+00> : vector<128x128xf32>
    %20 = tpu.matmul %18, %19, %cst {dimension_numbers = #tpu.dot_dimension_numbers<[1], [0], [0], [1], [0, 0, 1, 1], [], []>} : vector<128x128xbf16>, vector<128x128xbf16>, vector<128x128xf32> -> vector<128x128xf32>
    %c0_15 = arith.constant 0 : index
    %c0_16 = arith.constant 0 : index
    %21 = vector.load %arg8[%c0_15, %c0_16] : memref<128x128xbf16, #tpu.memory_space<vmem>>, vector<128x128xbf16>
    %22 = arith.truncf %17 : vector<128x128xf32> to vector<128x128xbf16>
    %cst_17 = arith.constant dense<0.000000e+00> : vector<128x128xf32>
    %23 = tpu.matmul %21, %22, %cst_17 {dimension_numbers = #tpu.dot_dimension_numbers<[1], [0], [0], [1], [0, 0, 1, 1], [], []>} : vector<128x128xbf16>, vector<128x128xbf16>, vector<128x128xf32> -> vector<128x128xf32>
    %c0_18 = arith.constant 0 : index
    %c0_19 = arith.constant 0 : index
    %24 = vector.load %arg9[%c0_18, %c0_19] : memref<128x128xbf16, #tpu.memory_space<vmem>>, vector<128x128xbf16>
    %25 = arith.addf %13, %17 : vector<128x128xf32>
    %26 = arith.truncf %25 : vector<128x128xf32> to vector<128x128xbf16>
    %cst_20 = arith.constant dense<0.000000e+00> : vector<128x128xf32>
    %27 = tpu.matmul %24, %26, %cst_20 {dimension_numbers = #tpu.dot_dimension_numbers<[1], [0], [0], [1], [0, 0, 1, 1], [], []>} : vector<128x128xbf16>, vector<128x128xbf16>, vector<128x128xf32> -> vector<128x128xf32>
    %28 = arith.addf %20, %23 : vector<128x128xf32>
    %29 = arith.addf %27, %23 : vector<128x128xf32>
    %30 = arith.subf %29, %20 : vector<128x128xf32>
    %c0_21 = arith.constant 0 : index
    %c0_22 = arith.constant 0 : index
    %31 = vector.load %arg10[%c0_21, %c0_22] : memref<128x128xbf16, #tpu.memory_space<vmem>>, vector<128x128xbf16>
    %32 = arith.truncf %28 : vector<128x128xf32> to vector<128x128xbf16>
    %cst_23 = arith.constant dense<0.000000e+00> : vector<128x128xf32>
    %33 = tpu.matmul %32, %31, %cst_23 {dimension_numbers = #tpu.dot_dimension_numbers<[1], [0], [0], [1], [0, 0, 1, 1], [], []>} : vector<128x128xbf16>, vector<128x128xbf16>, vector<128x128xf32> -> vector<128x128xf32>
    %c0_24 = arith.constant 0 : index
    %c0_25 = arith.constant 0 : index
    %34 = vector.load %arg11[%c0_24, %c0_25] : memref<128x128xbf16, #tpu.memory_space<vmem>>, vector<128x128xbf16>
    %35 = arith.truncf %30 : vector<128x128xf32> to vector<128x128xbf16>
    %cst_26 = arith.constant dense<0.000000e+00> : vector<128x128xf32>
    %36 = tpu.matmul %35, %34, %cst_26 {dimension_numbers = #tpu.dot_dimension_numbers<[1], [0], [0], [1], [0, 0, 1, 1], [], []>} : vector<128x128xbf16>, vector<128x128xbf16>, vector<128x128xf32> -> vector<128x128xf32>
    %37 = arith.addf %28, %30 : vector<128x128xf32>
    %c0_27 = arith.constant 0 : index
    %c0_28 = arith.constant 0 : index
    %38 = vector.load %arg12[%c0_27, %c0_28] : memref<128x128xbf16, #tpu.memory_space<vmem>>, vector<128x128xbf16>
    %39 = arith.truncf %37 : vector<128x128xf32> to vector<128x128xbf16>
    %cst_29 = arith.constant dense<0.000000e+00> : vector<128x128xf32>
    %40 = tpu.matmul %39, %38, %cst_29 {dimension_numbers = #tpu.dot_dimension_numbers<[1], [0], [0], [1], [0, 0, 1, 1], [], []>} : vector<128x128xbf16>, vector<128x128xbf16>, vector<128x128xf32> -> vector<128x128xf32>
    %41 = arith.addf %33, %36 : vector<128x128xf32>
    %42 = arith.addf %40, %36 : vector<128x128xf32>
    %43 = arith.subf %42, %33 : vector<128x128xf32>
    %44 = arith.mulf %41, %6 : vector<128x128xf32>
    %45 = arith.mulf %43, %7 : vector<128x128xf32>
    %46 = arith.subf %44, %45 : vector<128x128xf32>
    %47 = arith.mulf %41, %7 : vector<128x128xf32>
    %48 = arith.mulf %43, %6 : vector<128x128xf32>
    %49 = arith.addf %47, %48 : vector<128x128xf32>
    %50 = math.absf %46 : vector<128x128xf32>
    %51 = math.absf %49 : vector<128x128xf32>
    %52 = arith.maximumf %50, %51 : vector<128x128xf32>
    %53 = arith.minimumf %50, %51 : vector<128x128xf32>
    %cst_30 = arith.constant 1.000000e-30 : f32
    %54 = vector.broadcast %cst_30 : f32 to vector<128x128xf32>
    %55 = arith.maximumf %52, %54 : vector<128x128xf32>
    %56 = arith.divf %53, %55 : vector<128x128xf32>
    %57 = arith.mulf %56, %56 : vector<128x128xf32>
    %cst_31 = arith.constant 0.00282363896 : f32
    %58 = vector.broadcast %cst_31 : f32 to vector<128x128xf32>
    %59 = arith.mulf %58, %57 : vector<128x128xf32>
    %cst_32 = arith.constant -0.0159569029 : f32
    %60 = vector.broadcast %cst_32 : f32 to vector<128x128xf32>
    %61 = arith.addf %59, %60 : vector<128x128xf32>
    %62 = arith.mulf %61, %57 : vector<128x128xf32>
    %cst_33 = arith.constant 0.0425049886 : f32
    %63 = vector.broadcast %cst_33 : f32 to vector<128x128xf32>
    %64 = arith.addf %62, %63 : vector<128x128xf32>
    %65 = arith.mulf %64, %57 : vector<128x128xf32>
    %cst_34 = arith.constant -0.074890092 : f32
    %66 = vector.broadcast %cst_34 : f32 to vector<128x128xf32>
    %67 = arith.addf %65, %66 : vector<128x128xf32>
    %68 = arith.mulf %67, %57 : vector<128x128xf32>
    %cst_35 = arith.constant 0.106347933 : f32
    %69 = vector.broadcast %cst_35 : f32 to vector<128x128xf32>
    %70 = arith.addf %68, %69 : vector<128x128xf32>
    %71 = arith.mulf %70, %57 : vector<128x128xf32>
    %cst_36 = arith.constant -0.142027363 : f32
    %72 = vector.broadcast %cst_36 : f32 to vector<128x128xf32>
    %73 = arith.addf %71, %72 : vector<128x128xf32>
    %74 = arith.mulf %73, %57 : vector<128x128xf32>
    %cst_37 = arith.constant 0.199926957 : f32
    %75 = vector.broadcast %cst_37 : f32 to vector<128x128xf32>
    %76 = arith.addf %74, %75 : vector<128x128xf32>
    %77 = arith.mulf %76, %57 : vector<128x128xf32>
    %cst_38 = arith.constant -0.333331019 : f32
    %78 = vector.broadcast %cst_38 : f32 to vector<128x128xf32>
    %79 = arith.addf %77, %78 : vector<128x128xf32>
    %80 = arith.mulf %57, %79 : vector<128x128xf32>
    %81 = arith.mulf %56, %80 : vector<128x128xf32>
    %82 = arith.addf %56, %81 : vector<128x128xf32>
    %83 = arith.cmpf ogt, %51, %50 : vector<128x128xf32>
    %cst_39 = arith.constant 1.57079637 : f32
    %84 = vector.broadcast %cst_39 : f32 to vector<128x128xf32>
    %85 = arith.subf %84, %82 : vector<128x128xf32>
    %86 = arith.select %83, %85, %82 : vector<128x128xi1>, vector<128x128xf32>
    %cst_40 = arith.constant 0.000000e+00 : f32
    %87 = vector.broadcast %cst_40 : f32 to vector<128x128xf32>
    %88 = arith.cmpf olt, %46, %87 : vector<128x128xf32>
    %cst_41 = arith.constant 3.14159274 : f32
    %89 = vector.broadcast %cst_41 : f32 to vector<128x128xf32>
    %90 = arith.subf %89, %86 : vector<128x128xf32>
    %91 = arith.select %88, %90, %86 : vector<128x128xi1>, vector<128x128xf32>
    %cst_42 = arith.constant 0.000000e+00 : f32
    %92 = vector.broadcast %cst_42 : f32 to vector<128x128xf32>
    %93 = arith.cmpf olt, %49, %92 : vector<128x128xf32>
    %cst_43 = arith.constant 0.000000e+00 : f32
    %94 = vector.broadcast %cst_43 : f32 to vector<128x128xf32>
    %95 = arith.subf %94, %91 : vector<128x128xf32>
    %96 = arith.select %93, %95, %91 : vector<128x128xi1>, vector<128x128xf32>
    %c0_44 = arith.constant 0 : index
    %c0_45 = arith.constant 0 : index
    %c0_46 = arith.constant 0 : index
    %97 = vector.load %arg19[%c0_44, %c0_45, %c0_46] : memref<1x128x128xf32, #tpu.memory_space<vmem>>, vector<1x128x128xf32>
    %98 = vector.shape_cast %97 : vector<1x128x128xf32> to vector<128x128xf32>
    %99 = vector.shape_cast %96 : vector<128x128xf32> to vector<1x128x128xf32>
    tpu.vector_store %arg19[%c0_44, %c0_45, %c0_46], %99 {strides = array<i32>} : memref<1x128x128xf32, #tpu.memory_space<vmem>>, vector<1x128x128xf32>,
    %100 = arith.mulf %41, %41 : vector<128x128xf32>
    %101 = arith.mulf %43, %43 : vector<128x128xf32>
    %102 = arith.addf %100, %101 : vector<128x128xf32>
    %cst_47 = arith.constant 1.000000e-30 : f32
    %103 = vector.broadcast %cst_47 : f32 to vector<128x128xf32>
    %104 = arith.maximumf %102, %103 : vector<128x128xf32>
    %105 = math.rsqrt %104 : vector<128x128xf32>
    %cst_48 = arith.constant 0.000000e+00 : f32
    %106 = vector.broadcast %cst_48 : f32 to vector<128x128xf32>
    %107 = arith.cmpf oeq, %102, %106 : vector<128x128xf32>
    %108 = arith.mulf %41, %105 : vector<128x128xf32>
    %109 = arith.select %107, %6, %108 : vector<128x128xi1>, vector<128x128xf32>
    %cst_49 = arith.constant 0.000000e+00 : f32
    %110 = vector.broadcast %cst_49 : f32 to vector<128x128xf32>
    %111 = arith.subf %110, %7 : vector<128x128xf32>
    %112 = arith.mulf %43, %105 : vector<128x128xf32>
    %113 = arith.select %107, %111, %112 : vector<128x128xi1>, vector<128x128xf32>
    %c0_50 = arith.constant 0 : index
    %c0_51 = arith.constant 0 : index
    %114 = vector.load %arg13[%c0_50, %c0_51] : memref<128x128xbf16, #tpu.memory_space<vmem>>, vector<128x128xbf16>
    %115 = arith.truncf %109 : vector<128x128xf32> to vector<128x128xbf16>
    %cst_52 = arith.constant dense<0.000000e+00> : vector<128x128xf32>
    %116 = tpu.matmul %114, %115, %cst_52 {dimension_numbers = #tpu.dot_dimension_numbers<[1], [0], [0], [1], [0, 0, 1, 1], [], []>} : vector<128x128xbf16>, vector<128x128xbf16>, vector<128x128xf32> -> vector<128x128xf32>
    %c0_53 = arith.constant 0 : index
    %c0_54 = arith.constant 0 : index
    %117 = vector.load %arg14[%c0_53, %c0_54] : memref<128x128xbf16, #tpu.memory_space<vmem>>, vector<128x128xbf16>
    %118 = arith.truncf %113 : vector<128x128xf32> to vector<128x128xbf16>
    %cst_55 = arith.constant dense<0.000000e+00> : vector<128x128xf32>
    %119 = tpu.matmul %117, %118, %cst_55 {dimension_numbers = #tpu.dot_dimension_numbers<[1], [0], [0], [1], [0, 0, 1, 1], [], []>} : vector<128x128xbf16>, vector<128x128xbf16>, vector<128x128xf32> -> vector<128x128xf32>
    %c0_56 = arith.constant 0 : index
    %c0_57 = arith.constant 0 : index
    %120 = vector.load %arg15[%c0_56, %c0_57] : memref<128x128xbf16, #tpu.memory_space<vmem>>, vector<128x128xbf16>
    %121 = arith.addf %109, %113 : vector<128x128xf32>
    %122 = arith.truncf %121 : vector<128x128xf32> to vector<128x128xbf16>
    %cst_58 = arith.constant dense<0.000000e+00> : vector<128x128xf32>
    %123 = tpu.matmul %120, %122, %cst_58 {dimension_numbers = #tpu.dot_dimension_numbers<[1], [0], [0], [1], [0, 0, 1, 1], [], []>} : vector<128x128xbf16>, vector<128x128xbf16>, vector<128x128xf32> -> vector<128x128xf32>
    %124 = arith.addf %116, %119 : vector<128x128xf32>
    %125 = arith.addf %123, %119 : vector<128x128xf32>
    %126 = arith.subf %125, %116 : vector<128x128xf32>
    %c0_59 = arith.constant 0 : index
    %c0_60 = arith.constant 0 : index
    %127 = vector.load %arg16[%c0_59, %c0_60] : memref<128x128xbf16, #tpu.memory_space<vmem>>, vector<128x128xbf16>
    %128 = arith.truncf %124 : vector<128x128xf32> to vector<128x128xbf16>
    %cst_61 = arith.constant dense<0.000000e+00> : vector<128x128xf32>
    %129 = tpu.matmul %128, %127, %cst_61 {dimension_numbers = #tpu.dot_dimension_numbers<[1], [0], [0], [1], [0, 0, 1, 1], [], []>} : vector<128x128xbf16>, vector<128x128xbf16>, vector<128x128xf32> -> vector<128x128xf32>
    %c0_62 = arith.constant 0 : index
    %c0_63 = arith.constant 0 : index
    %130 = vector.load %arg17[%c0_62, %c0_63] : memref<128x128xbf16, #tpu.memory_space<vmem>>, vector<128x128xbf16>
    %131 = arith.truncf %126 : vector<128x128xf32> to vector<128x128xbf16>
    %cst_64 = arith.constant dense<0.000000e+00> : vector<128x128xf32>
    %132 = tpu.matmul %131, %130, %cst_64 {dimension_numbers = #tpu.dot_dimension_numbers<[1], [0], [0], [1], [0, 0, 1, 1], [], []>} : vector<128x128xbf16>, vector<128x128xbf16>, vector<128x128xf32> -> vector<128x128xf32>
    %133 = arith.addf %124, %126 : vector<128x128xf32>
    %c0_65 = arith.constant 0 : index
    %c0_66 = arith.constant 0 : index
    %134 = vector.load %arg18[%c0_65, %c0_66] : memref<128x128xbf16, #tpu.memory_space<vmem>>, vector<128x128xbf16>
    %135 = arith.truncf %133 : vector<128x128xf32> to vector<128x128xbf16>
    %cst_67 = arith.constant dense<0.000000e+00> : vector<128x128xf32>
    %136 = tpu.matmul %135, %134, %cst_67 {dimension_numbers = #tpu.dot_dimension_numbers<[1], [0], [0], [1], [0, 0, 1, 1], [], []>} : vector<128x128xbf16>, vector<128x128xbf16>, vector<128x128xf32> -> vector<128x128xf32>
    %137 = arith.addf %129, %132 : vector<128x128xf32>
    %138 = arith.addf %136, %132 : vector<128x128xf32>
    %139 = arith.subf %138, %129 : vector<128x128xf32>
    %140 = arith.mulf %137, %137 : vector<128x128xf32>
    %141 = arith.mulf %139, %139 : vector<128x128xf32>
    %142 = arith.addf %140, %141 : vector<128x128xf32>
    %143 = math.sqrt %142 : vector<128x128xf32>
    %c0_68 = arith.constant 0 : index
    %c0_69 = arith.constant 0 : index
    %c0_70 = arith.constant 0 : index
    %144 = vector.load %arg20[%c0_68, %c0_69, %c0_70] : memref<1x128x128xf32, #tpu.memory_space<vmem>>, vector<1x128x128xf32>
    %145 = vector.shape_cast %144 : vector<1x128x128xf32> to vector<128x128xf32>
    %146 = vector.shape_cast %143 : vector<128x128xf32> to vector<1x128x128xf32>
    tpu.vector_store %arg20[%c0_68, %c0_69, %c0_70], %146 {strides = array<i32>} : memref<1x128x128xf32, #tpu.memory_space<vmem>>, vector<1x128x128xf32>,
    return
  }
  func.func @transform_0(%arg0: i32) -> (i32, i32, i32) {
    %c0_i32 = arith.constant 0 : i32
    %c0_i32_0 = arith.constant 0 : i32
    %c0_i32_1 = arith.constant 0 : i32
    return %arg0, %c0_i32, %c0_i32_0 : i32, i32, i32
  }
  func.func @transform_1(%arg0: i32) -> (i32, i32, i32) {
    %c0_i32 = arith.constant 0 : i32
    %c0_i32_0 = arith.constant 0 : i32
    %c0_i32_1 = arith.constant 0 : i32
    return %arg0, %c0_i32, %c0_i32_0 : i32, i32, i32
  }
  func.func @transform_2(%arg0: i32) -> (i32, i32) {
    %c0_i32 = arith.constant 0 : i32
    %c0_i32_0 = arith.constant 0 : i32
    %c0_i32_1 = arith.constant 0 : i32
    return %c0_i32, %c0_i32_0 : i32, i32
  }
  func.func @transform_3(%arg0: i32) -> (i32, i32) {
    %c0_i32 = arith.constant 0 : i32
    %c0_i32_0 = arith.constant 0 : i32
    %c0_i32_1 = arith.constant 0 : i32
    return %c0_i32, %c0_i32_0 : i32, i32
  }
  func.func @transform_4(%arg0: i32) -> (i32, i32) {
    %c0_i32 = arith.constant 0 : i32
    %c0_i32_0 = arith.constant 0 : i32
    %c0_i32_1 = arith.constant 0 : i32
    return %c0_i32, %c0_i32_0 : i32, i32
  }
  func.func @transform_5(%arg0: i32) -> (i32, i32) {
    %c0_i32 = arith.constant 0 : i32
    %c0_i32_0 = arith.constant 0 : i32
    %c0_i32_1 = arith.constant 0 : i32
    return %c0_i32, %c0_i32_0 : i32, i32
  }
  func.func @transform_6(%arg0: i32) -> (i32, i32) {
    %c0_i32 = arith.constant 0 : i32
    %c0_i32_0 = arith.constant 0 : i32
    %c0_i32_1 = arith.constant 0 : i32
    return %c0_i32, %c0_i32_0 : i32, i32
  }
  func.func @transform_7(%arg0: i32) -> (i32, i32) {
    %c0_i32 = arith.constant 0 : i32
    %c0_i32_0 = arith.constant 0 : i32
    %c0_i32_1 = arith.constant 0 : i32
    return %c0_i32, %c0_i32_0 : i32, i32
  }
  func.func @transform_8(%arg0: i32) -> (i32, i32) {
    %c0_i32 = arith.constant 0 : i32
    %c0_i32_0 = arith.constant 0 : i32
    %c0_i32_1 = arith.constant 0 : i32
    return %c0_i32, %c0_i32_0 : i32, i32
  }
  func.func @transform_9(%arg0: i32) -> (i32, i32) {
    %c0_i32 = arith.constant 0 : i32
    %c0_i32_0 = arith.constant 0 : i32
    %c0_i32_1 = arith.constant 0 : i32
    return %c0_i32, %c0_i32_0 : i32, i32
  }
  func.func @transform_10(%arg0: i32) -> (i32, i32) {
    %c0_i32 = arith.constant 0 : i32
    %c0_i32_0 = arith.constant 0 : i32
    %c0_i32_1 = arith.constant 0 : i32
    return %c0_i32, %c0_i32_0 : i32, i32
  }
  func.func @transform_11(%arg0: i32) -> (i32, i32) {
    %c0_i32 = arith.constant 0 : i32
    %c0_i32_0 = arith.constant 0 : i32
    %c0_i32_1 = arith.constant 0 : i32
    return %c0_i32, %c0_i32_0 : i32, i32
  }
  func.func @transform_12(%arg0: i32) -> (i32, i32) {
    %c0_i32 = arith.constant 0 : i32
    %c0_i32_0 = arith.constant 0 : i32
    %c0_i32_1 = arith.constant 0 : i32
    return %c0_i32, %c0_i32_0 : i32, i32
  }
  func.func @transform_13(%arg0: i32) -> (i32, i32) {
    %c0_i32 = arith.constant 0 : i32
    %c0_i32_0 = arith.constant 0 : i32
    %c0_i32_1 = arith.constant 0 : i32
    return %c0_i32, %c0_i32_0 : i32, i32
  }
  func.func @transform_14(%arg0: i32) -> (i32, i32) {
    %c0_i32 = arith.constant 0 : i32
    %c0_i32_0 = arith.constant 0 : i32
    %c0_i32_1 = arith.constant 0 : i32
    return %c0_i32, %c0_i32_0 : i32, i32
  }
  func.func @transform_15(%arg0: i32) -> (i32, i32) {
    %c0_i32 = arith.constant 0 : i32
    %c0_i32_0 = arith.constant 0 : i32
    %c0_i32_1 = arith.constant 0 : i32
    return %c0_i32, %c0_i32_0 : i32, i32
  }
  func.func @transform_16(%arg0: i32) -> (i32, i32) {
    %c0_i32 = arith.constant 0 : i32
    %c0_i32_0 = arith.constant 0 : i32
    %c0_i32_1 = arith.constant 0 : i32
    return %c0_i32, %c0_i32_0 : i32, i32
  }
  func.func @transform_17(%arg0: i32) -> (i32, i32) {
    %c0_i32 = arith.constant 0 : i32
    %c0_i32_0 = arith.constant 0 : i32
    %c0_i32_1 = arith.constant 0 : i32
    return %c0_i32, %c0_i32_0 : i32, i32
  }
  func.func @transform_18(%arg0: i32) -> (i32, i32, i32) {
    %c2_i32 = arith.constant 2 : i32
    %0 = arith.addi %arg0, %c2_i32 : i32
    %c4_i32 = arith.constant 4 : i32
    %c0_i32 = arith.constant 0 : i32
    %1 = arith.cmpi eq, %c4_i32, %c0_i32 : i32
    %c1_i32 = arith.constant 1 : i32
    %2 = arith.select %1, %c1_i32, %c4_i32 : i32
    %3 = arith.remsi %0, %2 : i32
    %c0_i32_0 = arith.constant 0 : i32
    %4 = arith.cmpi ne, %3, %c0_i32_0 : i32
    %c0_i32_1 = arith.constant 0 : i32
    %5 = arith.cmpi slt, %3, %c0_i32_1 : i32
    %c0_i32_2 = arith.constant 0 : i32
    %6 = arith.cmpi slt, %2, %c0_i32_2 : i32
    %7 = arith.xori %5, %6 : i1
    %8 = arith.andi %7, %4 : i1
    %9 = arith.addi %3, %2 : i32
    %10 = arith.select %8, %9, %3 : i32
    %c0_i32_3 = arith.constant 0 : i32
    %c0_i32_4 = arith.constant 0 : i32
    %c0_i32_5 = arith.constant 0 : i32
    return %10, %c0_i32_3, %c0_i32_4 : i32, i32, i32
  }
  func.func @transform_19(%arg0: i32) -> (i32, i32, i32) {
    %c2_i32 = arith.constant 2 : i32
    %0 = arith.addi %arg0, %c2_i32 : i32
    %c4_i32 = arith.constant 4 : i32
    %c0_i32 = arith.constant 0 : i32
    %1 = arith.cmpi eq, %c4_i32, %c0_i32 : i32
    %c1_i32 = arith.constant 1 : i32
    %2 = arith.select %1, %c1_i32, %c4_i32 : i32
    %3 = arith.remsi %0, %2 : i32
    %c0_i32_0 = arith.constant 0 : i32
    %4 = arith.cmpi ne, %3, %c0_i32_0 : i32
    %c0_i32_1 = arith.constant 0 : i32
    %5 = arith.cmpi slt, %3, %c0_i32_1 : i32
    %c0_i32_2 = arith.constant 0 : i32
    %6 = arith.cmpi slt, %2, %c0_i32_2 : i32
    %7 = arith.xori %5, %6 : i1
    %8 = arith.andi %7, %4 : i1
    %9 = arith.addi %3, %2 : i32
    %10 = arith.select %8, %9, %3 : i32
    %c0_i32_3 = arith.constant 0 : i32
    %c0_i32_4 = arith.constant 0 : i32
    %c0_i32_5 = arith.constant 0 : i32
    return %10, %c0_i32_3, %c0_i32_4 : i32, i32, i32
  }
}

</mosaic_0001>

<llo_original>
// kernel: _lambda_.1
$region0: #{_lambda_.1}
  #allocation0 [shape = 'u32[]', space=smem, size = 0x4, offset = 0x4, fixed_abs, tag = 'smem constant byte address 0x4 - core index']
  #allocation1 [shape = 'u32[72,128]{1,0:T(1,128)}', space=vmem, size = 0x9000, scoped, tag = 'internal scratch']
  %s0 = inlined_call_operand.hbm [shape: f32[4,128,128], index: 0, kind: input, shape index: {}]
  %s1 = inlined_call_operand.hbm [shape: f32[4,128,128], index: 1, kind: input, shape index: {}]
  %s2 = inlined_call_operand.hbm [shape: f32[128,128], index: 2, kind: input, shape index: {}]
  %s3 = inlined_call_operand.hbm [shape: f32[128,128], index: 3, kind: input, shape index: {}]
  %s4 = inlined_call_operand.hbm [shape: f32[128,128], index: 4, kind: input, shape index: {}]
  %s5 = inlined_call_operand.hbm [shape: f32[128,128], index: 5, kind: input, shape index: {}]
  %s6 = inlined_call_operand.hbm [shape: bf16[128,128], index: 6, kind: input, shape index: {}]
  %s7 = inlined_call_operand.hbm [shape: bf16[128,128], index: 7, kind: input, shape index: {}]
  %s8 = inlined_call_operand.hbm [shape: bf16[128,128], index: 8, kind: input, shape index: {}]
  %s9 = inlined_call_operand.hbm [shape: bf16[128,128], index: 9, kind: input, shape index: {}]
  %s10 = inlined_call_operand.hbm [shape: bf16[128,128], index: 10, kind: input, shape index: {}]
  %s11 = inlined_call_operand.hbm [shape: bf16[128,128], index: 11, kind: input, shape index: {}]
  %s12 = inlined_call_operand.hbm [shape: bf16[128,128], index: 12, kind: input, shape index: {}, may-alias: {12,15}]
  %s13 = inlined_call_operand.hbm [shape: bf16[128,128], index: 13, kind: input, shape index: {}, may-alias: {13,16}]
  %s14 = inlined_call_operand.hbm [shape: bf16[128,128], index: 14, kind: input, shape index: {}, may-alias: {14,17}]
  %s15 = inlined_call_operand.hbm [shape: bf16[128,128], index: 15, kind: input, shape index: {}, may-alias: {12,15}]
  %s16 = inlined_call_operand.hbm [shape: bf16[128,128], index: 16, kind: input, shape index: {}, may-alias: {13,16}]
  %s17 = inlined_call_operand.hbm [shape: bf16[128,128], index: 17, kind: input, shape index: {}, may-alias: {14,17}]
  %s18 = inlined_call_operand.hbm [shape: f32[4,128,128], index: 18, kind: output, shape index: {0}]
  %s19 = inlined_call_operand.hbm [shape: f32[4,128,128], index: 19, kind: output, shape index: {1}]
  %20 = xla_tuple %s18, %s19
  %s21 = sld [smem:[#allocation0]]
  $region185: #{_lambda_.1} parent=0
    _
  %s23 = ssub.s32 1, %s21
  %s24 = scalar_select 0, %s23, %s21
  $region1: #{_lambda_.1} parent=0
    #allocation2 [shape = 'u8[131072]{0}', space=vmem, size = 0x20000, scoped, tag = 'input window, operand 0']
    #allocation3 [shape = 's32[2]{0}', space=sflag, size = 0x8, scoped, tag = 'scoped memory for _lambda_.1']
    #allocation4 [shape = 's32[2]{0}', space=sflag, size = 0x8, scoped, tag = 'scoped memory for _lambda_.1']
    #allocation5 [shape = 'u8[131072]{0}', space=vmem, size = 0x20000, scoped, tag = 'input window, operand 1']
    #allocation6 [shape = 's32[2]{0}', space=sflag, size = 0x8, scoped, tag = 'scoped memory for _lambda_.1']
    #allocation7 [shape = 'u8[65536]{0}', space=vmem, size = 0x10000, scoped, tag = 'input window, operand 2, single buffered']
    #allocation8 [shape = 'u8[65536]{0}', space=vmem, size = 0x10000, scoped, tag = 'input window, operand 3, single buffered']
    #allocation9 [shape = 's32[1]{0}', space=sflag, size = 0x4, scoped, tag = 'scoped memory for _lambda_.1']
    #allocation10 [shape = 'u8[65536]{0}', space=vmem, size = 0x10000, scoped, tag = 'input window, operand 4, single buffered']
    #allocation11 [shape = 'u8[65536]{0}', space=vmem, size = 0x10000, scoped, tag = 'input window, operand 5, single buffered']
    #allocation12 [shape = 's32[1]{0}', space=sflag, size = 0x4, scoped, tag = 'scoped memory for _lambda_.1']
    #allocation13 [shape = 'u8[32768]{0}', space=vmem, size = 0x8000, scoped, tag = 'input window, operand 6, single buffered']
    #allocation14 [shape = 'u8[32768]{0}', space=vmem, size = 0x8000, scoped, tag = 'input window, operand 7, single buffered']
    #allocation15 [shape = 's32[1]{0}', space=sflag, size = 0x4, scoped, tag = 'scoped memory for _lambda_.1']
    #allocation16 [shape = 'u8[32768]{0}', space=vmem, size = 0x8000, scoped, tag = 'input window, operand 8, single buffered']
    #allocation17 [shape = 'u8[32768]{0}', space=vmem, size = 0x8000, scoped, tag = 'input window, operand 9, single buffered']
    #allocation18 [shape = 's32[1]{0}', space=sflag, size = 0x4, scoped, tag = 'scoped memory for _lambda_.1']
    #allocation19 [shape = 'u8[32768]{0}', space=vmem, size = 0x8000, scoped, tag = 'input window, operand 10, single buffered']
    #allocation20 [shape = 'u8[32768]{0}', space=vmem, size = 0x8000, scoped, tag = 'input window, operand 11, single buffered']
    #allocation21 [shape = 's32[1]{0}', space=sflag, size = 0x4, scoped, tag = 'scoped memory for _lambda_.1']
    #allocation22 [shape = 'u8[32768]{0}', space=vmem, size = 0x8000, scoped, tag = 'input window, operand 12, single buffered']
    #allocation23 [shape = 'u8[32768]{0}', space=vmem, size = 0x8000, scoped, tag = 'input window, operand 13, single buffered']
    #allocation24 [shape = 's32[1]{0}', space=sflag, size = 0x4, scoped, tag = 'scoped memory for _lambda_.1']
    #allocation25 [shape = 'u8[32768]{0}', space=vmem, size = 0x8000, scoped, tag = 'input window, operand 14, single buffered']
    #allocation26 [shape = 'u8[32768]{0}', space=vmem, size = 0x8000, scoped, tag = 'input window, operand 15, single buffered']
    #allocation27 [shape = 's32[1]{0}', space=sflag, size = 0x4, scoped, tag = 'scoped memory for _lambda_.1']
    #allocation28 [shape = 'u8[32768]{0}', space=vmem, size = 0x8000, scoped, tag = 'input window, operand 16, single buffered']
    #allocation29 [shape = 'u8[32768]{0}', space=vmem, size = 0x8000, scoped, tag = 'input window, operand 17, single buffered']
    #allocation30 [shape = 's32[1]{0}', space=sflag, size = 0x4, scoped, tag = 'scoped memory for _lambda_.1']
    #allocation31 [shape = 'u8[131072]{0}', space=vmem, size = 0x20000, scoped, tag = 'output window, operand 0']
    #allocation32 [shape = 'u8[131072]{0}', space=vmem, size = 0x20000, scoped, tag = 'output window, operand 1']
    #allocation33 [shape = 's32[2]{0}', space=sflag, size = 0x8, scoped, tag = 'scoped memory for _lambda_.1']
    %25 = vsyncpa [#allocation3], 0
    %s26 = scalar_lea.sflag [#allocation3], 1
    %27 = vsyncpa %s26, 0
    %28 = vsyncpa [#allocation6], 0
    %s29 = scalar_lea.sflag [#allocation6], 1
    %30 = vsyncpa %s29, 0
    %31 = vsyncpa [#allocation9], 0
    %32 = vsyncpa [#allocation12], 0
    %33 = vsyncpa [#allocation15], 0
    %34 = vsyncpa [#allocation18], 0
    %35 = vsyncpa [#allocation21], 0
    %36 = vsyncpa [#allocation24], 0
    %37 = vsyncpa [#allocation27], 0
    %38 = vsyncpa [#allocation30], 0
    %39 = vsyncpa [#allocation4], 0
    %s40 = scalar_lea.sflag [#allocation4], 1
    %41 = vsyncpa %s40, 0
    %42 = vsyncpa [#allocation33], 0
    %s43 = scalar_lea.sflag [#allocation33], 1
    %44 = vsyncpa %s43, 0
    loop: start=0, step=1, limit=6
    $region2: #{_lambda_.1} parent=1 // loop_pre_header
      _
    $region3: #{_lambda_.1} parent=1 // loop_header
      %s46 = sphi 0, %s50
      %p47 = scmp.ge.s32.totalorder %s46, 6
      %s56 = sphi 0, %s58
      %s59 = sphi 0, %s56
      %s60 = sphi 0, %s59
      %s76 = sphi 0, %s60
      %s82 = sphi 0, %s84
      %s85 = sphi 0, %s82
      %s86 = sphi 0, %s85
      %s102 = sphi 0, %s86
      %s106 = sphi 0, %s106
      %s108 = sphi 0, %s106
      %s109 = sphi 0, %s108
      %s123 = sphi 0, %s109
      %s127 = sphi 0, %s127
      %s129 = sphi 0, %s127
      %s130 = sphi 0, %s129
      %s144 = sphi 0, %s130
      %s148 = sphi 0, %s148
      %s150 = sphi 0, %s148
      %s151 = sphi 0, %s150
      %s165 = sphi 0, %s151
      %s169 = sphi 0, %s169
      %s171 = sphi 0, %s169
      %s172 = sphi 0, %s171
      %s186 = sphi 0, %s172
      %s190 = sphi 0, %s190
      %s192 = sphi 0, %s190
      %s193 = sphi 0, %s192
      %s207 = sphi 0, %s193
      %s211 = sphi 0, %s211
      %s213 = sphi 0, %s211
      %s214 = sphi 0, %s213
      %s228 = sphi 0, %s214
      %s232 = sphi 0, %s232
      %s234 = sphi 0, %s232
      %s235 = sphi 0, %s234
      %s249 = sphi 0, %s235
      %s253 = sphi 0, %s253
      %s255 = sphi 0, %s253
      %s256 = sphi 0, %s255
      %s270 = sphi 0, %s256
      %s274 = sphi 0, %s274
      %s276 = sphi 0, %s274
      %s277 = sphi 0, %s276
      %s291 = sphi 0, %s277
      %s295 = sphi 0, %s295
      %s297 = sphi 0, %s295
      %s298 = sphi 0, %s297
      %s312 = sphi 0, %s298
      %s316 = sphi 0, %s316
      %s318 = sphi 0, %s316
      %s319 = sphi 0, %s318
      %s333 = sphi 0, %s319
      %s337 = sphi 0, %s337
      %s339 = sphi 0, %s337
      %s340 = sphi 0, %s339
      %s354 = sphi 0, %s340
      %s358 = sphi 0, %s358
      %s360 = sphi 0, %s358
      %s361 = sphi 0, %s360
      %s375 = sphi 0, %s361
      %s379 = sphi 0, %s379
      %s381 = sphi 0, %s379
      %s382 = sphi 0, %s381
      %s396 = sphi 0, %s382
      %s400 = sphi 0, %s400
      %s402 = sphi 0, %s400
      %s403 = sphi 0, %s402
      %s417 = sphi 0, %s403
      %s421 = sphi 0, %s421
      %s423 = sphi 0, %s421
      %s424 = sphi 0, %s423
      %s438 = sphi 0, %s424
      %s470 = sphi 0, %s472
      %s473 = sphi 0, %s470
      %s474 = sphi 0, %s473
      %s490 = sphi 0, %s474
      %s522 = sphi 0, %s524
      %s525 = sphi 0, %s522
      %s526 = sphi 0, %s525
      %s542 = sphi 0, %s526
    $region4: #{_lambda_.1} parent=1 // loop_header_branch
      %49 = sbr.rel (%p47) target = $region8
    $region5: #{_lambda_.1} parent=1 // loop_body
      %s51 = ssub.s32 %s46, 1
      %s52 = ssub.s32 %s46, 2
      %s53 = sadd.s32 %s46, 1
      %s54 = ssub.s32 %s46, %s53
      %p55 = scmp.eq.s32.totalorder %s54, 0
      %s57 = sadd.s32 %s56, 1
      %s58 = scalar_select %p55, %s56, %s57
      %p61 = pneg %p55
      %p62 = scmp.eq.s32.totalorder %s46, 3
      %p63 = por %p61, %p62
      %p64 = scmp.ne.s32.totalorder %s56, %s59
      %p65 = scmp.eq.s32.totalorder %s46, 0
      %p66 = por %p64, %p65
      %p67 = scmp.ne.s32.totalorder %s56, %s59
      %p68 = scmp.eq.s32.totalorder %s51, 3
      %p69 = por %p67, %p68
      %p70 = scmp.ne.s32.totalorder %s59, %s60
      %p71 = scmp.eq.s32.totalorder %s51, 0
      %p72 = por %p70, %p71
      %p73 = scmp.ne.s32.totalorder %s59, %s60
      %p74 = scmp.eq.s32.totalorder %s52, 3
      %p75 = por %p73, %p74
      %p77 = scmp.ne.s32.totalorder %s60, %s76
      %p78 = scmp.eq.s32.totalorder %s52, 0
      %p79 = por %p77, %p78
      %s80 = ssub.s32 %s46, %s53
      %p81 = scmp.eq.s32.totalorder %s80, 0
      %s83 = sadd.s32 %s82, 1
      %s84 = scalar_select %p81, %s82, %s83
      %p87 = pneg %p81
      %p88 = scmp.eq.s32.totalorder %s46, 3
      %p89 = por %p87, %p88
      %p90 = scmp.ne.s32.totalorder %s82, %s85
      %p91 = scmp.eq.s32.totalorder %s46, 0
      %p92 = por %p90, %p91
      %p93 = scmp.ne.s32.totalorder %s82, %s85
      %p94 = scmp.eq.s32.totalorder %s51, 3
      %p95 = por %p93, %p94
      %p96 = scmp.ne.s32.totalorder %s85, %s86
      %p97 = scmp.eq.s32.totalorder %s51, 0
      %p98 = por %p96, %p97
      %p99 = scmp.ne.s32.totalorder %s85, %s86
      %p100 = scmp.eq.s32.totalorder %s52, 3
      %p101 = por %p99, %p100
      %p103 = scmp.ne.s32.totalorder %s86, %s102
      %p104 = scmp.eq.s32.totalorder %s52, 0
      %p105 = por %p103, %p104
      %s107 = sadd.s32 %s106, 1
      %p110 = scmp.eq.s32.totalorder %s46, 3
      %p111 = scmp.ne.s32.totalorder %s106, %s108
      %p112 = scmp.eq.s32.totalorder %s46, 0
      %p113 = por %p111, %p112
      %p114 = scmp.ne.s32.totalorder %s106, %s108
      %p115 = scmp.eq.s32.totalorder %s51, 3
      %p116 = por %p114, %p115
      %p117 = scmp.ne.s32.totalorder %s108, %s109
      %p118 = scmp.eq.s32.totalorder %s51, 0
      %p119 = por %p117, %p118
      %p120 = scmp.ne.s32.totalorder %s108, %s109
      %p121 = scmp.eq.s32.totalorder %s52, 3
      %p122 = por %p120, %p121
      %p124 = scmp.ne.s32.totalorder %s109, %s123
      %p125 = scmp.eq.s32.totalorder %s52, 0
      %p126 = por %p124, %p125
      %s128 = sadd.s32 %s127, 1
      %p131 = scmp.eq.s32.totalorder %s46, 3
      %p132 = scmp.ne.s32.totalorder %s127, %s129
      %p133 = scmp.eq.s32.totalorder %s46, 0
      %p134 = por %p132, %p133
      %p135 = scmp.ne.s32.totalorder %s127, %s129
      %p136 = scmp.eq.s32.totalorder %s51, 3
      %p137 = por %p135, %p136
      %p138 = scmp.ne.s32.totalorder %s129, %s130
      %p139 = scmp.eq.s32.totalorder %s51, 0
      %p140 = por %p138, %p139
      %p141 = scmp.ne.s32.totalorder %s129, %s130
      %p142 = scmp.eq.s32.totalorder %s52, 3
      %p143 = por %p141, %p142
      %p145 = scmp.ne.s32.totalorder %s130, %s144
      %p146 = scmp.eq.s32.totalorder %s52, 0
      %p147 = por %p145, %p146
      %s149 = sadd.s32 %s148, 1
      %p152 = scmp.eq.s32.totalorder %s46, 3
      %p153 = scmp.ne.s32.totalorder %s148, %s150
      %p154 = scmp.eq.s32.totalorder %s46, 0
      %p155 = por %p153, %p154
      %p156 = scmp.ne.s32.totalorder %s148, %s150
      %p157 = scmp.eq.s32.totalorder %s51, 3
      %p158 = por %p156, %p157
      %p159 = scmp.ne.s32.totalorder %s150, %s151
      %p160 = scmp.eq.s32.totalorder %s51, 0
      %p161 = por %p159, %p160
      %p162 = scmp.ne.s32.totalorder %s150, %s151
      %p163 = scmp.eq.s32.totalorder %s52, 3
      %p164 = por %p162, %p163
      %p166 = scmp.ne.s32.totalorder %s151, %s165
      %p167 = scmp.eq.s32.totalorder %s52, 0
      %p168 = por %p166, %p167
      %s170 = sadd.s32 %s169, 1
      %p173 = scmp.eq.s32.totalorder %s46, 3
      %p174 = scmp.ne.s32.totalorder %s169, %s171
      %p175 = scmp.eq.s32.totalorder %s46, 0
      %p176 = por %p174, %p175
      %p177 = scmp.ne.s32.totalorder %s169, %s171
      %p178 = scmp.eq.s32.totalorder %s51, 3
      %p179 = por %p177, %p178
      %p180 = scmp.ne.s32.totalorder %s171, %s172
      %p181 = scmp.eq.s32.totalorder %s51, 0
      %p182 = por %p180, %p181
      %p183 = scmp.ne.s32.totalorder %s171, %s172
      %p184 = scmp.eq.s32.totalorder %s52, 3
      %p185 = por %p183, %p184
      %p187 = scmp.ne.s32.totalorder %s172, %s186
      %p188 = scmp.eq.s32.totalorder %s52, 0
      %p189 = por %p187, %p188
      %s191 = sadd.s32 %s190, 1
      %p194 = scmp.eq.s32.totalorder %s46, 3
      %p195 = scmp.ne.s32.totalorder %s190, %s192
      %p196 = scmp.eq.s32.totalorder %s46, 0
      %p197 = por %p195, %p196
      %p198 = scmp.ne.s32.totalorder %s190, %s192
      %p199 = scmp.eq.s32.totalorder %s51, 3
      %p200 = por %p198, %p199
      %p201 = scmp.ne.s32.totalorder %s192, %s193
      %p202 = scmp.eq.s32.totalorder %s51, 0
      %p203 = por %p201, %p202
      %p204 = scmp.ne.s32.totalorder %s192, %s193
      %p205 = scmp.eq.s32.totalorder %s52, 3
      %p206 = por %p204, %p205
      %p208 = scmp.ne.s32.totalorder %s193, %s207
      %p209 = scmp.eq.s32.totalorder %s52, 0
      %p210 = por %p208, %p209
      %s212 = sadd.s32 %s211, 1
      %p215 = scmp.eq.s32.totalorder %s46, 3
      %p216 = scmp.ne.s32.totalorder %s211, %s213
      %p217 = scmp.eq.s32.totalorder %s46, 0
      %p218 = por %p216, %p217
      %p219 = scmp.ne.s32.totalorder %s211, %s213
      %p220 = scmp.eq.s32.totalorder %s51, 3
      %p221 = por %p219, %p220
      %p222 = scmp.ne.s32.totalorder %s213, %s214
      %p223 = scmp.eq.s32.totalorder %s51, 0
      %p224 = por %p222, %p223
      %p225 = scmp.ne.s32.totalorder %s213, %s214
      %p226 = scmp.eq.s32.totalorder %s52, 3
      %p227 = por %p225, %p226
      %p229 = scmp.ne.s32.totalorder %s214, %s228
      %p230 = scmp.eq.s32.totalorder %s52, 0
      %p231 = por %p229, %p230
      %s233 = sadd.s32 %s232, 1
      %p236 = scmp.eq.s32.totalorder %s46, 3
      %p237 = scmp.ne.s32.totalorder %s232, %s234
      %p238 = scmp.eq.s32.totalorder %s46, 0
      %p239 = por %p237, %p238
      %p240 = scmp.ne.s32.totalorder %s232, %s234
      %p241 = scmp.eq.s32.totalorder %s51, 3
      %p242 = por %p240, %p241
      %p243 = scmp.ne.s32.totalorder %s234, %s235
      %p244 = scmp.eq.s32.totalorder %s51, 0
      %p245 = por %p243, %p244
      %p246 = scmp.ne.s32.totalorder %s234, %s235
      %p247 = scmp.eq.s32.totalorder %s52, 3
      %p248 = por %p246, %p247
      %p250 = scmp.ne.s32.totalorder %s235, %s249
      %p251 = scmp.eq.s32.totalorder %s52, 0
      %p252 = por %p250, %p251
      %s254 = sadd.s32 %s253, 1
      %p257 = scmp.eq.s32.totalorder %s46, 3
      %p258 = scmp.ne.s32.totalorder %s253, %s255
      %p259 = scmp.eq.s32.totalorder %s46, 0
      %p260 = por %p258, %p259
      %p261 = scmp.ne.s32.totalorder %s253, %s255
      %p262 = scmp.eq.s32.totalorder %s51, 3
      %p263 = por %p261, %p262
      %p264 = scmp.ne.s32.totalorder %s255, %s256
      %p265 = scmp.eq.s32.totalorder %s51, 0
      %p266 = por %p264, %p265
      %p267 = scmp.ne.s32.totalorder %s255, %s256
      %p268 = scmp.eq.s32.totalorder %s52, 3
      %p269 = por %p267, %p268
      %p271 = scmp.ne.s32.totalorder %s256, %s270
      %p272 = scmp.eq.s32.totalorder %s52, 0
      %p273 = por %p271, %p272
      %s275 = sadd.s32 %s274, 1
      %p278 = scmp.eq.s32.totalorder %s46, 3
      %p279 = scmp.ne.s32.totalorder %s274, %s276
      %p280 = scmp.eq.s32.totalorder %s46, 0
      %p281 = por %p279, %p280
      %p282 = scmp.ne.s32.totalorder %s274, %s276
      %p283 = scmp.eq.s32.totalorder %s51, 3
      %p284 = por %p282, %p283
      %p285 = scmp.ne.s32.totalorder %s276, %s277
      %p286 = scmp.eq.s32.totalorder %s51, 0
      %p287 = por %p285, %p286
      %p288 = scmp.ne.s32.totalorder %s276, %s277
      %p289 = scmp.eq.s32.totalorder %s52, 3
      %p290 = por %p288, %p289
      %p292 = scmp.ne.s32.totalorder %s277, %s291
      %p293 = scmp.eq.s32.totalorder %s52, 0
      %p294 = por %p292, %p293
      %s296 = sadd.s32 %s295, 1
      %p299 = scmp.eq.s32.totalorder %s46, 3
      %p300 = scmp.ne.s32.totalorder %s295, %s297
      %p301 = scmp.eq.s32.totalorder %s46, 0
      %p302 = por %p300, %p301
      %p303 = scmp.ne.s32.totalorder %s295, %s297
      %p304 = scmp.eq.s32.totalorder %s51, 3
      %p305 = por %p303, %p304
      %p306 = scmp.ne.s32.totalorder %s297, %s298
      %p307 = scmp.eq.s32.totalorder %s51, 0
      %p308 = por %p306, %p307
      %p309 = scmp.ne.s32.totalorder %s297, %s298
      %p310 = scmp.eq.s32.totalorder %s52, 3
      %p311 = por %p309, %p310
      %p313 = scmp.ne.s32.totalorder %s298, %s312
      %p314 = scmp.eq.s32.totalorder %s52, 0
      %p315 = por %p313, %p314
      %s317 = sadd.s32 %s316, 1
      %p320 = scmp.eq.s32.totalorder %s46, 3
      %p321 = scmp.ne.s32.totalorder %s316, %s318
      %p322 = scmp.eq.s32.totalorder %s46, 0
      %p323 = por %p321, %p322
      %p324 = scmp.ne.s32.totalorder %s316, %s318
      %p325 = scmp.eq.s32.totalorder %s51, 3
      %p326 = por %p324, %p325
      %p327 = scmp.ne.s32.totalorder %s318, %s319
      %p328 = scmp.eq.s32.totalorder %s51, 0
      %p329 = por %p327, %p328
      %p330 = scmp.ne.s32.totalorder %s318, %s319
      %p331 = scmp.eq.s32.totalorder %s52, 3
      %p332 = por %p330, %p331
      %p334 = scmp.ne.s32.totalorder %s319, %s333
      %p335 = scmp.eq.s32.totalorder %s52, 0
      %p336 = por %p334, %p335
      %s338 = sadd.s32 %s337, 1
      %p341 = scmp.eq.s32.totalorder %s46, 3
      %p342 = scmp.ne.s32.totalorder %s337, %s339
      %p343 = scmp.eq.s32.totalorder %s46, 0
      %p344 = por %p342, %p343
      %p345 = scmp.ne.s32.totalorder %s337, %s339
      %p346 = scmp.eq.s32.totalorder %s51, 3
      %p347 = por %p345, %p346
      %p348 = scmp.ne.s32.totalorder %s339, %s340
      %p349 = scmp.eq.s32.totalorder %s51, 0
      %p350 = por %p348, %p349
      %p351 = scmp.ne.s32.totalorder %s339, %s340
      %p352 = scmp.eq.s32.totalorder %s52, 3
      %p353 = por %p351, %p352
      %p355 = scmp.ne.s32.totalorder %s340, %s354
      %p356 = scmp.eq.s32.totalorder %s52, 0
      %p357 = por %p355, %p356
      %s359 = sadd.s32 %s358, 1
      %p362 = scmp.eq.s32.totalorder %s46, 3
      %p363 = scmp.ne.s32.totalorder %s358, %s360
      %p364 = scmp.eq.s32.totalorder %s46, 0
      %p365 = por %p363, %p364
      %p366 = scmp.ne.s32.totalorder %s358, %s360
      %p367 = scmp.eq.s32.totalorder %s51, 3
      %p368 = por %p366, %p367
      %p369 = scmp.ne.s32.totalorder %s360, %s361
      %p370 = scmp.eq.s32.totalorder %s51, 0
      %p371 = por %p369, %p370
      %p372 = scmp.ne.s32.totalorder %s360, %s361
      %p373 = scmp.eq.s32.totalorder %s52, 3
      %p374 = por %p372, %p373
      %p376 = scmp.ne.s32.totalorder %s361, %s375
      %p377 = scmp.eq.s32.totalorder %s52, 0
      %p378 = por %p376, %p377
      %s380 = sadd.s32 %s379, 1
      %p383 = scmp.eq.s32.totalorder %s46, 3
      %p384 = scmp.ne.s32.totalorder %s379, %s381
      %p385 = scmp.eq.s32.totalorder %s46, 0
      %p386 = por %p384, %p385
      %p387 = scmp.ne.s32.totalorder %s379, %s381
      %p388 = scmp.eq.s32.totalorder %s51, 3
      %p389 = por %p387, %p388
      %p390 = scmp.ne.s32.totalorder %s381, %s382
      %p391 = scmp.eq.s32.totalorder %s51, 0
      %p392 = por %p390, %p391
      %p393 = scmp.ne.s32.totalorder %s381, %s382
      %p394 = scmp.eq.s32.totalorder %s52, 3
      %p395 = por %p393, %p394
      %p397 = scmp.ne.s32.totalorder %s382, %s396
      %p398 = scmp.eq.s32.totalorder %s52, 0
      %p399 = por %p397, %p398
      %s401 = sadd.s32 %s400, 1
      %p404 = scmp.eq.s32.totalorder %s46, 3
      %p405 = scmp.ne.s32.totalorder %s400, %s402
      %p406 = scmp.eq.s32.totalorder %s46, 0
      %p407 = por %p405, %p406
      %p408 = scmp.ne.s32.totalorder %s400, %s402
      %p409 = scmp.eq.s32.totalorder %s51, 3
      %p410 = por %p408, %p409
      %p411 = scmp.ne.s32.totalorder %s402, %s403
      %p412 = scmp.eq.s32.totalorder %s51, 0
      %p413 = por %p411, %p412
      %p414 = scmp.ne.s32.totalorder %s402, %s403
      %p415 = scmp.eq.s32.totalorder %s52, 3
      %p416 = por %p414, %p415
      %p418 = scmp.ne.s32.totalorder %s403, %s417
      %p419 = scmp.eq.s32.totalorder %s52, 0
      %p420 = por %p418, %p419
      %s422 = sadd.s32 %s421, 1
      %p425 = scmp.eq.s32.totalorder %s46, 3
      %p426 = scmp.ne.s32.totalorder %s421, %s423
      %p427 = scmp.eq.s32.totalorder %s46, 0
      %p428 = por %p426, %p427
      %p429 = scmp.ne.s32.totalorder %s421, %s423
      %p430 = scmp.eq.s32.totalorder %s51, 3
      %p431 = por %p429, %p430
      %p432 = scmp.ne.s32.totalorder %s423, %s424
      %p433 = scmp.eq.s32.totalorder %s51, 0
      %p434 = por %p432, %p433
      %p435 = scmp.ne.s32.totalorder %s423, %s424
      %p436 = scmp.eq.s32.totalorder %s52, 3
      %p437 = por %p435, %p436
      %p439 = scmp.ne.s32.totalorder %s424, %s438
      %p440 = scmp.eq.s32.totalorder %s52, 0
      %p441 = por %p439, %p440
      %s442 = sadd.s32 %s46, 2
      %p443 = scmp.lt.s32.totalorder %s442, 0
      %s444 = ssub.s32 0, %s442
      %s445 = scalar_select %p443, %s444, %s442
      %s446 = sand.u32 %s445, 3
      %s447 = ssub.s32 0, %s446
      %s448 = scalar_select %p443, %s447, %s446
      %p449 = scmp.ne.s32.totalorder %s448, 0
      %p450 = scmp.lt.s32.totalorder %s448, 0
      %p451 = pnand %p450, %p449
      %p452 = pneg %p451
      %s453 = sadd.s32 %s448, 4
      %s454 = scalar_select %p452, %s453, %s448
      %s455 = sadd.s32 %s53, 2
      %p456 = scmp.lt.s32.totalorder %s455, 0
      %s457 = ssub.s32 0, %s455
      %s458 = scalar_select %p456, %s457, %s455
      %s459 = sand.u32 %s458, 3
      %s460 = ssub.s32 0, %s459
      %s461 = scalar_select %p456, %s460, %s459
      %p462 = scmp.ne.s32.totalorder %s461, 0
      %p463 = scmp.lt.s32.totalorder %s461, 0
      %p464 = pnand %p463, %p462
      %p465 = pneg %p464
      %s466 = sadd.s32 %s461, 4
      %s467 = scalar_select %p465, %s466, %s461
      %s468 = ssub.s32 %s454, %s467
      %p469 = scmp.eq.s32.totalorder %s468, 0
      %s471 = sadd.s32 %s470, 1
      %s472 = scalar_select %p469, %s470, %s471
      %p475 = pneg %p469
      %p476 = scmp.eq.s32.totalorder %s46, 3
      %p477 = por %p475, %p476
      %p478 = scmp.ne.s32.totalorder %s470, %s473
      %p479 = scmp.eq.s32.totalorder %s46, 0
      %p480 = por %p478, %p479
      %p481 = scmp.ne.s32.totalorder %s470, %s473
      %p482 = scmp.eq.s32.totalorder %s51, 3
      %p483 = por %p481, %p482
      %p484 = scmp.ne.s32.totalorder %s473, %s474
      %p485 = scmp.eq.s32.totalorder %s51, 0
      %p486 = por %p484, %p485
      %p487 = scmp.ne.s32.totalorder %s473, %s474
      %p488 = scmp.eq.s32.totalorder %s52, 3
      %p489 = por %p487, %p488
      %p491 = scmp.ne.s32.totalorder %s474, %s490
      %p492 = scmp.eq.s32.totalorder %s52, 0
      %p493 = por %p491, %p492
      %s494 = sadd.s32 %s46, 2
      %p495 = scmp.lt.s32.totalorder %s494, 0
      %s496 = ssub.s32 0, %s494
      %s497 = scalar_select %p495, %s496, %s494
      %s498 = sand.u32 %s497, 3
      %s499 = ssub.s32 0, %s498
      %s500 = scalar_select %p495, %s499, %s498
      %p501 = scmp.ne.s32.totalorder %s500, 0
      %p502 = scmp.lt.s32.totalorder %s500, 0
      %p503 = pnand %p502, %p501
      %p504 = pneg %p503
      %s505 = sadd.s32 %s500, 4
      %s506 = scalar_select %p504, %s505, %s500
      %s507 = sadd.s32 %s53, 2
      %p508 = scmp.lt.s32.totalorder %s507, 0
      %s509 = ssub.s32 0, %s507
      %s510 = scalar_select %p508, %s509, %s507
      %s511 = sand.u32 %s510, 3
      %s512 = ssub.s32 0, %s511
      %s513 = scalar_select %p508, %s512, %s511
      %p514 = scmp.ne.s32.totalorder %s513, 0
      %p515 = scmp.lt.s32.totalorder %s513, 0
      %p516 = pnand %p515, %p514
      %p517 = pneg %p516
      %s518 = sadd.s32 %s513, 4
      %s519 = scalar_select %p517, %s518, %s513
      %s520 = ssub.s32 %s506, %s519
      %p521 = scmp.eq.s32.totalorder %s520, 0
      %s523 = sadd.s32 %s522, 1
      %s524 = scalar_select %p521, %s522, %s523
      %p527 = pneg %p521
      %p528 = scmp.eq.s32.totalorder %s46, 3
      %p529 = por %p527, %p528
      %p530 = scmp.ne.s32.totalorder %s522, %s525
      %p531 = scmp.eq.s32.totalorder %s46, 0
      %p532 = por %p530, %p531
      %p533 = scmp.ne.s32.totalorder %s522, %s525
      %p534 = scmp.eq.s32.totalorder %s51, 3
      %p535 = por %p533, %p534
      %p536 = scmp.ne.s32.totalorder %s525, %s526
      %p537 = scmp.eq.s32.totalorder %s51, 0
      %p538 = por %p536, %p537
      %p539 = scmp.ne.s32.totalorder %s525, %s526
      %p540 = scmp.eq.s32.totalorder %s52, 3
      %p541 = por %p539, %p540
      %p543 = scmp.ne.s32.totalorder %s526, %s542
      %p544 = scmp.eq.s32.totalorder %s52, 0
      %p545 = por %p543, %p544
      %p546 = scmp.le.s32.totalorder 1, %s46
      %p547 = scmp.lt.s32.totalorder %s46, 5
      %p548 = pnand %p546, %p547
      %p549 = pneg %p548
      // Predicated region
      $region9: #{_lambda_.1} parent=5 // pred_check
        _
      $region10: #{_lambda_.1} parent=5 // pred_check_branch
        %551 = sbr.rel (%p548) target = $region12
      $region11: #{_lambda_.1} parent=5 // pred_region
        %s552 = ssub.s32 %s46, 1
        // Predicated region
        $region13: #{_lambda_.1} parent=11 // pred_check
          %p553 = pneg %p119
        $region14: #{_lambda_.1} parent=11 // pred_check_branch
          %555 = sbr.rel (%p553) target = $region16
        $region15: #{_lambda_.1} parent=11 // pred_region
          %557 = vsyncadd [#allocation6], 0
          %s558 = sshll.u32 %s2, 4
          %s559 = int_to_ptr.hbm [resolvable:$true] %s558
          %s560 = sshll.u32 [#allocation7], 4
          %s561 = int_to_ptr.vmem [resolvable:$true] %s560
          %566 = dma.hbm_to_vmem [thread:$0]  %s559, 2048, %s561, [#allocation6], 128, 128, 8
        $region16: #{_lambda_.1} parent=11 // pred_fallthru
          _
        // Predicated region
        $region17: #{_lambda_.1} parent=11 // pred_check
          %p567 = pneg %p140
        $region18: #{_lambda_.1} parent=11 // pred_check_branch
          %569 = sbr.rel (%p567) target = $region20
        $region19: #{_lambda_.1} parent=11 // pred_region
          %571 = vsyncadd [#allocation9], 0
          %s572 = sshll.u32 %s3, 4
          %s573 = int_to_ptr.hbm [resolvable:$true] %s572
          %s574 = sshll.u32 [#allocation8], 4
          %s575 = int_to_ptr.vmem [resolvable:$true] %s574
          %580 = dma.hbm_to_vmem [thread:$0]  %s573, 2048, %s575, [#allocation9], 128, 128, 8
        $region20: #{_lambda_.1} parent=11 // pred_fallthru
          _
        // Predicated region
        $region21: #{_lambda_.1} parent=11 // pred_check
          %p581 = pneg %p161
        $region22: #{_lambda_.1} parent=11 // pred_check_branch
          %583 = sbr.rel (%p581) target = $region24
        $region23: #{_lambda_.1} parent=11 // pred_region
          %585 = vsyncadd [#allocation9], 0
          %s586 = sshll.u32 %s4, 4
          %s587 = int_to_ptr.hbm [resolvable:$true] %s586
          %s588 = sshll.u32 [#allocation10], 4
          %s589 = int_to_ptr.vmem [resolvable:$true] %s588
          %594 = dma.hbm_to_vmem [thread:$0]  %s587, 2048, %s589, [#allocation9], 128, 128, 8
        $region24: #{_lambda_.1} parent=11 // pred_fallthru
          _
        // Predicated region
        $region25: #{_lambda_.1} parent=11 // pred_check
          %p595 = pneg %p182
        $region26: #{_lambda_.1} parent=11 // pred_check_branch
          %597 = sbr.rel (%p595) target = $region28
        $region27: #{_lambda_.1} parent=11 // pred_region
          %599 = vsyncadd [#allocation12], 0
          %s600 = sshll.u32 %s5, 4
          %s601 = int_to_ptr.hbm [resolvable:$true] %s600
          %s602 = sshll.u32 [#allocation11], 4
          %s603 = int_to_ptr.vmem [resolvable:$true] %s602
          %608 = dma.hbm_to_vmem [thread:$0]  %s601, 2048, %s603, [#allocation12], 128, 128, 8
        $region28: #{_lambda_.1} parent=11 // pred_fallthru
          _
        // Predicated region
        $region29: #{_lambda_.1} parent=11 // pred_check
          %p609 = pneg %p203
        $region30: #{_lambda_.1} parent=11 // pred_check_branch
          %611 = sbr.rel (%p609) target = $region32
        $region31: #{_lambda_.1} parent=11 // pred_region
          %613 = vsyncadd [#allocation12], 0
          %s614 = sshll.u32 %s6, 4
          %s615 = int_to_ptr.hbm [resolvable:$true] %s614
          %s616 = sshll.u32 [#allocation13], 4
          %s617 = int_to_ptr.vmem [resolvable:$true] %s616
          %622 = dma.hbm_to_vmem [thread:$0]  %s615, 1024, %s617, [#allocation12], 64, 64, 4
        $region32: #{_lambda_.1} parent=11 // pred_fallthru
          _
        // Predicated region
        $region33: #{_lambda_.1} parent=11 // pred_check
          %p623 = pneg %p224
        $region34: #{_lambda_.1} parent=11 // pred_check_branch
          %625 = sbr.rel (%p623) target = $region36
        $region35: #{_lambda_.1} parent=11 // pred_region
          %627 = vsyncadd [#allocation15], 0
          %s628 = sshll.u32 %s7, 4
          %s629 = int_to_ptr.hbm [resolvable:$true] %s628
          %s630 = sshll.u32 [#allocation14], 4
          %s631 = int_to_ptr.vmem [resolvable:$true] %s630
          %636 = dma.hbm_to_vmem [thread:$0]  %s629, 1024, %s631, [#allocation15], 64, 64, 4
        $region36: #{_lambda_.1} parent=11 // pred_fallthru
          _
        // Predicated region
        $region37: #{_lambda_.1} parent=11 // pred_check
          %p637 = pneg %p245
        $region38: #{_lambda_.1} parent=11 // pred_check_branch
          %639 = sbr.rel (%p637) target = $region40
        $region39: #{_lambda_.1} parent=11 // pred_region
          %641 = vsyncadd [#allocation15], 0
          %s642 = sshll.u32 %s8, 4
          %s643 = int_to_ptr.hbm [resolvable:$true] %s642
          %s644 = sshll.u32 [#allocation16], 4
          %s645 = int_to_ptr.vmem [resolvable:$true] %s644
          %650 = dma.hbm_to_vmem [thread:$0]  %s643, 1024, %s645, [#allocation15], 64, 64, 4
        $region40: #{_lambda_.1} parent=11 // pred_fallthru
          _
        // Predicated region
        $region41: #{_lambda_.1} parent=11 // pred_check
          %p651 = pneg %p266
        $region42: #{_lambda_.1} parent=11 // pred_check_branch
          %653 = sbr.rel (%p651) target = $region44
        $region43: #{_lambda_.1} parent=11 // pred_region
          %655 = vsyncadd [#allocation18], 0
          %s656 = sshll.u32 %s9, 4
          %s657 = int_to_ptr.hbm [resolvable:$true] %s656
          %s658 = sshll.u32 [#allocation17], 4
          %s659 = int_to_ptr.vmem [resolvable:$true] %s658
          %664 = dma.hbm_to_vmem [thread:$0]  %s657, 1024, %s659, [#allocation18], 64, 64, 4
        $region44: #{_lambda_.1} parent=11 // pred_fallthru
          _
        // Predicated region
        $region45: #{_lambda_.1} parent=11 // pred_check
          %p665 = pneg %p287
        $region46: #{_lambda_.1} parent=11 // pred_check_branch
          %667 = sbr.rel (%p665) target = $region48
        $region47: #{_lambda_.1} parent=11 // pred_region
          %669 = vsyncadd [#allocation18], 0
          %s670 = sshll.u32 %s10, 4
          %s671 = int_to_ptr.hbm [resolvable:$true] %s670
          %s672 = sshll.u32 [#allocation19], 4
          %s673 = int_to_ptr.vmem [resolvable:$true] %s672
          %678 = dma.hbm_to_vmem [thread:$0]  %s671, 1024, %s673, [#allocation18], 64, 64, 4
        $region48: #{_lambda_.1} parent=11 // pred_fallthru
          _
        // Predicated region
        $region49: #{_lambda_.1} parent=11 // pred_check
          %p679 = pneg %p308
        $region50: #{_lambda_.1} parent=11 // pred_check_branch
          %681 = sbr.rel (%p679) target = $region52
        $region51: #{_lambda_.1} parent=11 // pred_region
          %683 = vsyncadd [#allocation21], 0
          %s684 = sshll.u32 %s11, 4
          %s685 = int_to_ptr.hbm [resolvable:$true] %s684
          %s686 = sshll.u32 [#allocation20], 4
          %s687 = int_to_ptr.vmem [resolvable:$true] %s686
          %692 = dma.hbm_to_vmem [thread:$0]  %s685, 1024, %s687, [#allocation21], 64, 64, 4
        $region52: #{_lambda_.1} parent=11 // pred_fallthru
          _
        // Predicated region
        $region53: #{_lambda_.1} parent=11 // pred_check
          %p693 = pneg %p329
        $region54: #{_lambda_.1} parent=11 // pred_check_branch
          %695 = sbr.rel (%p693) target = $region56
        $region55: #{_lambda_.1} parent=11 // pred_region
          %697 = vsyncadd [#allocation21], 0
          %s698 = sshll.u32 %s12, 4
          %s699 = int_to_ptr.hbm [resolvable:$true] %s698
          %s700 = sshll.u32 [#allocation22], 4
          %s701 = int_to_ptr.vmem [resolvable:$true] %s700
          %706 = dma.hbm_to_vmem [thread:$0]  %s699, 1024, %s701, [#allocation21], 64, 64, 4
        $region56: #{_lambda_.1} parent=11 // pred_fallthru
          _
        // Predicated region
        $region57: #{_lambda_.1} parent=11 // pred_check
          %p707 = pneg %p350
        $region58: #{_lambda_.1} parent=11 // pred_check_branch
          %709 = sbr.rel (%p707) target = $region60
        $region59: #{_lambda_.1} parent=11 // pred_region
          %711 = vsyncadd [#allocation24], 0
          %s712 = sshll.u32 %s13, 4
          %s713 = int_to_ptr.hbm [resolvable:$true] %s712
          %s714 = sshll.u32 [#allocation23], 4
          %s715 = int_to_ptr.vmem [resolvable:$true] %s714
          %720 = dma.hbm_to_vmem [thread:$0]  %s713, 1024, %s715, [#allocation24], 64, 64, 4
        $region60: #{_lambda_.1} parent=11 // pred_fallthru
          _
        // Predicated region
        $region61: #{_lambda_.1} parent=11 // pred_check
          %p721 = pneg %p371
        $region62: #{_lambda_.1} parent=11 // pred_check_branch
          %723 = sbr.rel (%p721) target = $region64
        $region63: #{_lambda_.1} parent=11 // pred_region
          %725 = vsyncadd [#allocation24], 0
          %s726 = sshll.u32 %s14, 4
          %s727 = int_to_ptr.hbm [resolvable:$true] %s726
          %s728 = sshll.u32 [#allocation25], 4
          %s729 = int_to_ptr.vmem [resolvable:$true] %s728
          %734 = dma.hbm_to_vmem [thread:$0]  %s727, 1024, %s729, [#allocation24], 64, 64, 4
        $region64: #{_lambda_.1} parent=11 // pred_fallthru
          _
        // Predicated region
        $region65: #{_lambda_.1} parent=11 // pred_check
          %p735 = pneg %p392
        $region66: #{_lambda_.1} parent=11 // pred_check_branch
          %737 = sbr.rel (%p735) target = $region68
        $region67: #{_lambda_.1} parent=11 // pred_region
          %739 = vsyncadd [#allocation27], 0
          %s740 = sshll.u32 %s15, 4
          %s741 = int_to_ptr.hbm [resolvable:$true] %s740
          %s742 = sshll.u32 [#allocation26], 4
          %s743 = int_to_ptr.vmem [resolvable:$true] %s742
          %748 = dma.hbm_to_vmem [thread:$0]  %s741, 1024, %s743, [#allocation27], 64, 64, 4
        $region68: #{_lambda_.1} parent=11 // pred_fallthru
          _
        // Predicated region
        $region69: #{_lambda_.1} parent=11 // pred_check
          %p749 = pneg %p413
        $region70: #{_lambda_.1} parent=11 // pred_check_branch
          %751 = sbr.rel (%p749) target = $region72
        $region71: #{_lambda_.1} parent=11 // pred_region
          %753 = vsyncadd [#allocation27], 0
          %s754 = sshll.u32 %s16, 4
          %s755 = int_to_ptr.hbm [resolvable:$true] %s754
          %s756 = sshll.u32 [#allocation28], 4
          %s757 = int_to_ptr.vmem [resolvable:$true] %s756
          %762 = dma.hbm_to_vmem [thread:$0]  %s755, 1024, %s757, [#allocation27], 64, 64, 4
        $region72: #{_lambda_.1} parent=11 // pred_fallthru
          _
        // Predicated region
        $region73: #{_lambda_.1} parent=11 // pred_check
          %p763 = pneg %p434
        $region74: #{_lambda_.1} parent=11 // pred_check_branch
          %765 = sbr.rel (%p763) target = $region76
        $region75: #{_lambda_.1} parent=11 // pred_region
          %767 = vsyncadd [#allocation30], 0
          %s768 = sshll.u32 %s17, 4
          %s769 = int_to_ptr.hbm [resolvable:$true] %s768
          %s770 = sshll.u32 [#allocation29], 4
          %s771 = int_to_ptr.vmem [resolvable:$true] %s770
          %776 = dma.hbm_to_vmem [thread:$0]  %s769, 1024, %s771, [#allocation30], 64, 64, 4
        $region76: #{_lambda_.1} parent=11 // pred_fallthru
          _
      $region12: #{_lambda_.1} parent=5 // pred_fallthru
        _
      %p777 = scmp.lt.s32.totalorder %s46, 4
      // Predicated region
      $region77: #{_lambda_.1} parent=5 // pred_check
        %p778 = pneg %p777
      $region78: #{_lambda_.1} parent=5 // pred_check_branch
        %780 = sbr.rel (%p778) target = $region80
      $region79: #{_lambda_.1} parent=5 // pred_region
        // Predicated region
        $region81: #{_lambda_.1} parent=79 // pred_check
          %p781 = pneg %p66
        $region82: #{_lambda_.1} parent=79 // pred_check_branch
          %783 = sbr.rel (%p781) target = $region84
        $region83: #{_lambda_.1} parent=79 // pred_region
          %s784 = sand.u32 %s56, 1
          %s785 = scalar_lea.sflag [#allocation3], %s784
          %s786 = sand.u32 %s56, 1
          %s787 = smul.addr %s786, 128
          %s788 = scalar_lea.vmem [#allocation2], %s787
          %790 = vsyncadd %s785, 0
          %s791 = smul.addr %s46, 16
          %s792 = smul.addr %s791, 8
          %s793 = scalar_lea.hbm %s0, %s792
          %s794 = sshll.u32 %s793, 4
          %s795 = int_to_ptr.hbm [resolvable:$true] %s794
          %s796 = sshll.u32 %s788, 4
          %s797 = int_to_ptr.vmem [resolvable:$true] %s796
          %802 = dma.hbm_to_vmem [thread:$0]  %s795, 2048, %s797, %s785, 128, 128, 8
        $region84: #{_lambda_.1} parent=79 // pred_fallthru
          _
        // Predicated region
        $region85: #{_lambda_.1} parent=79 // pred_check
          %p803 = pneg %p92
        $region86: #{_lambda_.1} parent=79 // pred_check_branch
          %805 = sbr.rel (%p803) target = $region88
        $region87: #{_lambda_.1} parent=79 // pred_region
          %s806 = sand.u32 %s46, 1
          %s807 = scalar_lea.sflag [#allocation6], %s806
          %s808 = sand.u32 %s82, 1
          %s809 = smul.addr %s808, 128
          %s810 = scalar_lea.vmem [#allocation5], %s809
          %812 = vsyncadd %s807, 0
          %s813 = smul.addr %s46, 16
          %s814 = smul.addr %s813, 8
          %s815 = scalar_lea.hbm %s1, %s814
          %s816 = sshll.u32 %s815, 4
          %s817 = int_to_ptr.hbm [resolvable:$true] %s816
          %s818 = sshll.u32 %s810, 4
          %s819 = int_to_ptr.vmem [resolvable:$true] %s818
          %824 = dma.hbm_to_vmem [thread:$0]  %s817, 2048, %s819, %s807, 128, 128, 8
        $region88: #{_lambda_.1} parent=79 // pred_fallthru
          _
      $region80: #{_lambda_.1} parent=5 // pred_fallthru
        _
      %p825 = scmp.le.s32.totalorder 1, %s46
      %p826 = scmp.lt.s32.totalorder %s46, 5
      %p827 = pnand %p825, %p826
      %p828 = pneg %p827
      // Predicated region
      $region89: #{_lambda_.1} parent=5 // pred_check
        _
      $region90: #{_lambda_.1} parent=5 // pred_check_branch
        %830 = sbr.rel (%p827) target = $region92
      $region91: #{_lambda_.1} parent=5 // pred_region
        %s831 = ssub.s32 %s46, 1
        %s832 = sand.u32 %s59, 1
        %s833 = scalar_lea.sflag [#allocation3], %s832
        %s834 = sand.u32 %s59, 1
        %s835 = smul.addr %s834, 128
        %s836 = scalar_lea.vmem [#allocation2], %s835
        // Predicated region
        $region93: #{_lambda_.1} parent=91 // pred_check
          %p837 = pneg %p72
        $region94: #{_lambda_.1} parent=91 // pred_check_branch
          %839 = sbr.rel (%p837) target = $region96
        $region95: #{_lambda_.1} parent=91 // pred_region
          %841 = dma.done %s833, 2048
        $region96: #{_lambda_.1} parent=91 // pred_fallthru
          _
        %s842 = sand.u32 %s51, 1
        %s843 = scalar_lea.sflag [#allocation6], %s842
        %s844 = sand.u32 %s85, 1
        %s845 = smul.addr %s844, 128
        %s846 = scalar_lea.vmem [#allocation5], %s845
        // Predicated region
        $region97: #{_lambda_.1} parent=91 // pred_check
          %p847 = pneg %p98
        $region98: #{_lambda_.1} parent=91 // pred_check_branch
          %849 = sbr.rel (%p847) target = $region100
        $region99: #{_lambda_.1} parent=91 // pred_region
          %851 = dma.done %s843, 2048
        $region100: #{_lambda_.1} parent=91 // pred_fallthru
          _
        // Predicated region
        $region101: #{_lambda_.1} parent=91 // pred_check
          %p852 = pneg %p119
        $region102: #{_lambda_.1} parent=91 // pred_check_branch
          %854 = sbr.rel (%p852) target = $region104
        $region103: #{_lambda_.1} parent=91 // pred_region
          %856 = dma.done [#allocation6], 2048
        $region104: #{_lambda_.1} parent=91 // pred_fallthru
          _
        // Predicated region
        $region105: #{_lambda_.1} parent=91 // pred_check
          %p857 = pneg %p140
        $region106: #{_lambda_.1} parent=91 // pred_check_branch
          %859 = sbr.rel (%p857) target = $region108
        $region107: #{_lambda_.1} parent=91 // pred_region
          %861 = dma.done [#allocation9], 2048
        $region108: #{_lambda_.1} parent=91 // pred_fallthru
          _
        // Predicated region
        $region109: #{_lambda_.1} parent=91 // pred_check
          %p862 = pneg %p161
        $region110: #{_lambda_.1} parent=91 // pred_check_branch
          %864 = sbr.rel (%p862) target = $region112
        $region111: #{_lambda_.1} parent=91 // pred_region
          %866 = dma.done [#allocation9], 2048
        $region112: #{_lambda_.1} parent=91 // pred_fallthru
          _
        // Predicated region
        $region113: #{_lambda_.1} parent=91 // pred_check
          %p867 = pneg %p182
        $region114: #{_lambda_.1} parent=91 // pred_check_branch
          %869 = sbr.rel (%p867) target = $region116
        $region115: #{_lambda_.1} parent=91 // pred_region
          %871 = dma.done [#allocation12], 2048
        $region116: #{_lambda_.1} parent=91 // pred_fallthru
          _
        // Predicated region
        $region117: #{_lambda_.1} parent=91 // pred_check
          %p872 = pneg %p203
        $region118: #{_lambda_.1} parent=91 // pred_check_branch
          %874 = sbr.rel (%p872) target = $region120
        $region119: #{_lambda_.1} parent=91 // pred_region
          %876 = dma.done [#allocation12], 1024
        $region120: #{_lambda_.1} parent=91 // pred_fallthru
          _
        // Predicated region
        $region121: #{_lambda_.1} parent=91 // pred_check
          %p877 = pneg %p224
        $region122: #{_lambda_.1} parent=91 // pred_check_branch
          %879 = sbr.rel (%p877) target = $region124
        $region123: #{_lambda_.1} parent=91 // pred_region
          %881 = dma.done [#allocation15], 1024
        $region124: #{_lambda_.1} parent=91 // pred_fallthru
          _
        // Predicated region
        $region125: #{_lambda_.1} parent=91 // pred_check
          %p882 = pneg %p245
        $region126: #{_lambda_.1} parent=91 // pred_check_branch
          %884 = sbr.rel (%p882) target = $region128
        $region127: #{_lambda_.1} parent=91 // pred_region
          %886 = dma.done [#allocation15], 1024
        $region128: #{_lambda_.1} parent=91 // pred_fallthru
          _
        // Predicated region
        $region129: #{_lambda_.1} parent=91 // pred_check
          %p887 = pneg %p266
        $region130: #{_lambda_.1} parent=91 // pred_check_branch
          %889 = sbr.rel (%p887) target = $region132
        $region131: #{_lambda_.1} parent=91 // pred_region
          %891 = dma.done [#allocation18], 1024
        $region132: #{_lambda_.1} parent=91 // pred_fallthru
          _
        // Predicated region
        $region133: #{_lambda_.1} parent=91 // pred_check
          %p892 = pneg %p287
        $region134: #{_lambda_.1} parent=91 // pred_check_branch
          %894 = sbr.rel (%p892) target = $region136
        $region135: #{_lambda_.1} parent=91 // pred_region
          %896 = dma.done [#allocation18], 1024
        $region136: #{_lambda_.1} parent=91 // pred_fallthru
          _
        // Predicated region
        $region137: #{_lambda_.1} parent=91 // pred_check
          %p897 = pneg %p308
        $region138: #{_lambda_.1} parent=91 // pred_check_branch
          %899 = sbr.rel (%p897) target = $region140
        $region139: #{_lambda_.1} parent=91 // pred_region
          %901 = dma.done [#allocation21], 1024
        $region140: #{_lambda_.1} parent=91 // pred_fallthru
          _
        // Predicated region
        $region141: #{_lambda_.1} parent=91 // pred_check
          %p902 = pneg %p329
        $region142: #{_lambda_.1} parent=91 // pred_check_branch
          %904 = sbr.rel (%p902) target = $region144
        $region143: #{_lambda_.1} parent=91 // pred_region
          %906 = dma.done [#allocation21], 1024
        $region144: #{_lambda_.1} parent=91 // pred_fallthru
          _
        // Predicated region
        $region145: #{_lambda_.1} parent=91 // pred_check
          %p907 = pneg %p350
        $region146: #{_lambda_.1} parent=91 // pred_check_branch
          %909 = sbr.rel (%p907) target = $region148
        $region147: #{_lambda_.1} parent=91 // pred_region
          %911 = dma.done [#allocation24], 1024
        $region148: #{_lambda_.1} parent=91 // pred_fallthru
          _
        // Predicated region
        $region149: #{_lambda_.1} parent=91 // pred_check
          %p912 = pneg %p371
        $region150: #{_lambda_.1} parent=91 // pred_check_branch
          %914 = sbr.rel (%p912) target = $region152
        $region151: #{_lambda_.1} parent=91 // pred_region
          %916 = dma.done [#allocation24], 1024
        $region152: #{_lambda_.1} parent=91 // pred_fallthru
          _
        // Predicated region
        $region153: #{_lambda_.1} parent=91 // pred_check
          %p917 = pneg %p392
        $region154: #{_lambda_.1} parent=91 // pred_check_branch
          %919 = sbr.rel (%p917) target = $region156
        $region155: #{_lambda_.1} parent=91 // pred_region
          %921 = dma.done [#allocation27], 1024
        $region156: #{_lambda_.1} parent=91 // pred_fallthru
          _
        // Predicated region
        $region157: #{_lambda_.1} parent=91 // pred_check
          %p922 = pneg %p413
        $region158: #{_lambda_.1} parent=91 // pred_check_branch
          %924 = sbr.rel (%p922) target = $region160
        $region159: #{_lambda_.1} parent=91 // pred_region
          %926 = dma.done [#allocation27], 1024
        $region160: #{_lambda_.1} parent=91 // pred_fallthru
          _
        // Predicated region
        $region161: #{_lambda_.1} parent=91 // pred_check
          %p927 = pneg %p434
        $region162: #{_lambda_.1} parent=91 // pred_check_branch
          %929 = sbr.rel (%p927) target = $region164
        $region163: #{_lambda_.1} parent=91 // pred_region
          %931 = dma.done [#allocation30], 1024
        $region164: #{_lambda_.1} parent=91 // pred_fallthru
          _
        %s932 = sand.u32 %s59, 1
        %s933 = scalar_lea.sflag [#allocation3], %s932
        %s934 = sand.u32 %s59, 1
        %s935 = smul.addr %s934, 128
        %s936 = scalar_lea.vmem [#allocation2], %s935
        %p937 = pneg %p72
        %p938 = pneg %p69
        %s939 = sand.u32 %s51, 1
        %s940 = scalar_lea.sflag [#allocation6], %s939
        %s941 = sand.u32 %s85, 1
        %s942 = smul.addr %s941, 128
        %s943 = scalar_lea.vmem [#allocation5], %s942
        %p944 = pneg %p98
        %p945 = pneg %p95
        %p946 = pneg %p119
        %p947 = pneg %p116
        %p948 = pneg %p140
        %p949 = pneg %p137
        %p950 = pneg %p161
        %p951 = pneg %p158
        %p952 = pneg %p182
        %p953 = pneg %p179
        %p954 = pneg %p203
        %p955 = pneg %p200
        %p956 = pneg %p224
        %p957 = pneg %p221
        %p958 = pneg %p245
        %p959 = pneg %p242
        %p960 = pneg %p266
        %p961 = pneg %p263
        %p962 = pneg %p287
        %p963 = pneg %p284
        %p964 = pneg %p308
        %p965 = pneg %p305
        %p966 = pneg %p329
        %p967 = pneg %p326
        %p968 = pneg %p350
        %p969 = pneg %p347
        %p970 = pneg %p371
        %p971 = pneg %p368
        %p972 = pneg %p392
        %p973 = pneg %p389
        %p974 = pneg %p413
        %p975 = pneg %p410
        %p976 = pneg %p434
        %p977 = pneg %p431
        %p978 = pneg %p486
        %p979 = pneg %p483
        %s980 = sand.u32 %s473, 1
        %s981 = scalar_lea.sflag [#allocation4], %s980
        %s982 = sand.u32 %s473, 1
        %s983 = smul.addr %s982, 128
        %s984 = scalar_lea.vmem [#allocation31], %s983
        %p985 = pneg %p538
        %p986 = pneg %p535
        %s987 = sand.u32 %s525, 1
        %s988 = scalar_lea.sflag [#allocation33], %s987
        %s989 = sand.u32 %s525, 1
        %s990 = smul.addr %s989, 128
        %s991 = scalar_lea.vmem [#allocation32], %s990
        %s992 = sadd.s32 %s51, 2
        %p993 = scmp.lt.s32.totalorder %s992, 0
        %s994 = ssub.s32 0, %s992
        %s995 = scalar_select %p993, %s994, %s992
        %s996 = sand.u32 %s995, 3
        %s997 = ssub.s32 0, %s996
        %s998 = scalar_select %p993, %s997, %s996
        %p999 = scmp.ne.s32.totalorder %s998, 0
        %p1000 = scmp.lt.s32.totalorder %s998, 0
        %p1001 = pnand %p1000, %p999
        %p1002 = pneg %p1001
        %s1003 = sadd.s32 %s998, 4
        %s1004 = scalar_select %p1002, %s1003, %s998
        %s1005 = sadd.s32 %s51, 2
        %p1006 = scmp.lt.s32.totalorder %s1005, 0
        %s1007 = ssub.s32 0, %s1005
        %s1008 = scalar_select %p1006, %s1007, %s1005
        %s1009 = sand.u32 %s1008, 3
        %s1010 = ssub.s32 0, %s1009
        %s1011 = scalar_select %p1006, %s1010, %s1009
        %p1012 = scmp.ne.s32.totalorder %s1011, 0
        %p1013 = scmp.lt.s32.totalorder %s1011, 0
        %p1014 = pnand %p1013, %p1012
        %p1015 = pneg %p1014
        %s1016 = sadd.s32 %s1011, 4
        %s1017 = scalar_select %p1015, %s1016, %s1011
        %v1018 = vld [vmem:[%s836] sm:$0xff]
        %v1019 = vld [vmem:[%s836 + $0x8] sm:$0xff]
        %v1020 = vld [vmem:[%s836 + $0x10] sm:$0xff]
        %v1021 = vld [vmem:[%s836 + $0x18] sm:$0xff]
        %v1022 = vld [vmem:[%s836 + $0x20] sm:$0xff]
        %v1023 = vld [vmem:[%s836 + $0x28] sm:$0xff]
        %v1024 = vld [vmem:[%s836 + $0x30] sm:$0xff]
        %v1025 = vld [vmem:[%s836 + $0x38] sm:$0xff]
        %v1026 = vld [vmem:[%s836 + $0x40] sm:$0xff]
        %v1027 = vld [vmem:[%s836 + $0x48] sm:$0xff]
        %v1028 = vld [vmem:[%s836 + $0x50] sm:$0xff]
        %v1029 = vld [vmem:[%s836 + $0x58] sm:$0xff]
        %v1030 = vld [vmem:[%s836 + $0x60] sm:$0xff]
        %v1031 = vld [vmem:[%s836 + $0x68] sm:$0xff]
        %v1032 = vld [vmem:[%s836 + $0x70] sm:$0xff]
        %v1033 = vld [vmem:[%s836 + $0x78] sm:$0xff]
        %v1034 = vld [vmem:[%s846] sm:$0xff]
        %v1035 = vld [vmem:[%s846 + $0x8] sm:$0xff]
        %v1036 = vld [vmem:[%s846 + $0x10] sm:$0xff]
        %v1037 = vld [vmem:[%s846 + $0x18] sm:$0xff]
        %v1038 = vld [vmem:[%s846 + $0x20] sm:$0xff]
        %v1039 = vld [vmem:[%s846 + $0x28] sm:$0xff]
        %v1040 = vld [vmem:[%s846 + $0x30] sm:$0xff]
        %v1041 = vld [vmem:[%s846 + $0x38] sm:$0xff]
        %v1042 = vld [vmem:[%s846 + $0x40] sm:$0xff]
        %v1043 = vld [vmem:[%s846 + $0x48] sm:$0xff]
        %v1044 = vld [vmem:[%s846 + $0x50] sm:$0xff]
        %v1045 = vld [vmem:[%s846 + $0x58] sm:$0xff]
        %v1046 = vld [vmem:[%s846 + $0x60] sm:$0xff]
        %v1047 = vld [vmem:[%s846 + $0x68] sm:$0xff]
        %v1048 = vld [vmem:[%s846 + $0x70] sm:$0xff]
        %v1049 = vld [vmem:[%s846 + $0x78] sm:$0xff]
        %v1050 = vld [vmem:[#allocation7] sm:$0xff]
        %v1051 = vld [vmem:[#allocation7 + $0x8] sm:$0xff]
        %v1052 = vld [vmem:[#allocation7 + $0x10] sm:$0xff]
        %v1053 = vld [vmem:[#allocation7 + $0x18] sm:$0xff]
        %v1054 = vld [vmem:[#allocation7 + $0x20] sm:$0xff]
        %v1055 = vld [vmem:[#allocation7 + $0x28] sm:$0xff]
        %v1056 = vld [vmem:[#allocation7 + $0x30] sm:$0xff]
        %v1057 = vld [vmem:[#allocation7 + $0x38] sm:$0xff]
        %v1058 = vld [vmem:[#allocation7 + $0x40] sm:$0xff]
        %v1059 = vld [vmem:[#allocation7 + $0x48] sm:$0xff]
        %v1060 = vld [vmem:[#allocation7 + $0x50] sm:$0xff]
        %v1061 = vld [vmem:[#allocation7 + $0x58] sm:$0xff]
        %v1062 = vld [vmem:[#allocation7 + $0x60] sm:$0xff]
        %v1063 = vld [vmem:[#allocation7 + $0x68] sm:$0xff]
        %v1064 = vld [vmem:[#allocation7 + $0x70] sm:$0xff]
        %v1065 = vld [vmem:[#allocation7 + $0x78] sm:$0xff]
        %v1066 = vld [vmem:[#allocation8] sm:$0xff]
        %v1067 = vld [vmem:[#allocation8 + $0x8] sm:$0xff]
        %v1068 = vld [vmem:[#allocation8 + $0x10] sm:$0xff]
        %v1069 = vld [vmem:[#allocation8 + $0x18] sm:$0xff]
        %v1070 = vld [vmem:[#allocation8 + $0x20] sm:$0xff]
        %v1071 = vld [vmem:[#allocation8 + $0x28] sm:$0xff]
        %v1072 = vld [vmem:[#allocation8 + $0x30] sm:$0xff]
        %v1073 = vld [vmem:[#allocation8 + $0x38] sm:$0xff]
        %v1074 = vld [vmem:[#allocation8 + $0x40] sm:$0xff]
        %v1075 = vld [vmem:[#allocation8 + $0x48] sm:$0xff]
        %v1076 = vld [vmem:[#allocation8 + $0x50] sm:$0xff]
        %v1077 = vld [vmem:[#allocation8 + $0x58] sm:$0xff]
        %v1078 = vld [vmem:[#allocation8 + $0x60] sm:$0xff]
        %v1079 = vld [vmem:[#allocation8 + $0x68] sm:$0xff]
        %v1080 = vld [vmem:[#allocation8 + $0x70] sm:$0xff]
        %v1081 = vld [vmem:[#allocation8 + $0x78] sm:$0xff]
        %v1082 = vld [vmem:[#allocation10] sm:$0xff]
        %v1083 = vld [vmem:[#allocation10 + $0x8] sm:$0xff]
        %v1084 = vld [vmem:[#allocation10 + $0x10] sm:$0xff]
        %v1085 = vld [vmem:[#allocation10 + $0x18] sm:$0xff]
        %v1086 = vld [vmem:[#allocation10 + $0x20] sm:$0xff]
        %v1087 = vld [vmem:[#allocation10 + $0x28] sm:$0xff]
        %v1088 = vld [vmem:[#allocation10 + $0x30] sm:$0xff]
        %v1089 = vld [vmem:[#allocation10 + $0x38] sm:$0xff]
        %v1090 = vld [vmem:[#allocation10 + $0x40] sm:$0xff]
        %v1091 = vld [vmem:[#allocation10 + $0x48] sm:$0xff]
        %v1092 = vld [vmem:[#allocation10 + $0x50] sm:$0xff]
        %v1093 = vld [vmem:[#allocation10 + $0x58] sm:$0xff]
        %v1094 = vld [vmem:[#allocation10 + $0x60] sm:$0xff]
        %v1095 = vld [vmem:[#allocation10 + $0x68] sm:$0xff]
        %v1096 = vld [vmem:[#allocation10 + $0x70] sm:$0xff]
        %v1097 = vld [vmem:[#allocation10 + $0x78] sm:$0xff]
        %v1098 = vld [vmem:[#allocation11] sm:$0xff]
        %v1099 = vld [vmem:[#allocation11 + $0x8] sm:$0xff]
        %v1100 = vld [vmem:[#allocation11 + $0x10] sm:$0xff]
        %v1101 = vld [vmem:[#allocation11 + $0x18] sm:$0xff]
        %v1102 = vld [vmem:[#allocation11 + $0x20] sm:$0xff]
        %v1103 = vld [vmem:[#allocation11 + $0x28] sm:$0xff]
        %v1104 = vld [vmem:[#allocation11 + $0x30] sm:$0xff]
        %v1105 = vld [vmem:[#allocation11 + $0x38] sm:$0xff]
        %v1106 = vld [vmem:[#allocation11 + $0x40] sm:$0xff]
        %v1107 = vld [vmem:[#allocation11 + $0x48] sm:$0xff]
        %v1108 = vld [vmem:[#allocation11 + $0x50] sm:$0xff]
        %v1109 = vld [vmem:[#allocation11 + $0x58] sm:$0xff]
        %v1110 = vld [vmem:[#allocation11 + $0x60] sm:$0xff]
        %v1111 = vld [vmem:[#allocation11 + $0x68] sm:$0xff]
        %v1112 = vld [vmem:[#allocation11 + $0x70] sm:$0xff]
        %v1113 = vld [vmem:[#allocation11 + $0x78] sm:$0xff]
        %v1114 = vand.u32 2147483647, %v1034
        %vm1115 = vcmp.le.f32.partialorder %v1114, 0.7853982
        %vm1116 = vcmp.lt.s32.totalorder %v1034, 0
        %v1117 = vand.u32 %v1034, 2139095040
        %v1118 = vshrl.u32 %v1117, 23
        %v1119 = vsub.s32 %v1118, 127
        %v1120 = vand.u32 2147483647, %v1034
        %v1121 = vand.u32 %v1120, 8388607
        %v1122 = vor.u32 %v1121, 8388608
        %v1123 = vsub.s32 0, %v1122
        %v1124 = vadd.s32 %v1119, 1
        %vm1125 = vcmp.gt.s32.totalorder %v1124, 0
        %v1126 = vsel %vm1125, %v1124, 0
        %v1127 = vshrl.u32 %v1126, 5
        %v1128 = vand.u32 %v1126, 31
        %v1129 = vsub.s32 32, %v1128
        %v1130 = vshrl.u32 683565275, %v1129
        %v1131 = vshll.u32 683565275, %v1128
        %v1132 = vshrl.u32 2475754826, %v1129
        %v1133 = vor.u32 %v1131, %v1132
        %v1134 = vshll.u32 2475754826, %v1128
        %v1135 = vshrl.u32 2131351028, %v1129
        %v1136 = vor.u32 %v1134, %v1135
        %v1137 = vshll.u32 2131351028, %v1128
        %v1138 = vshrl.u32 2102212464, %v1129
        %v1139 = vor.u32 %v1137, %v1138
        %v1140 = vshll.u32 2102212464, %v1128
        %v1141 = vshrl.u32 920167782, %v1129
        %v1142 = vor.u32 %v1140, %v1141
        %v1143 = vshll.u32 920167782, %v1128
        %v1144 = vshrl.u32 1326507024, %v1129
        %v1145 = vor.u32 %v1143, %v1144
        %vm1146 = vcmp.lt.s32.totalorder %v1127, 1
        %vm1147 = vcmp.lt.s32.totalorder %v1127, 2
        %vm1148 = vcmp.lt.s32.totalorder %v1127, 3
        %vm1149 = vcmp.lt.s32.totalorder %v1127, 4
        %v1150 = vsel %vm1146, %v1130, %v1133
        %v1151 = vsel %vm1149, %v1139, 2102212464
        %v1152 = vsel %vm1148, %v1136, %v1151
        %v1153 = vsel %vm1147, %v1150, %v1152
        %v1154 = vsel %vm1146, %v1133, %v1136
        %v1155 = vsel %vm1149, %v1142, 920167782
        %v1156 = vsel %vm1148, %v1139, %v1155
        %v1157 = vsel %vm1147, %v1154, %v1156
        %v1158 = vsel %vm1146, %v1136, %v1139
        %v1159 = vsel %vm1149, %v1145, 1326507024
        %v1160 = vsel %vm1148, %v1142, %v1159
        %v1161 = vsel %vm1147, %v1158, %v1160
        %v1162 = vshll.u32 %v1122, 8
        %v1163 = vand.u32 %v1162, 65535
        %v1164 = vshrl.u32 %v1162, 16
        %v1165 = vand.u32 %v1161, 65535
        %v1166 = vshrl.u32 %v1161, 16
        %v1167 = vmul.u32 %v1163, %v1165
        %v1168 = vmul.u32 %v1163, %v1166
        %v1169 = vmul.u32 %v1164, %v1165
        %v1170 = vmul.u32 %v1164, %v1166
        %v1171 = vshll.u32 %v1168, 16
        %v1172 = vshrl.u32 %v1168, 16
        %v1173 = vshll.u32 %v1169, 16
        %v1174 = vshrl.u32 %v1169, 16
        %vm1175 = vc.u32 %v1167, %v1171
        %v1176 = vsel %vm1175, 1, 0
        %v1177 = vadd.s32 %v1167, %v1171
        %v1178 = vadd.s32 %v1170, %v1176
        %vm1179 = vc.u32 %v1177, %v1173
        %v1180 = vsel %vm1179, 1, 0
        %v1181 = vadd.s32 %v1177, %v1173
        %v1182 = vadd.s32 %v1178, %v1180
        %v1183 = vadd.s32 %v1182, %v1172
        %v1184 = vadd.s32 %v1183, %v1174
        %v1185 = vand.u32 %v1162, 65535
        %v1186 = vshrl.u32 %v1162, 16
        %v1187 = vand.u32 %v1157, 65535
        %v1188 = vshrl.u32 %v1157, 16
        %v1189 = vmul.u32 %v1185, %v1187
        %v1190 = vmul.u32 %v1185, %v1188
        %v1191 = vmul.u32 %v1186, %v1187
        %v1192 = vmul.u32 %v1186, %v1188
        %v1193 = vshll.u32 %v1190, 16
        %v1194 = vshrl.u32 %v1190, 16
        %v1195 = vshll.u32 %v1191, 16
        %v1196 = vshrl.u32 %v1191, 16
        %vm1197 = vc.u32 %v1189, %v1193
        %v1198 = vsel %vm1197, 1, 0
        %v1199 = vadd.s32 %v1189, %v1193
        %v1200 = vadd.s32 %v1192, %v1198
        %vm1201 = vc.u32 %v1199, %v1195
        %v1202 = vsel %vm1201, 1, 0
        %v1203 = vadd.s32 %v1199, %v1195
        %v1204 = vadd.s32 %v1200, %v1202
        %v1205 = vadd.s32 %v1204, %v1194
        %v1206 = vadd.s32 %v1205, %v1196
        %v1207 = vmul.u32 %v1162, %v1153
        %v1208 = vadd.s32 %v1184, %v1203
        %vm1209 = vc.u32 %v1184, %v1203
        %v1210 = vadd.s32 %v1206, 1
        %v1211 = vsel %vm1209, %v1210, %v1206
        %v1212 = vadd.s32 %v1207, %v1211
        %v1213 = vadd.s32 %v1212, 536870912
        %v1214 = vshrl.u32 %v1213, 30
        %v1215 = vshll.u32 %v1214, 30
        %v1216 = vsub.s32 %v1212, %v1215
        %vm1217 = vcmp.lt.s32.totalorder %v1216, 0
        %v1218 = vsub.s32 0, %v1216
        %v1219 = vsel %vm1217, %v1218, %v1216
        %v1220 = vclz %v1219
        %v1221 = vsub.s32 %v1220, 2
        %vm1222 = vcmp.gt.s32.totalorder 0, %v1221
        %v1223 = vsel %vm1222, 0, %v1221
        %v1224 = vsub.s32 32, %v1223
        %v1225 = vshll.u32 %v1216, %v1223
        %v1226 = vshrl.u32 %v1208, %v1224
        %v1227 = vor.u32 %v1225, %v1226
        %v1228 = vsub.s32 4294967266, %v1223
        %v1229 = vadd.s32 %v1228, 127
        %v1230 = vshll.u32 %v1229, 23
        %v1231 = vor.u32 4788187, %v1230
        %v1232 = vand.u32 2147483647, %v1231
        %v1234 = vcvt.s32.f32 %v1227
        %v1235 = vmul.f32 %v1234, %v1232
        %v1236 = vxor.u32 %v1235, 2147483648
        %v1237 = vsel %vm1116, %v1236, %v1235
        %v1238 = vsub.s32 4, %v1214
        %v1239 = vsel %vm1116, %v1238, %v1214
        %v1240 = vsel %vm1115, %v1034, %v1237
        %v1241 = vsel %vm1115, 0, %v1239
        %v1242 = vmul.f32 %v1240, %v1240
        %v1243 = vmul.f32 %v1242, -0.001358992
        %v1244 = vadd.f32 %v1243, 0.041655596
        %v1245 = vmul.f32 %v1242, %v1244
        %v1246 = vadd.f32 %v1245, -0.4999988
        %v1247 = vmul.f32 %v1242, %v1246
        %v1248 = vadd.f32 1.0, %v1247
        %v1249 = vmul.f32 %v1240, %v1240
        %v1250 = vmul.f32 %v1249, -0.00019511016
        %v1251 = vadd.f32 %v1250, 0.008332121
        %v1252 = vmul.f32 %v1249, %v1251
        %v1253 = vadd.f32 %v1252, -0.16666654
        %v1254 = vmul.f32 %v1249, %v1253
        %v1255 = vadd.f32 %v1254, 1.0
        %v1256 = vmul.f32 %v1255, %v1240
        %vm1257 = vweird.f32 %v1034
        %v1258 = vand.u32 %v1241, 3
        %vm1259 = vcmp.lt.s32.totalorder %v1258, 2
        %vm1260 = vcmp.eq.s32.totalorder %v1258, 0
        %v1261 = vxor.u32 %v1256, 2147483648
        %v1262 = vsel %vm1260, %v1248, %v1261
        %vm1263 = vcmp.eq.s32.totalorder %v1258, 2
        %v1264 = vxor.u32 %v1248, 2147483648
        %v1265 = vsel %vm1263, %v1264, %v1256
        %v1266 = vsel %vm1259, %v1262, %v1265
        %v1267 = vsel %vm1257, nan, %v1266
        %v1268 = vand.u32 2147483647, %v1035
        %vm1269 = vcmp.le.f32.partialorder %v1268, 0.7853982
        %vm1270 = vcmp.lt.s32.totalorder %v1035, 0
        %v1271 = vand.u32 %v1035, 2139095040
        %v1272 = vshrl.u32 %v1271, 23
        %v1273 = vsub.s32 %v1272, 127
        %v1274 = vand.u32 2147483647, %v1035
        %v1275 = vand.u32 %v1274, 8388607
        %v1276 = vor.u32 %v1275, 8388608
        %v1277 = vsub.s32 0, %v1276
        %v1278 = vadd.s32 %v1273, 1
        %vm1279 = vcmp.gt.s32.totalorder %v1278, 0
        %v1280 = vsel %vm1279, %v1278, 0
        %v1281 = vshrl.u32 %v1280, 5
        %v1282 = vand.u32 %v1280, 31
        %v1283 = vsub.s32 32, %v1282
        %v1284 = vshrl.u32 683565275, %v1283
        %v1285 = vshll.u32 683565275, %v1282
        %v1286 = vshrl.u32 2475754826, %v1283
        %v1287 = vor.u32 %v1285, %v1286
        %v1288 = vshll.u32 2475754826, %v1282
        %v1289 = vshrl.u32 2131351028, %v1283
        %v1290 = vor.u32 %v1288, %v1289
        %v1291 = vshll.u32 2131351028, %v1282
        %v1292 = vshrl.u32 2102212464, %v1283
        %v1293 = vor.u32 %v1291, %v1292
        %v1294 = vshll.u32 2102212464, %v1282
        %v1295 = vshrl.u32 920167782, %v1283
        %v1296 = vor.u32 %v1294, %v1295
        %v1297 = vshll.u32 920167782, %v1282
        %v1298 = vshrl.u32 1326507024, %v1283
        %v1299 = vor.u32 %v1297, %v1298
        %vm1300 = vcmp.lt.s32.totalorder %v1281, 1
        %vm1301 = vcmp.lt.s32.totalorder %v1281, 2
        %vm1302 = vcmp.lt.s32.totalorder %v1281, 3
        %vm1303 = vcmp.lt.s32.totalorder %v1281, 4
        %v1304 = vsel %vm1300, %v1284, %v1287
        %v1305 = vsel %vm1303, %v1293, 2102212464
        %v1306 = vsel %vm1302, %v1290, %v1305
        %v1307 = vsel %vm1301, %v1304, %v1306
        %v1308 = vsel %vm1300, %v1287, %v1290
        %v1309 = vsel %vm1303, %v1296, 920167782
        %v1310 = vsel %vm1302, %v1293, %v1309
        %v1311 = vsel %vm1301, %v1308, %v1310
        %v1312 = vsel %vm1300, %v1290, %v1293
        %v1313 = vsel %vm1303, %v1299, 1326507024
        %v1314 = vsel %vm1302, %v1296, %v1313
        %v1315 = vsel %vm1301, %v1312, %v1314
        %v1316 = vshll.u32 %v1276, 8
        %v1317 = vand.u32 %v1316, 65535
        %v1318 = vshrl.u32 %v1316, 16
        %v1319 = vand.u32 %v1315, 65535
        %v1320 = vshrl.u32 %v1315, 16
        %v1321 = vmul.u32 %v1317, %v1319
        %v1322 = vmul.u32 %v1317, %v1320
        %v1323 = vmul.u32 %v1318, %v1319
        %v1324 = vmul.u32 %v1318, %v1320
        %v1325 = vshll.u32 %v1322, 16
        %v1326 = vshrl.u32 %v1322, 16
        %v1327 = vshll.u32 %v1323, 16
        %v1328 = vshrl.u32 %v1323, 16
        %vm1329 = vc.u32 %v1321, %v1325
        %v1330 = vsel %vm1329, 1, 0
        %v1331 = vadd.s32 %v1321, %v1325
        %v1332 = vadd.s32 %v1324, %v1330
        %vm1333 = vc.u32 %v1331, %v1327
        %v1334 = vsel %vm1333, 1, 0
        %v1335 = vadd.s32 %v1331, %v1327
        %v1336 = vadd.s32 %v1332, %v1334
        %v1337 = vadd.s32 %v1336, %v1326
        %v1338 = vadd.s32 %v1337, %v1328
        %v1339 = vand.u32 %v1316, 65535
        %v1340 = vshrl.u32 %v1316, 16
        %v1341 = vand.u32 %v1311, 65535
        %v1342 = vshrl.u32 %v1311, 16
        %v1343 = vmul.u32 %v1339, %v1341
        %v1344 = vmul.u32 %v1339, %v1342
        %v1345 = vmul.u32 %v1340, %v1341
        %v1346 = vmul.u32 %v1340, %v1342
        %v1347 = vshll.u32 %v1344, 16
        %v1348 = vshrl.u32 %v1344, 16
        %v1349 = vshll.u32 %v1345, 16
        %v1350 = vshrl.u32 %v1345, 16
        %vm1351 = vc.u32 %v1343, %v1347
        %v1352 = vsel %vm1351, 1, 0
        %v1353 = vadd.s32 %v1343, %v1347
        %v1354 = vadd.s32 %v1346, %v1352
        %vm1355 = vc.u32 %v1353, %v1349
        %v1356 = vsel %vm1355, 1, 0
        %v1357 = vadd.s32 %v1353, %v1349
        %v1358 = vadd.s32 %v1354, %v1356
        %v1359 = vadd.s32 %v1358, %v1348
        %v1360 = vadd.s32 %v1359, %v1350
        %v1361 = vmul.u32 %v1316, %v1307
        %v1362 = vadd.s32 %v1338, %v1357
        %vm1363 = vc.u32 %v1338, %v1357
        %v1364 = vadd.s32 %v1360, 1
        %v1365 = vsel %vm1363, %v1364, %v1360
        %v1366 = vadd.s32 %v1361, %v1365
        %v1367 = vadd.s32 %v1366, 536870912
        %v1368 = vshrl.u32 %v1367, 30
        %v1369 = vshll.u32 %v1368, 30
        %v1370 = vsub.s32 %v1366, %v1369
        %vm1371 = vcmp.lt.s32.totalorder %v1370, 0
        %v1372 = vsub.s32 0, %v1370
        %v1373 = vsel %vm1371, %v1372, %v1370
        %v1374 = vclz %v1373
        %v1375 = vsub.s32 %v1374, 2
        %vm1376 = vcmp.gt.s32.totalorder 0, %v1375
        %v1377 = vsel %vm1376, 0, %v1375
        %v1378 = vsub.s32 32, %v1377
        %v1379 = vshll.u32 %v1370, %v1377
        %v1380 = vshrl.u32 %v1362, %v1378
        %v1381 = vor.u32 %v1379, %v1380
        %v1382 = vsub.s32 4294967266, %v1377
        %v1383 = vadd.s32 %v1382, 127
        %v1384 = vshll.u32 %v1383, 23
        %v1385 = vor.u32 4788187, %v1384
        %v1386 = vand.u32 2147483647, %v1385
        %v1388 = vcvt.s32.f32 %v1381
        %v1389 = vmul.f32 %v1388, %v1386
        %v1390 = vxor.u32 %v1389, 2147483648
        %v1391 = vsel %vm1270, %v1390, %v1389
        %v1392 = vsub.s32 4, %v1368
        %v1393 = vsel %vm1270, %v1392, %v1368
        %v1394 = vsel %vm1269, %v1035, %v1391
        %v1395 = vsel %vm1269, 0, %v1393
        %v1396 = vmul.f32 %v1394, %v1394
        %v1397 = vmul.f32 %v1396, -0.001358992
        %v1398 = vadd.f32 %v1397, 0.041655596
        %v1399 = vmul.f32 %v1396, %v1398
        %v1400 = vadd.f32 %v1399, -0.4999988
        %v1401 = vmul.f32 %v1396, %v1400
        %v1402 = vadd.f32 1.0, %v1401
        %v1403 = vmul.f32 %v1394, %v1394
        %v1404 = vmul.f32 %v1403, -0.00019511016
        %v1405 = vadd.f32 %v1404, 0.008332121
        %v1406 = vmul.f32 %v1403, %v1405
        %v1407 = vadd.f32 %v1406, -0.16666654
        %v1408 = vmul.f32 %v1403, %v1407
        %v1409 = vadd.f32 %v1408, 1.0
        %v1410 = vmul.f32 %v1409, %v1394
        %vm1411 = vweird.f32 %v1035
        %v1412 = vand.u32 %v1395, 3
        %vm1413 = vcmp.lt.s32.totalorder %v1412, 2
        %vm1414 = vcmp.eq.s32.totalorder %v1412, 0
        %v1415 = vxor.u32 %v1410, 2147483648
        %v1416 = vsel %vm1414, %v1402, %v1415
        %vm1417 = vcmp.eq.s32.totalorder %v1412, 2
        %v1418 = vxor.u32 %v1402, 2147483648
        %v1419 = vsel %vm1417, %v1418, %v1410
        %v1420 = vsel %vm1413, %v1416, %v1419
        %v1421 = vsel %vm1411, nan, %v1420
        %v1422 = vand.u32 2147483647, %v1036
        %vm1423 = vcmp.le.f32.partialorder %v1422, 0.7853982
        %vm1424 = vcmp.lt.s32.totalorder %v1036, 0
        %v1425 = vand.u32 %v1036, 2139095040
        %v1426 = vshrl.u32 %v1425, 23
        %v1427 = vsub.s32 %v1426, 127
        %v1428 = vand.u32 2147483647, %v1036
        %v1429 = vand.u32 %v1428, 8388607
        %v1430 = vor.u32 %v1429, 8388608
        %v1431 = vsub.s32 0, %v1430
        %v1432 = vadd.s32 %v1427, 1
        %vm1433 = vcmp.gt.s32.totalorder %v1432, 0
        %v1434 = vsel %vm1433, %v1432, 0
        %v1435 = vshrl.u32 %v1434, 5
        %v1436 = vand.u32 %v1434, 31
        %v1437 = vsub.s32 32, %v1436
        %v1438 = vshrl.u32 683565275, %v1437
        %v1439 = vshll.u32 683565275, %v1436
        %v1440 = vshrl.u32 2475754826, %v1437
        %v1441 = vor.u32 %v1439, %v1440
        %v1442 = vshll.u32 2475754826, %v1436
        %v1443 = vshrl.u32 2131351028, %v1437
        %v1444 = vor.u32 %v1442, %v1443
        %v1445 = vshll.u32 2131351028, %v1436
        %v1446 = vshrl.u32 2102212464, %v1437
        %v1447 = vor.u32 %v1445, %v1446
        %v1448 = vshll.u32 2102212464, %v1436
        %v1449 = vshrl.u32 920167782, %v1437
        %v1450 = vor.u32 %v1448, %v1449
        %v1451 = vshll.u32 920167782, %v1436
        %v1452 = vshrl.u32 1326507024, %v1437
        %v1453 = vor.u32 %v1451, %v1452
        %vm1454 = vcmp.lt.s32.totalorder %v1435, 1
        %vm1455 = vcmp.lt.s32.totalorder %v1435, 2
        %vm1456 = vcmp.lt.s32.totalorder %v1435, 3
        %vm1457 = vcmp.lt.s32.totalorder %v1435, 4
        %v1458 = vsel %vm1454, %v1438, %v1441
        %v1459 = vsel %vm1457, %v1447, 2102212464
        %v1460 = vsel %vm1456, %v1444, %v1459
        %v1461 = vsel %vm1455, %v1458, %v1460
        %v1462 = vsel %vm1454, %v1441, %v1444
        %v1463 = vsel %vm1457, %v1450, 920167782
        %v1464 = vsel %vm1456, %v1447, %v1463
        %v1465 = vsel %vm1455, %v1462, %v1464
        %v1466 = vsel %vm1454, %v1444, %v1447
        %v1467 = vsel %vm1457, %v1453, 1326507024
        %v1468 = vsel %vm1456, %v1450, %v1467
        %v1469 = vsel %vm1455, %v1466, %v1468
        %v1470 = vshll.u32 %v1430, 8
        %v1471 = vand.u32 %v1470, 65535
        %v1472 = vshrl.u32 %v1470, 16
        %v1473 = vand.u32 %v1469, 65535
        %v1474 = vshrl.u32 %v1469, 16
        %v1475 = vmul.u32 %v1471, %v1473
        %v1476 = vmul.u32 %v1471, %v1474
        %v1477 = vmul.u32 %v1472, %v1473
        %v1478 = vmul.u32 %v1472, %v1474
        %v1479 = vshll.u32 %v1476, 16
        %v1480 = vshrl.u32 %v1476, 16
        %v1481 = vshll.u32 %v1477, 16
        %v1482 = vshrl.u32 %v1477, 16
        %vm1483 = vc.u32 %v1475, %v1479
        %v1484 = vsel %vm1483, 1, 0
        %v1485 = vadd.s32 %v1475, %v1479
        %v1486 = vadd.s32 %v1478, %v1484
        %vm1487 = vc.u32 %v1485, %v1481
        %v1488 = vsel %vm1487, 1, 0
        %v1489 = vadd.s32 %v1485, %v1481
        %v1490 = vadd.s32 %v1486, %v1488
        %v1491 = vadd.s32 %v1490, %v1480
        %v1492 = vadd.s32 %v1491, %v1482
        %v1493 = vand.u32 %v1470, 65535
        %v1494 = vshrl.u32 %v1470, 16
        %v1495 = vand.u32 %v1465, 65535
        %v1496 = vshrl.u32 %v1465, 16
        %v1497 = vmul.u32 %v1493, %v1495
        %v1498 = vmul.u32 %v1493, %v1496
        %v1499 = vmul.u32 %v1494, %v1495
        %v1500 = vmul.u32 %v1494, %v1496
        %v1501 = vshll.u32 %v1498, 16
        %v1502 = vshrl.u32 %v1498, 16
        %v1503 = vshll.u32 %v1499, 16
        %v1504 = vshrl.u32 %v1499, 16
        %vm1505 = vc.u32 %v1497, %v1501
        %v1506 = vsel %vm1505, 1, 0
        %v1507 = vadd.s32 %v1497, %v1501
        %v1508 = vadd.s32 %v1500, %v1506
        %vm1509 = vc.u32 %v1507, %v1503
        %v1510 = vsel %vm1509, 1, 0
        %v1511 = vadd.s32 %v1507, %v1503
        %v1512 = vadd.s32 %v1508, %v1510
        %v1513 = vadd.s32 %v1512, %v1502
        %v1514 = vadd.s32 %v1513, %v1504
        %v1515 = vmul.u32 %v1470, %v1461
        %v1516 = vadd.s32 %v1492, %v1511
        %vm1517 = vc.u32 %v1492, %v1511
        %v1518 = vadd.s32 %v1514, 1
        %v1519 = vsel %vm1517, %v1518, %v1514
        %v1520 = vadd.s32 %v1515, %v1519
        %v1521 = vadd.s32 %v1520, 536870912
        %v1522 = vshrl.u32 %v1521, 30
        %v1523 = vshll.u32 %v1522, 30
        %v1524 = vsub.s32 %v1520, %v1523
        %vm1525 = vcmp.lt.s32.totalorder %v1524, 0
        %v1526 = vsub.s32 0, %v1524
        %v1527 = vsel %vm1525, %v1526, %v1524
        %v1528 = vclz %v1527
        %v1529 = vsub.s32 %v1528, 2
        %vm1530 = vcmp.gt.s32.totalorder 0, %v1529
        %v1531 = vsel %vm1530, 0, %v1529
        %v1532 = vsub.s32 32, %v1531
        %v1533 = vshll.u32 %v1524, %v1531
        %v1534 = vshrl.u32 %v1516, %v1532
        %v1535 = vor.u32 %v1533, %v1534
        %v1536 = vsub.s32 4294967266, %v1531
        %v1537 = vadd.s32 %v1536, 127
        %v1538 = vshll.u32 %v1537, 23
        %v1539 = vor.u32 4788187, %v1538
        %v1540 = vand.u32 2147483647, %v1539
        %v1542 = vcvt.s32.f32 %v1535
        %v1543 = vmul.f32 %v1542, %v1540
        %v1544 = vxor.u32 %v1543, 2147483648
        %v1545 = vsel %vm1424, %v1544, %v1543
        %v1546 = vsub.s32 4, %v1522
        %v1547 = vsel %vm1424, %v1546, %v1522
        %v1548 = vsel %vm1423, %v1036, %v1545
        %v1549 = vsel %vm1423, 0, %v1547
        %v1550 = vmul.f32 %v1548, %v1548
        %v1551 = vmul.f32 %v1550, -0.001358992
        %v1552 = vadd.f32 %v1551, 0.041655596
        %v1553 = vmul.f32 %v1550, %v1552
        %v1554 = vadd.f32 %v1553, -0.4999988
        %v1555 = vmul.f32 %v1550, %v1554
        %v1556 = vadd.f32 1.0, %v1555
        %v1557 = vmul.f32 %v1548, %v1548
        %v1558 = vmul.f32 %v1557, -0.00019511016
        %v1559 = vadd.f32 %v1558, 0.008332121
        %v1560 = vmul.f32 %v1557, %v1559
        %v1561 = vadd.f32 %v1560, -0.16666654
        %v1562 = vmul.f32 %v1557, %v1561
        %v1563 = vadd.f32 %v1562, 1.0
        %v1564 = vmul.f32 %v1563, %v1548
        %vm1565 = vweird.f32 %v1036
        %v1566 = vand.u32 %v1549, 3
        %vm1567 = vcmp.lt.s32.totalorder %v1566, 2
        %vm1568 = vcmp.eq.s32.totalorder %v1566, 0
        %v1569 = vxor.u32 %v1564, 2147483648
        %v1570 = vsel %vm1568, %v1556, %v1569
        %vm1571 = vcmp.eq.s32.totalorder %v1566, 2
        %v1572 = vxor.u32 %v1556, 2147483648
        %v1573 = vsel %vm1571, %v1572, %v1564
        %v1574 = vsel %vm1567, %v1570, %v1573
        %v1575 = vsel %vm1565, nan, %v1574
        %v1576 = vand.u32 2147483647, %v1037
        %vm1577 = vcmp.le.f32.partialorder %v1576, 0.7853982
        %vm1578 = vcmp.lt.s32.totalorder %v1037, 0
        %v1579 = vand.u32 %v1037, 2139095040
        %v1580 = vshrl.u32 %v1579, 23
        %v1581 = vsub.s32 %v1580, 127
        %v1582 = vand.u32 2147483647, %v1037
        %v1583 = vand.u32 %v1582, 8388607
        %v1584 = vor.u32 %v1583, 8388608
        %v1585 = vsub.s32 0, %v1584
        %v1586 = vadd.s32 %v1581, 1
        %vm1587 = vcmp.gt.s32.totalorder %v1586, 0
        %v1588 = vsel %vm1587, %v1586, 0
        %v1589 = vshrl.u32 %v1588, 5
        %v1590 = vand.u32 %v1588, 31
        %v1591 = vsub.s32 32, %v1590
        %v1592 = vshrl.u32 683565275, %v1591
        %v1593 = vshll.u32 683565275, %v1590
        %v1594 = vshrl.u32 2475754826, %v1591
        %v1595 = vor.u32 %v1593, %v1594
        %v1596 = vshll.u32 2475754826, %v1590
        %v1597 = vshrl.u32 2131351028, %v1591
        %v1598 = vor.u32 %v1596, %v1597
        %v1599 = vshll.u32 2131351028, %v1590
        %v1600 = vshrl.u32 2102212464, %v1591
        %v1601 = vor.u32 %v1599, %v1600
        %v1602 = vshll.u32 2102212464, %v1590
        %v1603 = vshrl.u32 920167782, %v1591
        %v1604 = vor.u32 %v1602, %v1603
        %v1605 = vshll.u32 920167782, %v1590
        %v1606 = vshrl.u32 1326507024, %v1591
        %v1607 = vor.u32 %v1605, %v1606
        %vm1608 = vcmp.lt.s32.totalorder %v1589, 1
        %vm1609 = vcmp.lt.s32.totalorder %v1589, 2
        %vm1610 = vcmp.lt.s32.totalorder %v1589, 3
        %vm1611 = vcmp.lt.s32.totalorder %v1589, 4
        %v1612 = vsel %vm1608, %v1592, %v1595
        %v1613 = vsel %vm1611, %v1601, 2102212464
        %v1614 = vsel %vm1610, %v1598, %v1613
        %v1615 = vsel %vm1609, %v1612, %v1614
        %v1616 = vsel %vm1608, %v1595, %v1598
        %v1617 = vsel %vm1611, %v1604, 920167782
        %v1618 = vsel %vm1610, %v1601, %v1617
        %v1619 = vsel %vm1609, %v1616, %v1618
        %v1620 = vsel %vm1608, %v1598, %v1601
        %v1621 = vsel %vm1611, %v1607, 1326507024
        %v1622 = vsel %vm1610, %v1604, %v1621
        %v1623 = vsel %vm1609, %v1620, %v1622
        %v1624 = vshll.u32 %v1584, 8
        %v1625 = vand.u32 %v1624, 65535
        %v1626 = vshrl.u32 %v1624, 16
        %v1627 = vand.u32 %v1623, 65535
        %v1628 = vshrl.u32 %v1623, 16
        %v1629 = vmul.u32 %v1625, %v1627
        %v1630 = vmul.u32 %v1625, %v1628
        %v1631 = vmul.u32 %v1626, %v1627
        %v1632 = vmul.u32 %v1626, %v1628
        %v1633 = vshll.u32 %v1630, 16
        %v1634 = vshrl.u32 %v1630, 16
        %v1635 = vshll.u32 %v1631, 16
        %v1636 = vshrl.u32 %v1631, 16
        %vm1637 = vc.u32 %v1629, %v1633
        %v1638 = vsel %vm1637, 1, 0
        %v1639 = vadd.s32 %v1629, %v1633
        %v1640 = vadd.s32 %v1632, %v1638
        %vm1641 = vc.u32 %v1639, %v1635
        %v1642 = vsel %vm1641, 1, 0
        %v1643 = vadd.s32 %v1639, %v1635
        %v1644 = vadd.s32 %v1640, %v1642
        %v1645 = vadd.s32 %v1644, %v1634
        %v1646 = vadd.s32 %v1645, %v1636
        %v1647 = vand.u32 %v1624, 65535
        %v1648 = vshrl.u32 %v1624, 16
        %v1649 = vand.u32 %v1619, 65535
        %v1650 = vshrl.u32 %v1619, 16
        %v1651 = vmul.u32 %v1647, %v1649
        %v1652 = vmul.u32 %v1647, %v1650
        %v1653 = vmul.u32 %v1648, %v1649
        %v1654 = vmul.u32 %v1648, %v1650
        %v1655 = vshll.u32 %v1652, 16
        %v1656 = vshrl.u32 %v1652, 16
        %v1657 = vshll.u32 %v1653, 16
        %v1658 = vshrl.u32 %v1653, 16
        %vm1659 = vc.u32 %v1651, %v1655
        %v1660 = vsel %vm1659, 1, 0
        %v1661 = vadd.s32 %v1651, %v1655
        %v1662 = vadd.s32 %v1654, %v1660
        %vm1663 = vc.u32 %v1661, %v1657
        %v1664 = vsel %vm1663, 1, 0
        %v1665 = vadd.s32 %v1661, %v1657
        %v1666 = vadd.s32 %v1662, %v1664
        %v1667 = vadd.s32 %v1666, %v1656
        %v1668 = vadd.s32 %v1667, %v1658
        %v1669 = vmul.u32 %v1624, %v1615
        %v1670 = vadd.s32 %v1646, %v1665
        %vm1671 = vc.u32 %v1646, %v1665
        %v1672 = vadd.s32 %v1668, 1
        %v1673 = vsel %vm1671, %v1672, %v1668
        %v1674 = vadd.s32 %v1669, %v1673
        %v1675 = vadd.s32 %v1674, 536870912
        %v1676 = vshrl.u32 %v1675, 30
        %v1677 = vshll.u32 %v1676, 30
        %v1678 = vsub.s32 %v1674, %v1677
        %vm1679 = vcmp.lt.s32.totalorder %v1678, 0
        %v1680 = vsub.s32 0, %v1678
        %v1681 = vsel %vm1679, %v1680, %v1678
        %v1682 = vclz %v1681
        %v1683 = vsub.s32 %v1682, 2
        %vm1684 = vcmp.gt.s32.totalorder 0, %v1683
        %v1685 = vsel %vm1684, 0, %v1683
        %v1686 = vsub.s32 32, %v1685
        %v1687 = vshll.u32 %v1678, %v1685
        %v1688 = vshrl.u32 %v1670, %v1686
        %v1689 = vor.u32 %v1687, %v1688
        %v1690 = vsub.s32 4294967266, %v1685
        %v1691 = vadd.s32 %v1690, 127
        %v1692 = vshll.u32 %v1691, 23
        %v1693 = vor.u32 4788187, %v1692
        %v1694 = vand.u32 2147483647, %v1693
        %v1696 = vcvt.s32.f32 %v1689
        %v1697 = vmul.f32 %v1696, %v1694
        %v1698 = vxor.u32 %v1697, 2147483648
        %v1699 = vsel %vm1578, %v1698, %v1697
        %v1700 = vsub.s32 4, %v1676
        %v1701 = vsel %vm1578, %v1700, %v1676
        %v1702 = vsel %vm1577, %v1037, %v1699
        %v1703 = vsel %vm1577, 0, %v1701
        %v1704 = vmul.f32 %v1702, %v1702
        %v1705 = vmul.f32 %v1704, -0.001358992
        %v1706 = vadd.f32 %v1705, 0.041655596
        %v1707 = vmul.f32 %v1704, %v1706
        %v1708 = vadd.f32 %v1707, -0.4999988
        %v1709 = vmul.f32 %v1704, %v1708
        %v1710 = vadd.f32 1.0, %v1709
        %v1711 = vmul.f32 %v1702, %v1702
        %v1712 = vmul.f32 %v1711, -0.00019511016
        %v1713 = vadd.f32 %v1712, 0.008332121
        %v1714 = vmul.f32 %v1711, %v1713
        %v1715 = vadd.f32 %v1714, -0.16666654
        %v1716 = vmul.f32 %v1711, %v1715
        %v1717 = vadd.f32 %v1716, 1.0
        %v1718 = vmul.f32 %v1717, %v1702
        %vm1719 = vweird.f32 %v1037
        %v1720 = vand.u32 %v1703, 3
        %vm1721 = vcmp.lt.s32.totalorder %v1720, 2
        %vm1722 = vcmp.eq.s32.totalorder %v1720, 0
        %v1723 = vxor.u32 %v1718, 2147483648
        %v1724 = vsel %vm1722, %v1710, %v1723
        %vm1725 = vcmp.eq.s32.totalorder %v1720, 2
        %v1726 = vxor.u32 %v1710, 2147483648
        %v1727 = vsel %vm1725, %v1726, %v1718
        %v1728 = vsel %vm1721, %v1724, %v1727
        %v1729 = vsel %vm1719, nan, %v1728
        %v1730 = vand.u32 2147483647, %v1038
        %vm1731 = vcmp.le.f32.partialorder %v1730, 0.7853982
        %vm1732 = vcmp.lt.s32.totalorder %v1038, 0
        %v1733 = vand.u32 %v1038, 2139095040
        %v1734 = vshrl.u32 %v1733, 23
        %v1735 = vsub.s32 %v1734, 127
        %v1736 = vand.u32 2147483647, %v1038
        %v1737 = vand.u32 %v1736, 8388607
        %v1738 = vor.u32 %v1737, 8388608
        %v1739 = vsub.s32 0, %v1738
        %v1740 = vadd.s32 %v1735, 1
        %vm1741 = vcmp.gt.s32.totalorder %v1740, 0
        %v1742 = vsel %vm1741, %v1740, 0
        %v1743 = vshrl.u32 %v1742, 5
        %v1744 = vand.u32 %v1742, 31
        %v1745 = vsub.s32 32, %v1744
        %v1746 = vshrl.u32 683565275, %v1745
        %v1747 = vshll.u32 683565275, %v1744
        %v1748 = vshrl.u32 2475754826, %v1745
        %v1749 = vor.u32 %v1747, %v1748
        %v1750 = vshll.u32 2475754826, %v1744
        %v1751 = vshrl.u32 2131351028, %v1745
        %v1752 = vor.u32 %v1750, %v1751
        %v1753 = vshll.u32 2131351028, %v1744
        %v1754 = vshrl.u32 2102212464, %v1745
        %v1755 = vor.u32 %v1753, %v1754
        %v1756 = vshll.u32 2102212464, %v1744
        %v1757 = vshrl.u32 920167782, %v1745
        %v1758 = vor.u32 %v1756, %v1757
        %v1759 = vshll.u32 920167782, %v1744
        %v1760 = vshrl.u32 1326507024, %v1745
        %v1761 = vor.u32 %v1759, %v1760
        %vm1762 = vcmp.lt.s32.totalorder %v1743, 1
        %vm1763 = vcmp.lt.s32.totalorder %v1743, 2
        %vm1764 = vcmp.lt.s32.totalorder %v1743, 3
        %vm1765 = vcmp.lt.s32.totalorder %v1743, 4
        %v1766 = vsel %vm1762, %v1746, %v1749
        %v1767 = vsel %vm1765, %v1755, 2102212464
        %v1768 = vsel %vm1764, %v1752, %v1767
        %v1769 = vsel %vm1763, %v1766, %v1768
        %v1770 = vsel %vm1762, %v1749, %v1752
        %v1771 = vsel %vm1765, %v1758, 920167782
        %v1772 = vsel %vm1764, %v1755, %v1771
        %v1773 = vsel %vm1763, %v1770, %v1772
        %v1774 = vsel %vm1762, %v1752, %v1755
        %v1775 = vsel %vm1765, %v1761, 1326507024
        %v1776 = vsel %vm1764, %v1758, %v1775
        %v1777 = vsel %vm1763, %v1774, %v1776
        %v1778 = vshll.u32 %v1738, 8
        %v1779 = vand.u32 %v1778, 65535
        %v1780 = vshrl.u32 %v1778, 16
        %v1781 = vand.u32 %v1777, 65535
        %v1782 = vshrl.u32 %v1777, 16
        %v1783 = vmul.u32 %v1779, %v1781
        %v1784 = vmul.u32 %v1779, %v1782
        %v1785 = vmul.u32 %v1780, %v1781
        %v1786 = vmul.u32 %v1780, %v1782
        %v1787 = vshll.u32 %v1784, 16
        %v1788 = vshrl.u32 %v1784, 16
        %v1789 = vshll.u32 %v1785, 16
        %v1790 = vshrl.u32 %v1785, 16
        %vm1791 = vc.u32 %v1783, %v1787
        %v1792 = vsel %vm1791, 1, 0
        %v1793 = vadd.s32 %v1783, %v1787
        %v1794 = vadd.s32 %v1786, %v1792
        %vm1795 = vc.u32 %v1793, %v1789
        %v1796 = vsel %vm1795, 1, 0
        %v1797 = vadd.s32 %v1793, %v1789
        %v1798 = vadd.s32 %v1794, %v1796
        %v1799 = vadd.s32 %v1798, %v1788
        %v1800 = vadd.s32 %v1799, %v1790
        %v1801 = vand.u32 %v1778, 65535
        %v1802 = vshrl.u32 %v1778, 16
        %v1803 = vand.u32 %v1773, 65535
        %v1804 = vshrl.u32 %v1773, 16
        %v1805 = vmul.u32 %v1801, %v1803
        %v1806 = vmul.u32 %v1801, %v1804
        %v1807 = vmul.u32 %v1802, %v1803
        %v1808 = vmul.u32 %v1802, %v1804
        %v1809 = vshll.u32 %v1806, 16
        %v1810 = vshrl.u32 %v1806, 16
        %v1811 = vshll.u32 %v1807, 16
        %v1812 = vshrl.u32 %v1807, 16
        %vm1813 = vc.u32 %v1805, %v1809
        %v1814 = vsel %vm1813, 1, 0
        %v1815 = vadd.s32 %v1805, %v1809
        %v1816 = vadd.s32 %v1808, %v1814
        %vm1817 = vc.u32 %v1815, %v1811
        %v1818 = vsel %vm1817, 1, 0
        %v1819 = vadd.s32 %v1815, %v1811
        %v1820 = vadd.s32 %v1816, %v1818
        %v1821 = vadd.s32 %v1820, %v1810
        %v1822 = vadd.s32 %v1821, %v1812
        %v1823 = vmul.u32 %v1778, %v1769
        %v1824 = vadd.s32 %v1800, %v1819
        %vm1825 = vc.u32 %v1800, %v1819
        %v1826 = vadd.s32 %v1822, 1
        %v1827 = vsel %vm1825, %v1826, %v1822
        %v1828 = vadd.s32 %v1823, %v1827
        %v1829 = vadd.s32 %v1828, 536870912
        %v1830 = vshrl.u32 %v1829, 30
        %v1831 = vshll.u32 %v1830, 30
        %v1832 = vsub.s32 %v1828, %v1831
        %vm1833 = vcmp.lt.s32.totalorder %v1832, 0
        %v1834 = vsub.s32 0, %v1832
        %v1835 = vsel %vm1833, %v1834, %v1832
        %v1836 = vclz %v1835
        %v1837 = vsub.s32 %v1836, 2
        %vm1838 = vcmp.gt.s32.totalorder 0, %v1837
        %v1839 = vsel %vm1838, 0, %v1837
        %v1840 = vsub.s32 32, %v1839
        %v1841 = vshll.u32 %v1832, %v1839
        %v1842 = vshrl.u32 %v1824, %v1840
        %v1843 = vor.u32 %v1841, %v1842
        %v1844 = vsub.s32 4294967266, %v1839
        %v1845 = vadd.s32 %v1844, 127
        %v1846 = vshll.u32 %v1845, 23
        %v1847 = vor.u32 4788187, %v1846
        %v1848 = vand.u32 2147483647, %v1847
        %v1850 = vcvt.s32.f32 %v1843
        %v1851 = vmul.f32 %v1850, %v1848
        %v1852 = vxor.u32 %v1851, 2147483648
        %v1853 = vsel %vm1732, %v1852, %v1851
        %v1854 = vsub.s32 4, %v1830
        %v1855 = vsel %vm1732, %v1854, %v1830
        %v1856 = vsel %vm1731, %v1038, %v1853
        %v1857 = vsel %vm1731, 0, %v1855
        %v1858 = vmul.f32 %v1856, %v1856
        %v1859 = vmul.f32 %v1858, -0.001358992
        %v1860 = vadd.f32 %v1859, 0.041655596
        %v1861 = vmul.f32 %v1858, %v1860
        %v1862 = vadd.f32 %v1861, -0.4999988
        %v1863 = vmul.f32 %v1858, %v1862
        %v1864 = vadd.f32 1.0, %v1863
        %v1865 = vmul.f32 %v1856, %v1856
        %v1866 = vmul.f32 %v1865, -0.00019511016
        %v1867 = vadd.f32 %v1866, 0.008332121
        %v1868 = vmul.f32 %v1865, %v1867
        %v1869 = vadd.f32 %v1868, -0.16666654
        %v1870 = vmul.f32 %v1865, %v1869
        %v1871 = vadd.f32 %v1870, 1.0
        %v1872 = vmul.f32 %v1871, %v1856
        %vm1873 = vweird.f32 %v1038
        %v1874 = vand.u32 %v1857, 3
        %vm1875 = vcmp.lt.s32.totalorder %v1874, 2
        %vm1876 = vcmp.eq.s32.totalorder %v1874, 0
        %v1877 = vxor.u32 %v1872, 2147483648
        %v1878 = vsel %vm1876, %v1864, %v1877
        %vm1879 = vcmp.eq.s32.totalorder %v1874, 2
        %v1880 = vxor.u32 %v1864, 2147483648
        %v1881 = vsel %vm1879, %v1880, %v1872
        %v1882 = vsel %vm1875, %v1878, %v1881
        %v1883 = vsel %vm1873, nan, %v1882
        %v1884 = vand.u32 2147483647, %v1039
        %vm1885 = vcmp.le.f32.partialorder %v1884, 0.7853982
        %vm1886 = vcmp.lt.s32.totalorder %v1039, 0
        %v1887 = vand.u32 %v1039, 2139095040
        %v1888 = vshrl.u32 %v1887, 23
        %v1889 = vsub.s32 %v1888, 127
        %v1890 = vand.u32 2147483647, %v1039
        %v1891 = vand.u32 %v1890, 8388607
        %v1892 = vor.u32 %v1891, 8388608
        %v1893 = vsub.s32 0, %v1892
        %v1894 = vadd.s32 %v1889, 1
        %vm1895 = vcmp.gt.s32.totalorder %v1894, 0
        %v1896 = vsel %vm1895, %v1894, 0
        %v1897 = vshrl.u32 %v1896, 5
        %v1898 = vand.u32 %v1896, 31
        %v1899 = vsub.s32 32, %v1898
        %v1900 = vshrl.u32 683565275, %v1899
        %v1901 = vshll.u32 683565275, %v1898
        %v1902 = vshrl.u32 2475754826, %v1899
        %v1903 = vor.u32 %v1901, %v1902
        %v1904 = vshll.u32 2475754826, %v1898
        %v1905 = vshrl.u32 2131351028, %v1899
        %v1906 = vor.u32 %v1904, %v1905
        %v1907 = vshll.u32 2131351028, %v1898
        %v1908 = vshrl.u32 2102212464, %v1899
        %v1909 = vor.u32 %v1907, %v1908
        %v1910 = vshll.u32 2102212464, %v1898
        %v1911 = vshrl.u32 920167782, %v1899
        %v1912 = vor.u32 %v1910, %v1911
        %v1913 = vshll.u32 920167782, %v1898
        %v1914 = vshrl.u32 1326507024, %v1899
        %v1915 = vor.u32 %v1913, %v1914
        %vm1916 = vcmp.lt.s32.totalorder %v1897, 1
        %vm1917 = vcmp.lt.s32.totalorder %v1897, 2
        %vm1918 = vcmp.lt.s32.totalorder %v1897, 3
        %vm1919 = vcmp.lt.s32.totalorder %v1897, 4
        %v1920 = vsel %vm1916, %v1900, %v1903
        %v1921 = vsel %vm1919, %v1909, 2102212464
        %v1922 = vsel %vm1918, %v1906, %v1921
        %v1923 = vsel %vm1917, %v1920, %v1922
        %v1924 = vsel %vm1916, %v1903, %v1906
        %v1925 = vsel %vm1919, %v1912, 920167782
        %v1926 = vsel %vm1918, %v1909, %v1925
        %v1927 = vsel %vm1917, %v1924, %v1926
        %v1928 = vsel %vm1916, %v1906, %v1909
        %v1929 = vsel %vm1919, %v1915, 1326507024
        %v1930 = vsel %vm1918, %v1912, %v1929
        %v1931 = vsel %vm1917, %v1928, %v1930
        %v1932 = vshll.u32 %v1892, 8
        %v1933 = vand.u32 %v1932, 65535
        %v1934 = vshrl.u32 %v1932, 16
        %v1935 = vand.u32 %v1931, 65535
        %v1936 = vshrl.u32 %v1931, 16
        %v1937 = vmul.u32 %v1933, %v1935
        %v1938 = vmul.u32 %v1933, %v1936
        %v1939 = vmul.u32 %v1934, %v1935
        %v1940 = vmul.u32 %v1934, %v1936
        %v1941 = vshll.u32 %v1938, 16
        %v1942 = vshrl.u32 %v1938, 16
        %v1943 = vshll.u32 %v1939, 16
        %v1944 = vshrl.u32 %v1939, 16
        %vm1945 = vc.u32 %v1937, %v1941
        %v1946 = vsel %vm1945, 1, 0
        %v1947 = vadd.s32 %v1937, %v1941
        %v1948 = vadd.s32 %v1940, %v1946
        %vm1949 = vc.u32 %v1947, %v1943
        %v1950 = vsel %vm1949, 1, 0
        %v1951 = vadd.s32 %v1947, %v1943
        %v1952 = vadd.s32 %v1948, %v1950
        %v1953 = vadd.s32 %v1952, %v1942
        %v1954 = vadd.s32 %v1953, %v1944
        %v1955 = vand.u32 %v1932, 65535
        %v1956 = vshrl.u32 %v1932, 16
        %v1957 = vand.u32 %v1927, 65535
        %v1958 = vshrl.u32 %v1927, 16
        %v1959 = vmul.u32 %v1955, %v1957
        %v1960 = vmul.u32 %v1955, %v1958
        %v1961 = vmul.u32 %v1956, %v1957
        %v1962 = vmul.u32 %v1956, %v1958
        %v1963 = vshll.u32 %v1960, 16
        %v1964 = vshrl.u32 %v1960, 16
        %v1965 = vshll.u32 %v1961, 16
        %v1966 = vshrl.u32 %v1961, 16
        %vm1967 = vc.u32 %v1959, %v1963
        %v1968 = vsel %vm1967, 1, 0
        %v1969 = vadd.s32 %v1959, %v1963
        %v1970 = vadd.s32 %v1962, %v1968
        %vm1971 = vc.u32 %v1969, %v1965
        %v1972 = vsel %vm1971, 1, 0
        %v1973 = vadd.s32 %v1969, %v1965
        %v1974 = vadd.s32 %v1970, %v1972
        %v1975 = vadd.s32 %v1974, %v1964
        %v1976 = vadd.s32 %v1975, %v1966
        %v1977 = vmul.u32 %v1932, %v1923
        %v1978 = vadd.s32 %v1954, %v1973
        %vm1979 = vc.u32 %v1954, %v1973
        %v1980 = vadd.s32 %v1976, 1
        %v1981 = vsel %vm1979, %v1980, %v1976
        %v1982 = vadd.s32 %v1977, %v1981
        %v1983 = vadd.s32 %v1982, 536870912
        %v1984 = vshrl.u32 %v1983, 30
        %v1985 = vshll.u32 %v1984, 30
        %v1986 = vsub.s32 %v1982, %v1985
        %vm1987 = vcmp.lt.s32.totalorder %v1986, 0
        %v1988 = vsub.s32 0, %v1986
        %v1989 = vsel %vm1987, %v1988, %v1986
        %v1990 = vclz %v1989
        %v1991 = vsub.s32 %v1990, 2
        %vm1992 = vcmp.gt.s32.totalorder 0, %v1991
        %v1993 = vsel %vm1992, 0, %v1991
        %v1994 = vsub.s32 32, %v1993
        %v1995 = vshll.u32 %v1986, %v1993
        %v1996 = vshrl.u32 %v1978, %v1994
        %v1997 = vor.u32 %v1995, %v1996
        %v1998 = vsub.s32 4294967266, %v1993
        %v1999 = vadd.s32 %v1998, 127
        %v2000 = vshll.u32 %v1999, 23
        %v2001 = vor.u32 4788187, %v2000
        %v2002 = vand.u32 2147483647, %v2001
        %v2004 = vcvt.s32.f32 %v1997
        %v2005 = vmul.f32 %v2004, %v2002
        %v2006 = vxor.u32 %v2005, 2147483648
        %v2007 = vsel %vm1886, %v2006, %v2005
        %v2008 = vsub.s32 4, %v1984
        %v2009 = vsel %vm1886, %v2008, %v1984
        %v2010 = vsel %vm1885, %v1039, %v2007
        %v2011 = vsel %vm1885, 0, %v2009
        %v2012 = vmul.f32 %v2010, %v2010
        %v2013 = vmul.f32 %v2012, -0.001358992
        %v2014 = vadd.f32 %v2013, 0.041655596
        %v2015 = vmul.f32 %v2012, %v2014
        %v2016 = vadd.f32 %v2015, -0.4999988
        %v2017 = vmul.f32 %v2012, %v2016
        %v2018 = vadd.f32 1.0, %v2017
        %v2019 = vmul.f32 %v2010, %v2010
        %v2020 = vmul.f32 %v2019, -0.00019511016
        %v2021 = vadd.f32 %v2020, 0.008332121
        %v2022 = vmul.f32 %v2019, %v2021
        %v2023 = vadd.f32 %v2022, -0.16666654
        %v2024 = vmul.f32 %v2019, %v2023
        %v2025 = vadd.f32 %v2024, 1.0
        %v2026 = vmul.f32 %v2025, %v2010
        %vm2027 = vweird.f32 %v1039
        %v2028 = vand.u32 %v2011, 3
        %vm2029 = vcmp.lt.s32.totalorder %v2028, 2
        %vm2030 = vcmp.eq.s32.totalorder %v2028, 0
        %v2031 = vxor.u32 %v2026, 2147483648
        %v2032 = vsel %vm2030, %v2018, %v2031
        %vm2033 = vcmp.eq.s32.totalorder %v2028, 2
        %v2034 = vxor.u32 %v2018, 2147483648
        %v2035 = vsel %vm2033, %v2034, %v2026
        %v2036 = vsel %vm2029, %v2032, %v2035
        %v2037 = vsel %vm2027, nan, %v2036
        %v2038 = vand.u32 2147483647, %v1040
        %vm2039 = vcmp.le.f32.partialorder %v2038, 0.7853982
        %vm2040 = vcmp.lt.s32.totalorder %v1040, 0
        %v2041 = vand.u32 %v1040, 2139095040
        %v2042 = vshrl.u32 %v2041, 23
        %v2043 = vsub.s32 %v2042, 127
        %v2044 = vand.u32 2147483647, %v1040
        %v2045 = vand.u32 %v2044, 8388607
        %v2046 = vor.u32 %v2045, 8388608
        %v2047 = vsub.s32 0, %v2046
        %v2048 = vadd.s32 %v2043, 1
        %vm2049 = vcmp.gt.s32.totalorder %v2048, 0
        %v2050 = vsel %vm2049, %v2048, 0
        %v2051 = vshrl.u32 %v2050, 5
        %v2052 = vand.u32 %v2050, 31
        %v2053 = vsub.s32 32, %v2052
        %v2054 = vshrl.u32 683565275, %v2053
        %v2055 = vshll.u32 683565275, %v2052
        %v2056 = vshrl.u32 2475754826, %v2053
        %v2057 = vor.u32 %v2055, %v2056
        %v2058 = vshll.u32 2475754826, %v2052
        %v2059 = vshrl.u32 2131351028, %v2053
        %v2060 = vor.u32 %v2058, %v2059
        %v2061 = vshll.u32 2131351028, %v2052
        %v2062 = vshrl.u32 2102212464, %v2053
        %v2063 = vor.u32 %v2061, %v2062
        %v2064 = vshll.u32 2102212464, %v2052
        %v2065 = vshrl.u32 920167782, %v2053
        %v2066 = vor.u32 %v2064, %v2065
        %v2067 = vshll.u32 920167782, %v2052
        %v2068 = vshrl.u32 1326507024, %v2053
        %v2069 = vor.u32 %v2067, %v2068
        %vm2070 = vcmp.lt.s32.totalorder %v2051, 1
        %vm2071 = vcmp.lt.s32.totalorder %v2051, 2
        %vm2072 = vcmp.lt.s32.totalorder %v2051, 3
        %vm2073 = vcmp.lt.s32.totalorder %v2051, 4
        %v2074 = vsel %vm2070, %v2054, %v2057
        %v2075 = vsel %vm2073, %v2063, 2102212464
        %v2076 = vsel %vm2072, %v2060, %v2075
        %v2077 = vsel %vm2071, %v2074, %v2076
        %v2078 = vsel %vm2070, %v2057, %v2060
        %v2079 = vsel %vm2073, %v2066, 920167782
        %v2080 = vsel %vm2072, %v2063, %v2079
        %v2081 = vsel %vm2071, %v2078, %v2080
        %v2082 = vsel %vm2070, %v2060, %v2063
        %v2083 = vsel %vm2073, %v2069, 1326507024
        %v2084 = vsel %vm2072, %v2066, %v2083
        %v2085 = vsel %vm2071, %v2082, %v2084
        %v2086 = vshll.u32 %v2046, 8
        %v2087 = vand.u32 %v2086, 65535
        %v2088 = vshrl.u32 %v2086, 16
        %v2089 = vand.u32 %v2085, 65535
        %v2090 = vshrl.u32 %v2085, 16
        %v2091 = vmul.u32 %v2087, %v2089
        %v2092 = vmul.u32 %v2087, %v2090
        %v2093 = vmul.u32 %v2088, %v2089
        %v2094 = vmul.u32 %v2088, %v2090
        %v2095 = vshll.u32 %v2092, 16
        %v2096 = vshrl.u32 %v2092, 16
        %v2097 = vshll.u32 %v2093, 16
        %v2098 = vshrl.u32 %v2093, 16
        %vm2099 = vc.u32 %v2091, %v2095
        %v2100 = vsel %vm2099, 1, 0
        %v2101 = vadd.s32 %v2091, %v2095
        %v2102 = vadd.s32 %v2094, %v2100
        %vm2103 = vc.u32 %v2101, %v2097
        %v2104 = vsel %vm2103, 1, 0
        %v2105 = vadd.s32 %v2101, %v2097
        %v2106 = vadd.s32 %v2102, %v2104
        %v2107 = vadd.s32 %v2106, %v2096
        %v2108 = vadd.s32 %v2107, %v2098
        %v2109 = vand.u32 %v2086, 65535
        %v2110 = vshrl.u32 %v2086, 16
        %v2111 = vand.u32 %v2081, 65535
        %v2112 = vshrl.u32 %v2081, 16
        %v2113 = vmul.u32 %v2109, %v2111
        %v2114 = vmul.u32 %v2109, %v2112
        %v2115 = vmul.u32 %v2110, %v2111
        %v2116 = vmul.u32 %v2110, %v2112
        %v2117 = vshll.u32 %v2114, 16
        %v2118 = vshrl.u32 %v2114, 16
        %v2119 = vshll.u32 %v2115, 16
        %v2120 = vshrl.u32 %v2115, 16
        %vm2121 = vc.u32 %v2113, %v2117
        %v2122 = vsel %vm2121, 1, 0
        %v2123 = vadd.s32 %v2113, %v2117
        %v2124 = vadd.s32 %v2116, %v2122
        %vm2125 = vc.u32 %v2123, %v2119
        %v2126 = vsel %vm2125, 1, 0
        %v2127 = vadd.s32 %v2123, %v2119
        %v2128 = vadd.s32 %v2124, %v2126
        %v2129 = vadd.s32 %v2128, %v2118
        %v2130 = vadd.s32 %v2129, %v2120
        %v2131 = vmul.u32 %v2086, %v2077
        %v2132 = vadd.s32 %v2108, %v2127
        %vm2133 = vc.u32 %v2108, %v2127
        %v2134 = vadd.s32 %v2130, 1
        %v2135 = vsel %vm2133, %v2134, %v2130
        %v2136 = vadd.s32 %v2131, %v2135
        %v2137 = vadd.s32 %v2136, 536870912
        %v2138 = vshrl.u32 %v2137, 30
        %v2139 = vshll.u32 %v2138, 30
        %v2140 = vsub.s32 %v2136, %v2139
        %vm2141 = vcmp.lt.s32.totalorder %v2140, 0
        %v2142 = vsub.s32 0, %v2140
        %v2143 = vsel %vm2141, %v2142, %v2140
        %v2144 = vclz %v2143
        %v2145 = vsub.s32 %v2144, 2
        %vm2146 = vcmp.gt.s32.totalorder 0, %v2145
        %v2147 = vsel %vm2146, 0, %v2145
        %v2148 = vsub.s32 32, %v2147
        %v2149 = vshll.u32 %v2140, %v2147
        %v2150 = vshrl.u32 %v2132, %v2148
        %v2151 = vor.u32 %v2149, %v2150
        %v2152 = vsub.s32 4294967266, %v2147
        %v2153 = vadd.s32 %v2152, 127
        %v2154 = vshll.u32 %v2153, 23
        %v2155 = vor.u32 4788187, %v2154
        %v2156 = vand.u32 2147483647, %v2155
        %v2158 = vcvt.s32.f32 %v2151
        %v2159 = vmul.f32 %v2158, %v2156
        %v2160 = vxor.u32 %v2159, 2147483648
        %v2161 = vsel %vm2040, %v2160, %v2159
        %v2162 = vsub.s32 4, %v2138
        %v2163 = vsel %vm2040, %v2162, %v2138
        %v2164 = vsel %vm2039, %v1040, %v2161
        %v2165 = vsel %vm2039, 0, %v2163
        %v2166 = vmul.f32 %v2164, %v2164
        %v2167 = vmul.f32 %v2166, -0.001358992
        %v2168 = vadd.f32 %v2167, 0.041655596
        %v2169 = vmul.f32 %v2166, %v2168
        %v2170 = vadd.f32 %v2169, -0.4999988
        %v2171 = vmul.f32 %v2166, %v2170
        %v2172 = vadd.f32 1.0, %v2171
        %v2173 = vmul.f32 %v2164, %v2164
        %v2174 = vmul.f32 %v2173, -0.00019511016
        %v2175 = vadd.f32 %v2174, 0.008332121
        %v2176 = vmul.f32 %v2173, %v2175
        %v2177 = vadd.f32 %v2176, -0.16666654
        %v2178 = vmul.f32 %v2173, %v2177
        %v2179 = vadd.f32 %v2178, 1.0
        %v2180 = vmul.f32 %v2179, %v2164
        %vm2181 = vweird.f32 %v1040
        %v2182 = vand.u32 %v2165, 3
        %vm2183 = vcmp.lt.s32.totalorder %v2182, 2
        %vm2184 = vcmp.eq.s32.totalorder %v2182, 0
        %v2185 = vxor.u32 %v2180, 2147483648
        %v2186 = vsel %vm2184, %v2172, %v2185
        %vm2187 = vcmp.eq.s32.totalorder %v2182, 2
        %v2188 = vxor.u32 %v2172, 2147483648
        %v2189 = vsel %vm2187, %v2188, %v2180
        %v2190 = vsel %vm2183, %v2186, %v2189
        %v2191 = vsel %vm2181, nan, %v2190
        %v2192 = vand.u32 2147483647, %v1041
        %vm2193 = vcmp.le.f32.partialorder %v2192, 0.7853982
        %vm2194 = vcmp.lt.s32.totalorder %v1041, 0
        %v2195 = vand.u32 %v1041, 2139095040
        %v2196 = vshrl.u32 %v2195, 23
        %v2197 = vsub.s32 %v2196, 127
        %v2198 = vand.u32 2147483647, %v1041
        %v2199 = vand.u32 %v2198, 8388607
        %v2200 = vor.u32 %v2199, 8388608
        %v2201 = vsub.s32 0, %v2200
        %v2202 = vadd.s32 %v2197, 1
        %vm2203 = vcmp.gt.s32.totalorder %v2202, 0
        %v2204 = vsel %vm2203, %v2202, 0
        %v2205 = vshrl.u32 %v2204, 5
        %v2206 = vand.u32 %v2204, 31
        %v2207 = vsub.s32 32, %v2206
        %v2208 = vshrl.u32 683565275, %v2207
        %v2209 = vshll.u32 683565275, %v2206
        %v2210 = vshrl.u32 2475754826, %v2207
        %v2211 = vor.u32 %v2209, %v2210
        %v2212 = vshll.u32 2475754826, %v2206
        %v2213 = vshrl.u32 2131351028, %v2207
        %v2214 = vor.u32 %v2212, %v2213
        %v2215 = vshll.u32 2131351028, %v2206
        %v2216 = vshrl.u32 2102212464, %v2207
        %v2217 = vor.u32 %v2215, %v2216
        %v2218 = vshll.u32 2102212464, %v2206
        %v2219 = vshrl.u32 920167782, %v2207
        %v2220 = vor.u32 %v2218, %v2219
        %v2221 = vshll.u32 920167782, %v2206
        %v2222 = vshrl.u32 1326507024, %v2207
        %v2223 = vor.u32 %v2221, %v2222
        %vm2224 = vcmp.lt.s32.totalorder %v2205, 1
        %vm2225 = vcmp.lt.s32.totalorder %v2205, 2
        %vm2226 = vcmp.lt.s32.totalorder %v2205, 3
        %vm2227 = vcmp.lt.s32.totalorder %v2205, 4
        %v2228 = vsel %vm2224, %v2208, %v2211
        %v2229 = vsel %vm2227, %v2217, 2102212464
        %v2230 = vsel %vm2226, %v2214, %v2229
        %v2231 = vsel %vm2225, %v2228, %v2230
        %v2232 = vsel %vm2224, %v2211, %v2214
        %v2233 = vsel %vm2227, %v2220, 920167782
        %v2234 = vsel %vm2226, %v2217, %v2233
        %v2235 = vsel %vm2225, %v2232, %v2234
        %v2236 = vsel %vm2224, %v2214, %v2217
        %v2237 = vsel %vm2227, %v2223, 1326507024
        %v2238 = vsel %vm2226, %v2220, %v2237
        %v2239 = vsel %vm2225, %v2236, %v2238
        %v2240 = vshll.u32 %v2200, 8
        %v2241 = vand.u32 %v2240, 65535
        %v2242 = vshrl.u32 %v2240, 16
        %v2243 = vand.u32 %v2239, 65535
        %v2244 = vshrl.u32 %v2239, 16
        %v2245 = vmul.u32 %v2241, %v2243
        %v2246 = vmul.u32 %v2241, %v2244
        %v2247 = vmul.u32 %v2242, %v2243
        %v2248 = vmul.u32 %v2242, %v2244
        %v2249 = vshll.u32 %v2246, 16
        %v2250 = vshrl.u32 %v2246, 16
        %v2251 = vshll.u32 %v2247, 16
        %v2252 = vshrl.u32 %v2247, 16
        %vm2253 = vc.u32 %v2245, %v2249
        %v2254 = vsel %vm2253, 1, 0
        %v2255 = vadd.s32 %v2245, %v2249
        %v2256 = vadd.s32 %v2248, %v2254
        %vm2257 = vc.u32 %v2255, %v2251
        %v2258 = vsel %vm2257, 1, 0
        %v2259 = vadd.s32 %v2255, %v2251
        %v2260 = vadd.s32 %v2256, %v2258
        %v2261 = vadd.s32 %v2260, %v2250
        %v2262 = vadd.s32 %v2261, %v2252
        %v2263 = vand.u32 %v2240, 65535
        %v2264 = vshrl.u32 %v2240, 16
        %v2265 = vand.u32 %v2235, 65535
        %v2266 = vshrl.u32 %v2235, 16
        %v2267 = vmul.u32 %v2263, %v2265
        %v2268 = vmul.u32 %v2263, %v2266
        %v2269 = vmul.u32 %v2264, %v2265
        %v2270 = vmul.u32 %v2264, %v2266
        %v2271 = vshll.u32 %v2268, 16
        %v2272 = vshrl.u32 %v2268, 16
        %v2273 = vshll.u32 %v2269, 16
        %v2274 = vshrl.u32 %v2269, 16
        %vm2275 = vc.u32 %v2267, %v2271
        %v2276 = vsel %vm2275, 1, 0
        %v2277 = vadd.s32 %v2267, %v2271
        %v2278 = vadd.s32 %v2270, %v2276
        %vm2279 = vc.u32 %v2277, %v2273
        %v2280 = vsel %vm2279, 1, 0
        %v2281 = vadd.s32 %v2277, %v2273
        %v2282 = vadd.s32 %v2278, %v2280
        %v2283 = vadd.s32 %v2282, %v2272
        %v2284 = vadd.s32 %v2283, %v2274
        %v2285 = vmul.u32 %v2240, %v2231
        %v2286 = vadd.s32 %v2262, %v2281
        %vm2287 = vc.u32 %v2262, %v2281
        %v2288 = vadd.s32 %v2284, 1
        %v2289 = vsel %vm2287, %v2288, %v2284
        %v2290 = vadd.s32 %v2285, %v2289
        %v2291 = vadd.s32 %v2290, 536870912
        %v2292 = vshrl.u32 %v2291, 30
        %v2293 = vshll.u32 %v2292, 30
        %v2294 = vsub.s32 %v2290, %v2293
        %vm2295 = vcmp.lt.s32.totalorder %v2294, 0
        %v2296 = vsub.s32 0, %v2294
        %v2297 = vsel %vm2295, %v2296, %v2294
        %v2298 = vclz %v2297
        %v2299 = vsub.s32 %v2298, 2
        %vm2300 = vcmp.gt.s32.totalorder 0, %v2299
        %v2301 = vsel %vm2300, 0, %v2299
        %v2302 = vsub.s32 32, %v2301
        %v2303 = vshll.u32 %v2294, %v2301
        %v2304 = vshrl.u32 %v2286, %v2302
        %v2305 = vor.u32 %v2303, %v2304
        %v2306 = vsub.s32 4294967266, %v2301
        %v2307 = vadd.s32 %v2306, 127
        %v2308 = vshll.u32 %v2307, 23
        %v2309 = vor.u32 4788187, %v2308
        %v2310 = vand.u32 2147483647, %v2309
        %v2312 = vcvt.s32.f32 %v2305
        %v2313 = vmul.f32 %v2312, %v2310
        %v2314 = vxor.u32 %v2313, 2147483648
        %v2315 = vsel %vm2194, %v2314, %v2313
        %v2316 = vsub.s32 4, %v2292
        %v2317 = vsel %vm2194, %v2316, %v2292
        %v2318 = vsel %vm2193, %v1041, %v2315
        %v2319 = vsel %vm2193, 0, %v2317
        %v2320 = vmul.f32 %v2318, %v2318
        %v2321 = vmul.f32 %v2320, -0.001358992
        %v2322 = vadd.f32 %v2321, 0.041655596
        %v2323 = vmul.f32 %v2320, %v2322
        %v2324 = vadd.f32 %v2323, -0.4999988
        %v2325 = vmul.f32 %v2320, %v2324
        %v2326 = vadd.f32 1.0, %v2325
        %v2327 = vmul.f32 %v2318, %v2318
        %v2328 = vmul.f32 %v2327, -0.00019511016
        %v2329 = vadd.f32 %v2328, 0.008332121
        %v2330 = vmul.f32 %v2327, %v2329
        %v2331 = vadd.f32 %v2330, -0.16666654
        %v2332 = vmul.f32 %v2327, %v2331
        %v2333 = vadd.f32 %v2332, 1.0
        %v2334 = vmul.f32 %v2333, %v2318
        %vm2335 = vweird.f32 %v1041
        %v2336 = vand.u32 %v2319, 3
        %vm2337 = vcmp.lt.s32.totalorder %v2336, 2
        %vm2338 = vcmp.eq.s32.totalorder %v2336, 0
        %v2339 = vxor.u32 %v2334, 2147483648
        %v2340 = vsel %vm2338, %v2326, %v2339
        %vm2341 = vcmp.eq.s32.totalorder %v2336, 2
        %v2342 = vxor.u32 %v2326, 2147483648
        %v2343 = vsel %vm2341, %v2342, %v2334
        %v2344 = vsel %vm2337, %v2340, %v2343
        %v2345 = vsel %vm2335, nan, %v2344
        %v2346 = vand.u32 2147483647, %v1042
        %vm2347 = vcmp.le.f32.partialorder %v2346, 0.7853982
        %vm2348 = vcmp.lt.s32.totalorder %v1042, 0
        %v2349 = vand.u32 %v1042, 2139095040
        %v2350 = vshrl.u32 %v2349, 23
        %v2351 = vsub.s32 %v2350, 127
        %v2352 = vand.u32 2147483647, %v1042
        %v2353 = vand.u32 %v2352, 8388607
        %v2354 = vor.u32 %v2353, 8388608
        %v2355 = vsub.s32 0, %v2354
        %v2356 = vadd.s32 %v2351, 1
        %vm2357 = vcmp.gt.s32.totalorder %v2356, 0
        %v2358 = vsel %vm2357, %v2356, 0
        %v2359 = vshrl.u32 %v2358, 5
        %v2360 = vand.u32 %v2358, 31
        %v2361 = vsub.s32 32, %v2360
        %v2362 = vshrl.u32 683565275, %v2361
        %v2363 = vshll.u32 683565275, %v2360
        %v2364 = vshrl.u32 2475754826, %v2361
        %v2365 = vor.u32 %v2363, %v2364
        %v2366 = vshll.u32 2475754826, %v2360
        %v2367 = vshrl.u32 2131351028, %v2361
        %v2368 = vor.u32 %v2366, %v2367
        %v2369 = vshll.u32 2131351028, %v2360
        %v2370 = vshrl.u32 2102212464, %v2361
        %v2371 = vor.u32 %v2369, %v2370
        %v2372 = vshll.u32 2102212464, %v2360
        %v2373 = vshrl.u32 920167782, %v2361
        %v2374 = vor.u32 %v2372, %v2373
        %v2375 = vshll.u32 920167782, %v2360
        %v2376 = vshrl.u32 1326507024, %v2361
        %v2377 = vor.u32 %v2375, %v2376
        %vm2378 = vcmp.lt.s32.totalorder %v2359, 1
        %vm2379 = vcmp.lt.s32.totalorder %v2359, 2
        %vm2380 = vcmp.lt.s32.totalorder %v2359, 3
        %vm2381 = vcmp.lt.s32.totalorder %v2359, 4
        %v2382 = vsel %vm2378, %v2362, %v2365
        %v2383 = vsel %vm2381, %v2371, 2102212464
        %v2384 = vsel %vm2380, %v2368, %v2383
        %v2385 = vsel %vm2379, %v2382, %v2384
        %v2386 = vsel %vm2378, %v2365, %v2368
        %v2387 = vsel %vm2381, %v2374, 920167782
        %v2388 = vsel %vm2380, %v2371, %v2387
        %v2389 = vsel %vm2379, %v2386, %v2388
        %v2390 = vsel %vm2378, %v2368, %v2371
        %v2391 = vsel %vm2381, %v2377, 1326507024
        %v2392 = vsel %vm2380, %v2374, %v2391
        %v2393 = vsel %vm2379, %v2390, %v2392
        %v2394 = vshll.u32 %v2354, 8
        %v2395 = vand.u32 %v2394, 65535
        %v2396 = vshrl.u32 %v2394, 16
        %v2397 = vand.u32 %v2393, 65535
        %v2398 = vshrl.u32 %v2393, 16
        %v2399 = vmul.u32 %v2395, %v2397
        %v2400 = vmul.u32 %v2395, %v2398
        %v2401 = vmul.u32 %v2396, %v2397
        %v2402 = vmul.u32 %v2396, %v2398
        %v2403 = vshll.u32 %v2400, 16
        %v2404 = vshrl.u32 %v2400, 16
        %v2405 = vshll.u32 %v2401, 16
        %v2406 = vshrl.u32 %v2401, 16
        %vm2407 = vc.u32 %v2399, %v2403
        %v2408 = vsel %vm2407, 1, 0
        %v2409 = vadd.s32 %v2399, %v2403
        %v2410 = vadd.s32 %v2402, %v2408
        %vm2411 = vc.u32 %v2409, %v2405
        %v2412 = vsel %vm2411, 1, 0
        %v2413 = vadd.s32 %v2409, %v2405
        %v2414 = vadd.s32 %v2410, %v2412
        %v2415 = vadd.s32 %v2414, %v2404
        %v2416 = vadd.s32 %v2415, %v2406
        %v2417 = vand.u32 %v2394, 65535
        %v2418 = vshrl.u32 %v2394, 16
        %v2419 = vand.u32 %v2389, 65535
        %v2420 = vshrl.u32 %v2389, 16
        %v2421 = vmul.u32 %v2417, %v2419
        %v2422 = vmul.u32 %v2417, %v2420
        %v2423 = vmul.u32 %v2418, %v2419
        %v2424 = vmul.u32 %v2418, %v2420
        %v2425 = vshll.u32 %v2422, 16
        %v2426 = vshrl.u32 %v2422, 16
        %v2427 = vshll.u32 %v2423, 16
        %v2428 = vshrl.u32 %v2423, 16
        %vm2429 = vc.u32 %v2421, %v2425
        %v2430 = vsel %vm2429, 1, 0
        %v2431 = vadd.s32 %v2421, %v2425
        %v2432 = vadd.s32 %v2424, %v2430
        %vm2433 = vc.u32 %v2431, %v2427
        %v2434 = vsel %vm2433, 1, 0
        %v2435 = vadd.s32 %v2431, %v2427
        %v2436 = vadd.s32 %v2432, %v2434
        %v2437 = vadd.s32 %v2436, %v2426
        %v2438 = vadd.s32 %v2437, %v2428
        %v2439 = vmul.u32 %v2394, %v2385
        %v2440 = vadd.s32 %v2416, %v2435
        %vm2441 = vc.u32 %v2416, %v2435
        %v2442 = vadd.s32 %v2438, 1
        %v2443 = vsel %vm2441, %v2442, %v2438
        %v2444 = vadd.s32 %v2439, %v2443
        %v2445 = vadd.s32 %v2444, 536870912
        %v2446 = vshrl.u32 %v2445, 30
        %v2447 = vshll.u32 %v2446, 30
        %v2448 = vsub.s32 %v2444, %v2447
        %vm2449 = vcmp.lt.s32.totalorder %v2448, 0
        %v2450 = vsub.s32 0, %v2448
        %v2451 = vsel %vm2449, %v2450, %v2448
        %v2452 = vclz %v2451
        %v2453 = vsub.s32 %v2452, 2
        %vm2454 = vcmp.gt.s32.totalorder 0, %v2453
        %v2455 = vsel %vm2454, 0, %v2453
        %v2456 = vsub.s32 32, %v2455
        %v2457 = vshll.u32 %v2448, %v2455
        %v2458 = vshrl.u32 %v2440, %v2456
        %v2459 = vor.u32 %v2457, %v2458
        %v2460 = vsub.s32 4294967266, %v2455
        %v2461 = vadd.s32 %v2460, 127
        %v2462 = vshll.u32 %v2461, 23
        %v2463 = vor.u32 4788187, %v2462
        %v2464 = vand.u32 2147483647, %v2463
        %v2466 = vcvt.s32.f32 %v2459
        %v2467 = vmul.f32 %v2466, %v2464
        %v2468 = vxor.u32 %v2467, 2147483648
        %v2469 = vsel %vm2348, %v2468, %v2467
        %v2470 = vsub.s32 4, %v2446
        %v2471 = vsel %vm2348, %v2470, %v2446
        %v2472 = vsel %vm2347, %v1042, %v2469
        %v2473 = vsel %vm2347, 0, %v2471
        %v2474 = vmul.f32 %v2472, %v2472
        %v2475 = vmul.f32 %v2474, -0.001358992
        %v2476 = vadd.f32 %v2475, 0.041655596
        %v2477 = vmul.f32 %v2474, %v2476
        %v2478 = vadd.f32 %v2477, -0.4999988
        %v2479 = vmul.f32 %v2474, %v2478
        %v2480 = vadd.f32 1.0, %v2479
        %v2481 = vmul.f32 %v2472, %v2472
        %v2482 = vmul.f32 %v2481, -0.00019511016
        %v2483 = vadd.f32 %v2482, 0.008332121
        %v2484 = vmul.f32 %v2481, %v2483
        %v2485 = vadd.f32 %v2484, -0.16666654
        %v2486 = vmul.f32 %v2481, %v2485
        %v2487 = vadd.f32 %v2486, 1.0
        %v2488 = vmul.f32 %v2487, %v2472
        %vm2489 = vweird.f32 %v1042
        %v2490 = vand.u32 %v2473, 3
        %vm2491 = vcmp.lt.s32.totalorder %v2490, 2
        %vm2492 = vcmp.eq.s32.totalorder %v2490, 0
        %v2493 = vxor.u32 %v2488, 2147483648
        %v2494 = vsel %vm2492, %v2480, %v2493
        %vm2495 = vcmp.eq.s32.totalorder %v2490, 2
        %v2496 = vxor.u32 %v2480, 2147483648
        %v2497 = vsel %vm2495, %v2496, %v2488
        %v2498 = vsel %vm2491, %v2494, %v2497
        %v2499 = vsel %vm2489, nan, %v2498
        %v2500 = vand.u32 2147483647, %v1043
        %vm2501 = vcmp.le.f32.partialorder %v2500, 0.7853982
        %vm2502 = vcmp.lt.s32.totalorder %v1043, 0
        %v2503 = vand.u32 %v1043, 2139095040
        %v2504 = vshrl.u32 %v2503, 23
        %v2505 = vsub.s32 %v2504, 127
        %v2506 = vand.u32 2147483647, %v1043
        %v2507 = vand.u32 %v2506, 8388607
        %v2508 = vor.u32 %v2507, 8388608
        %v2509 = vsub.s32 0, %v2508
        %v2510 = vadd.s32 %v2505, 1
        %vm2511 = vcmp.gt.s32.totalorder %v2510, 0
        %v2512 = vsel %vm2511, %v2510, 0
        %v2513 = vshrl.u32 %v2512, 5
        %v2514 = vand.u32 %v2512, 31
        %v2515 = vsub.s32 32, %v2514
        %v2516 = vshrl.u32 683565275, %v2515
        %v2517 = vshll.u32 683565275, %v2514
        %v2518 = vshrl.u32 2475754826, %v2515
        %v2519 = vor.u32 %v2517, %v2518
        %v2520 = vshll.u32 2475754826, %v2514
        %v2521 = vshrl.u32 2131351028, %v2515
        %v2522 = vor.u32 %v2520, %v2521
        %v2523 = vshll.u32 2131351028, %v2514
        %v2524 = vshrl.u32 2102212464, %v2515
        %v2525 = vor.u32 %v2523, %v2524
        %v2526 = vshll.u32 2102212464, %v2514
        %v2527 = vshrl.u32 920167782, %v2515
        %v2528 = vor.u32 %v2526, %v2527
        %v2529 = vshll.u32 920167782, %v2514
        %v2530 = vshrl.u32 1326507024, %v2515
        %v2531 = vor.u32 %v2529, %v2530
        %vm2532 = vcmp.lt.s32.totalorder %v2513, 1
        %vm2533 = vcmp.lt.s32.totalorder %v2513, 2
        %vm2534 = vcmp.lt.s32.totalorder %v2513, 3
        %vm2535 = vcmp.lt.s32.totalorder %v2513, 4
        %v2536 = vsel %vm2532, %v2516, %v2519
        %v2537 = vsel %vm2535, %v2525, 2102212464
        %v2538 = vsel %vm2534, %v2522, %v2537
        %v2539 = vsel %vm2533, %v2536, %v2538
        %v2540 = vsel %vm2532, %v2519, %v2522
        %v2541 = vsel %vm2535, %v2528, 920167782
        %v2542 = vsel %vm2534, %v2525, %v2541
        %v2543 = vsel %vm2533, %v2540, %v2542
        %v2544 = vsel %vm2532, %v2522, %v2525
        %v2545 = vsel %vm2535, %v2531, 1326507024
        %v2546 = vsel %vm2534, %v2528, %v2545
        %v2547 = vsel %vm2533, %v2544, %v2546
        %v2548 = vshll.u32 %v2508, 8
        %v2549 = vand.u32 %v2548, 65535
        %v2550 = vshrl.u32 %v2548, 16
        %v2551 = vand.u32 %v2547, 65535
        %v2552 = vshrl.u32 %v2547, 16
        %v2553 = vmul.u32 %v2549, %v2551
        %v2554 = vmul.u32 %v2549, %v2552
        %v2555 = vmul.u32 %v2550, %v2551
        %v2556 = vmul.u32 %v2550, %v2552
        %v2557 = vshll.u32 %v2554, 16
        %v2558 = vshrl.u32 %v2554, 16
        %v2559 = vshll.u32 %v2555, 16
        %v2560 = vshrl.u32 %v2555, 16
        %vm2561 = vc.u32 %v2553, %v2557
        %v2562 = vsel %vm2561, 1, 0
        %v2563 = vadd.s32 %v2553, %v2557
        %v2564 = vadd.s32 %v2556, %v2562
        %vm2565 = vc.u32 %v2563, %v2559
        %v2566 = vsel %vm2565, 1, 0
        %v2567 = vadd.s32 %v2563, %v2559
        %v2568 = vadd.s32 %v2564, %v2566
        %v2569 = vadd.s32 %v2568, %v2558
        %v2570 = vadd.s32 %v2569, %v2560
        %v2571 = vand.u32 %v2548, 65535
        %v2572 = vshrl.u32 %v2548, 16
        %v2573 = vand.u32 %v2543, 65535
        %v2574 = vshrl.u32 %v2543, 16
        %v2575 = vmul.u32 %v2571, %v2573
        %v2576 = vmul.u32 %v2571, %v2574
        %v2577 = vmul.u32 %v2572, %v2573
        %v2578 = vmul.u32 %v2572, %v2574
        %v2579 = vshll.u32 %v2576, 16
        %v2580 = vshrl.u32 %v2576, 16
        %v2581 = vshll.u32 %v2577, 16
        %v2582 = vshrl.u32 %v2577, 16
        %vm2583 = vc.u32 %v2575, %v2579
        %v2584 = vsel %vm2583, 1, 0
        %v2585 = vadd.s32 %v2575, %v2579
        %v2586 = vadd.s32 %v2578, %v2584
        %vm2587 = vc.u32 %v2585, %v2581
        %v2588 = vsel %vm2587, 1, 0
        %v2589 = vadd.s32 %v2585, %v2581
        %v2590 = vadd.s32 %v2586, %v2588
        %v2591 = vadd.s32 %v2590, %v2580
        %v2592 = vadd.s32 %v2591, %v2582
        %v2593 = vmul.u32 %v2548, %v2539
        %v2594 = vadd.s32 %v2570, %v2589
        %vm2595 = vc.u32 %v2570, %v2589
        %v2596 = vadd.s32 %v2592, 1
        %v2597 = vsel %vm2595, %v2596, %v2592
        %v2598 = vadd.s32 %v2593, %v2597
        %v2599 = vadd.s32 %v2598, 536870912
        %v2600 = vshrl.u32 %v2599, 30
        %v2601 = vshll.u32 %v2600, 30
        %v2602 = vsub.s32 %v2598, %v2601
        %vm2603 = vcmp.lt.s32.totalorder %v2602, 0
        %v2604 = vsub.s32 0, %v2602
        %v2605 = vsel %vm2603, %v2604, %v2602
        %v2606 = vclz %v2605
        %v2607 = vsub.s32 %v2606, 2
        %vm2608 = vcmp.gt.s32.totalorder 0, %v2607
        %v2609 = vsel %vm2608, 0, %v2607
        %v2610 = vsub.s32 32, %v2609
        %v2611 = vshll.u32 %v2602, %v2609
        %v2612 = vshrl.u32 %v2594, %v2610
        %v2613 = vor.u32 %v2611, %v2612
        %v2614 = vsub.s32 4294967266, %v2609
        %v2615 = vadd.s32 %v2614, 127
        %v2616 = vshll.u32 %v2615, 23
        %v2617 = vor.u32 4788187, %v2616
        %v2618 = vand.u32 2147483647, %v2617
        %v2620 = vcvt.s32.f32 %v2613
        %v2621 = vmul.f32 %v2620, %v2618
        %v2622 = vxor.u32 %v2621, 2147483648
        %v2623 = vsel %vm2502, %v2622, %v2621
        %v2624 = vsub.s32 4, %v2600
        %v2625 = vsel %vm2502, %v2624, %v2600
        %v2626 = vsel %vm2501, %v1043, %v2623
        %v2627 = vsel %vm2501, 0, %v2625
        %v2628 = vmul.f32 %v2626, %v2626
        %v2629 = vmul.f32 %v2628, -0.001358992
        %v2630 = vadd.f32 %v2629, 0.041655596
        %v2631 = vmul.f32 %v2628, %v2630
        %v2632 = vadd.f32 %v2631, -0.4999988
        %v2633 = vmul.f32 %v2628, %v2632
        %v2634 = vadd.f32 1.0, %v2633
        %v2635 = vmul.f32 %v2626, %v2626
        %v2636 = vmul.f32 %v2635, -0.00019511016
        %v2637 = vadd.f32 %v2636, 0.008332121
        %v2638 = vmul.f32 %v2635, %v2637
        %v2639 = vadd.f32 %v2638, -0.16666654
        %v2640 = vmul.f32 %v2635, %v2639
        %v2641 = vadd.f32 %v2640, 1.0
        %v2642 = vmul.f32 %v2641, %v2626
        %vm2643 = vweird.f32 %v1043
        %v2644 = vand.u32 %v2627, 3
        %vm2645 = vcmp.lt.s32.totalorder %v2644, 2
        %vm2646 = vcmp.eq.s32.totalorder %v2644, 0
        %v2647 = vxor.u32 %v2642, 2147483648
        %v2648 = vsel %vm2646, %v2634, %v2647
        %vm2649 = vcmp.eq.s32.totalorder %v2644, 2
        %v2650 = vxor.u32 %v2634, 2147483648
        %v2651 = vsel %vm2649, %v2650, %v2642
        %v2652 = vsel %vm2645, %v2648, %v2651
        %v2653 = vsel %vm2643, nan, %v2652
        %v2654 = vand.u32 2147483647, %v1044
        %vm2655 = vcmp.le.f32.partialorder %v2654, 0.7853982
        %vm2656 = vcmp.lt.s32.totalorder %v1044, 0
        %v2657 = vand.u32 %v1044, 2139095040
        %v2658 = vshrl.u32 %v2657, 23
        %v2659 = vsub.s32 %v2658, 127
        %v2660 = vand.u32 2147483647, %v1044
        %v2661 = vand.u32 %v2660, 8388607
        %v2662 = vor.u32 %v2661, 8388608
        %v2663 = vsub.s32 0, %v2662
        %v2664 = vadd.s32 %v2659, 1
        %vm2665 = vcmp.gt.s32.totalorder %v2664, 0
        %v2666 = vsel %vm2665, %v2664, 0
        %v2667 = vshrl.u32 %v2666, 5
        %v2668 = vand.u32 %v2666, 31
        %v2669 = vsub.s32 32, %v2668
        %v2670 = vshrl.u32 683565275, %v2669
        %v2671 = vshll.u32 683565275, %v2668
        %v2672 = vshrl.u32 2475754826, %v2669
        %v2673 = vor.u32 %v2671, %v2672
        %v2674 = vshll.u32 2475754826, %v2668
        %v2675 = vshrl.u32 2131351028, %v2669
        %v2676 = vor.u32 %v2674, %v2675
        %v2677 = vshll.u32 2131351028, %v2668
        %v2678 = vshrl.u32 2102212464, %v2669
        %v2679 = vor.u32 %v2677, %v2678
        %v2680 = vshll.u32 2102212464, %v2668
        %v2681 = vshrl.u32 920167782, %v2669
        %v2682 = vor.u32 %v2680, %v2681
        %v2683 = vshll.u32 920167782, %v2668
        %v2684 = vshrl.u32 1326507024, %v2669
        %v2685 = vor.u32 %v2683, %v2684
        %vm2686 = vcmp.lt.s32.totalorder %v2667, 1
        %vm2687 = vcmp.lt.s32.totalorder %v2667, 2
        %vm2688 = vcmp.lt.s32.totalorder %v2667, 3
        %vm2689 = vcmp.lt.s32.totalorder %v2667, 4
        %v2690 = vsel %vm2686, %v2670, %v2673
        %v2691 = vsel %vm2689, %v2679, 2102212464
        %v2692 = vsel %vm2688, %v2676, %v2691
        %v2693 = vsel %vm2687, %v2690, %v2692
        %v2694 = vsel %vm2686, %v2673, %v2676
        %v2695 = vsel %vm2689, %v2682, 920167782
        %v2696 = vsel %vm2688, %v2679, %v2695
        %v2697 = vsel %vm2687, %v2694, %v2696
        %v2698 = vsel %vm2686, %v2676, %v2679
        %v2699 = vsel %vm2689, %v2685, 1326507024
        %v2700 = vsel %vm2688, %v2682, %v2699
        %v2701 = vsel %vm2687, %v2698, %v2700
        %v2702 = vshll.u32 %v2662, 8
        %v2703 = vand.u32 %v2702, 65535
        %v2704 = vshrl.u32 %v2702, 16
        %v2705 = vand.u32 %v2701, 65535
        %v2706 = vshrl.u32 %v2701, 16
        %v2707 = vmul.u32 %v2703, %v2705
        %v2708 = vmul.u32 %v2703, %v2706
        %v2709 = vmul.u32 %v2704, %v2705
        %v2710 = vmul.u32 %v2704, %v2706
        %v2711 = vshll.u32 %v2708, 16
        %v2712 = vshrl.u32 %v2708, 16
        %v2713 = vshll.u32 %v2709, 16
        %v2714 = vshrl.u32 %v2709, 16
        %vm2715 = vc.u32 %v2707, %v2711
        %v2716 = vsel %vm2715, 1, 0
        %v2717 = vadd.s32 %v2707, %v2711
        %v2718 = vadd.s32 %v2710, %v2716
        %vm2719 = vc.u32 %v2717, %v2713
        %v2720 = vsel %vm2719, 1, 0
        %v2721 = vadd.s32 %v2717, %v2713
        %v2722 = vadd.s32 %v2718, %v2720
        %v2723 = vadd.s32 %v2722, %v2712
        %v2724 = vadd.s32 %v2723, %v2714
        %v2725 = vand.u32 %v2702, 65535
        %v2726 = vshrl.u32 %v2702, 16
        %v2727 = vand.u32 %v2697, 65535
        %v2728 = vshrl.u32 %v2697, 16
        %v2729 = vmul.u32 %v2725, %v2727
        %v2730 = vmul.u32 %v2725, %v2728
        %v2731 = vmul.u32 %v2726, %v2727
        %v2732 = vmul.u32 %v2726, %v2728
        %v2733 = vshll.u32 %v2730, 16
        %v2734 = vshrl.u32 %v2730, 16
        %v2735 = vshll.u32 %v2731, 16
        %v2736 = vshrl.u32 %v2731, 16
        %vm2737 = vc.u32 %v2729, %v2733
        %v2738 = vsel %vm2737, 1, 0
        %v2739 = vadd.s32 %v2729, %v2733
        %v2740 = vadd.s32 %v2732, %v2738
        %vm2741 = vc.u32 %v2739, %v2735
        %v2742 = vsel %vm2741, 1, 0
        %v2743 = vadd.s32 %v2739, %v2735
        %v2744 = vadd.s32 %v2740, %v2742
        %v2745 = vadd.s32 %v2744, %v2734
        %v2746 = vadd.s32 %v2745, %v2736
        %v2747 = vmul.u32 %v2702, %v2693
        %v2748 = vadd.s32 %v2724, %v2743
        %vm2749 = vc.u32 %v2724, %v2743
        %v2750 = vadd.s32 %v2746, 1
        %v2751 = vsel %vm2749, %v2750, %v2746
        %v2752 = vadd.s32 %v2747, %v2751
        %v2753 = vadd.s32 %v2752, 536870912
        %v2754 = vshrl.u32 %v2753, 30
        %v2755 = vshll.u32 %v2754, 30
        %v2756 = vsub.s32 %v2752, %v2755
        %vm2757 = vcmp.lt.s32.totalorder %v2756, 0
        %v2758 = vsub.s32 0, %v2756
        %v2759 = vsel %vm2757, %v2758, %v2756
        %v2760 = vclz %v2759
        %v2761 = vsub.s32 %v2760, 2
        %vm2762 = vcmp.gt.s32.totalorder 0, %v2761
        %v2763 = vsel %vm2762, 0, %v2761
        %v2764 = vsub.s32 32, %v2763
        %v2765 = vshll.u32 %v2756, %v2763
        %v2766 = vshrl.u32 %v2748, %v2764
        %v2767 = vor.u32 %v2765, %v2766
        %v2768 = vsub.s32 4294967266, %v2763
        %v2769 = vadd.s32 %v2768, 127
        %v2770 = vshll.u32 %v2769, 23
        %v2771 = vor.u32 4788187, %v2770
        %v2772 = vand.u32 2147483647, %v2771
        %v2774 = vcvt.s32.f32 %v2767
        %v2775 = vmul.f32 %v2774, %v2772
        %v2776 = vxor.u32 %v2775, 2147483648
        %v2777 = vsel %vm2656, %v2776, %v2775
        %v2778 = vsub.s32 4, %v2754
        %v2779 = vsel %vm2656, %v2778, %v2754
        %v2780 = vsel %vm2655, %v1044, %v2777
        %v2781 = vsel %vm2655, 0, %v2779
        %v2782 = vmul.f32 %v2780, %v2780
        %v2783 = vmul.f32 %v2782, -0.001358992
        %v2784 = vadd.f32 %v2783, 0.041655596
        %v2785 = vmul.f32 %v2782, %v2784
        %v2786 = vadd.f32 %v2785, -0.4999988
        %v2787 = vmul.f32 %v2782, %v2786
        %v2788 = vadd.f32 1.0, %v2787
        %v2789 = vmul.f32 %v2780, %v2780
        %v2790 = vmul.f32 %v2789, -0.00019511016
        %v2791 = vadd.f32 %v2790, 0.008332121
        %v2792 = vmul.f32 %v2789, %v2791
        %v2793 = vadd.f32 %v2792, -0.16666654
        %v2794 = vmul.f32 %v2789, %v2793
        %v2795 = vadd.f32 %v2794, 1.0
        %v2796 = vmul.f32 %v2795, %v2780
        %vm2797 = vweird.f32 %v1044
        %v2798 = vand.u32 %v2781, 3
        %vm2799 = vcmp.lt.s32.totalorder %v2798, 2
        %vm2800 = vcmp.eq.s32.totalorder %v2798, 0
        %v2801 = vxor.u32 %v2796, 2147483648
        %v2802 = vsel %vm2800, %v2788, %v2801
        %vm2803 = vcmp.eq.s32.totalorder %v2798, 2
        %v2804 = vxor.u32 %v2788, 2147483648
        %v2805 = vsel %vm2803, %v2804, %v2796
        %v2806 = vsel %vm2799, %v2802, %v2805
        %v2807 = vsel %vm2797, nan, %v2806
        %v2808 = vand.u32 2147483647, %v1045
        %vm2809 = vcmp.le.f32.partialorder %v2808, 0.7853982
        %vm2810 = vcmp.lt.s32.totalorder %v1045, 0
        %v2811 = vand.u32 %v1045, 2139095040
        %v2812 = vshrl.u32 %v2811, 23
        %v2813 = vsub.s32 %v2812, 127
        %v2814 = vand.u32 2147483647, %v1045
        %v2815 = vand.u32 %v2814, 8388607
        %v2816 = vor.u32 %v2815, 8388608
        %v2817 = vsub.s32 0, %v2816
        %v2818 = vadd.s32 %v2813, 1
        %vm2819 = vcmp.gt.s32.totalorder %v2818, 0
        %v2820 = vsel %vm2819, %v2818, 0
        %v2821 = vshrl.u32 %v2820, 5
        %v2822 = vand.u32 %v2820, 31
        %v2823 = vsub.s32 32, %v2822
        %v2824 = vshrl.u32 683565275, %v2823
        %v2825 = vshll.u32 683565275, %v2822
        %v2826 = vshrl.u32 2475754826, %v2823
        %v2827 = vor.u32 %v2825, %v2826
        %v2828 = vshll.u32 2475754826, %v2822
        %v2829 = vshrl.u32 2131351028, %v2823
        %v2830 = vor.u32 %v2828, %v2829
        %v2831 = vshll.u32 2131351028, %v2822
        %v2832 = vshrl.u32 2102212464, %v2823
        %v2833 = vor.u32 %v2831, %v2832
        %v2834 = vshll.u32 2102212464, %v2822
        %v2835 = vshrl.u32 920167782, %v2823
        %v2836 = vor.u32 %v2834, %v2835
        %v2837 = vshll.u32 920167782, %v2822
        %v2838 = vshrl.u32 1326507024, %v2823
        %v2839 = vor.u32 %v2837, %v2838
        %vm2840 = vcmp.lt.s32.totalorder %v2821, 1
        %vm2841 = vcmp.lt.s32.totalorder %v2821, 2
        %vm2842 = vcmp.lt.s32.totalorder %v2821, 3
        %vm2843 = vcmp.lt.s32.totalorder %v2821, 4
        %v2844 = vsel %vm2840, %v2824, %v2827
        %v2845 = vsel %vm2843, %v2833, 2102212464
        %v2846 = vsel %vm2842, %v2830, %v2845
        %v2847 = vsel %vm2841, %v2844, %v2846
        %v2848 = vsel %vm2840, %v2827, %v2830
        %v2849 = vsel %vm2843, %v2836, 920167782
        %v2850 = vsel %vm2842, %v2833, %v2849
        %v2851 = vsel %vm2841, %v2848, %v2850
        %v2852 = vsel %vm2840, %v2830, %v2833
        %v2853 = vsel %vm2843, %v2839, 1326507024
        %v2854 = vsel %vm2842, %v2836, %v2853
        %v2855 = vsel %vm2841, %v2852, %v2854
        %v2856 = vshll.u32 %v2816, 8
        %v2857 = vand.u32 %v2856, 65535
        %v2858 = vshrl.u32 %v2856, 16
        %v2859 = vand.u32 %v2855, 65535
        %v2860 = vshrl.u32 %v2855, 16
        %v2861 = vmul.u32 %v2857, %v2859
        %v2862 = vmul.u32 %v2857, %v2860
        %v2863 = vmul.u32 %v2858, %v2859
        %v2864 = vmul.u32 %v2858, %v2860
        %v2865 = vshll.u32 %v2862, 16
        %v2866 = vshrl.u32 %v2862, 16
        %v2867 = vshll.u32 %v2863, 16
        %v2868 = vshrl.u32 %v2863, 16
        %vm2869 = vc.u32 %v2861, %v2865
        %v2870 = vsel %vm2869, 1, 0
        %v2871 = vadd.s32 %v2861, %v2865
        %v2872 = vadd.s32 %v2864, %v2870
        %vm2873 = vc.u32 %v2871, %v2867
        %v2874 = vsel %vm2873, 1, 0
        %v2875 = vadd.s32 %v2871, %v2867
        %v2876 = vadd.s32 %v2872, %v2874
        %v2877 = vadd.s32 %v2876, %v2866
        %v2878 = vadd.s32 %v2877, %v2868
        %v2879 = vand.u32 %v2856, 65535
        %v2880 = vshrl.u32 %v2856, 16
        %v2881 = vand.u32 %v2851, 65535
        %v2882 = vshrl.u32 %v2851, 16
        %v2883 = vmul.u32 %v2879, %v2881
        %v2884 = vmul.u32 %v2879, %v2882
        %v2885 = vmul.u32 %v2880, %v2881
        %v2886 = vmul.u32 %v2880, %v2882
        %v2887 = vshll.u32 %v2884, 16
        %v2888 = vshrl.u32 %v2884, 16
        %v2889 = vshll.u32 %v2885, 16
        %v2890 = vshrl.u32 %v2885, 16
        %vm2891 = vc.u32 %v2883, %v2887
        %v2892 = vsel %vm2891, 1, 0
        %v2893 = vadd.s32 %v2883, %v2887
        %v2894 = vadd.s32 %v2886, %v2892
        %vm2895 = vc.u32 %v2893, %v2889
        %v2896 = vsel %vm2895, 1, 0
        %v2897 = vadd.s32 %v2893, %v2889
        %v2898 = vadd.s32 %v2894, %v2896
        %v2899 = vadd.s32 %v2898, %v2888
        %v2900 = vadd.s32 %v2899, %v2890
        %v2901 = vmul.u32 %v2856, %v2847
        %v2902 = vadd.s32 %v2878, %v2897
        %vm2903 = vc.u32 %v2878, %v2897
        %v2904 = vadd.s32 %v2900, 1
        %v2905 = vsel %vm2903, %v2904, %v2900
        %v2906 = vadd.s32 %v2901, %v2905
        %v2907 = vadd.s32 %v2906, 536870912
        %v2908 = vshrl.u32 %v2907, 30
        %v2909 = vshll.u32 %v2908, 30
        %v2910 = vsub.s32 %v2906, %v2909
        %vm2911 = vcmp.lt.s32.totalorder %v2910, 0
        %v2912 = vsub.s32 0, %v2910
        %v2913 = vsel %vm2911, %v2912, %v2910
        %v2914 = vclz %v2913
        %v2915 = vsub.s32 %v2914, 2
        %vm2916 = vcmp.gt.s32.totalorder 0, %v2915
        %v2917 = vsel %vm2916, 0, %v2915
        %v2918 = vsub.s32 32, %v2917
        %v2919 = vshll.u32 %v2910, %v2917
        %v2920 = vshrl.u32 %v2902, %v2918
        %v2921 = vor.u32 %v2919, %v2920
        %v2922 = vsub.s32 4294967266, %v2917
        %v2923 = vadd.s32 %v2922, 127
        %v2924 = vshll.u32 %v2923, 23
        %v2925 = vor.u32 4788187, %v2924
        %v2926 = vand.u32 2147483647, %v2925
        %v2928 = vcvt.s32.f32 %v2921
        %v2929 = vmul.f32 %v2928, %v2926
        %v2930 = vxor.u32 %v2929, 2147483648
        %v2931 = vsel %vm2810, %v2930, %v2929
        %v2932 = vsub.s32 4, %v2908
        %v2933 = vsel %vm2810, %v2932, %v2908
        %v2934 = vsel %vm2809, %v1045, %v2931
        %v2935 = vsel %vm2809, 0, %v2933
        %v2936 = vmul.f32 %v2934, %v2934
        %v2937 = vmul.f32 %v2936, -0.001358992
        %v2938 = vadd.f32 %v2937, 0.041655596
        %v2939 = vmul.f32 %v2936, %v2938
        %v2940 = vadd.f32 %v2939, -0.4999988
        %v2941 = vmul.f32 %v2936, %v2940
        %v2942 = vadd.f32 1.0, %v2941
        %v2943 = vmul.f32 %v2934, %v2934
        %v2944 = vmul.f32 %v2943, -0.00019511016
        %v2945 = vadd.f32 %v2944, 0.008332121
        %v2946 = vmul.f32 %v2943, %v2945
        %v2947 = vadd.f32 %v2946, -0.16666654
        %v2948 = vmul.f32 %v2943, %v2947
        %v2949 = vadd.f32 %v2948, 1.0
        %v2950 = vmul.f32 %v2949, %v2934
        %vm2951 = vweird.f32 %v1045
        %v2952 = vand.u32 %v2935, 3
        %vm2953 = vcmp.lt.s32.totalorder %v2952, 2
        %vm2954 = vcmp.eq.s32.totalorder %v2952, 0
        %v2955 = vxor.u32 %v2950, 2147483648
        %v2956 = vsel %vm2954, %v2942, %v2955
        %vm2957 = vcmp.eq.s32.totalorder %v2952, 2
        %v2958 = vxor.u32 %v2942, 2147483648
        %v2959 = vsel %vm2957, %v2958, %v2950
        %v2960 = vsel %vm2953, %v2956, %v2959
        %v2961 = vsel %vm2951, nan, %v2960
        %v2962 = vand.u32 2147483647, %v1046
        %vm2963 = vcmp.le.f32.partialorder %v2962, 0.7853982
        %vm2964 = vcmp.lt.s32.totalorder %v1046, 0
        %v2965 = vand.u32 %v1046, 2139095040
        %v2966 = vshrl.u32 %v2965, 23
        %v2967 = vsub.s32 %v2966, 127
        %v2968 = vand.u32 2147483647, %v1046
        %v2969 = vand.u32 %v2968, 8388607
        %v2970 = vor.u32 %v2969, 8388608
        %v2971 = vsub.s32 0, %v2970
        %v2972 = vadd.s32 %v2967, 1
        %vm2973 = vcmp.gt.s32.totalorder %v2972, 0
        %v2974 = vsel %vm2973, %v2972, 0
        %v2975 = vshrl.u32 %v2974, 5
        %v2976 = vand.u32 %v2974, 31
        %v2977 = vsub.s32 32, %v2976
        %v2978 = vshrl.u32 683565275, %v2977
        %v2979 = vshll.u32 683565275, %v2976
        %v2980 = vshrl.u32 2475754826, %v2977
        %v2981 = vor.u32 %v2979, %v2980
        %v2982 = vshll.u32 2475754826, %v2976
        %v2983 = vshrl.u32 2131351028, %v2977
        %v2984 = vor.u32 %v2982, %v2983
        %v2985 = vshll.u32 2131351028, %v2976
        %v2986 = vshrl.u32 2102212464, %v2977
        %v2987 = vor.u32 %v2985, %v2986
        %v2988 = vshll.u32 2102212464, %v2976
        %v2989 = vshrl.u32 920167782, %v2977
        %v2990 = vor.u32 %v2988, %v2989
        %v2991 = vshll.u32 920167782, %v2976
        %v2992 = vshrl.u32 1326507024, %v2977
        %v2993 = vor.u32 %v2991, %v2992
        %vm2994 = vcmp.lt.s32.totalorder %v2975, 1
        %vm2995 = vcmp.lt.s32.totalorder %v2975, 2
        %vm2996 = vcmp.lt.s32.totalorder %v2975, 3
        %vm2997 = vcmp.lt.s32.totalorder %v2975, 4
        %v2998 = vsel %vm2994, %v2978, %v2981
        %v2999 = vsel %vm2997, %v2987, 2102212464
        %v3000 = vsel %vm2996, %v2984, %v2999
        %v3001 = vsel %vm2995, %v2998, %v3000
        %v3002 = vsel %vm2994, %v2981, %v2984
        %v3003 = vsel %vm2997, %v2990, 920167782
        %v3004 = vsel %vm2996, %v2987, %v3003
        %v3005 = vsel %vm2995, %v3002, %v3004
        %v3006 = vsel %vm2994, %v2984, %v2987
        %v3007 = vsel %vm2997, %v2993, 1326507024
        %v3008 = vsel %vm2996, %v2990, %v3007
        %v3009 = vsel %vm2995, %v3006, %v3008
        %v3010 = vshll.u32 %v2970, 8
        %v3011 = vand.u32 %v3010, 65535
        %v3012 = vshrl.u32 %v3010, 16
        %v3013 = vand.u32 %v3009, 65535
        %v3014 = vshrl.u32 %v3009, 16
        %v3015 = vmul.u32 %v3011, %v3013
        %v3016 = vmul.u32 %v3011, %v3014
        %v3017 = vmul.u32 %v3012, %v3013
        %v3018 = vmul.u32 %v3012, %v3014
        %v3019 = vshll.u32 %v3016, 16
        %v3020 = vshrl.u32 %v3016, 16
        %v3021 = vshll.u32 %v3017, 16
        %v3022 = vshrl.u32 %v3017, 16
        %vm3023 = vc.u32 %v3015, %v3019
        %v3024 = vsel %vm3023, 1, 0
        %v3025 = vadd.s32 %v3015, %v3019
        %v3026 = vadd.s32 %v3018, %v3024
        %vm3027 = vc.u32 %v3025, %v3021
        %v3028 = vsel %vm3027, 1, 0
        %v3029 = vadd.s32 %v3025, %v3021
        %v3030 = vadd.s32 %v3026, %v3028
        %v3031 = vadd.s32 %v3030, %v3020
        %v3032 = vadd.s32 %v3031, %v3022
        %v3033 = vand.u32 %v3010, 65535
        %v3034 = vshrl.u32 %v3010, 16
        %v3035 = vand.u32 %v3005, 65535
        %v3036 = vshrl.u32 %v3005, 16
        %v3037 = vmul.u32 %v3033, %v3035
        %v3038 = vmul.u32 %v3033, %v3036
        %v3039 = vmul.u32 %v3034, %v3035
        %v3040 = vmul.u32 %v3034, %v3036
        %v3041 = vshll.u32 %v3038, 16
        %v3042 = vshrl.u32 %v3038, 16
        %v3043 = vshll.u32 %v3039, 16
        %v3044 = vshrl.u32 %v3039, 16
        %vm3045 = vc.u32 %v3037, %v3041
        %v3046 = vsel %vm3045, 1, 0
        %v3047 = vadd.s32 %v3037, %v3041
        %v3048 = vadd.s32 %v3040, %v3046
        %vm3049 = vc.u32 %v3047, %v3043
        %v3050 = vsel %vm3049, 1, 0
        %v3051 = vadd.s32 %v3047, %v3043
        %v3052 = vadd.s32 %v3048, %v3050
        %v3053 = vadd.s32 %v3052, %v3042
        %v3054 = vadd.s32 %v3053, %v3044
        %v3055 = vmul.u32 %v3010, %v3001
        %v3056 = vadd.s32 %v3032, %v3051
        %vm3057 = vc.u32 %v3032, %v3051
        %v3058 = vadd.s32 %v3054, 1
        %v3059 = vsel %vm3057, %v3058, %v3054
        %v3060 = vadd.s32 %v3055, %v3059
        %v3061 = vadd.s32 %v3060, 536870912
        %v3062 = vshrl.u32 %v3061, 30
        %v3063 = vshll.u32 %v3062, 30
        %v3064 = vsub.s32 %v3060, %v3063
        %vm3065 = vcmp.lt.s32.totalorder %v3064, 0
        %v3066 = vsub.s32 0, %v3064
        %v3067 = vsel %vm3065, %v3066, %v3064
        %v3068 = vclz %v3067
        %v3069 = vsub.s32 %v3068, 2
        %vm3070 = vcmp.gt.s32.totalorder 0, %v3069
        %v3071 = vsel %vm3070, 0, %v3069
        %v3072 = vsub.s32 32, %v3071
        %v3073 = vshll.u32 %v3064, %v3071
        %v3074 = vshrl.u32 %v3056, %v3072
        %v3075 = vor.u32 %v3073, %v3074
        %v3076 = vsub.s32 4294967266, %v3071
        %v3077 = vadd.s32 %v3076, 127
        %v3078 = vshll.u32 %v3077, 23
        %v3079 = vor.u32 4788187, %v3078
        %v3080 = vand.u32 2147483647, %v3079
        %v3082 = vcvt.s32.f32 %v3075
        %v3083 = vmul.f32 %v3082, %v3080
        %v3084 = vxor.u32 %v3083, 2147483648
        %v3085 = vsel %vm2964, %v3084, %v3083
        %v3086 = vsub.s32 4, %v3062
        %v3087 = vsel %vm2964, %v3086, %v3062
        %v3088 = vsel %vm2963, %v1046, %v3085
        %v3089 = vsel %vm2963, 0, %v3087
        %v3090 = vmul.f32 %v3088, %v3088
        %v3091 = vmul.f32 %v3090, -0.001358992
        %v3092 = vadd.f32 %v3091, 0.041655596
        %v3093 = vmul.f32 %v3090, %v3092
        %v3094 = vadd.f32 %v3093, -0.4999988
        %v3095 = vmul.f32 %v3090, %v3094
        %v3096 = vadd.f32 1.0, %v3095
        %v3097 = vmul.f32 %v3088, %v3088
        %v3098 = vmul.f32 %v3097, -0.00019511016
        %v3099 = vadd.f32 %v3098, 0.008332121
        %v3100 = vmul.f32 %v3097, %v3099
        %v3101 = vadd.f32 %v3100, -0.16666654
        %v3102 = vmul.f32 %v3097, %v3101
        %v3103 = vadd.f32 %v3102, 1.0
        %v3104 = vmul.f32 %v3103, %v3088
        %vm3105 = vweird.f32 %v1046
        %v3106 = vand.u32 %v3089, 3
        %vm3107 = vcmp.lt.s32.totalorder %v3106, 2
        %vm3108 = vcmp.eq.s32.totalorder %v3106, 0
        %v3109 = vxor.u32 %v3104, 2147483648
        %v3110 = vsel %vm3108, %v3096, %v3109
        %vm3111 = vcmp.eq.s32.totalorder %v3106, 2
        %v3112 = vxor.u32 %v3096, 2147483648
        %v3113 = vsel %vm3111, %v3112, %v3104
        %v3114 = vsel %vm3107, %v3110, %v3113
        %v3115 = vsel %vm3105, nan, %v3114
        %v3116 = vand.u32 2147483647, %v1047
        %vm3117 = vcmp.le.f32.partialorder %v3116, 0.7853982
        %vm3118 = vcmp.lt.s32.totalorder %v1047, 0
        %v3119 = vand.u32 %v1047, 2139095040
        %v3120 = vshrl.u32 %v3119, 23
        %v3121 = vsub.s32 %v3120, 127
        %v3122 = vand.u32 2147483647, %v1047
        %v3123 = vand.u32 %v3122, 8388607
        %v3124 = vor.u32 %v3123, 8388608
        %v3125 = vsub.s32 0, %v3124
        %v3126 = vadd.s32 %v3121, 1
        %vm3127 = vcmp.gt.s32.totalorder %v3126, 0
        %v3128 = vsel %vm3127, %v3126, 0
        %v3129 = vshrl.u32 %v3128, 5
        %v3130 = vand.u32 %v3128, 31
        %v3131 = vsub.s32 32, %v3130
        %v3132 = vshrl.u32 683565275, %v3131
        %v3133 = vshll.u32 683565275, %v3130
        %v3134 = vshrl.u32 2475754826, %v3131
        %v3135 = vor.u32 %v3133, %v3134
        %v3136 = vshll.u32 2475754826, %v3130
        %v3137 = vshrl.u32 2131351028, %v3131
        %v3138 = vor.u32 %v3136, %v3137
        %v3139 = vshll.u32 2131351028, %v3130
        %v3140 = vshrl.u32 2102212464, %v3131
        %v3141 = vor.u32 %v3139, %v3140
        %v3142 = vshll.u32 2102212464, %v3130
        %v3143 = vshrl.u32 920167782, %v3131
        %v3144 = vor.u32 %v3142, %v3143
        %v3145 = vshll.u32 920167782, %v3130
        %v3146 = vshrl.u32 1326507024, %v3131
        %v3147 = vor.u32 %v3145, %v3146
        %vm3148 = vcmp.lt.s32.totalorder %v3129, 1
        %vm3149 = vcmp.lt.s32.totalorder %v3129, 2
        %vm3150 = vcmp.lt.s32.totalorder %v3129, 3
        %vm3151 = vcmp.lt.s32.totalorder %v3129, 4
        %v3152 = vsel %vm3148, %v3132, %v3135
        %v3153 = vsel %vm3151, %v3141, 2102212464
        %v3154 = vsel %vm3150, %v3138, %v3153
        %v3155 = vsel %vm3149, %v3152, %v3154
        %v3156 = vsel %vm3148, %v3135, %v3138
        %v3157 = vsel %vm3151, %v3144, 920167782
        %v3158 = vsel %vm3150, %v3141, %v3157
        %v3159 = vsel %vm3149, %v3156, %v3158
        %v3160 = vsel %vm3148, %v3138, %v3141
        %v3161 = vsel %vm3151, %v3147, 1326507024
        %v3162 = vsel %vm3150, %v3144, %v3161
        %v3163 = vsel %vm3149, %v3160, %v3162
        %v3164 = vshll.u32 %v3124, 8
        %v3165 = vand.u32 %v3164, 65535
        %v3166 = vshrl.u32 %v3164, 16
        %v3167 = vand.u32 %v3163, 65535
        %v3168 = vshrl.u32 %v3163, 16
        %v3169 = vmul.u32 %v3165, %v3167
        %v3170 = vmul.u32 %v3165, %v3168
        %v3171 = vmul.u32 %v3166, %v3167
        %v3172 = vmul.u32 %v3166, %v3168
        %v3173 = vshll.u32 %v3170, 16
        %v3174 = vshrl.u32 %v3170, 16
        %v3175 = vshll.u32 %v3171, 16
        %v3176 = vshrl.u32 %v3171, 16
        %vm3177 = vc.u32 %v3169, %v3173
        %v3178 = vsel %vm3177, 1, 0
        %v3179 = vadd.s32 %v3169, %v3173
        %v3180 = vadd.s32 %v3172, %v3178
        %vm3181 = vc.u32 %v3179, %v3175
        %v3182 = vsel %vm3181, 1, 0
        %v3183 = vadd.s32 %v3179, %v3175
        %v3184 = vadd.s32 %v3180, %v3182
        %v3185 = vadd.s32 %v3184, %v3174
        %v3186 = vadd.s32 %v3185, %v3176
        %v3187 = vand.u32 %v3164, 65535
        %v3188 = vshrl.u32 %v3164, 16
        %v3189 = vand.u32 %v3159, 65535
        %v3190 = vshrl.u32 %v3159, 16
        %v3191 = vmul.u32 %v3187, %v3189
        %v3192 = vmul.u32 %v3187, %v3190
        %v3193 = vmul.u32 %v3188, %v3189
        %v3194 = vmul.u32 %v3188, %v3190
        %v3195 = vshll.u32 %v3192, 16
        %v3196 = vshrl.u32 %v3192, 16
        %v3197 = vshll.u32 %v3193, 16
        %v3198 = vshrl.u32 %v3193, 16
        %vm3199 = vc.u32 %v3191, %v3195
        %v3200 = vsel %vm3199, 1, 0
        %v3201 = vadd.s32 %v3191, %v3195
        %v3202 = vadd.s32 %v3194, %v3200
        %vm3203 = vc.u32 %v3201, %v3197
        %v3204 = vsel %vm3203, 1, 0
        %v3205 = vadd.s32 %v3201, %v3197
        %v3206 = vadd.s32 %v3202, %v3204
        %v3207 = vadd.s32 %v3206, %v3196
        %v3208 = vadd.s32 %v3207, %v3198
        %v3209 = vmul.u32 %v3164, %v3155
        %v3210 = vadd.s32 %v3186, %v3205
        %vm3211 = vc.u32 %v3186, %v3205
        %v3212 = vadd.s32 %v3208, 1
        %v3213 = vsel %vm3211, %v3212, %v3208
        %v3214 = vadd.s32 %v3209, %v3213
        %v3215 = vadd.s32 %v3214, 536870912
        %v3216 = vshrl.u32 %v3215, 30
        %v3217 = vshll.u32 %v3216, 30
        %v3218 = vsub.s32 %v3214, %v3217
        %vm3219 = vcmp.lt.s32.totalorder %v3218, 0
        %v3220 = vsub.s32 0, %v3218
        %v3221 = vsel %vm3219, %v3220, %v3218
        %v3222 = vclz %v3221
        %v3223 = vsub.s32 %v3222, 2
        %vm3224 = vcmp.gt.s32.totalorder 0, %v3223
        %v3225 = vsel %vm3224, 0, %v3223
        %v3226 = vsub.s32 32, %v3225
        %v3227 = vshll.u32 %v3218, %v3225
        %v3228 = vshrl.u32 %v3210, %v3226
        %v3229 = vor.u32 %v3227, %v3228
        %v3230 = vsub.s32 4294967266, %v3225
        %v3231 = vadd.s32 %v3230, 127
        %v3232 = vshll.u32 %v3231, 23
        %v3233 = vor.u32 4788187, %v3232
        %v3234 = vand.u32 2147483647, %v3233
        %v3236 = vcvt.s32.f32 %v3229
        %v3237 = vmul.f32 %v3236, %v3234
        %v3238 = vxor.u32 %v3237, 2147483648
        %v3239 = vsel %vm3118, %v3238, %v3237
        %v3240 = vsub.s32 4, %v3216
        %v3241 = vsel %vm3118, %v3240, %v3216
        %v3242 = vsel %vm3117, %v1047, %v3239
        %v3243 = vsel %vm3117, 0, %v3241
        %v3244 = vmul.f32 %v3242, %v3242
        %v3245 = vmul.f32 %v3244, -0.001358992
        %v3246 = vadd.f32 %v3245, 0.041655596
        %v3247 = vmul.f32 %v3244, %v3246
        %v3248 = vadd.f32 %v3247, -0.4999988
        %v3249 = vmul.f32 %v3244, %v3248
        %v3250 = vadd.f32 1.0, %v3249
        %v3251 = vmul.f32 %v3242, %v3242
        %v3252 = vmul.f32 %v3251, -0.00019511016
        %v3253 = vadd.f32 %v3252, 0.008332121
        %v3254 = vmul.f32 %v3251, %v3253
        %v3255 = vadd.f32 %v3254, -0.16666654
        %v3256 = vmul.f32 %v3251, %v3255
        %v3257 = vadd.f32 %v3256, 1.0
        %v3258 = vmul.f32 %v3257, %v3242
        %vm3259 = vweird.f32 %v1047
        %v3260 = vand.u32 %v3243, 3
        %vm3261 = vcmp.lt.s32.totalorder %v3260, 2
        %vm3262 = vcmp.eq.s32.totalorder %v3260, 0
        %v3263 = vxor.u32 %v3258, 2147483648
        %v3264 = vsel %vm3262, %v3250, %v3263
        %vm3265 = vcmp.eq.s32.totalorder %v3260, 2
        %v3266 = vxor.u32 %v3250, 2147483648
        %v3267 = vsel %vm3265, %v3266, %v3258
        %v3268 = vsel %vm3261, %v3264, %v3267
        %v3269 = vsel %vm3259, nan, %v3268
        %v3270 = vand.u32 2147483647, %v1048
        %vm3271 = vcmp.le.f32.partialorder %v3270, 0.7853982
        %vm3272 = vcmp.lt.s32.totalorder %v1048, 0
        %v3273 = vand.u32 %v1048, 2139095040
        %v3274 = vshrl.u32 %v3273, 23
        %v3275 = vsub.s32 %v3274, 127
        %v3276 = vand.u32 2147483647, %v1048
        %v3277 = vand.u32 %v3276, 8388607
        %v3278 = vor.u32 %v3277, 8388608
        %v3279 = vsub.s32 0, %v3278
        %v3280 = vadd.s32 %v3275, 1
        %vm3281 = vcmp.gt.s32.totalorder %v3280, 0
        %v3282 = vsel %vm3281, %v3280, 0
        %v3283 = vshrl.u32 %v3282, 5
        %v3284 = vand.u32 %v3282, 31
        %v3285 = vsub.s32 32, %v3284
        %v3286 = vshrl.u32 683565275, %v3285
        %v3287 = vshll.u32 683565275, %v3284
        %v3288 = vshrl.u32 2475754826, %v3285
        %v3289 = vor.u32 %v3287, %v3288
        %v3290 = vshll.u32 2475754826, %v3284
        %v3291 = vshrl.u32 2131351028, %v3285
        %v3292 = vor.u32 %v3290, %v3291
        %v3293 = vshll.u32 2131351028, %v3284
        %v3294 = vshrl.u32 2102212464, %v3285
        %v3295 = vor.u32 %v3293, %v3294
        %v3296 = vshll.u32 2102212464, %v3284
        %v3297 = vshrl.u32 920167782, %v3285
        %v3298 = vor.u32 %v3296, %v3297
        %v3299 = vshll.u32 920167782, %v3284
        %v3300 = vshrl.u32 1326507024, %v3285
        %v3301 = vor.u32 %v3299, %v3300
        %vm3302 = vcmp.lt.s32.totalorder %v3283, 1
        %vm3303 = vcmp.lt.s32.totalorder %v3283, 2
        %vm3304 = vcmp.lt.s32.totalorder %v3283, 3
        %vm3305 = vcmp.lt.s32.totalorder %v3283, 4
        %v3306 = vsel %vm3302, %v3286, %v3289
        %v3307 = vsel %vm3305, %v3295, 2102212464
        %v3308 = vsel %vm3304, %v3292, %v3307
        %v3309 = vsel %vm3303, %v3306, %v3308
        %v3310 = vsel %vm3302, %v3289, %v3292
        %v3311 = vsel %vm3305, %v3298, 920167782
        %v3312 = vsel %vm3304, %v3295, %v3311
        %v3313 = vsel %vm3303, %v3310, %v3312
        %v3314 = vsel %vm3302, %v3292, %v3295
        %v3315 = vsel %vm3305, %v3301, 1326507024
        %v3316 = vsel %vm3304, %v3298, %v3315
        %v3317 = vsel %vm3303, %v3314, %v3316
        %v3318 = vshll.u32 %v3278, 8
        %v3319 = vand.u32 %v3318, 65535
        %v3320 = vshrl.u32 %v3318, 16
        %v3321 = vand.u32 %v3317, 65535
        %v3322 = vshrl.u32 %v3317, 16
        %v3323 = vmul.u32 %v3319, %v3321
        %v3324 = vmul.u32 %v3319, %v3322
        %v3325 = vmul.u32 %v3320, %v3321
        %v3326 = vmul.u32 %v3320, %v3322
        %v3327 = vshll.u32 %v3324, 16
        %v3328 = vshrl.u32 %v3324, 16
        %v3329 = vshll.u32 %v3325, 16
        %v3330 = vshrl.u32 %v3325, 16
        %vm3331 = vc.u32 %v3323, %v3327
        %v3332 = vsel %vm3331, 1, 0
        %v3333 = vadd.s32 %v3323, %v3327
        %v3334 = vadd.s32 %v3326, %v3332
        %vm3335 = vc.u32 %v3333, %v3329
        %v3336 = vsel %vm3335, 1, 0
        %v3337 = vadd.s32 %v3333, %v3329
        %v3338 = vadd.s32 %v3334, %v3336
        %v3339 = vadd.s32 %v3338, %v3328
        %v3340 = vadd.s32 %v3339, %v3330
        %v3341 = vand.u32 %v3318, 65535
        %v3342 = vshrl.u32 %v3318, 16
        %v3343 = vand.u32 %v3313, 65535
        %v3344 = vshrl.u32 %v3313, 16
        %v3345 = vmul.u32 %v3341, %v3343
        %v3346 = vmul.u32 %v3341, %v3344
        %v3347 = vmul.u32 %v3342, %v3343
        %v3348 = vmul.u32 %v3342, %v3344
        %v3349 = vshll.u32 %v3346, 16
        %v3350 = vshrl.u32 %v3346, 16
        %v3351 = vshll.u32 %v3347, 16
        %v3352 = vshrl.u32 %v3347, 16
        %vm3353 = vc.u32 %v3345, %v3349
        %v3354 = vsel %vm3353, 1, 0
        %v3355 = vadd.s32 %v3345, %v3349
        %v3356 = vadd.s32 %v3348, %v3354
        %vm3357 = vc.u32 %v3355, %v3351
        %v3358 = vsel %vm3357, 1, 0
        %v3359 = vadd.s32 %v3355, %v3351
        %v3360 = vadd.s32 %v3356, %v3358
        %v3361 = vadd.s32 %v3360, %v3350
        %v3362 = vadd.s32 %v3361, %v3352
        %v3363 = vmul.u32 %v3318, %v3309
        %v3364 = vadd.s32 %v3340, %v3359
        %vm3365 = vc.u32 %v3340, %v3359
        %v3366 = vadd.s32 %v3362, 1
        %v3367 = vsel %vm3365, %v3366, %v3362
        %v3368 = vadd.s32 %v3363, %v3367
        %v3369 = vadd.s32 %v3368, 536870912
        %v3370 = vshrl.u32 %v3369, 30
        %v3371 = vshll.u32 %v3370, 30
        %v3372 = vsub.s32 %v3368, %v3371
        %vm3373 = vcmp.lt.s32.totalorder %v3372, 0
        %v3374 = vsub.s32 0, %v3372
        %v3375 = vsel %vm3373, %v3374, %v3372
        %v3376 = vclz %v3375
        %v3377 = vsub.s32 %v3376, 2
        %vm3378 = vcmp.gt.s32.totalorder 0, %v3377
        %v3379 = vsel %vm3378, 0, %v3377
        %v3380 = vsub.s32 32, %v3379
        %v3381 = vshll.u32 %v3372, %v3379
        %v3382 = vshrl.u32 %v3364, %v3380
        %v3383 = vor.u32 %v3381, %v3382
        %v3384 = vsub.s32 4294967266, %v3379
        %v3385 = vadd.s32 %v3384, 127
        %v3386 = vshll.u32 %v3385, 23
        %v3387 = vor.u32 4788187, %v3386
        %v3388 = vand.u32 2147483647, %v3387
        %v3390 = vcvt.s32.f32 %v3383
        %v3391 = vmul.f32 %v3390, %v3388
        %v3392 = vxor.u32 %v3391, 2147483648
        %v3393 = vsel %vm3272, %v3392, %v3391
        %v3394 = vsub.s32 4, %v3370
        %v3395 = vsel %vm3272, %v3394, %v3370
        %v3396 = vsel %vm3271, %v1048, %v3393
        %v3397 = vsel %vm3271, 0, %v3395
        %v3398 = vmul.f32 %v3396, %v3396
        %v3399 = vmul.f32 %v3398, -0.001358992
        %v3400 = vadd.f32 %v3399, 0.041655596
        %v3401 = vmul.f32 %v3398, %v3400
        %v3402 = vadd.f32 %v3401, -0.4999988
        %v3403 = vmul.f32 %v3398, %v3402
        %v3404 = vadd.f32 1.0, %v3403
        %v3405 = vmul.f32 %v3396, %v3396
        %v3406 = vmul.f32 %v3405, -0.00019511016
        %v3407 = vadd.f32 %v3406, 0.008332121
        %v3408 = vmul.f32 %v3405, %v3407
        %v3409 = vadd.f32 %v3408, -0.16666654
        %v3410 = vmul.f32 %v3405, %v3409
        %v3411 = vadd.f32 %v3410, 1.0
        %v3412 = vmul.f32 %v3411, %v3396
        %vm3413 = vweird.f32 %v1048
        %v3414 = vand.u32 %v3397, 3
        %vm3415 = vcmp.lt.s32.totalorder %v3414, 2
        %vm3416 = vcmp.eq.s32.totalorder %v3414, 0
        %v3417 = vxor.u32 %v3412, 2147483648
        %v3418 = vsel %vm3416, %v3404, %v3417
        %vm3419 = vcmp.eq.s32.totalorder %v3414, 2
        %v3420 = vxor.u32 %v3404, 2147483648
        %v3421 = vsel %vm3419, %v3420, %v3412
        %v3422 = vsel %vm3415, %v3418, %v3421
        %v3423 = vsel %vm3413, nan, %v3422
        %v3424 = vand.u32 2147483647, %v1049
        %vm3425 = vcmp.le.f32.partialorder %v3424, 0.7853982
        %vm3426 = vcmp.lt.s32.totalorder %v1049, 0
        %v3427 = vand.u32 %v1049, 2139095040
        %v3428 = vshrl.u32 %v3427, 23
        %v3429 = vsub.s32 %v3428, 127
        %v3430 = vand.u32 2147483647, %v1049
        %v3431 = vand.u32 %v3430, 8388607
        %v3432 = vor.u32 %v3431, 8388608
        %v3433 = vsub.s32 0, %v3432
        %v3434 = vadd.s32 %v3429, 1
        %vm3435 = vcmp.gt.s32.totalorder %v3434, 0
        %v3436 = vsel %vm3435, %v3434, 0
        %v3437 = vshrl.u32 %v3436, 5
        %v3438 = vand.u32 %v3436, 31
        %v3439 = vsub.s32 32, %v3438
        %v3440 = vshrl.u32 683565275, %v3439
        %v3441 = vshll.u32 683565275, %v3438
        %v3442 = vshrl.u32 2475754826, %v3439
        %v3443 = vor.u32 %v3441, %v3442
        %v3444 = vshll.u32 2475754826, %v3438
        %v3445 = vshrl.u32 2131351028, %v3439
        %v3446 = vor.u32 %v3444, %v3445
        %v3447 = vshll.u32 2131351028, %v3438
        %v3448 = vshrl.u32 2102212464, %v3439
        %v3449 = vor.u32 %v3447, %v3448
        %v3450 = vshll.u32 2102212464, %v3438
        %v3451 = vshrl.u32 920167782, %v3439
        %v3452 = vor.u32 %v3450, %v3451
        %v3453 = vshll.u32 920167782, %v3438
        %v3454 = vshrl.u32 1326507024, %v3439
        %v3455 = vor.u32 %v3453, %v3454
        %vm3456 = vcmp.lt.s32.totalorder %v3437, 1
        %vm3457 = vcmp.lt.s32.totalorder %v3437, 2
        %vm3458 = vcmp.lt.s32.totalorder %v3437, 3
        %vm3459 = vcmp.lt.s32.totalorder %v3437, 4
        %v3460 = vsel %vm3456, %v3440, %v3443
        %v3461 = vsel %vm3459, %v3449, 2102212464
        %v3462 = vsel %vm3458, %v3446, %v3461
        %v3463 = vsel %vm3457, %v3460, %v3462
        %v3464 = vsel %vm3456, %v3443, %v3446
        %v3465 = vsel %vm3459, %v3452, 920167782
        %v3466 = vsel %vm3458, %v3449, %v3465
        %v3467 = vsel %vm3457, %v3464, %v3466
        %v3468 = vsel %vm3456, %v3446, %v3449
        %v3469 = vsel %vm3459, %v3455, 1326507024
        %v3470 = vsel %vm3458, %v3452, %v3469
        %v3471 = vsel %vm3457, %v3468, %v3470
        %v3472 = vshll.u32 %v3432, 8
        %v3473 = vand.u32 %v3472, 65535
        %v3474 = vshrl.u32 %v3472, 16
        %v3475 = vand.u32 %v3471, 65535
        %v3476 = vshrl.u32 %v3471, 16
        %v3477 = vmul.u32 %v3473, %v3475
        %v3478 = vmul.u32 %v3473, %v3476
        %v3479 = vmul.u32 %v3474, %v3475
        %v3480 = vmul.u32 %v3474, %v3476
        %v3481 = vshll.u32 %v3478, 16
        %v3482 = vshrl.u32 %v3478, 16
        %v3483 = vshll.u32 %v3479, 16
        %v3484 = vshrl.u32 %v3479, 16
        %vm3485 = vc.u32 %v3477, %v3481
        %v3486 = vsel %vm3485, 1, 0
        %v3487 = vadd.s32 %v3477, %v3481
        %v3488 = vadd.s32 %v3480, %v3486
        %vm3489 = vc.u32 %v3487, %v3483
        %v3490 = vsel %vm3489, 1, 0
        %v3491 = vadd.s32 %v3487, %v3483
        %v3492 = vadd.s32 %v3488, %v3490
        %v3493 = vadd.s32 %v3492, %v3482
        %v3494 = vadd.s32 %v3493, %v3484
        %v3495 = vand.u32 %v3472, 65535
        %v3496 = vshrl.u32 %v3472, 16
        %v3497 = vand.u32 %v3467, 65535
        %v3498 = vshrl.u32 %v3467, 16
        %v3499 = vmul.u32 %v3495, %v3497
        %v3500 = vmul.u32 %v3495, %v3498
        %v3501 = vmul.u32 %v3496, %v3497
        %v3502 = vmul.u32 %v3496, %v3498
        %v3503 = vshll.u32 %v3500, 16
        %v3504 = vshrl.u32 %v3500, 16
        %v3505 = vshll.u32 %v3501, 16
        %v3506 = vshrl.u32 %v3501, 16
        %vm3507 = vc.u32 %v3499, %v3503
        %v3508 = vsel %vm3507, 1, 0
        %v3509 = vadd.s32 %v3499, %v3503
        %v3510 = vadd.s32 %v3502, %v3508
        %vm3511 = vc.u32 %v3509, %v3505
        %v3512 = vsel %vm3511, 1, 0
        %v3513 = vadd.s32 %v3509, %v3505
        %v3514 = vadd.s32 %v3510, %v3512
        %v3515 = vadd.s32 %v3514, %v3504
        %v3516 = vadd.s32 %v3515, %v3506
        %v3517 = vmul.u32 %v3472, %v3463
        %v3518 = vadd.s32 %v3494, %v3513
        %vm3519 = vc.u32 %v3494, %v3513
        %v3520 = vadd.s32 %v3516, 1
        %v3521 = vsel %vm3519, %v3520, %v3516
        %v3522 = vadd.s32 %v3517, %v3521
        %v3523 = vadd.s32 %v3522, 536870912
        %v3524 = vshrl.u32 %v3523, 30
        %v3525 = vshll.u32 %v3524, 30
        %v3526 = vsub.s32 %v3522, %v3525
        %vm3527 = vcmp.lt.s32.totalorder %v3526, 0
        %v3528 = vsub.s32 0, %v3526
        %v3529 = vsel %vm3527, %v3528, %v3526
        %v3530 = vclz %v3529
        %v3531 = vsub.s32 %v3530, 2
        %vm3532 = vcmp.gt.s32.totalorder 0, %v3531
        %v3533 = vsel %vm3532, 0, %v3531
        %v3534 = vsub.s32 32, %v3533
        %v3535 = vshll.u32 %v3526, %v3533
        %v3536 = vshrl.u32 %v3518, %v3534
        %v3537 = vor.u32 %v3535, %v3536
        %v3538 = vsub.s32 4294967266, %v3533
        %v3539 = vadd.s32 %v3538, 127
        %v3540 = vshll.u32 %v3539, 23
        %v3541 = vor.u32 4788187, %v3540
        %v3542 = vand.u32 2147483647, %v3541
        %v3544 = vcvt.s32.f32 %v3537
        %v3545 = vmul.f32 %v3544, %v3542
        %v3546 = vxor.u32 %v3545, 2147483648
        %v3547 = vsel %vm3426, %v3546, %v3545
        %v3548 = vsub.s32 4, %v3524
        %v3549 = vsel %vm3426, %v3548, %v3524
        %v3550 = vsel %vm3425, %v1049, %v3547
        %v3551 = vsel %vm3425, 0, %v3549
        %v3552 = vmul.f32 %v3550, %v3550
        %v3553 = vmul.f32 %v3552, -0.001358992
        %v3554 = vadd.f32 %v3553, 0.041655596
        %v3555 = vmul.f32 %v3552, %v3554
        %v3556 = vadd.f32 %v3555, -0.4999988
        %v3557 = vmul.f32 %v3552, %v3556
        %v3558 = vadd.f32 1.0, %v3557
        %v3559 = vmul.f32 %v3550, %v3550
        %v3560 = vmul.f32 %v3559, -0.00019511016
        %v3561 = vadd.f32 %v3560, 0.008332121
        %v3562 = vmul.f32 %v3559, %v3561
        %v3563 = vadd.f32 %v3562, -0.16666654
        %v3564 = vmul.f32 %v3559, %v3563
        %v3565 = vadd.f32 %v3564, 1.0
        %v3566 = vmul.f32 %v3565, %v3550
        %vm3567 = vweird.f32 %v1049
        %v3568 = vand.u32 %v3551, 3
        %vm3569 = vcmp.lt.s32.totalorder %v3568, 2
        %vm3570 = vcmp.eq.s32.totalorder %v3568, 0
        %v3571 = vxor.u32 %v3566, 2147483648
        %v3572 = vsel %vm3570, %v3558, %v3571
        %vm3573 = vcmp.eq.s32.totalorder %v3568, 2
        %v3574 = vxor.u32 %v3558, 2147483648
        %v3575 = vsel %vm3573, %v3574, %v3566
        %v3576 = vsel %vm3569, %v3572, %v3575
        %v3577 = vsel %vm3567, nan, %v3576
        %v3578 = vand.u32 2147483647, %v1034
        %vm3579 = vcmp.le.f32.partialorder %v3578, 0.7853982
        %vm3580 = vcmp.lt.s32.totalorder %v1034, 0
        %v3581 = vand.u32 %v1034, 2139095040
        %v3582 = vshrl.u32 %v3581, 23
        %v3583 = vsub.s32 %v3582, 127
        %v3584 = vand.u32 2147483647, %v1034
        %v3585 = vand.u32 %v3584, 8388607
        %v3586 = vor.u32 %v3585, 8388608
        %v3587 = vsub.s32 0, %v3586
        %v3588 = vadd.s32 %v3583, 1
        %vm3589 = vcmp.gt.s32.totalorder %v3588, 0
        %v3590 = vsel %vm3589, %v3588, 0
        %v3591 = vshrl.u32 %v3590, 5
        %v3592 = vand.u32 %v3590, 31
        %v3593 = vsub.s32 32, %v3592
        %v3594 = vshrl.u32 683565275, %v3593
        %v3595 = vshll.u32 683565275, %v3592
        %v3596 = vshrl.u32 2475754826, %v3593
        %v3597 = vor.u32 %v3595, %v3596
        %v3598 = vshll.u32 2475754826, %v3592
        %v3599 = vshrl.u32 2131351028, %v3593
        %v3600 = vor.u32 %v3598, %v3599
        %v3601 = vshll.u32 2131351028, %v3592
        %v3602 = vshrl.u32 2102212464, %v3593
        %v3603 = vor.u32 %v3601, %v3602
        %v3604 = vshll.u32 2102212464, %v3592
        %v3605 = vshrl.u32 920167782, %v3593
        %v3606 = vor.u32 %v3604, %v3605
        %v3607 = vshll.u32 920167782, %v3592
        %v3608 = vshrl.u32 1326507024, %v3593
        %v3609 = vor.u32 %v3607, %v3608
        %vm3610 = vcmp.lt.s32.totalorder %v3591, 1
        %vm3611 = vcmp.lt.s32.totalorder %v3591, 2
        %vm3612 = vcmp.lt.s32.totalorder %v3591, 3
        %vm3613 = vcmp.lt.s32.totalorder %v3591, 4
        %v3614 = vsel %vm3610, %v3594, %v3597
        %v3615 = vsel %vm3613, %v3603, 2102212464
        %v3616 = vsel %vm3612, %v3600, %v3615
        %v3617 = vsel %vm3611, %v3614, %v3616
        %v3618 = vsel %vm3610, %v3597, %v3600
        %v3619 = vsel %vm3613, %v3606, 920167782
        %v3620 = vsel %vm3612, %v3603, %v3619
        %v3621 = vsel %vm3611, %v3618, %v3620
        %v3622 = vsel %vm3610, %v3600, %v3603
        %v3623 = vsel %vm3613, %v3609, 1326507024
        %v3624 = vsel %vm3612, %v3606, %v3623
        %v3625 = vsel %vm3611, %v3622, %v3624
        %v3626 = vshll.u32 %v3586, 8
        %v3627 = vand.u32 %v3626, 65535
        %v3628 = vshrl.u32 %v3626, 16
        %v3629 = vand.u32 %v3625, 65535
        %v3630 = vshrl.u32 %v3625, 16
        %v3631 = vmul.u32 %v3627, %v3629
        %v3632 = vmul.u32 %v3627, %v3630
        %v3633 = vmul.u32 %v3628, %v3629
        %v3634 = vmul.u32 %v3628, %v3630
        %v3635 = vshll.u32 %v3632, 16
        %v3636 = vshrl.u32 %v3632, 16
        %v3637 = vshll.u32 %v3633, 16
        %v3638 = vshrl.u32 %v3633, 16
        %vm3639 = vc.u32 %v3631, %v3635
        %v3640 = vsel %vm3639, 1, 0
        %v3641 = vadd.s32 %v3631, %v3635
        %v3642 = vadd.s32 %v3634, %v3640
        %vm3643 = vc.u32 %v3641, %v3637
        %v3644 = vsel %vm3643, 1, 0
        %v3645 = vadd.s32 %v3641, %v3637
        %v3646 = vadd.s32 %v3642, %v3644
        %v3647 = vadd.s32 %v3646, %v3636
        %v3648 = vadd.s32 %v3647, %v3638
        %v3649 = vand.u32 %v3626, 65535
        %v3650 = vshrl.u32 %v3626, 16
        %v3651 = vand.u32 %v3621, 65535
        %v3652 = vshrl.u32 %v3621, 16
        %v3653 = vmul.u32 %v3649, %v3651
        %v3654 = vmul.u32 %v3649, %v3652
        %v3655 = vmul.u32 %v3650, %v3651
        %v3656 = vmul.u32 %v3650, %v3652
        %v3657 = vshll.u32 %v3654, 16
        %v3658 = vshrl.u32 %v3654, 16
        %v3659 = vshll.u32 %v3655, 16
        %v3660 = vshrl.u32 %v3655, 16
        %vm3661 = vc.u32 %v3653, %v3657
        %v3662 = vsel %vm3661, 1, 0
        %v3663 = vadd.s32 %v3653, %v3657
        %v3664 = vadd.s32 %v3656, %v3662
        %vm3665 = vc.u32 %v3663, %v3659
        %v3666 = vsel %vm3665, 1, 0
        %v3667 = vadd.s32 %v3663, %v3659
        %v3668 = vadd.s32 %v3664, %v3666
        %v3669 = vadd.s32 %v3668, %v3658
        %v3670 = vadd.s32 %v3669, %v3660
        %v3671 = vmul.u32 %v3626, %v3617
        %v3672 = vadd.s32 %v3648, %v3667
        %vm3673 = vc.u32 %v3648, %v3667
        %v3674 = vadd.s32 %v3670, 1
        %v3675 = vsel %vm3673, %v3674, %v3670
        %v3676 = vadd.s32 %v3671, %v3675
        %v3677 = vadd.s32 %v3676, 536870912
        %v3678 = vshrl.u32 %v3677, 30
        %v3679 = vshll.u32 %v3678, 30
        %v3680 = vsub.s32 %v3676, %v3679
        %vm3681 = vcmp.lt.s32.totalorder %v3680, 0
        %v3682 = vsub.s32 0, %v3680
        %v3683 = vsel %vm3681, %v3682, %v3680
        %v3684 = vclz %v3683
        %v3685 = vsub.s32 %v3684, 2
        %vm3686 = vcmp.gt.s32.totalorder 0, %v3685
        %v3687 = vsel %vm3686, 0, %v3685
        %v3688 = vsub.s32 32, %v3687
        %v3689 = vshll.u32 %v3680, %v3687
        %v3690 = vshrl.u32 %v3672, %v3688
        %v3691 = vor.u32 %v3689, %v3690
        %v3692 = vsub.s32 4294967266, %v3687
        %v3693 = vadd.s32 %v3692, 127
        %v3694 = vshll.u32 %v3693, 23
        %v3695 = vor.u32 4788187, %v3694
        %v3696 = vand.u32 2147483647, %v3695
        %v3698 = vcvt.s32.f32 %v3691
        %v3699 = vmul.f32 %v3698, %v3696
        %v3700 = vxor.u32 %v3699, 2147483648
        %v3701 = vsel %vm3580, %v3700, %v3699
        %v3702 = vsub.s32 4, %v3678
        %v3703 = vsel %vm3580, %v3702, %v3678
        %v3704 = vsel %vm3579, %v1034, %v3701
        %v3705 = vsel %vm3579, 0, %v3703
        %v3706 = vmul.f32 %v3704, %v3704
        %v3707 = vmul.f32 %v3706, -0.001358992
        %v3708 = vadd.f32 %v3707, 0.041655596
        %v3709 = vmul.f32 %v3706, %v3708
        %v3710 = vadd.f32 %v3709, -0.4999988
        %v3711 = vmul.f32 %v3706, %v3710
        %v3712 = vadd.f32 1.0, %v3711
        %v3713 = vmul.f32 %v3704, %v3704
        %v3714 = vmul.f32 %v3713, -0.00019511016
        %v3715 = vadd.f32 %v3714, 0.008332121
        %v3716 = vmul.f32 %v3713, %v3715
        %v3717 = vadd.f32 %v3716, -0.16666654
        %v3718 = vmul.f32 %v3713, %v3717
        %v3719 = vadd.f32 %v3718, 1.0
        %v3720 = vmul.f32 %v3719, %v3704
        %vm3721 = vweird.f32 %v1034
        %v3722 = vadd.s32 %v3705, 3
        %v3723 = vand.u32 %v3722, 3
        %vm3724 = vcmp.lt.s32.totalorder %v3723, 2
        %vm3725 = vcmp.eq.s32.totalorder %v3723, 0
        %v3726 = vxor.u32 %v3720, 2147483648
        %v3727 = vsel %vm3725, %v3712, %v3726
        %vm3728 = vcmp.eq.s32.totalorder %v3723, 2
        %v3729 = vxor.u32 %v3712, 2147483648
        %v3730 = vsel %vm3728, %v3729, %v3720
        %v3731 = vsel %vm3724, %v3727, %v3730
        %v3732 = vsel %vm3721, nan, %v3731
        %v3733 = vand.u32 2147483647, %v1035
        %vm3734 = vcmp.le.f32.partialorder %v3733, 0.7853982
        %vm3735 = vcmp.lt.s32.totalorder %v1035, 0
        %v3736 = vand.u32 %v1035, 2139095040
        %v3737 = vshrl.u32 %v3736, 23
        %v3738 = vsub.s32 %v3737, 127
        %v3739 = vand.u32 2147483647, %v1035
        %v3740 = vand.u32 %v3739, 8388607
        %v3741 = vor.u32 %v3740, 8388608
        %v3742 = vsub.s32 0, %v3741
        %v3743 = vadd.s32 %v3738, 1
        %vm3744 = vcmp.gt.s32.totalorder %v3743, 0
        %v3745 = vsel %vm3744, %v3743, 0
        %v3746 = vshrl.u32 %v3745, 5
        %v3747 = vand.u32 %v3745, 31
        %v3748 = vsub.s32 32, %v3747
        %v3749 = vshrl.u32 683565275, %v3748
        %v3750 = vshll.u32 683565275, %v3747
        %v3751 = vshrl.u32 2475754826, %v3748
        %v3752 = vor.u32 %v3750, %v3751
        %v3753 = vshll.u32 2475754826, %v3747
        %v3754 = vshrl.u32 2131351028, %v3748
        %v3755 = vor.u32 %v3753, %v3754
        %v3756 = vshll.u32 2131351028, %v3747
        %v3757 = vshrl.u32 2102212464, %v3748
        %v3758 = vor.u32 %v3756, %v3757
        %v3759 = vshll.u32 2102212464, %v3747
        %v3760 = vshrl.u32 920167782, %v3748
        %v3761 = vor.u32 %v3759, %v3760
        %v3762 = vshll.u32 920167782, %v3747
        %v3763 = vshrl.u32 1326507024, %v3748
        %v3764 = vor.u32 %v3762, %v3763
        %vm3765 = vcmp.lt.s32.totalorder %v3746, 1
        %vm3766 = vcmp.lt.s32.totalorder %v3746, 2
        %vm3767 = vcmp.lt.s32.totalorder %v3746, 3
        %vm3768 = vcmp.lt.s32.totalorder %v3746, 4
        %v3769 = vsel %vm3765, %v3749, %v3752
        %v3770 = vsel %vm3768, %v3758, 2102212464
        %v3771 = vsel %vm3767, %v3755, %v3770
        %v3772 = vsel %vm3766, %v3769, %v3771
        %v3773 = vsel %vm3765, %v3752, %v3755
        %v3774 = vsel %vm3768, %v3761, 920167782
        %v3775 = vsel %vm3767, %v3758, %v3774
        %v3776 = vsel %vm3766, %v3773, %v3775
        %v3777 = vsel %vm3765, %v3755, %v3758
        %v3778 = vsel %vm3768, %v3764, 1326507024
        %v3779 = vsel %vm3767, %v3761, %v3778
        %v3780 = vsel %vm3766, %v3777, %v3779
        %v3781 = vshll.u32 %v3741, 8
        %v3782 = vand.u32 %v3781, 65535
        %v3783 = vshrl.u32 %v3781, 16
        %v3784 = vand.u32 %v3780, 65535
        %v3785 = vshrl.u32 %v3780, 16
        %v3786 = vmul.u32 %v3782, %v3784
        %v3787 = vmul.u32 %v3782, %v3785
        %v3788 = vmul.u32 %v3783, %v3784
        %v3789 = vmul.u32 %v3783, %v3785
        %v3790 = vshll.u32 %v3787, 16
        %v3791 = vshrl.u32 %v3787, 16
        %v3792 = vshll.u32 %v3788, 16
        %v3793 = vshrl.u32 %v3788, 16
        %vm3794 = vc.u32 %v3786, %v3790
        %v3795 = vsel %vm3794, 1, 0
        %v3796 = vadd.s32 %v3786, %v3790
        %v3797 = vadd.s32 %v3789, %v3795
        %vm3798 = vc.u32 %v3796, %v3792
        %v3799 = vsel %vm3798, 1, 0
        %v3800 = vadd.s32 %v3796, %v3792
        %v3801 = vadd.s32 %v3797, %v3799
        %v3802 = vadd.s32 %v3801, %v3791
        %v3803 = vadd.s32 %v3802, %v3793
        %v3804 = vand.u32 %v3781, 65535
        %v3805 = vshrl.u32 %v3781, 16
        %v3806 = vand.u32 %v3776, 65535
        %v3807 = vshrl.u32 %v3776, 16
        %v3808 = vmul.u32 %v3804, %v3806
        %v3809 = vmul.u32 %v3804, %v3807
        %v3810 = vmul.u32 %v3805, %v3806
        %v3811 = vmul.u32 %v3805, %v3807
        %v3812 = vshll.u32 %v3809, 16
        %v3813 = vshrl.u32 %v3809, 16
        %v3814 = vshll.u32 %v3810, 16
        %v3815 = vshrl.u32 %v3810, 16
        %vm3816 = vc.u32 %v3808, %v3812
        %v3817 = vsel %vm3816, 1, 0
        %v3818 = vadd.s32 %v3808, %v3812
        %v3819 = vadd.s32 %v3811, %v3817
        %vm3820 = vc.u32 %v3818, %v3814
        %v3821 = vsel %vm3820, 1, 0
        %v3822 = vadd.s32 %v3818, %v3814
        %v3823 = vadd.s32 %v3819, %v3821
        %v3824 = vadd.s32 %v3823, %v3813
        %v3825 = vadd.s32 %v3824, %v3815
        %v3826 = vmul.u32 %v3781, %v3772
        %v3827 = vadd.s32 %v3803, %v3822
        %vm3828 = vc.u32 %v3803, %v3822
        %v3829 = vadd.s32 %v3825, 1
        %v3830 = vsel %vm3828, %v3829, %v3825
        %v3831 = vadd.s32 %v3826, %v3830
        %v3832 = vadd.s32 %v3831, 536870912
        %v3833 = vshrl.u32 %v3832, 30
        %v3834 = vshll.u32 %v3833, 30
        %v3835 = vsub.s32 %v3831, %v3834
        %vm3836 = vcmp.lt.s32.totalorder %v3835, 0
        %v3837 = vsub.s32 0, %v3835
        %v3838 = vsel %vm3836, %v3837, %v3835
        %v3839 = vclz %v3838
        %v3840 = vsub.s32 %v3839, 2
        %vm3841 = vcmp.gt.s32.totalorder 0, %v3840
        %v3842 = vsel %vm3841, 0, %v3840
        %v3843 = vsub.s32 32, %v3842
        %v3844 = vshll.u32 %v3835, %v3842
        %v3845 = vshrl.u32 %v3827, %v3843
        %v3846 = vor.u32 %v3844, %v3845
        %v3847 = vsub.s32 4294967266, %v3842
        %v3848 = vadd.s32 %v3847, 127
        %v3849 = vshll.u32 %v3848, 23
        %v3850 = vor.u32 4788187, %v3849
        %v3851 = vand.u32 2147483647, %v3850
        %v3853 = vcvt.s32.f32 %v3846
        %v3854 = vmul.f32 %v3853, %v3851
        %v3855 = vxor.u32 %v3854, 2147483648
        %v3856 = vsel %vm3735, %v3855, %v3854
        %v3857 = vsub.s32 4, %v3833
        %v3858 = vsel %vm3735, %v3857, %v3833
        %v3859 = vsel %vm3734, %v1035, %v3856
        %v3860 = vsel %vm3734, 0, %v3858
        %v3861 = vmul.f32 %v3859, %v3859
        %v3862 = vmul.f32 %v3861, -0.001358992
        %v3863 = vadd.f32 %v3862, 0.041655596
        %v3864 = vmul.f32 %v3861, %v3863
        %v3865 = vadd.f32 %v3864, -0.4999988
        %v3866 = vmul.f32 %v3861, %v3865
        %v3867 = vadd.f32 1.0, %v3866
        %v3868 = vmul.f32 %v3859, %v3859
        %v3869 = vmul.f32 %v3868, -0.00019511016
        %v3870 = vadd.f32 %v3869, 0.008332121
        %v3871 = vmul.f32 %v3868, %v3870
        %v3872 = vadd.f32 %v3871, -0.16666654
        %v3873 = vmul.f32 %v3868, %v3872
        %v3874 = vadd.f32 %v3873, 1.0
        %v3875 = vmul.f32 %v3874, %v3859
        %vm3876 = vweird.f32 %v1035
        %v3877 = vadd.s32 %v3860, 3
        %v3878 = vand.u32 %v3877, 3
        %vm3879 = vcmp.lt.s32.totalorder %v3878, 2
        %vm3880 = vcmp.eq.s32.totalorder %v3878, 0
        %v3881 = vxor.u32 %v3875, 2147483648
        %v3882 = vsel %vm3880, %v3867, %v3881
        %vm3883 = vcmp.eq.s32.totalorder %v3878, 2
        %v3884 = vxor.u32 %v3867, 2147483648
        %v3885 = vsel %vm3883, %v3884, %v3875
        %v3886 = vsel %vm3879, %v3882, %v3885
        %v3887 = vsel %vm3876, nan, %v3886
        %v3888 = vand.u32 2147483647, %v1036
        %vm3889 = vcmp.le.f32.partialorder %v3888, 0.7853982
        %vm3890 = vcmp.lt.s32.totalorder %v1036, 0
        %v3891 = vand.u32 %v1036, 2139095040
        %v3892 = vshrl.u32 %v3891, 23
        %v3893 = vsub.s32 %v3892, 127
        %v3894 = vand.u32 2147483647, %v1036
        %v3895 = vand.u32 %v3894, 8388607
        %v3896 = vor.u32 %v3895, 8388608
        %v3897 = vsub.s32 0, %v3896
        %v3898 = vadd.s32 %v3893, 1
        %vm3899 = vcmp.gt.s32.totalorder %v3898, 0
        %v3900 = vsel %vm3899, %v3898, 0
        %v3901 = vshrl.u32 %v3900, 5
        %v3902 = vand.u32 %v3900, 31
        %v3903 = vsub.s32 32, %v3902
        %v3904 = vshrl.u32 683565275, %v3903
        %v3905 = vshll.u32 683565275, %v3902
        %v3906 = vshrl.u32 2475754826, %v3903
        %v3907 = vor.u32 %v3905, %v3906
        %v3908 = vshll.u32 2475754826, %v3902
        %v3909 = vshrl.u32 2131351028, %v3903
        %v3910 = vor.u32 %v3908, %v3909
        %v3911 = vshll.u32 2131351028, %v3902
        %v3912 = vshrl.u32 2102212464, %v3903
        %v3913 = vor.u32 %v3911, %v3912
        %v3914 = vshll.u32 2102212464, %v3902
        %v3915 = vshrl.u32 920167782, %v3903
        %v3916 = vor.u32 %v3914, %v3915
        %v3917 = vshll.u32 920167782, %v3902
        %v3918 = vshrl.u32 1326507024, %v3903
        %v3919 = vor.u32 %v3917, %v3918
        %vm3920 = vcmp.lt.s32.totalorder %v3901, 1
        %vm3921 = vcmp.lt.s32.totalorder %v3901, 2
        %vm3922 = vcmp.lt.s32.totalorder %v3901, 3
        %vm3923 = vcmp.lt.s32.totalorder %v3901, 4
        %v3924 = vsel %vm3920, %v3904, %v3907
        %v3925 = vsel %vm3923, %v3913, 2102212464
        %v3926 = vsel %vm3922, %v3910, %v3925
        %v3927 = vsel %vm3921, %v3924, %v3926
        %v3928 = vsel %vm3920, %v3907, %v3910
        %v3929 = vsel %vm3923, %v3916, 920167782
        %v3930 = vsel %vm3922, %v3913, %v3929
        %v3931 = vsel %vm3921, %v3928, %v3930
        %v3932 = vsel %vm3920, %v3910, %v3913
        %v3933 = vsel %vm3923, %v3919, 1326507024
        %v3934 = vsel %vm3922, %v3916, %v3933
        %v3935 = vsel %vm3921, %v3932, %v3934
        %v3936 = vshll.u32 %v3896, 8
        %v3937 = vand.u32 %v3936, 65535
        %v3938 = vshrl.u32 %v3936, 16
        %v3939 = vand.u32 %v3935, 65535
        %v3940 = vshrl.u32 %v3935, 16
        %v3941 = vmul.u32 %v3937, %v3939
        %v3942 = vmul.u32 %v3937, %v3940
        %v3943 = vmul.u32 %v3938, %v3939
        %v3944 = vmul.u32 %v3938, %v3940
        %v3945 = vshll.u32 %v3942, 16
        %v3946 = vshrl.u32 %v3942, 16
        %v3947 = vshll.u32 %v3943, 16
        %v3948 = vshrl.u32 %v3943, 16
        %vm3949 = vc.u32 %v3941, %v3945
        %v3950 = vsel %vm3949, 1, 0
        %v3951 = vadd.s32 %v3941, %v3945
        %v3952 = vadd.s32 %v3944, %v3950
        %vm3953 = vc.u32 %v3951, %v3947
        %v3954 = vsel %vm3953, 1, 0
        %v3955 = vadd.s32 %v3951, %v3947
        %v3956 = vadd.s32 %v3952, %v3954
        %v3957 = vadd.s32 %v3956, %v3946
        %v3958 = vadd.s32 %v3957, %v3948
        %v3959 = vand.u32 %v3936, 65535
        %v3960 = vshrl.u32 %v3936, 16
        %v3961 = vand.u32 %v3931, 65535
        %v3962 = vshrl.u32 %v3931, 16
        %v3963 = vmul.u32 %v3959, %v3961
        %v3964 = vmul.u32 %v3959, %v3962
        %v3965 = vmul.u32 %v3960, %v3961
        %v3966 = vmul.u32 %v3960, %v3962
        %v3967 = vshll.u32 %v3964, 16
        %v3968 = vshrl.u32 %v3964, 16
        %v3969 = vshll.u32 %v3965, 16
        %v3970 = vshrl.u32 %v3965, 16
        %vm3971 = vc.u32 %v3963, %v3967
        %v3972 = vsel %vm3971, 1, 0
        %v3973 = vadd.s32 %v3963, %v3967
        %v3974 = vadd.s32 %v3966, %v3972
        %vm3975 = vc.u32 %v3973, %v3969
        %v3976 = vsel %vm3975, 1, 0
        %v3977 = vadd.s32 %v3973, %v3969
        %v3978 = vadd.s32 %v3974, %v3976
        %v3979 = vadd.s32 %v3978, %v3968
        %v3980 = vadd.s32 %v3979, %v3970
        %v3981 = vmul.u32 %v3936, %v3927
        %v3982 = vadd.s32 %v3958, %v3977
        %vm3983 = vc.u32 %v3958, %v3977
        %v3984 = vadd.s32 %v3980, 1
        %v3985 = vsel %vm3983, %v3984, %v3980
        %v3986 = vadd.s32 %v3981, %v3985
        %v3987 = vadd.s32 %v3986, 536870912
        %v3988 = vshrl.u32 %v3987, 30
        %v3989 = vshll.u32 %v3988, 30
        %v3990 = vsub.s32 %v3986, %v3989
        %vm3991 = vcmp.lt.s32.totalorder %v3990, 0
        %v3992 = vsub.s32 0, %v3990
        %v3993 = vsel %vm3991, %v3992, %v3990
        %v3994 = vclz %v3993
        %v3995 = vsub.s32 %v3994, 2
        %vm3996 = vcmp.gt.s32.totalorder 0, %v3995
        %v3997 = vsel %vm3996, 0, %v3995
        %v3998 = vsub.s32 32, %v3997
        %v3999 = vshll.u32 %v3990, %v3997
        %v4000 = vshrl.u32 %v3982, %v3998
        %v4001 = vor.u32 %v3999, %v4000
        %v4002 = vsub.s32 4294967266, %v3997
        %v4003 = vadd.s32 %v4002, 127
        %v4004 = vshll.u32 %v4003, 23
        %v4005 = vor.u32 4788187, %v4004
        %v4006 = vand.u32 2147483647, %v4005
        %v4008 = vcvt.s32.f32 %v4001
        %v4009 = vmul.f32 %v4008, %v4006
        %v4010 = vxor.u32 %v4009, 2147483648
        %v4011 = vsel %vm3890, %v4010, %v4009
        %v4012 = vsub.s32 4, %v3988
        %v4013 = vsel %vm3890, %v4012, %v3988
        %v4014 = vsel %vm3889, %v1036, %v4011
        %v4015 = vsel %vm3889, 0, %v4013
        %v4016 = vmul.f32 %v4014, %v4014
        %v4017 = vmul.f32 %v4016, -0.001358992
        %v4018 = vadd.f32 %v4017, 0.041655596
        %v4019 = vmul.f32 %v4016, %v4018
        %v4020 = vadd.f32 %v4019, -0.4999988
        %v4021 = vmul.f32 %v4016, %v4020
        %v4022 = vadd.f32 1.0, %v4021
        %v4023 = vmul.f32 %v4014, %v4014
        %v4024 = vmul.f32 %v4023, -0.00019511016
        %v4025 = vadd.f32 %v4024, 0.008332121
        %v4026 = vmul.f32 %v4023, %v4025
        %v4027 = vadd.f32 %v4026, -0.16666654
        %v4028 = vmul.f32 %v4023, %v4027
        %v4029 = vadd.f32 %v4028, 1.0
        %v4030 = vmul.f32 %v4029, %v4014
        %vm4031 = vweird.f32 %v1036
        %v4032 = vadd.s32 %v4015, 3
        %v4033 = vand.u32 %v4032, 3
        %vm4034 = vcmp.lt.s32.totalorder %v4033, 2
        %vm4035 = vcmp.eq.s32.totalorder %v4033, 0
        %v4036 = vxor.u32 %v4030, 2147483648
        %v4037 = vsel %vm4035, %v4022, %v4036
        %vm4038 = vcmp.eq.s32.totalorder %v4033, 2
        %v4039 = vxor.u32 %v4022, 2147483648
        %v4040 = vsel %vm4038, %v4039, %v4030
        %v4041 = vsel %vm4034, %v4037, %v4040
        %v4042 = vsel %vm4031, nan, %v4041
        %v4043 = vand.u32 2147483647, %v1037
        %vm4044 = vcmp.le.f32.partialorder %v4043, 0.7853982
        %vm4045 = vcmp.lt.s32.totalorder %v1037, 0
        %v4046 = vand.u32 %v1037, 2139095040
        %v4047 = vshrl.u32 %v4046, 23
        %v4048 = vsub.s32 %v4047, 127
        %v4049 = vand.u32 2147483647, %v1037
        %v4050 = vand.u32 %v4049, 8388607
        %v4051 = vor.u32 %v4050, 8388608
        %v4052 = vsub.s32 0, %v4051
        %v4053 = vadd.s32 %v4048, 1
        %vm4054 = vcmp.gt.s32.totalorder %v4053, 0
        %v4055 = vsel %vm4054, %v4053, 0
        %v4056 = vshrl.u32 %v4055, 5
        %v4057 = vand.u32 %v4055, 31
        %v4058 = vsub.s32 32, %v4057
        %v4059 = vshrl.u32 683565275, %v4058
        %v4060 = vshll.u32 683565275, %v4057
        %v4061 = vshrl.u32 2475754826, %v4058
        %v4062 = vor.u32 %v4060, %v4061
        %v4063 = vshll.u32 2475754826, %v4057
        %v4064 = vshrl.u32 2131351028, %v4058
        %v4065 = vor.u32 %v4063, %v4064
        %v4066 = vshll.u32 2131351028, %v4057
        %v4067 = vshrl.u32 2102212464, %v4058
        %v4068 = vor.u32 %v4066, %v4067
        %v4069 = vshll.u32 2102212464, %v4057
        %v4070 = vshrl.u32 920167782, %v4058
        %v4071 = vor.u32 %v4069, %v4070
        %v4072 = vshll.u32 920167782, %v4057
        %v4073 = vshrl.u32 1326507024, %v4058
        %v4074 = vor.u32 %v4072, %v4073
        %vm4075 = vcmp.lt.s32.totalorder %v4056, 1
        %vm4076 = vcmp.lt.s32.totalorder %v4056, 2
        %vm4077 = vcmp.lt.s32.totalorder %v4056, 3
        %vm4078 = vcmp.lt.s32.totalorder %v4056, 4
        %v4079 = vsel %vm4075, %v4059, %v4062
        %v4080 = vsel %vm4078, %v4068, 2102212464
        %v4081 = vsel %vm4077, %v4065, %v4080
        %v4082 = vsel %vm4076, %v4079, %v4081
        %v4083 = vsel %vm4075, %v4062, %v4065
        %v4084 = vsel %vm4078, %v4071, 920167782
        %v4085 = vsel %vm4077, %v4068, %v4084
        %v4086 = vsel %vm4076, %v4083, %v4085
        %v4087 = vsel %vm4075, %v4065, %v4068
        %v4088 = vsel %vm4078, %v4074, 1326507024
        %v4089 = vsel %vm4077, %v4071, %v4088
        %v4090 = vsel %vm4076, %v4087, %v4089
        %v4091 = vshll.u32 %v4051, 8
        %v4092 = vand.u32 %v4091, 65535
        %v4093 = vshrl.u32 %v4091, 16
        %v4094 = vand.u32 %v4090, 65535
        %v4095 = vshrl.u32 %v4090, 16
        %v4096 = vmul.u32 %v4092, %v4094
        %v4097 = vmul.u32 %v4092, %v4095
        %v4098 = vmul.u32 %v4093, %v4094
        %v4099 = vmul.u32 %v4093, %v4095
        %v4100 = vshll.u32 %v4097, 16
        %v4101 = vshrl.u32 %v4097, 16
        %v4102 = vshll.u32 %v4098, 16
        %v4103 = vshrl.u32 %v4098, 16
        %vm4104 = vc.u32 %v4096, %v4100
        %v4105 = vsel %vm4104, 1, 0
        %v4106 = vadd.s32 %v4096, %v4100
        %v4107 = vadd.s32 %v4099, %v4105
        %vm4108 = vc.u32 %v4106, %v4102
        %v4109 = vsel %vm4108, 1, 0
        %v4110 = vadd.s32 %v4106, %v4102
        %v4111 = vadd.s32 %v4107, %v4109
        %v4112 = vadd.s32 %v4111, %v4101
        %v4113 = vadd.s32 %v4112, %v4103
        %v4114 = vand.u32 %v4091, 65535
        %v4115 = vshrl.u32 %v4091, 16
        %v4116 = vand.u32 %v4086, 65535
        %v4117 = vshrl.u32 %v4086, 16
        %v4118 = vmul.u32 %v4114, %v4116
        %v4119 = vmul.u32 %v4114, %v4117
        %v4120 = vmul.u32 %v4115, %v4116
        %v4121 = vmul.u32 %v4115, %v4117
        %v4122 = vshll.u32 %v4119, 16
        %v4123 = vshrl.u32 %v4119, 16
        %v4124 = vshll.u32 %v4120, 16
        %v4125 = vshrl.u32 %v4120, 16
        %vm4126 = vc.u32 %v4118, %v4122
        %v4127 = vsel %vm4126, 1, 0
        %v4128 = vadd.s32 %v4118, %v4122
        %v4129 = vadd.s32 %v4121, %v4127
        %vm4130 = vc.u32 %v4128, %v4124
        %v4131 = vsel %vm4130, 1, 0
        %v4132 = vadd.s32 %v4128, %v4124
        %v4133 = vadd.s32 %v4129, %v4131
        %v4134 = vadd.s32 %v4133, %v4123
        %v4135 = vadd.s32 %v4134, %v4125
        %v4136 = vmul.u32 %v4091, %v4082
        %v4137 = vadd.s32 %v4113, %v4132
        %vm4138 = vc.u32 %v4113, %v4132
        %v4139 = vadd.s32 %v4135, 1
        %v4140 = vsel %vm4138, %v4139, %v4135
        %v4141 = vadd.s32 %v4136, %v4140
        %v4142 = vadd.s32 %v4141, 536870912
        %v4143 = vshrl.u32 %v4142, 30
        %v4144 = vshll.u32 %v4143, 30
        %v4145 = vsub.s32 %v4141, %v4144
        %vm4146 = vcmp.lt.s32.totalorder %v4145, 0
        %v4147 = vsub.s32 0, %v4145
        %v4148 = vsel %vm4146, %v4147, %v4145
        %v4149 = vclz %v4148
        %v4150 = vsub.s32 %v4149, 2
        %vm4151 = vcmp.gt.s32.totalorder 0, %v4150
        %v4152 = vsel %vm4151, 0, %v4150
        %v4153 = vsub.s32 32, %v4152
        %v4154 = vshll.u32 %v4145, %v4152
        %v4155 = vshrl.u32 %v4137, %v4153
        %v4156 = vor.u32 %v4154, %v4155
        %v4157 = vsub.s32 4294967266, %v4152
        %v4158 = vadd.s32 %v4157, 127
        %v4159 = vshll.u32 %v4158, 23
        %v4160 = vor.u32 4788187, %v4159
        %v4161 = vand.u32 2147483647, %v4160
        %v4163 = vcvt.s32.f32 %v4156
        %v4164 = vmul.f32 %v4163, %v4161
        %v4165 = vxor.u32 %v4164, 2147483648
        %v4166 = vsel %vm4045, %v4165, %v4164
        %v4167 = vsub.s32 4, %v4143
        %v4168 = vsel %vm4045, %v4167, %v4143
        %v4169 = vsel %vm4044, %v1037, %v4166
        %v4170 = vsel %vm4044, 0, %v4168
        %v4171 = vmul.f32 %v4169, %v4169
        %v4172 = vmul.f32 %v4171, -0.001358992
        %v4173 = vadd.f32 %v4172, 0.041655596
        %v4174 = vmul.f32 %v4171, %v4173
        %v4175 = vadd.f32 %v4174, -0.4999988
        %v4176 = vmul.f32 %v4171, %v4175
        %v4177 = vadd.f32 1.0, %v4176
        %v4178 = vmul.f32 %v4169, %v4169
        %v4179 = vmul.f32 %v4178, -0.00019511016
        %v4180 = vadd.f32 %v4179, 0.008332121
        %v4181 = vmul.f32 %v4178, %v4180
        %v4182 = vadd.f32 %v4181, -0.16666654
        %v4183 = vmul.f32 %v4178, %v4182
        %v4184 = vadd.f32 %v4183, 1.0
        %v4185 = vmul.f32 %v4184, %v4169
        %vm4186 = vweird.f32 %v1037
        %v4187 = vadd.s32 %v4170, 3
        %v4188 = vand.u32 %v4187, 3
        %vm4189 = vcmp.lt.s32.totalorder %v4188, 2
        %vm4190 = vcmp.eq.s32.totalorder %v4188, 0
        %v4191 = vxor.u32 %v4185, 2147483648
        %v4192 = vsel %vm4190, %v4177, %v4191
        %vm4193 = vcmp.eq.s32.totalorder %v4188, 2
        %v4194 = vxor.u32 %v4177, 2147483648
        %v4195 = vsel %vm4193, %v4194, %v4185
        %v4196 = vsel %vm4189, %v4192, %v4195
        %v4197 = vsel %vm4186, nan, %v4196
        %v4198 = vand.u32 2147483647, %v1038
        %vm4199 = vcmp.le.f32.partialorder %v4198, 0.7853982
        %vm4200 = vcmp.lt.s32.totalorder %v1038, 0
        %v4201 = vand.u32 %v1038, 2139095040
        %v4202 = vshrl.u32 %v4201, 23
        %v4203 = vsub.s32 %v4202, 127
        %v4204 = vand.u32 2147483647, %v1038
        %v4205 = vand.u32 %v4204, 8388607
        %v4206 = vor.u32 %v4205, 8388608
        %v4207 = vsub.s32 0, %v4206
        %v4208 = vadd.s32 %v4203, 1
        %vm4209 = vcmp.gt.s32.totalorder %v4208, 0
        %v4210 = vsel %vm4209, %v4208, 0
        %v4211 = vshrl.u32 %v4210, 5
        %v4212 = vand.u32 %v4210, 31
        %v4213 = vsub.s32 32, %v4212
        %v4214 = vshrl.u32 683565275, %v4213
        %v4215 = vshll.u32 683565275, %v4212
        %v4216 = vshrl.u32 2475754826, %v4213
        %v4217 = vor.u32 %v4215, %v4216
        %v4218 = vshll.u32 2475754826, %v4212
        %v4219 = vshrl.u32 2131351028, %v4213
        %v4220 = vor.u32 %v4218, %v4219
        %v4221 = vshll.u32 2131351028, %v4212
        %v4222 = vshrl.u32 2102212464, %v4213
        %v4223 = vor.u32 %v4221, %v4222
        %v4224 = vshll.u32 2102212464, %v4212
        %v4225 = vshrl.u32 920167782, %v4213
        %v4226 = vor.u32 %v4224, %v4225
        %v4227 = vshll.u32 920167782, %v4212
        %v4228 = vshrl.u32 1326507024, %v4213
        %v4229 = vor.u32 %v4227, %v4228
        %vm4230 = vcmp.lt.s32.totalorder %v4211, 1
        %vm4231 = vcmp.lt.s32.totalorder %v4211, 2
        %vm4232 = vcmp.lt.s32.totalorder %v4211, 3
        %vm4233 = vcmp.lt.s32.totalorder %v4211, 4
        %v4234 = vsel %vm4230, %v4214, %v4217
        %v4235 = vsel %vm4233, %v4223, 2102212464
        %v4236 = vsel %vm4232, %v4220, %v4235
        %v4237 = vsel %vm4231, %v4234, %v4236
        %v4238 = vsel %vm4230, %v4217, %v4220
        %v4239 = vsel %vm4233, %v4226, 920167782
        %v4240 = vsel %vm4232, %v4223, %v4239
        %v4241 = vsel %vm4231, %v4238, %v4240
        %v4242 = vsel %vm4230, %v4220, %v4223
        %v4243 = vsel %vm4233, %v4229, 1326507024
        %v4244 = vsel %vm4232, %v4226, %v4243
        %v4245 = vsel %vm4231, %v4242, %v4244
        %v4246 = vshll.u32 %v4206, 8
        %v4247 = vand.u32 %v4246, 65535
        %v4248 = vshrl.u32 %v4246, 16
        %v4249 = vand.u32 %v4245, 65535
        %v4250 = vshrl.u32 %v4245, 16
        %v4251 = vmul.u32 %v4247, %v4249
        %v4252 = vmul.u32 %v4247, %v4250
        %v4253 = vmul.u32 %v4248, %v4249
        %v4254 = vmul.u32 %v4248, %v4250
        %v4255 = vshll.u32 %v4252, 16
        %v4256 = vshrl.u32 %v4252, 16
        %v4257 = vshll.u32 %v4253, 16
        %v4258 = vshrl.u32 %v4253, 16
        %vm4259 = vc.u32 %v4251, %v4255
        %v4260 = vsel %vm4259, 1, 0
        %v4261 = vadd.s32 %v4251, %v4255
        %v4262 = vadd.s32 %v4254, %v4260
        %vm4263 = vc.u32 %v4261, %v4257
        %v4264 = vsel %vm4263, 1, 0
        %v4265 = vadd.s32 %v4261, %v4257
        %v4266 = vadd.s32 %v4262, %v4264
        %v4267 = vadd.s32 %v4266, %v4256
        %v4268 = vadd.s32 %v4267, %v4258
        %v4269 = vand.u32 %v4246, 65535
        %v4270 = vshrl.u32 %v4246, 16
        %v4271 = vand.u32 %v4241, 65535
        %v4272 = vshrl.u32 %v4241, 16
        %v4273 = vmul.u32 %v4269, %v4271
        %v4274 = vmul.u32 %v4269, %v4272
        %v4275 = vmul.u32 %v4270, %v4271
        %v4276 = vmul.u32 %v4270, %v4272
        %v4277 = vshll.u32 %v4274, 16
        %v4278 = vshrl.u32 %v4274, 16
        %v4279 = vshll.u32 %v4275, 16
        %v4280 = vshrl.u32 %v4275, 16
        %vm4281 = vc.u32 %v4273, %v4277
        %v4282 = vsel %vm4281, 1, 0
        %v4283 = vadd.s32 %v4273, %v4277
        %v4284 = vadd.s32 %v4276, %v4282
        %vm4285 = vc.u32 %v4283, %v4279
        %v4286 = vsel %vm4285, 1, 0
        %v4287 = vadd.s32 %v4283, %v4279
        %v4288 = vadd.s32 %v4284, %v4286
        %v4289 = vadd.s32 %v4288, %v4278
        %v4290 = vadd.s32 %v4289, %v4280
        %v4291 = vmul.u32 %v4246, %v4237
        %v4292 = vadd.s32 %v4268, %v4287
        %vm4293 = vc.u32 %v4268, %v4287
        %v4294 = vadd.s32 %v4290, 1
        %v4295 = vsel %vm4293, %v4294, %v4290
        %v4296 = vadd.s32 %v4291, %v4295
        %v4297 = vadd.s32 %v4296, 536870912
        %v4298 = vshrl.u32 %v4297, 30
        %v4299 = vshll.u32 %v4298, 30
        %v4300 = vsub.s32 %v4296, %v4299
        %vm4301 = vcmp.lt.s32.totalorder %v4300, 0
        %v4302 = vsub.s32 0, %v4300
        %v4303 = vsel %vm4301, %v4302, %v4300
        %v4304 = vclz %v4303
        %v4305 = vsub.s32 %v4304, 2
        %vm4306 = vcmp.gt.s32.totalorder 0, %v4305
        %v4307 = vsel %vm4306, 0, %v4305
        %v4308 = vsub.s32 32, %v4307
        %v4309 = vshll.u32 %v4300, %v4307
        %v4310 = vshrl.u32 %v4292, %v4308
        %v4311 = vor.u32 %v4309, %v4310
        %v4312 = vsub.s32 4294967266, %v4307
        %v4313 = vadd.s32 %v4312, 127
        %v4314 = vshll.u32 %v4313, 23
        %v4315 = vor.u32 4788187, %v4314
        %v4316 = vand.u32 2147483647, %v4315
        %v4318 = vcvt.s32.f32 %v4311
        %v4319 = vmul.f32 %v4318, %v4316
        %v4320 = vxor.u32 %v4319, 2147483648
        %v4321 = vsel %vm4200, %v4320, %v4319
        %v4322 = vsub.s32 4, %v4298
        %v4323 = vsel %vm4200, %v4322, %v4298
        %v4324 = vsel %vm4199, %v1038, %v4321
        %v4325 = vsel %vm4199, 0, %v4323
        %v4326 = vmul.f32 %v4324, %v4324
        %v4327 = vmul.f32 %v4326, -0.001358992
        %v4328 = vadd.f32 %v4327, 0.041655596
        %v4329 = vmul.f32 %v4326, %v4328
        %v4330 = vadd.f32 %v4329, -0.4999988
        %v4331 = vmul.f32 %v4326, %v4330
        %v4332 = vadd.f32 1.0, %v4331
        %v4333 = vmul.f32 %v4324, %v4324
        %v4334 = vmul.f32 %v4333, -0.00019511016
        %v4335 = vadd.f32 %v4334, 0.008332121
        %v4336 = vmul.f32 %v4333, %v4335
        %v4337 = vadd.f32 %v4336, -0.16666654
        %v4338 = vmul.f32 %v4333, %v4337
        %v4339 = vadd.f32 %v4338, 1.0
        %v4340 = vmul.f32 %v4339, %v4324
        %vm4341 = vweird.f32 %v1038
        %v4342 = vadd.s32 %v4325, 3
        %v4343 = vand.u32 %v4342, 3
        %vm4344 = vcmp.lt.s32.totalorder %v4343, 2
        %vm4345 = vcmp.eq.s32.totalorder %v4343, 0
        %v4346 = vxor.u32 %v4340, 2147483648
        %v4347 = vsel %vm4345, %v4332, %v4346
        %vm4348 = vcmp.eq.s32.totalorder %v4343, 2
        %v4349 = vxor.u32 %v4332, 2147483648
        %v4350 = vsel %vm4348, %v4349, %v4340
        %v4351 = vsel %vm4344, %v4347, %v4350
        %v4352 = vsel %vm4341, nan, %v4351
        %v4353 = vand.u32 2147483647, %v1039
        %vm4354 = vcmp.le.f32.partialorder %v4353, 0.7853982
        %vm4355 = vcmp.lt.s32.totalorder %v1039, 0
        %v4356 = vand.u32 %v1039, 2139095040
        %v4357 = vshrl.u32 %v4356, 23
        %v4358 = vsub.s32 %v4357, 127
        %v4359 = vand.u32 2147483647, %v1039
        %v4360 = vand.u32 %v4359, 8388607
        %v4361 = vor.u32 %v4360, 8388608
        %v4362 = vsub.s32 0, %v4361
        %v4363 = vadd.s32 %v4358, 1
        %vm4364 = vcmp.gt.s32.totalorder %v4363, 0
        %v4365 = vsel %vm4364, %v4363, 0
        %v4366 = vshrl.u32 %v4365, 5
        %v4367 = vand.u32 %v4365, 31
        %v4368 = vsub.s32 32, %v4367
        %v4369 = vshrl.u32 683565275, %v4368
        %v4370 = vshll.u32 683565275, %v4367
        %v4371 = vshrl.u32 2475754826, %v4368
        %v4372 = vor.u32 %v4370, %v4371
        %v4373 = vshll.u32 2475754826, %v4367
        %v4374 = vshrl.u32 2131351028, %v4368
        %v4375 = vor.u32 %v4373, %v4374
        %v4376 = vshll.u32 2131351028, %v4367
        %v4377 = vshrl.u32 2102212464, %v4368
        %v4378 = vor.u32 %v4376, %v4377
        %v4379 = vshll.u32 2102212464, %v4367
        %v4380 = vshrl.u32 920167782, %v4368
        %v4381 = vor.u32 %v4379, %v4380
        %v4382 = vshll.u32 920167782, %v4367
        %v4383 = vshrl.u32 1326507024, %v4368
        %v4384 = vor.u32 %v4382, %v4383
        %vm4385 = vcmp.lt.s32.totalorder %v4366, 1
        %vm4386 = vcmp.lt.s32.totalorder %v4366, 2
        %vm4387 = vcmp.lt.s32.totalorder %v4366, 3
        %vm4388 = vcmp.lt.s32.totalorder %v4366, 4
        %v4389 = vsel %vm4385, %v4369, %v4372
        %v4390 = vsel %vm4388, %v4378, 2102212464
        %v4391 = vsel %vm4387, %v4375, %v4390
        %v4392 = vsel %vm4386, %v4389, %v4391
        %v4393 = vsel %vm4385, %v4372, %v4375
        %v4394 = vsel %vm4388, %v4381, 920167782
        %v4395 = vsel %vm4387, %v4378, %v4394
        %v4396 = vsel %vm4386, %v4393, %v4395
        %v4397 = vsel %vm4385, %v4375, %v4378
        %v4398 = vsel %vm4388, %v4384, 1326507024
        %v4399 = vsel %vm4387, %v4381, %v4398
        %v4400 = vsel %vm4386, %v4397, %v4399
        %v4401 = vshll.u32 %v4361, 8
        %v4402 = vand.u32 %v4401, 65535
        %v4403 = vshrl.u32 %v4401, 16
        %v4404 = vand.u32 %v4400, 65535
        %v4405 = vshrl.u32 %v4400, 16
        %v4406 = vmul.u32 %v4402, %v4404
        %v4407 = vmul.u32 %v4402, %v4405
        %v4408 = vmul.u32 %v4403, %v4404
        %v4409 = vmul.u32 %v4403, %v4405
        %v4410 = vshll.u32 %v4407, 16
        %v4411 = vshrl.u32 %v4407, 16
        %v4412 = vshll.u32 %v4408, 16
        %v4413 = vshrl.u32 %v4408, 16
        %vm4414 = vc.u32 %v4406, %v4410
        %v4415 = vsel %vm4414, 1, 0
        %v4416 = vadd.s32 %v4406, %v4410
        %v4417 = vadd.s32 %v4409, %v4415
        %vm4418 = vc.u32 %v4416, %v4412
        %v4419 = vsel %vm4418, 1, 0
        %v4420 = vadd.s32 %v4416, %v4412
        %v4421 = vadd.s32 %v4417, %v4419
        %v4422 = vadd.s32 %v4421, %v4411
        %v4423 = vadd.s32 %v4422, %v4413
        %v4424 = vand.u32 %v4401, 65535
        %v4425 = vshrl.u32 %v4401, 16
        %v4426 = vand.u32 %v4396, 65535
        %v4427 = vshrl.u32 %v4396, 16
        %v4428 = vmul.u32 %v4424, %v4426
        %v4429 = vmul.u32 %v4424, %v4427
        %v4430 = vmul.u32 %v4425, %v4426
        %v4431 = vmul.u32 %v4425, %v4427
        %v4432 = vshll.u32 %v4429, 16
        %v4433 = vshrl.u32 %v4429, 16
        %v4434 = vshll.u32 %v4430, 16
        %v4435 = vshrl.u32 %v4430, 16
        %vm4436 = vc.u32 %v4428, %v4432
        %v4437 = vsel %vm4436, 1, 0
        %v4438 = vadd.s32 %v4428, %v4432
        %v4439 = vadd.s32 %v4431, %v4437
        %vm4440 = vc.u32 %v4438, %v4434
        %v4441 = vsel %vm4440, 1, 0
        %v4442 = vadd.s32 %v4438, %v4434
        %v4443 = vadd.s32 %v4439, %v4441
        %v4444 = vadd.s32 %v4443, %v4433
        %v4445 = vadd.s32 %v4444, %v4435
        %v4446 = vmul.u32 %v4401, %v4392
        %v4447 = vadd.s32 %v4423, %v4442
        %vm4448 = vc.u32 %v4423, %v4442
        %v4449 = vadd.s32 %v4445, 1
        %v4450 = vsel %vm4448, %v4449, %v4445
        %v4451 = vadd.s32 %v4446, %v4450
        %v4452 = vadd.s32 %v4451, 536870912
        %v4453 = vshrl.u32 %v4452, 30
        %v4454 = vshll.u32 %v4453, 30
        %v4455 = vsub.s32 %v4451, %v4454
        %vm4456 = vcmp.lt.s32.totalorder %v4455, 0
        %v4457 = vsub.s32 0, %v4455
        %v4458 = vsel %vm4456, %v4457, %v4455
        %v4459 = vclz %v4458
        %v4460 = vsub.s32 %v4459, 2
        %vm4461 = vcmp.gt.s32.totalorder 0, %v4460
        %v4462 = vsel %vm4461, 0, %v4460
        %v4463 = vsub.s32 32, %v4462
        %v4464 = vshll.u32 %v4455, %v4462
        %v4465 = vshrl.u32 %v4447, %v4463
        %v4466 = vor.u32 %v4464, %v4465
        %v4467 = vsub.s32 4294967266, %v4462
        %v4468 = vadd.s32 %v4467, 127
        %v4469 = vshll.u32 %v4468, 23
        %v4470 = vor.u32 4788187, %v4469
        %v4471 = vand.u32 2147483647, %v4470
        %v4473 = vcvt.s32.f32 %v4466
        %v4474 = vmul.f32 %v4473, %v4471
        %v4475 = vxor.u32 %v4474, 2147483648
        %v4476 = vsel %vm4355, %v4475, %v4474
        %v4477 = vsub.s32 4, %v4453
        %v4478 = vsel %vm4355, %v4477, %v4453
        %v4479 = vsel %vm4354, %v1039, %v4476
        %v4480 = vsel %vm4354, 0, %v4478
        %v4481 = vmul.f32 %v4479, %v4479
        %v4482 = vmul.f32 %v4481, -0.001358992
        %v4483 = vadd.f32 %v4482, 0.041655596
        %v4484 = vmul.f32 %v4481, %v4483
        %v4485 = vadd.f32 %v4484, -0.4999988
        %v4486 = vmul.f32 %v4481, %v4485
        %v4487 = vadd.f32 1.0, %v4486
        %v4488 = vmul.f32 %v4479, %v4479
        %v4489 = vmul.f32 %v4488, -0.00019511016
        %v4490 = vadd.f32 %v4489, 0.008332121
        %v4491 = vmul.f32 %v4488, %v4490
        %v4492 = vadd.f32 %v4491, -0.16666654
        %v4493 = vmul.f32 %v4488, %v4492
        %v4494 = vadd.f32 %v4493, 1.0
        %v4495 = vmul.f32 %v4494, %v4479
        %vm4496 = vweird.f32 %v1039
        %v4497 = vadd.s32 %v4480, 3
        %v4498 = vand.u32 %v4497, 3
        %vm4499 = vcmp.lt.s32.totalorder %v4498, 2
        %vm4500 = vcmp.eq.s32.totalorder %v4498, 0
        %v4501 = vxor.u32 %v4495, 2147483648
        %v4502 = vsel %vm4500, %v4487, %v4501
        %vm4503 = vcmp.eq.s32.totalorder %v4498, 2
        %v4504 = vxor.u32 %v4487, 2147483648
        %v4505 = vsel %vm4503, %v4504, %v4495
        %v4506 = vsel %vm4499, %v4502, %v4505
        %v4507 = vsel %vm4496, nan, %v4506
        %v4508 = vand.u32 2147483647, %v1040
        %vm4509 = vcmp.le.f32.partialorder %v4508, 0.7853982
        %vm4510 = vcmp.lt.s32.totalorder %v1040, 0
        %v4511 = vand.u32 %v1040, 2139095040
        %v4512 = vshrl.u32 %v4511, 23
        %v4513 = vsub.s32 %v4512, 127
        %v4514 = vand.u32 2147483647, %v1040
        %v4515 = vand.u32 %v4514, 8388607
        %v4516 = vor.u32 %v4515, 8388608
        %v4517 = vsub.s32 0, %v4516
        %v4518 = vadd.s32 %v4513, 1
        %vm4519 = vcmp.gt.s32.totalorder %v4518, 0
        %v4520 = vsel %vm4519, %v4518, 0
        %v4521 = vshrl.u32 %v4520, 5
        %v4522 = vand.u32 %v4520, 31
        %v4523 = vsub.s32 32, %v4522
        %v4524 = vshrl.u32 683565275, %v4523
        %v4525 = vshll.u32 683565275, %v4522
        %v4526 = vshrl.u32 2475754826, %v4523
        %v4527 = vor.u32 %v4525, %v4526
        %v4528 = vshll.u32 2475754826, %v4522
        %v4529 = vshrl.u32 2131351028, %v4523
        %v4530 = vor.u32 %v4528, %v4529
        %v4531 = vshll.u32 2131351028, %v4522
        %v4532 = vshrl.u32 2102212464, %v4523
        %v4533 = vor.u32 %v4531, %v4532
        %v4534 = vshll.u32 2102212464, %v4522
        %v4535 = vshrl.u32 920167782, %v4523
        %v4536 = vor.u32 %v4534, %v4535
        %v4537 = vshll.u32 920167782, %v4522
        %v4538 = vshrl.u32 1326507024, %v4523
        %v4539 = vor.u32 %v4537, %v4538
        %vm4540 = vcmp.lt.s32.totalorder %v4521, 1
        %vm4541 = vcmp.lt.s32.totalorder %v4521, 2
        %vm4542 = vcmp.lt.s32.totalorder %v4521, 3
        %vm4543 = vcmp.lt.s32.totalorder %v4521, 4
        %v4544 = vsel %vm4540, %v4524, %v4527
        %v4545 = vsel %vm4543, %v4533, 2102212464
        %v4546 = vsel %vm4542, %v4530, %v4545
        %v4547 = vsel %vm4541, %v4544, %v4546
        %v4548 = vsel %vm4540, %v4527, %v4530
        %v4549 = vsel %vm4543, %v4536, 920167782
        %v4550 = vsel %vm4542, %v4533, %v4549
        %v4551 = vsel %vm4541, %v4548, %v4550
        %v4552 = vsel %vm4540, %v4530, %v4533
        %v4553 = vsel %vm4543, %v4539, 1326507024
        %v4554 = vsel %vm4542, %v4536, %v4553
        %v4555 = vsel %vm4541, %v4552, %v4554
        %v4556 = vshll.u32 %v4516, 8
        %v4557 = vand.u32 %v4556, 65535
        %v4558 = vshrl.u32 %v4556, 16
        %v4559 = vand.u32 %v4555, 65535
        %v4560 = vshrl.u32 %v4555, 16
        %v4561 = vmul.u32 %v4557, %v4559
        %v4562 = vmul.u32 %v4557, %v4560
        %v4563 = vmul.u32 %v4558, %v4559
        %v4564 = vmul.u32 %v4558, %v4560
        %v4565 = vshll.u32 %v4562, 16
        %v4566 = vshrl.u32 %v4562, 16
        %v4567 = vshll.u32 %v4563, 16
        %v4568 = vshrl.u32 %v4563, 16
        %vm4569 = vc.u32 %v4561, %v4565
        %v4570 = vsel %vm4569, 1, 0
        %v4571 = vadd.s32 %v4561, %v4565
        %v4572 = vadd.s32 %v4564, %v4570
        %vm4573 = vc.u32 %v4571, %v4567
        %v4574 = vsel %vm4573, 1, 0
        %v4575 = vadd.s32 %v4571, %v4567
        %v4576 = vadd.s32 %v4572, %v4574
        %v4577 = vadd.s32 %v4576, %v4566
        %v4578 = vadd.s32 %v4577, %v4568
        %v4579 = vand.u32 %v4556, 65535
        %v4580 = vshrl.u32 %v4556, 16
        %v4581 = vand.u32 %v4551, 65535
        %v4582 = vshrl.u32 %v4551, 16
        %v4583 = vmul.u32 %v4579, %v4581
        %v4584 = vmul.u32 %v4579, %v4582
        %v4585 = vmul.u32 %v4580, %v4581
        %v4586 = vmul.u32 %v4580, %v4582
        %v4587 = vshll.u32 %v4584, 16
        %v4588 = vshrl.u32 %v4584, 16
        %v4589 = vshll.u32 %v4585, 16
        %v4590 = vshrl.u32 %v4585, 16
        %vm4591 = vc.u32 %v4583, %v4587
        %v4592 = vsel %vm4591, 1, 0
        %v4593 = vadd.s32 %v4583, %v4587
        %v4594 = vadd.s32 %v4586, %v4592
        %vm4595 = vc.u32 %v4593, %v4589
        %v4596 = vsel %vm4595, 1, 0
        %v4597 = vadd.s32 %v4593, %v4589
        %v4598 = vadd.s32 %v4594, %v4596
        %v4599 = vadd.s32 %v4598, %v4588
        %v4600 = vadd.s32 %v4599, %v4590
        %v4601 = vmul.u32 %v4556, %v4547
        %v4602 = vadd.s32 %v4578, %v4597
        %vm4603 = vc.u32 %v4578, %v4597
        %v4604 = vadd.s32 %v4600, 1
        %v4605 = vsel %vm4603, %v4604, %v4600
        %v4606 = vadd.s32 %v4601, %v4605
        %v4607 = vadd.s32 %v4606, 536870912
        %v4608 = vshrl.u32 %v4607, 30
        %v4609 = vshll.u32 %v4608, 30
        %v4610 = vsub.s32 %v4606, %v4609
        %vm4611 = vcmp.lt.s32.totalorder %v4610, 0
        %v4612 = vsub.s32 0, %v4610
        %v4613 = vsel %vm4611, %v4612, %v4610
        %v4614 = vclz %v4613
        %v4615 = vsub.s32 %v4614, 2
        %vm4616 = vcmp.gt.s32.totalorder 0, %v4615
        %v4617 = vsel %vm4616, 0, %v4615
        %v4618 = vsub.s32 32, %v4617
        %v4619 = vshll.u32 %v4610, %v4617
        %v4620 = vshrl.u32 %v4602, %v4618
        %v4621 = vor.u32 %v4619, %v4620
        %v4622 = vsub.s32 4294967266, %v4617
        %v4623 = vadd.s32 %v4622, 127
        %v4624 = vshll.u32 %v4623, 23
        %v4625 = vor.u32 4788187, %v4624
        %v4626 = vand.u32 2147483647, %v4625
        %v4628 = vcvt.s32.f32 %v4621
        %v4629 = vmul.f32 %v4628, %v4626
        %v4630 = vxor.u32 %v4629, 2147483648
        %v4631 = vsel %vm4510, %v4630, %v4629
        %v4632 = vsub.s32 4, %v4608
        %v4633 = vsel %vm4510, %v4632, %v4608
        %v4634 = vsel %vm4509, %v1040, %v4631
        %v4635 = vsel %vm4509, 0, %v4633
        %v4636 = vmul.f32 %v4634, %v4634
        %v4637 = vmul.f32 %v4636, -0.001358992
        %v4638 = vadd.f32 %v4637, 0.041655596
        %v4639 = vmul.f32 %v4636, %v4638
        %v4640 = vadd.f32 %v4639, -0.4999988
        %v4641 = vmul.f32 %v4636, %v4640
        %v4642 = vadd.f32 1.0, %v4641
        %v4643 = vmul.f32 %v4634, %v4634
        %v4644 = vmul.f32 %v4643, -0.00019511016
        %v4645 = vadd.f32 %v4644, 0.008332121
        %v4646 = vmul.f32 %v4643, %v4645
        %v4647 = vadd.f32 %v4646, -0.16666654
        %v4648 = vmul.f32 %v4643, %v4647
        %v4649 = vadd.f32 %v4648, 1.0
        %v4650 = vmul.f32 %v4649, %v4634
        %vm4651 = vweird.f32 %v1040
        %v4652 = vadd.s32 %v4635, 3
        %v4653 = vand.u32 %v4652, 3
        %vm4654 = vcmp.lt.s32.totalorder %v4653, 2
        %vm4655 = vcmp.eq.s32.totalorder %v4653, 0
        %v4656 = vxor.u32 %v4650, 2147483648
        %v4657 = vsel %vm4655, %v4642, %v4656
        %vm4658 = vcmp.eq.s32.totalorder %v4653, 2
        %v4659 = vxor.u32 %v4642, 2147483648
        %v4660 = vsel %vm4658, %v4659, %v4650
        %v4661 = vsel %vm4654, %v4657, %v4660
        %v4662 = vsel %vm4651, nan, %v4661
        %v4663 = vand.u32 2147483647, %v1041
        %vm4664 = vcmp.le.f32.partialorder %v4663, 0.7853982
        %vm4665 = vcmp.lt.s32.totalorder %v1041, 0
        %v4666 = vand.u32 %v1041, 2139095040
        %v4667 = vshrl.u32 %v4666, 23
        %v4668 = vsub.s32 %v4667, 127
        %v4669 = vand.u32 2147483647, %v1041
        %v4670 = vand.u32 %v4669, 8388607
        %v4671 = vor.u32 %v4670, 8388608
        %v4672 = vsub.s32 0, %v4671
        %v4673 = vadd.s32 %v4668, 1
        %vm4674 = vcmp.gt.s32.totalorder %v4673, 0
        %v4675 = vsel %vm4674, %v4673, 0
        %v4676 = vshrl.u32 %v4675, 5
        %v4677 = vand.u32 %v4675, 31
        %v4678 = vsub.s32 32, %v4677
        %v4679 = vshrl.u32 683565275, %v4678
        %v4680 = vshll.u32 683565275, %v4677
        %v4681 = vshrl.u32 2475754826, %v4678
        %v4682 = vor.u32 %v4680, %v4681
        %v4683 = vshll.u32 2475754826, %v4677
        %v4684 = vshrl.u32 2131351028, %v4678
        %v4685 = vor.u32 %v4683, %v4684
        %v4686 = vshll.u32 2131351028, %v4677
        %v4687 = vshrl.u32 2102212464, %v4678
        %v4688 = vor.u32 %v4686, %v4687
        %v4689 = vshll.u32 2102212464, %v4677
        %v4690 = vshrl.u32 920167782, %v4678
        %v4691 = vor.u32 %v4689, %v4690
        %v4692 = vshll.u32 920167782, %v4677
        %v4693 = vshrl.u32 1326507024, %v4678
        %v4694 = vor.u32 %v4692, %v4693
        %vm4695 = vcmp.lt.s32.totalorder %v4676, 1
        %vm4696 = vcmp.lt.s32.totalorder %v4676, 2
        %vm4697 = vcmp.lt.s32.totalorder %v4676, 3
        %vm4698 = vcmp.lt.s32.totalorder %v4676, 4
        %v4699 = vsel %vm4695, %v4679, %v4682
        %v4700 = vsel %vm4698, %v4688, 2102212464
        %v4701 = vsel %vm4697, %v4685, %v4700
        %v4702 = vsel %vm4696, %v4699, %v4701
        %v4703 = vsel %vm4695, %v4682, %v4685
        %v4704 = vsel %vm4698, %v4691, 920167782
        %v4705 = vsel %vm4697, %v4688, %v4704
        %v4706 = vsel %vm4696, %v4703, %v4705
        %v4707 = vsel %vm4695, %v4685, %v4688
        %v4708 = vsel %vm4698, %v4694, 1326507024
        %v4709 = vsel %vm4697, %v4691, %v4708
        %v4710 = vsel %vm4696, %v4707, %v4709
        %v4711 = vshll.u32 %v4671, 8
        %v4712 = vand.u32 %v4711, 65535
        %v4713 = vshrl.u32 %v4711, 16
        %v4714 = vand.u32 %v4710, 65535
        %v4715 = vshrl.u32 %v4710, 16
        %v4716 = vmul.u32 %v4712, %v4714
        %v4717 = vmul.u32 %v4712, %v4715
        %v4718 = vmul.u32 %v4713, %v4714
        %v4719 = vmul.u32 %v4713, %v4715
        %v4720 = vshll.u32 %v4717, 16
        %v4721 = vshrl.u32 %v4717, 16
        %v4722 = vshll.u32 %v4718, 16
        %v4723 = vshrl.u32 %v4718, 16
        %vm4724 = vc.u32 %v4716, %v4720
        %v4725 = vsel %vm4724, 1, 0
        %v4726 = vadd.s32 %v4716, %v4720
        %v4727 = vadd.s32 %v4719, %v4725
        %vm4728 = vc.u32 %v4726, %v4722
        %v4729 = vsel %vm4728, 1, 0
        %v4730 = vadd.s32 %v4726, %v4722
        %v4731 = vadd.s32 %v4727, %v4729
        %v4732 = vadd.s32 %v4731, %v4721
        %v4733 = vadd.s32 %v4732, %v4723
        %v4734 = vand.u32 %v4711, 65535
        %v4735 = vshrl.u32 %v4711, 16
        %v4736 = vand.u32 %v4706, 65535
        %v4737 = vshrl.u32 %v4706, 16
        %v4738 = vmul.u32 %v4734, %v4736
        %v4739 = vmul.u32 %v4734, %v4737
        %v4740 = vmul.u32 %v4735, %v4736
        %v4741 = vmul.u32 %v4735, %v4737
        %v4742 = vshll.u32 %v4739, 16
        %v4743 = vshrl.u32 %v4739, 16
        %v4744 = vshll.u32 %v4740, 16
        %v4745 = vshrl.u32 %v4740, 16
        %vm4746 = vc.u32 %v4738, %v4742
        %v4747 = vsel %vm4746, 1, 0
        %v4748 = vadd.s32 %v4738, %v4742
        %v4749 = vadd.s32 %v4741, %v4747
        %vm4750 = vc.u32 %v4748, %v4744
        %v4751 = vsel %vm4750, 1, 0
        %v4752 = vadd.s32 %v4748, %v4744
        %v4753 = vadd.s32 %v4749, %v4751
        %v4754 = vadd.s32 %v4753, %v4743
        %v4755 = vadd.s32 %v4754, %v4745
        %v4756 = vmul.u32 %v4711, %v4702
        %v4757 = vadd.s32 %v4733, %v4752
        %vm4758 = vc.u32 %v4733, %v4752
        %v4759 = vadd.s32 %v4755, 1
        %v4760 = vsel %vm4758, %v4759, %v4755
        %v4761 = vadd.s32 %v4756, %v4760
        %v4762 = vadd.s32 %v4761, 536870912
        %v4763 = vshrl.u32 %v4762, 30
        %v4764 = vshll.u32 %v4763, 30
        %v4765 = vsub.s32 %v4761, %v4764
        %vm4766 = vcmp.lt.s32.totalorder %v4765, 0
        %v4767 = vsub.s32 0, %v4765
        %v4768 = vsel %vm4766, %v4767, %v4765
        %v4769 = vclz %v4768
        %v4770 = vsub.s32 %v4769, 2
        %vm4771 = vcmp.gt.s32.totalorder 0, %v4770
        %v4772 = vsel %vm4771, 0, %v4770
        %v4773 = vsub.s32 32, %v4772
        %v4774 = vshll.u32 %v4765, %v4772
        %v4775 = vshrl.u32 %v4757, %v4773
        %v4776 = vor.u32 %v4774, %v4775
        %v4777 = vsub.s32 4294967266, %v4772
        %v4778 = vadd.s32 %v4777, 127
        %v4779 = vshll.u32 %v4778, 23
        %v4780 = vor.u32 4788187, %v4779
        %v4781 = vand.u32 2147483647, %v4780
        %v4783 = vcvt.s32.f32 %v4776
        %v4784 = vmul.f32 %v4783, %v4781
        %v4785 = vxor.u32 %v4784, 2147483648
        %v4786 = vsel %vm4665, %v4785, %v4784
        %v4787 = vsub.s32 4, %v4763
        %v4788 = vsel %vm4665, %v4787, %v4763
        %v4789 = vsel %vm4664, %v1041, %v4786
        %v4790 = vsel %vm4664, 0, %v4788
        %v4791 = vmul.f32 %v4789, %v4789
        %v4792 = vmul.f32 %v4791, -0.001358992
        %v4793 = vadd.f32 %v4792, 0.041655596
        %v4794 = vmul.f32 %v4791, %v4793
        %v4795 = vadd.f32 %v4794, -0.4999988
        %v4796 = vmul.f32 %v4791, %v4795
        %v4797 = vadd.f32 1.0, %v4796
        %v4798 = vmul.f32 %v4789, %v4789
        %v4799 = vmul.f32 %v4798, -0.00019511016
        %v4800 = vadd.f32 %v4799, 0.008332121
        %v4801 = vmul.f32 %v4798, %v4800
        %v4802 = vadd.f32 %v4801, -0.16666654
        %v4803 = vmul.f32 %v4798, %v4802
        %v4804 = vadd.f32 %v4803, 1.0
        %v4805 = vmul.f32 %v4804, %v4789
        %vm4806 = vweird.f32 %v1041
        %v4807 = vadd.s32 %v4790, 3
        %v4808 = vand.u32 %v4807, 3
        %vm4809 = vcmp.lt.s32.totalorder %v4808, 2
        %vm4810 = vcmp.eq.s32.totalorder %v4808, 0
        %v4811 = vxor.u32 %v4805, 2147483648
        %v4812 = vsel %vm4810, %v4797, %v4811
        %vm4813 = vcmp.eq.s32.totalorder %v4808, 2
        %v4814 = vxor.u32 %v4797, 2147483648
        %v4815 = vsel %vm4813, %v4814, %v4805
        %v4816 = vsel %vm4809, %v4812, %v4815
        %v4817 = vsel %vm4806, nan, %v4816
        %v4818 = vand.u32 2147483647, %v1042
        %vm4819 = vcmp.le.f32.partialorder %v4818, 0.7853982
        %vm4820 = vcmp.lt.s32.totalorder %v1042, 0
        %v4821 = vand.u32 %v1042, 2139095040
        %v4822 = vshrl.u32 %v4821, 23
        %v4823 = vsub.s32 %v4822, 127
        %v4824 = vand.u32 2147483647, %v1042
        %v4825 = vand.u32 %v4824, 8388607
        %v4826 = vor.u32 %v4825, 8388608
        %v4827 = vsub.s32 0, %v4826
        %v4828 = vadd.s32 %v4823, 1
        %vm4829 = vcmp.gt.s32.totalorder %v4828, 0
        %v4830 = vsel %vm4829, %v4828, 0
        %v4831 = vshrl.u32 %v4830, 5
        %v4832 = vand.u32 %v4830, 31
        %v4833 = vsub.s32 32, %v4832
        %v4834 = vshrl.u32 683565275, %v4833
        %v4835 = vshll.u32 683565275, %v4832
        %v4836 = vshrl.u32 2475754826, %v4833
        %v4837 = vor.u32 %v4835, %v4836
        %v4838 = vshll.u32 2475754826, %v4832
        %v4839 = vshrl.u32 2131351028, %v4833
        %v4840 = vor.u32 %v4838, %v4839
        %v4841 = vshll.u32 2131351028, %v4832
        %v4842 = vshrl.u32 2102212464, %v4833
        %v4843 = vor.u32 %v4841, %v4842
        %v4844 = vshll.u32 2102212464, %v4832
        %v4845 = vshrl.u32 920167782, %v4833
        %v4846 = vor.u32 %v4844, %v4845
        %v4847 = vshll.u32 920167782, %v4832
        %v4848 = vshrl.u32 1326507024, %v4833
        %v4849 = vor.u32 %v4847, %v4848
        %vm4850 = vcmp.lt.s32.totalorder %v4831, 1
        %vm4851 = vcmp.lt.s32.totalorder %v4831, 2
        %vm4852 = vcmp.lt.s32.totalorder %v4831, 3
        %vm4853 = vcmp.lt.s32.totalorder %v4831, 4
        %v4854 = vsel %vm4850, %v4834, %v4837
        %v4855 = vsel %vm4853, %v4843, 2102212464
        %v4856 = vsel %vm4852, %v4840, %v4855
        %v4857 = vsel %vm4851, %v4854, %v4856
        %v4858 = vsel %vm4850, %v4837, %v4840
        %v4859 = vsel %vm4853, %v4846, 920167782
        %v4860 = vsel %vm4852, %v4843, %v4859
        %v4861 = vsel %vm4851, %v4858, %v4860
        %v4862 = vsel %vm4850, %v4840, %v4843
        %v4863 = vsel %vm4853, %v4849, 1326507024
        %v4864 = vsel %vm4852, %v4846, %v4863
        %v4865 = vsel %vm4851, %v4862, %v4864
        %v4866 = vshll.u32 %v4826, 8
        %v4867 = vand.u32 %v4866, 65535
        %v4868 = vshrl.u32 %v4866, 16
        %v4869 = vand.u32 %v4865, 65535
        %v4870 = vshrl.u32 %v4865, 16
        %v4871 = vmul.u32 %v4867, %v4869
        %v4872 = vmul.u32 %v4867, %v4870
        %v4873 = vmul.u32 %v4868, %v4869
        %v4874 = vmul.u32 %v4868, %v4870
        %v4875 = vshll.u32 %v4872, 16
        %v4876 = vshrl.u32 %v4872, 16
        %v4877 = vshll.u32 %v4873, 16
        %v4878 = vshrl.u32 %v4873, 16
        %vm4879 = vc.u32 %v4871, %v4875
        %v4880 = vsel %vm4879, 1, 0
        %v4881 = vadd.s32 %v4871, %v4875
        %v4882 = vadd.s32 %v4874, %v4880
        %vm4883 = vc.u32 %v4881, %v4877
        %v4884 = vsel %vm4883, 1, 0
        %v4885 = vadd.s32 %v4881, %v4877
        %v4886 = vadd.s32 %v4882, %v4884
        %v4887 = vadd.s32 %v4886, %v4876
        %v4888 = vadd.s32 %v4887, %v4878
        %v4889 = vand.u32 %v4866, 65535
        %v4890 = vshrl.u32 %v4866, 16
        %v4891 = vand.u32 %v4861, 65535
        %v4892 = vshrl.u32 %v4861, 16
        %v4893 = vmul.u32 %v4889, %v4891
        %v4894 = vmul.u32 %v4889, %v4892
        %v4895 = vmul.u32 %v4890, %v4891
        %v4896 = vmul.u32 %v4890, %v4892
        %v4897 = vshll.u32 %v4894, 16
        %v4898 = vshrl.u32 %v4894, 16
        %v4899 = vshll.u32 %v4895, 16
        %v4900 = vshrl.u32 %v4895, 16
        %vm4901 = vc.u32 %v4893, %v4897
        %v4902 = vsel %vm4901, 1, 0
        %v4903 = vadd.s32 %v4893, %v4897
        %v4904 = vadd.s32 %v4896, %v4902
        %vm4905 = vc.u32 %v4903, %v4899
        %v4906 = vsel %vm4905, 1, 0
        %v4907 = vadd.s32 %v4903, %v4899
        %v4908 = vadd.s32 %v4904, %v4906
        %v4909 = vadd.s32 %v4908, %v4898
        %v4910 = vadd.s32 %v4909, %v4900
        %v4911 = vmul.u32 %v4866, %v4857
        %v4912 = vadd.s32 %v4888, %v4907
        %vm4913 = vc.u32 %v4888, %v4907
        %v4914 = vadd.s32 %v4910, 1
        %v4915 = vsel %vm4913, %v4914, %v4910
        %v4916 = vadd.s32 %v4911, %v4915
        %v4917 = vadd.s32 %v4916, 536870912
        %v4918 = vshrl.u32 %v4917, 30
        %v4919 = vshll.u32 %v4918, 30
        %v4920 = vsub.s32 %v4916, %v4919
        %vm4921 = vcmp.lt.s32.totalorder %v4920, 0
        %v4922 = vsub.s32 0, %v4920
        %v4923 = vsel %vm4921, %v4922, %v4920
        %v4924 = vclz %v4923
        %v4925 = vsub.s32 %v4924, 2
        %vm4926 = vcmp.gt.s32.totalorder 0, %v4925
        %v4927 = vsel %vm4926, 0, %v4925
        %v4928 = vsub.s32 32, %v4927
        %v4929 = vshll.u32 %v4920, %v4927
        %v4930 = vshrl.u32 %v4912, %v4928
        %v4931 = vor.u32 %v4929, %v4930
        %v4932 = vsub.s32 4294967266, %v4927
        %v4933 = vadd.s32 %v4932, 127
        %v4934 = vshll.u32 %v4933, 23
        %v4935 = vor.u32 4788187, %v4934
        %v4936 = vand.u32 2147483647, %v4935
        %v4938 = vcvt.s32.f32 %v4931
        %v4939 = vmul.f32 %v4938, %v4936
        %v4940 = vxor.u32 %v4939, 2147483648
        %v4941 = vsel %vm4820, %v4940, %v4939
        %v4942 = vsub.s32 4, %v4918
        %v4943 = vsel %vm4820, %v4942, %v4918
        %v4944 = vsel %vm4819, %v1042, %v4941
        %v4945 = vsel %vm4819, 0, %v4943
        %v4946 = vmul.f32 %v4944, %v4944
        %v4947 = vmul.f32 %v4946, -0.001358992
        %v4948 = vadd.f32 %v4947, 0.041655596
        %v4949 = vmul.f32 %v4946, %v4948
        %v4950 = vadd.f32 %v4949, -0.4999988
        %v4951 = vmul.f32 %v4946, %v4950
        %v4952 = vadd.f32 1.0, %v4951
        %v4953 = vmul.f32 %v4944, %v4944
        %v4954 = vmul.f32 %v4953, -0.00019511016
        %v4955 = vadd.f32 %v4954, 0.008332121
        %v4956 = vmul.f32 %v4953, %v4955
        %v4957 = vadd.f32 %v4956, -0.16666654
        %v4958 = vmul.f32 %v4953, %v4957
        %v4959 = vadd.f32 %v4958, 1.0
        %v4960 = vmul.f32 %v4959, %v4944
        %vm4961 = vweird.f32 %v1042
        %v4962 = vadd.s32 %v4945, 3
        %v4963 = vand.u32 %v4962, 3
        %vm4964 = vcmp.lt.s32.totalorder %v4963, 2
        %vm4965 = vcmp.eq.s32.totalorder %v4963, 0
        %v4966 = vxor.u32 %v4960, 2147483648
        %v4967 = vsel %vm4965, %v4952, %v4966
        %vm4968 = vcmp.eq.s32.totalorder %v4963, 2
        %v4969 = vxor.u32 %v4952, 2147483648
        %v4970 = vsel %vm4968, %v4969, %v4960
        %v4971 = vsel %vm4964, %v4967, %v4970
        %v4972 = vsel %vm4961, nan, %v4971
        %v4973 = vand.u32 2147483647, %v1043
        %vm4974 = vcmp.le.f32.partialorder %v4973, 0.7853982
        %vm4975 = vcmp.lt.s32.totalorder %v1043, 0
        %v4976 = vand.u32 %v1043, 2139095040
        %v4977 = vshrl.u32 %v4976, 23
        %v4978 = vsub.s32 %v4977, 127
        %v4979 = vand.u32 2147483647, %v1043
        %v4980 = vand.u32 %v4979, 8388607
        %v4981 = vor.u32 %v4980, 8388608
        %v4982 = vsub.s32 0, %v4981
        %v4983 = vadd.s32 %v4978, 1
        %vm4984 = vcmp.gt.s32.totalorder %v4983, 0
        %v4985 = vsel %vm4984, %v4983, 0
        %v4986 = vshrl.u32 %v4985, 5
        %v4987 = vand.u32 %v4985, 31
        %v4988 = vsub.s32 32, %v4987
        %v4989 = vshrl.u32 683565275, %v4988
        %v4990 = vshll.u32 683565275, %v4987
        %v4991 = vshrl.u32 2475754826, %v4988
        %v4992 = vor.u32 %v4990, %v4991
        %v4993 = vshll.u32 2475754826, %v4987
        %v4994 = vshrl.u32 2131351028, %v4988
        %v4995 = vor.u32 %v4993, %v4994
        %v4996 = vshll.u32 2131351028, %v4987
        %v4997 = vshrl.u32 2102212464, %v4988
        %v4998 = vor.u32 %v4996, %v4997
        %v4999 = vshll.u32 2102212464, %v4987
        %v5000 = vshrl.u32 920167782, %v4988
        %v5001 = vor.u32 %v4999, %v5000
        %v5002 = vshll.u32 920167782, %v4987
        %v5003 = vshrl.u32 1326507024, %v4988
        %v5004 = vor.u32 %v5002, %v5003
        %vm5005 = vcmp.lt.s32.totalorder %v4986, 1
        %vm5006 = vcmp.lt.s32.totalorder %v4986, 2
        %vm5007 = vcmp.lt.s32.totalorder %v4986, 3
        %vm5008 = vcmp.lt.s32.totalorder %v4986, 4
        %v5009 = vsel %vm5005, %v4989, %v4992
        %v5010 = vsel %vm5008, %v4998, 2102212464
        %v5011 = vsel %vm5007, %v4995, %v5010
        %v5012 = vsel %vm5006, %v5009, %v5011
        %v5013 = vsel %vm5005, %v4992, %v4995
        %v5014 = vsel %vm5008, %v5001, 920167782
        %v5015 = vsel %vm5007, %v4998, %v5014
        %v5016 = vsel %vm5006, %v5013, %v5015
        %v5017 = vsel %vm5005, %v4995, %v4998
        %v5018 = vsel %vm5008, %v5004, 1326507024
        %v5019 = vsel %vm5007, %v5001, %v5018
        %v5020 = vsel %vm5006, %v5017, %v5019
        %v5021 = vshll.u32 %v4981, 8
        %v5022 = vand.u32 %v5021, 65535
        %v5023 = vshrl.u32 %v5021, 16
        %v5024 = vand.u32 %v5020, 65535
        %v5025 = vshrl.u32 %v5020, 16
        %v5026 = vmul.u32 %v5022, %v5024
        %v5027 = vmul.u32 %v5022, %v5025
        %v5028 = vmul.u32 %v5023, %v5024
        %v5029 = vmul.u32 %v5023, %v5025
        %v5030 = vshll.u32 %v5027, 16
        %v5031 = vshrl.u32 %v5027, 16
        %v5032 = vshll.u32 %v5028, 16
        %v5033 = vshrl.u32 %v5028, 16
        %vm5034 = vc.u32 %v5026, %v5030
        %v5035 = vsel %vm5034, 1, 0
        %v5036 = vadd.s32 %v5026, %v5030
        %v5037 = vadd.s32 %v5029, %v5035
        %vm5038 = vc.u32 %v5036, %v5032
        %v5039 = vsel %vm5038, 1, 0
        %v5040 = vadd.s32 %v5036, %v5032
        %v5041 = vadd.s32 %v5037, %v5039
        %v5042 = vadd.s32 %v5041, %v5031
        %v5043 = vadd.s32 %v5042, %v5033
        %v5044 = vand.u32 %v5021, 65535
        %v5045 = vshrl.u32 %v5021, 16
        %v5046 = vand.u32 %v5016, 65535
        %v5047 = vshrl.u32 %v5016, 16
        %v5048 = vmul.u32 %v5044, %v5046
        %v5049 = vmul.u32 %v5044, %v5047
        %v5050 = vmul.u32 %v5045, %v5046
        %v5051 = vmul.u32 %v5045, %v5047
        %v5052 = vshll.u32 %v5049, 16
        %v5053 = vshrl.u32 %v5049, 16
        %v5054 = vshll.u32 %v5050, 16
        %v5055 = vshrl.u32 %v5050, 16
        %vm5056 = vc.u32 %v5048, %v5052
        %v5057 = vsel %vm5056, 1, 0
        %v5058 = vadd.s32 %v5048, %v5052
        %v5059 = vadd.s32 %v5051, %v5057
        %vm5060 = vc.u32 %v5058, %v5054
        %v5061 = vsel %vm5060, 1, 0
        %v5062 = vadd.s32 %v5058, %v5054
        %v5063 = vadd.s32 %v5059, %v5061
        %v5064 = vadd.s32 %v5063, %v5053
        %v5065 = vadd.s32 %v5064, %v5055
        %v5066 = vmul.u32 %v5021, %v5012
        %v5067 = vadd.s32 %v5043, %v5062
        %vm5068 = vc.u32 %v5043, %v5062
        %v5069 = vadd.s32 %v5065, 1
        %v5070 = vsel %vm5068, %v5069, %v5065
        %v5071 = vadd.s32 %v5066, %v5070
        %v5072 = vadd.s32 %v5071, 536870912
        %v5073 = vshrl.u32 %v5072, 30
        %v5074 = vshll.u32 %v5073, 30
        %v5075 = vsub.s32 %v5071, %v5074
        %vm5076 = vcmp.lt.s32.totalorder %v5075, 0
        %v5077 = vsub.s32 0, %v5075
        %v5078 = vsel %vm5076, %v5077, %v5075
        %v5079 = vclz %v5078
        %v5080 = vsub.s32 %v5079, 2
        %vm5081 = vcmp.gt.s32.totalorder 0, %v5080
        %v5082 = vsel %vm5081, 0, %v5080
        %v5083 = vsub.s32 32, %v5082
        %v5084 = vshll.u32 %v5075, %v5082
        %v5085 = vshrl.u32 %v5067, %v5083
        %v5086 = vor.u32 %v5084, %v5085
        %v5087 = vsub.s32 4294967266, %v5082
        %v5088 = vadd.s32 %v5087, 127
        %v5089 = vshll.u32 %v5088, 23
        %v5090 = vor.u32 4788187, %v5089
        %v5091 = vand.u32 2147483647, %v5090
        %v5093 = vcvt.s32.f32 %v5086
        %v5094 = vmul.f32 %v5093, %v5091
        %v5095 = vxor.u32 %v5094, 2147483648
        %v5096 = vsel %vm4975, %v5095, %v5094
        %v5097 = vsub.s32 4, %v5073
        %v5098 = vsel %vm4975, %v5097, %v5073
        %v5099 = vsel %vm4974, %v1043, %v5096
        %v5100 = vsel %vm4974, 0, %v5098
        %v5101 = vmul.f32 %v5099, %v5099
        %v5102 = vmul.f32 %v5101, -0.001358992
        %v5103 = vadd.f32 %v5102, 0.041655596
        %v5104 = vmul.f32 %v5101, %v5103
        %v5105 = vadd.f32 %v5104, -0.4999988
        %v5106 = vmul.f32 %v5101, %v5105
        %v5107 = vadd.f32 1.0, %v5106
        %v5108 = vmul.f32 %v5099, %v5099
        %v5109 = vmul.f32 %v5108, -0.00019511016
        %v5110 = vadd.f32 %v5109, 0.008332121
        %v5111 = vmul.f32 %v5108, %v5110
        %v5112 = vadd.f32 %v5111, -0.16666654
        %v5113 = vmul.f32 %v5108, %v5112
        %v5114 = vadd.f32 %v5113, 1.0
        %v5115 = vmul.f32 %v5114, %v5099
        %vm5116 = vweird.f32 %v1043
        %v5117 = vadd.s32 %v5100, 3
        %v5118 = vand.u32 %v5117, 3
        %vm5119 = vcmp.lt.s32.totalorder %v5118, 2
        %vm5120 = vcmp.eq.s32.totalorder %v5118, 0
        %v5121 = vxor.u32 %v5115, 2147483648
        %v5122 = vsel %vm5120, %v5107, %v5121
        %vm5123 = vcmp.eq.s32.totalorder %v5118, 2
        %v5124 = vxor.u32 %v5107, 2147483648
        %v5125 = vsel %vm5123, %v5124, %v5115
        %v5126 = vsel %vm5119, %v5122, %v5125
        %v5127 = vsel %vm5116, nan, %v5126
        %v5128 = vand.u32 2147483647, %v1044
        %vm5129 = vcmp.le.f32.partialorder %v5128, 0.7853982
        %vm5130 = vcmp.lt.s32.totalorder %v1044, 0
        %v5131 = vand.u32 %v1044, 2139095040
        %v5132 = vshrl.u32 %v5131, 23
        %v5133 = vsub.s32 %v5132, 127
        %v5134 = vand.u32 2147483647, %v1044
        %v5135 = vand.u32 %v5134, 8388607
        %v5136 = vor.u32 %v5135, 8388608
        %v5137 = vsub.s32 0, %v5136
        %v5138 = vadd.s32 %v5133, 1
        %vm5139 = vcmp.gt.s32.totalorder %v5138, 0
        %v5140 = vsel %vm5139, %v5138, 0
        %v5141 = vshrl.u32 %v5140, 5
        %v5142 = vand.u32 %v5140, 31
        %v5143 = vsub.s32 32, %v5142
        %v5144 = vshrl.u32 683565275, %v5143
        %v5145 = vshll.u32 683565275, %v5142
        %v5146 = vshrl.u32 2475754826, %v5143
        %v5147 = vor.u32 %v5145, %v5146
        %v5148 = vshll.u32 2475754826, %v5142
        %v5149 = vshrl.u32 2131351028, %v5143
        %v5150 = vor.u32 %v5148, %v5149
        %v5151 = vshll.u32 2131351028, %v5142
        %v5152 = vshrl.u32 2102212464, %v5143
        %v5153 = vor.u32 %v5151, %v5152
        %v5154 = vshll.u32 2102212464, %v5142
        %v5155 = vshrl.u32 920167782, %v5143
        %v5156 = vor.u32 %v5154, %v5155
        %v5157 = vshll.u32 920167782, %v5142
        %v5158 = vshrl.u32 1326507024, %v5143
        %v5159 = vor.u32 %v5157, %v5158
        %vm5160 = vcmp.lt.s32.totalorder %v5141, 1
        %vm5161 = vcmp.lt.s32.totalorder %v5141, 2
        %vm5162 = vcmp.lt.s32.totalorder %v5141, 3
        %vm5163 = vcmp.lt.s32.totalorder %v5141, 4
        %v5164 = vsel %vm5160, %v5144, %v5147
        %v5165 = vsel %vm5163, %v5153, 2102212464
        %v5166 = vsel %vm5162, %v5150, %v5165
        %v5167 = vsel %vm5161, %v5164, %v5166
        %v5168 = vsel %vm5160, %v5147, %v5150
        %v5169 = vsel %vm5163, %v5156, 920167782
        %v5170 = vsel %vm5162, %v5153, %v5169
        %v5171 = vsel %vm5161, %v5168, %v5170
        %v5172 = vsel %vm5160, %v5150, %v5153
        %v5173 = vsel %vm5163, %v5159, 1326507024
        %v5174 = vsel %vm5162, %v5156, %v5173
        %v5175 = vsel %vm5161, %v5172, %v5174
        %v5176 = vshll.u32 %v5136, 8
        %v5177 = vand.u32 %v5176, 65535
        %v5178 = vshrl.u32 %v5176, 16
        %v5179 = vand.u32 %v5175, 65535
        %v5180 = vshrl.u32 %v5175, 16
        %v5181 = vmul.u32 %v5177, %v5179
        %v5182 = vmul.u32 %v5177, %v5180
        %v5183 = vmul.u32 %v5178, %v5179
        %v5184 = vmul.u32 %v5178, %v5180
        %v5185 = vshll.u32 %v5182, 16
        %v5186 = vshrl.u32 %v5182, 16
        %v5187 = vshll.u32 %v5183, 16
        %v5188 = vshrl.u32 %v5183, 16
        %vm5189 = vc.u32 %v5181, %v5185
        %v5190 = vsel %vm5189, 1, 0
        %v5191 = vadd.s32 %v5181, %v5185
        %v5192 = vadd.s32 %v5184, %v5190
        %vm5193 = vc.u32 %v5191, %v5187
        %v5194 = vsel %vm5193, 1, 0
        %v5195 = vadd.s32 %v5191, %v5187
        %v5196 = vadd.s32 %v5192, %v5194
        %v5197 = vadd.s32 %v5196, %v5186
        %v5198 = vadd.s32 %v5197, %v5188
        %v5199 = vand.u32 %v5176, 65535
        %v5200 = vshrl.u32 %v5176, 16
        %v5201 = vand.u32 %v5171, 65535
        %v5202 = vshrl.u32 %v5171, 16
        %v5203 = vmul.u32 %v5199, %v5201
        %v5204 = vmul.u32 %v5199, %v5202
        %v5205 = vmul.u32 %v5200, %v5201
        %v5206 = vmul.u32 %v5200, %v5202
        %v5207 = vshll.u32 %v5204, 16
        %v5208 = vshrl.u32 %v5204, 16
        %v5209 = vshll.u32 %v5205, 16
        %v5210 = vshrl.u32 %v5205, 16
        %vm5211 = vc.u32 %v5203, %v5207
        %v5212 = vsel %vm5211, 1, 0
        %v5213 = vadd.s32 %v5203, %v5207
        %v5214 = vadd.s32 %v5206, %v5212
        %vm5215 = vc.u32 %v5213, %v5209
        %v5216 = vsel %vm5215, 1, 0
        %v5217 = vadd.s32 %v5213, %v5209
        %v5218 = vadd.s32 %v5214, %v5216
        %v5219 = vadd.s32 %v5218, %v5208
        %v5220 = vadd.s32 %v5219, %v5210
        %v5221 = vmul.u32 %v5176, %v5167
        %v5222 = vadd.s32 %v5198, %v5217
        %vm5223 = vc.u32 %v5198, %v5217
        %v5224 = vadd.s32 %v5220, 1
        %v5225 = vsel %vm5223, %v5224, %v5220
        %v5226 = vadd.s32 %v5221, %v5225
        %v5227 = vadd.s32 %v5226, 536870912
        %v5228 = vshrl.u32 %v5227, 30
        %v5229 = vshll.u32 %v5228, 30
        %v5230 = vsub.s32 %v5226, %v5229
        %vm5231 = vcmp.lt.s32.totalorder %v5230, 0
        %v5232 = vsub.s32 0, %v5230
        %v5233 = vsel %vm5231, %v5232, %v5230
        %v5234 = vclz %v5233
        %v5235 = vsub.s32 %v5234, 2
        %vm5236 = vcmp.gt.s32.totalorder 0, %v5235
        %v5237 = vsel %vm5236, 0, %v5235
        %v5238 = vsub.s32 32, %v5237
        %v5239 = vshll.u32 %v5230, %v5237
        %v5240 = vshrl.u32 %v5222, %v5238
        %v5241 = vor.u32 %v5239, %v5240
        %v5242 = vsub.s32 4294967266, %v5237
        %v5243 = vadd.s32 %v5242, 127
        %v5244 = vshll.u32 %v5243, 23
        %v5245 = vor.u32 4788187, %v5244
        %v5246 = vand.u32 2147483647, %v5245
        %v5248 = vcvt.s32.f32 %v5241
        %v5249 = vmul.f32 %v5248, %v5246
        %v5250 = vxor.u32 %v5249, 2147483648
        %v5251 = vsel %vm5130, %v5250, %v5249
        %v5252 = vsub.s32 4, %v5228
        %v5253 = vsel %vm5130, %v5252, %v5228
        %v5254 = vsel %vm5129, %v1044, %v5251
        %v5255 = vsel %vm5129, 0, %v5253
        %v5256 = vmul.f32 %v5254, %v5254
        %v5257 = vmul.f32 %v5256, -0.001358992
        %v5258 = vadd.f32 %v5257, 0.041655596
        %v5259 = vmul.f32 %v5256, %v5258
        %v5260 = vadd.f32 %v5259, -0.4999988
        %v5261 = vmul.f32 %v5256, %v5260
        %v5262 = vadd.f32 1.0, %v5261
        %v5263 = vmul.f32 %v5254, %v5254
        %v5264 = vmul.f32 %v5263, -0.00019511016
        %v5265 = vadd.f32 %v5264, 0.008332121
        %v5266 = vmul.f32 %v5263, %v5265
        %v5267 = vadd.f32 %v5266, -0.16666654
        %v5268 = vmul.f32 %v5263, %v5267
        %v5269 = vadd.f32 %v5268, 1.0
        %v5270 = vmul.f32 %v5269, %v5254
        %vm5271 = vweird.f32 %v1044
        %v5272 = vadd.s32 %v5255, 3
        %v5273 = vand.u32 %v5272, 3
        %vm5274 = vcmp.lt.s32.totalorder %v5273, 2
        %vm5275 = vcmp.eq.s32.totalorder %v5273, 0
        %v5276 = vxor.u32 %v5270, 2147483648
        %v5277 = vsel %vm5275, %v5262, %v5276
        %vm5278 = vcmp.eq.s32.totalorder %v5273, 2
        %v5279 = vxor.u32 %v5262, 2147483648
        %v5280 = vsel %vm5278, %v5279, %v5270
        %v5281 = vsel %vm5274, %v5277, %v5280
        %v5282 = vsel %vm5271, nan, %v5281
        %v5283 = vand.u32 2147483647, %v1045
        %vm5284 = vcmp.le.f32.partialorder %v5283, 0.7853982
        %vm5285 = vcmp.lt.s32.totalorder %v1045, 0
        %v5286 = vand.u32 %v1045, 2139095040
        %v5287 = vshrl.u32 %v5286, 23
        %v5288 = vsub.s32 %v5287, 127
        %v5289 = vand.u32 2147483647, %v1045
        %v5290 = vand.u32 %v5289, 8388607
        %v5291 = vor.u32 %v5290, 8388608
        %v5292 = vsub.s32 0, %v5291
        %v5293 = vadd.s32 %v5288, 1
        %vm5294 = vcmp.gt.s32.totalorder %v5293, 0
        %v5295 = vsel %vm5294, %v5293, 0
        %v5296 = vshrl.u32 %v5295, 5
        %v5297 = vand.u32 %v5295, 31
        %v5298 = vsub.s32 32, %v5297
        %v5299 = vshrl.u32 683565275, %v5298
        %v5300 = vshll.u32 683565275, %v5297
        %v5301 = vshrl.u32 2475754826, %v5298
        %v5302 = vor.u32 %v5300, %v5301
        %v5303 = vshll.u32 2475754826, %v5297
        %v5304 = vshrl.u32 2131351028, %v5298
        %v5305 = vor.u32 %v5303, %v5304
        %v5306 = vshll.u32 2131351028, %v5297
        %v5307 = vshrl.u32 2102212464, %v5298
        %v5308 = vor.u32 %v5306, %v5307
        %v5309 = vshll.u32 2102212464, %v5297
        %v5310 = vshrl.u32 920167782, %v5298
        %v5311 = vor.u32 %v5309, %v5310
        %v5312 = vshll.u32 920167782, %v5297
        %v5313 = vshrl.u32 1326507024, %v5298
        %v5314 = vor.u32 %v5312, %v5313
        %vm5315 = vcmp.lt.s32.totalorder %v5296, 1
        %vm5316 = vcmp.lt.s32.totalorder %v5296, 2
        %vm5317 = vcmp.lt.s32.totalorder %v5296, 3
        %vm5318 = vcmp.lt.s32.totalorder %v5296, 4
        %v5319 = vsel %vm5315, %v5299, %v5302
        %v5320 = vsel %vm5318, %v5308, 2102212464
        %v5321 = vsel %vm5317, %v5305, %v5320
        %v5322 = vsel %vm5316, %v5319, %v5321
        %v5323 = vsel %vm5315, %v5302, %v5305
        %v5324 = vsel %vm5318, %v5311, 920167782
        %v5325 = vsel %vm5317, %v5308, %v5324
        %v5326 = vsel %vm5316, %v5323, %v5325
        %v5327 = vsel %vm5315, %v5305, %v5308
        %v5328 = vsel %vm5318, %v5314, 1326507024
        %v5329 = vsel %vm5317, %v5311, %v5328
        %v5330 = vsel %vm5316, %v5327, %v5329
        %v5331 = vshll.u32 %v5291, 8
        %v5332 = vand.u32 %v5331, 65535
        %v5333 = vshrl.u32 %v5331, 16
        %v5334 = vand.u32 %v5330, 65535
        %v5335 = vshrl.u32 %v5330, 16
        %v5336 = vmul.u32 %v5332, %v5334
        %v5337 = vmul.u32 %v5332, %v5335
        %v5338 = vmul.u32 %v5333, %v5334
        %v5339 = vmul.u32 %v5333, %v5335
        %v5340 = vshll.u32 %v5337, 16
        %v5341 = vshrl.u32 %v5337, 16
        %v5342 = vshll.u32 %v5338, 16
        %v5343 = vshrl.u32 %v5338, 16
        %vm5344 = vc.u32 %v5336, %v5340
        %v5345 = vsel %vm5344, 1, 0
        %v5346 = vadd.s32 %v5336, %v5340
        %v5347 = vadd.s32 %v5339, %v5345
        %vm5348 = vc.u32 %v5346, %v5342
        %v5349 = vsel %vm5348, 1, 0
        %v5350 = vadd.s32 %v5346, %v5342
        %v5351 = vadd.s32 %v5347, %v5349
        %v5352 = vadd.s32 %v5351, %v5341
        %v5353 = vadd.s32 %v5352, %v5343
        %v5354 = vand.u32 %v5331, 65535
        %v5355 = vshrl.u32 %v5331, 16
        %v5356 = vand.u32 %v5326, 65535
        %v5357 = vshrl.u32 %v5326, 16
        %v5358 = vmul.u32 %v5354, %v5356
        %v5359 = vmul.u32 %v5354, %v5357
        %v5360 = vmul.u32 %v5355, %v5356
        %v5361 = vmul.u32 %v5355, %v5357
        %v5362 = vshll.u32 %v5359, 16
        %v5363 = vshrl.u32 %v5359, 16
        %v5364 = vshll.u32 %v5360, 16
        %v5365 = vshrl.u32 %v5360, 16
        %vm5366 = vc.u32 %v5358, %v5362
        %v5367 = vsel %vm5366, 1, 0
        %v5368 = vadd.s32 %v5358, %v5362
        %v5369 = vadd.s32 %v5361, %v5367
        %vm5370 = vc.u32 %v5368, %v5364
        %v5371 = vsel %vm5370, 1, 0
        %v5372 = vadd.s32 %v5368, %v5364
        %v5373 = vadd.s32 %v5369, %v5371
        %v5374 = vadd.s32 %v5373, %v5363
        %v5375 = vadd.s32 %v5374, %v5365
        %v5376 = vmul.u32 %v5331, %v5322
        %v5377 = vadd.s32 %v5353, %v5372
        %vm5378 = vc.u32 %v5353, %v5372
        %v5379 = vadd.s32 %v5375, 1
        %v5380 = vsel %vm5378, %v5379, %v5375
        %v5381 = vadd.s32 %v5376, %v5380
        %v5382 = vadd.s32 %v5381, 536870912
        %v5383 = vshrl.u32 %v5382, 30
        %v5384 = vshll.u32 %v5383, 30
        %v5385 = vsub.s32 %v5381, %v5384
        %vm5386 = vcmp.lt.s32.totalorder %v5385, 0
        %v5387 = vsub.s32 0, %v5385
        %v5388 = vsel %vm5386, %v5387, %v5385
        %v5389 = vclz %v5388
        %v5390 = vsub.s32 %v5389, 2
        %vm5391 = vcmp.gt.s32.totalorder 0, %v5390
        %v5392 = vsel %vm5391, 0, %v5390
        %v5393 = vsub.s32 32, %v5392
        %v5394 = vshll.u32 %v5385, %v5392
        %v5395 = vshrl.u32 %v5377, %v5393
        %v5396 = vor.u32 %v5394, %v5395
        %v5397 = vsub.s32 4294967266, %v5392
        %v5398 = vadd.s32 %v5397, 127
        %v5399 = vshll.u32 %v5398, 23
        %v5400 = vor.u32 4788187, %v5399
        %v5401 = vand.u32 2147483647, %v5400
        %v5403 = vcvt.s32.f32 %v5396
        %v5404 = vmul.f32 %v5403, %v5401
        %v5405 = vxor.u32 %v5404, 2147483648
        %v5406 = vsel %vm5285, %v5405, %v5404
        %v5407 = vsub.s32 4, %v5383
        %v5408 = vsel %vm5285, %v5407, %v5383
        %v5409 = vsel %vm5284, %v1045, %v5406
        %v5410 = vsel %vm5284, 0, %v5408
        %v5411 = vmul.f32 %v5409, %v5409
        %v5412 = vmul.f32 %v5411, -0.001358992
        %v5413 = vadd.f32 %v5412, 0.041655596
        %v5414 = vmul.f32 %v5411, %v5413
        %v5415 = vadd.f32 %v5414, -0.4999988
        %v5416 = vmul.f32 %v5411, %v5415
        %v5417 = vadd.f32 1.0, %v5416
        %v5418 = vmul.f32 %v5409, %v5409
        %v5419 = vmul.f32 %v5418, -0.00019511016
        %v5420 = vadd.f32 %v5419, 0.008332121
        %v5421 = vmul.f32 %v5418, %v5420
        %v5422 = vadd.f32 %v5421, -0.16666654
        %v5423 = vmul.f32 %v5418, %v5422
        %v5424 = vadd.f32 %v5423, 1.0
        %v5425 = vmul.f32 %v5424, %v5409
        %vm5426 = vweird.f32 %v1045
        %v5427 = vadd.s32 %v5410, 3
        %v5428 = vand.u32 %v5427, 3
        %vm5429 = vcmp.lt.s32.totalorder %v5428, 2
        %vm5430 = vcmp.eq.s32.totalorder %v5428, 0
        %v5431 = vxor.u32 %v5425, 2147483648
        %v5432 = vsel %vm5430, %v5417, %v5431
        %vm5433 = vcmp.eq.s32.totalorder %v5428, 2
        %v5434 = vxor.u32 %v5417, 2147483648
        %v5435 = vsel %vm5433, %v5434, %v5425
        %v5436 = vsel %vm5429, %v5432, %v5435
        %v5437 = vsel %vm5426, nan, %v5436
        %v5438 = vand.u32 2147483647, %v1046
        %vm5439 = vcmp.le.f32.partialorder %v5438, 0.7853982
        %vm5440 = vcmp.lt.s32.totalorder %v1046, 0
        %v5441 = vand.u32 %v1046, 2139095040
        %v5442 = vshrl.u32 %v5441, 23
        %v5443 = vsub.s32 %v5442, 127
        %v5444 = vand.u32 2147483647, %v1046
        %v5445 = vand.u32 %v5444, 8388607
        %v5446 = vor.u32 %v5445, 8388608
        %v5447 = vsub.s32 0, %v5446
        %v5448 = vadd.s32 %v5443, 1
        %vm5449 = vcmp.gt.s32.totalorder %v5448, 0
        %v5450 = vsel %vm5449, %v5448, 0
        %v5451 = vshrl.u32 %v5450, 5
        %v5452 = vand.u32 %v5450, 31
        %v5453 = vsub.s32 32, %v5452
        %v5454 = vshrl.u32 683565275, %v5453
        %v5455 = vshll.u32 683565275, %v5452
        %v5456 = vshrl.u32 2475754826, %v5453
        %v5457 = vor.u32 %v5455, %v5456
        %v5458 = vshll.u32 2475754826, %v5452
        %v5459 = vshrl.u32 2131351028, %v5453
        %v5460 = vor.u32 %v5458, %v5459
        %v5461 = vshll.u32 2131351028, %v5452
        %v5462 = vshrl.u32 2102212464, %v5453
        %v5463 = vor.u32 %v5461, %v5462
        %v5464 = vshll.u32 2102212464, %v5452
        %v5465 = vshrl.u32 920167782, %v5453
        %v5466 = vor.u32 %v5464, %v5465
        %v5467 = vshll.u32 920167782, %v5452
        %v5468 = vshrl.u32 1326507024, %v5453
        %v5469 = vor.u32 %v5467, %v5468
        %vm5470 = vcmp.lt.s32.totalorder %v5451, 1
        %vm5471 = vcmp.lt.s32.totalorder %v5451, 2
        %vm5472 = vcmp.lt.s32.totalorder %v5451, 3
        %vm5473 = vcmp.lt.s32.totalorder %v5451, 4
        %v5474 = vsel %vm5470, %v5454, %v5457
        %v5475 = vsel %vm5473, %v5463, 2102212464
        %v5476 = vsel %vm5472, %v5460, %v5475
        %v5477 = vsel %vm5471, %v5474, %v5476
        %v5478 = vsel %vm5470, %v5457, %v5460
        %v5479 = vsel %vm5473, %v5466, 920167782
        %v5480 = vsel %vm5472, %v5463, %v5479
        %v5481 = vsel %vm5471, %v5478, %v5480
        %v5482 = vsel %vm5470, %v5460, %v5463
        %v5483 = vsel %vm5473, %v5469, 1326507024
        %v5484 = vsel %vm5472, %v5466, %v5483
        %v5485 = vsel %vm5471, %v5482, %v5484
        %v5486 = vshll.u32 %v5446, 8
        %v5487 = vand.u32 %v5486, 65535
        %v5488 = vshrl.u32 %v5486, 16
        %v5489 = vand.u32 %v5485, 65535
        %v5490 = vshrl.u32 %v5485, 16
        %v5491 = vmul.u32 %v5487, %v5489
        %v5492 = vmul.u32 %v5487, %v5490
        %v5493 = vmul.u32 %v5488, %v5489
        %v5494 = vmul.u32 %v5488, %v5490
        %v5495 = vshll.u32 %v5492, 16
        %v5496 = vshrl.u32 %v5492, 16
        %v5497 = vshll.u32 %v5493, 16
        %v5498 = vshrl.u32 %v5493, 16
        %vm5499 = vc.u32 %v5491, %v5495
        %v5500 = vsel %vm5499, 1, 0
        %v5501 = vadd.s32 %v5491, %v5495
        %v5502 = vadd.s32 %v5494, %v5500
        %vm5503 = vc.u32 %v5501, %v5497
        %v5504 = vsel %vm5503, 1, 0
        %v5505 = vadd.s32 %v5501, %v5497
        %v5506 = vadd.s32 %v5502, %v5504
        %v5507 = vadd.s32 %v5506, %v5496
        %v5508 = vadd.s32 %v5507, %v5498
        %v5509 = vand.u32 %v5486, 65535
        %v5510 = vshrl.u32 %v5486, 16
        %v5511 = vand.u32 %v5481, 65535
        %v5512 = vshrl.u32 %v5481, 16
        %v5513 = vmul.u32 %v5509, %v5511
        %v5514 = vmul.u32 %v5509, %v5512
        %v5515 = vmul.u32 %v5510, %v5511
        %v5516 = vmul.u32 %v5510, %v5512
        %v5517 = vshll.u32 %v5514, 16
        %v5518 = vshrl.u32 %v5514, 16
        %v5519 = vshll.u32 %v5515, 16
        %v5520 = vshrl.u32 %v5515, 16
        %vm5521 = vc.u32 %v5513, %v5517
        %v5522 = vsel %vm5521, 1, 0
        %v5523 = vadd.s32 %v5513, %v5517
        %v5524 = vadd.s32 %v5516, %v5522
        %vm5525 = vc.u32 %v5523, %v5519
        %v5526 = vsel %vm5525, 1, 0
        %v5527 = vadd.s32 %v5523, %v5519
        %v5528 = vadd.s32 %v5524, %v5526
        %v5529 = vadd.s32 %v5528, %v5518
        %v5530 = vadd.s32 %v5529, %v5520
        %v5531 = vmul.u32 %v5486, %v5477
        %v5532 = vadd.s32 %v5508, %v5527
        %vm5533 = vc.u32 %v5508, %v5527
        %v5534 = vadd.s32 %v5530, 1
        %v5535 = vsel %vm5533, %v5534, %v5530
        %v5536 = vadd.s32 %v5531, %v5535
        %v5537 = vadd.s32 %v5536, 536870912
        %v5538 = vshrl.u32 %v5537, 30
        %v5539 = vshll.u32 %v5538, 30
        %v5540 = vsub.s32 %v5536, %v5539
        %vm5541 = vcmp.lt.s32.totalorder %v5540, 0
        %v5542 = vsub.s32 0, %v5540
        %v5543 = vsel %vm5541, %v5542, %v5540
        %v5544 = vclz %v5543
        %v5545 = vsub.s32 %v5544, 2
        %vm5546 = vcmp.gt.s32.totalorder 0, %v5545
        %v5547 = vsel %vm5546, 0, %v5545
        %v5548 = vsub.s32 32, %v5547
        %v5549 = vshll.u32 %v5540, %v5547
        %v5550 = vshrl.u32 %v5532, %v5548
        %v5551 = vor.u32 %v5549, %v5550
        %v5552 = vsub.s32 4294967266, %v5547
        %v5553 = vadd.s32 %v5552, 127
        %v5554 = vshll.u32 %v5553, 23
        %v5555 = vor.u32 4788187, %v5554
        %v5556 = vand.u32 2147483647, %v5555
        %v5558 = vcvt.s32.f32 %v5551
        %v5559 = vmul.f32 %v5558, %v5556
        %v5560 = vxor.u32 %v5559, 2147483648
        %v5561 = vsel %vm5440, %v5560, %v5559
        %v5562 = vsub.s32 4, %v5538
        %v5563 = vsel %vm5440, %v5562, %v5538
        %v5564 = vsel %vm5439, %v1046, %v5561
        %v5565 = vsel %vm5439, 0, %v5563
        %v5566 = vmul.f32 %v5564, %v5564
        %v5567 = vmul.f32 %v5566, -0.001358992
        %v5568 = vadd.f32 %v5567, 0.041655596
        %v5569 = vmul.f32 %v5566, %v5568
        %v5570 = vadd.f32 %v5569, -0.4999988
        %v5571 = vmul.f32 %v5566, %v5570
        %v5572 = vadd.f32 1.0, %v5571
        %v5573 = vmul.f32 %v5564, %v5564
        %v5574 = vmul.f32 %v5573, -0.00019511016
        %v5575 = vadd.f32 %v5574, 0.008332121
        %v5576 = vmul.f32 %v5573, %v5575
        %v5577 = vadd.f32 %v5576, -0.16666654
        %v5578 = vmul.f32 %v5573, %v5577
        %v5579 = vadd.f32 %v5578, 1.0
        %v5580 = vmul.f32 %v5579, %v5564
        %vm5581 = vweird.f32 %v1046
        %v5582 = vadd.s32 %v5565, 3
        %v5583 = vand.u32 %v5582, 3
        %vm5584 = vcmp.lt.s32.totalorder %v5583, 2
        %vm5585 = vcmp.eq.s32.totalorder %v5583, 0
        %v5586 = vxor.u32 %v5580, 2147483648
        %v5587 = vsel %vm5585, %v5572, %v5586
        %vm5588 = vcmp.eq.s32.totalorder %v5583, 2
        %v5589 = vxor.u32 %v5572, 2147483648
        %v5590 = vsel %vm5588, %v5589, %v5580
        %v5591 = vsel %vm5584, %v5587, %v5590
        %v5592 = vsel %vm5581, nan, %v5591
        %v5593 = vand.u32 2147483647, %v1047
        %vm5594 = vcmp.le.f32.partialorder %v5593, 0.7853982
        %vm5595 = vcmp.lt.s32.totalorder %v1047, 0
        %v5596 = vand.u32 %v1047, 2139095040
        %v5597 = vshrl.u32 %v5596, 23
        %v5598 = vsub.s32 %v5597, 127
        %v5599 = vand.u32 2147483647, %v1047
        %v5600 = vand.u32 %v5599, 8388607
        %v5601 = vor.u32 %v5600, 8388608
        %v5602 = vsub.s32 0, %v5601
        %v5603 = vadd.s32 %v5598, 1
        %vm5604 = vcmp.gt.s32.totalorder %v5603, 0
        %v5605 = vsel %vm5604, %v5603, 0
        %v5606 = vshrl.u32 %v5605, 5
        %v5607 = vand.u32 %v5605, 31
        %v5608 = vsub.s32 32, %v5607
        %v5609 = vshrl.u32 683565275, %v5608
        %v5610 = vshll.u32 683565275, %v5607
        %v5611 = vshrl.u32 2475754826, %v5608
        %v5612 = vor.u32 %v5610, %v5611
        %v5613 = vshll.u32 2475754826, %v5607
        %v5614 = vshrl.u32 2131351028, %v5608
        %v5615 = vor.u32 %v5613, %v5614
        %v5616 = vshll.u32 2131351028, %v5607
        %v5617 = vshrl.u32 2102212464, %v5608
        %v5618 = vor.u32 %v5616, %v5617
        %v5619 = vshll.u32 2102212464, %v5607
        %v5620 = vshrl.u32 920167782, %v5608
        %v5621 = vor.u32 %v5619, %v5620
        %v5622 = vshll.u32 920167782, %v5607
        %v5623 = vshrl.u32 1326507024, %v5608
        %v5624 = vor.u32 %v5622, %v5623
        %vm5625 = vcmp.lt.s32.totalorder %v5606, 1
        %vm5626 = vcmp.lt.s32.totalorder %v5606, 2
        %vm5627 = vcmp.lt.s32.totalorder %v5606, 3
        %vm5628 = vcmp.lt.s32.totalorder %v5606, 4
        %v5629 = vsel %vm5625, %v5609, %v5612
        %v5630 = vsel %vm5628, %v5618, 2102212464
        %v5631 = vsel %vm5627, %v5615, %v5630
        %v5632 = vsel %vm5626, %v5629, %v5631
        %v5633 = vsel %vm5625, %v5612, %v5615
        %v5634 = vsel %vm5628, %v5621, 920167782
        %v5635 = vsel %vm5627, %v5618, %v5634
        %v5636 = vsel %vm5626, %v5633, %v5635
        %v5637 = vsel %vm5625, %v5615, %v5618
        %v5638 = vsel %vm5628, %v5624, 1326507024
        %v5639 = vsel %vm5627, %v5621, %v5638
        %v5640 = vsel %vm5626, %v5637, %v5639
        %v5641 = vshll.u32 %v5601, 8
        %v5642 = vand.u32 %v5641, 65535
        %v5643 = vshrl.u32 %v5641, 16
        %v5644 = vand.u32 %v5640, 65535
        %v5645 = vshrl.u32 %v5640, 16
        %v5646 = vmul.u32 %v5642, %v5644
        %v5647 = vmul.u32 %v5642, %v5645
        %v5648 = vmul.u32 %v5643, %v5644
        %v5649 = vmul.u32 %v5643, %v5645
        %v5650 = vshll.u32 %v5647, 16
        %v5651 = vshrl.u32 %v5647, 16
        %v5652 = vshll.u32 %v5648, 16
        %v5653 = vshrl.u32 %v5648, 16
        %vm5654 = vc.u32 %v5646, %v5650
        %v5655 = vsel %vm5654, 1, 0
        %v5656 = vadd.s32 %v5646, %v5650
        %v5657 = vadd.s32 %v5649, %v5655
        %vm5658 = vc.u32 %v5656, %v5652
        %v5659 = vsel %vm5658, 1, 0
        %v5660 = vadd.s32 %v5656, %v5652
        %v5661 = vadd.s32 %v5657, %v5659
        %v5662 = vadd.s32 %v5661, %v5651
        %v5663 = vadd.s32 %v5662, %v5653
        %v5664 = vand.u32 %v5641, 65535
        %v5665 = vshrl.u32 %v5641, 16
        %v5666 = vand.u32 %v5636, 65535
        %v5667 = vshrl.u32 %v5636, 16
        %v5668 = vmul.u32 %v5664, %v5666
        %v5669 = vmul.u32 %v5664, %v5667
        %v5670 = vmul.u32 %v5665, %v5666
        %v5671 = vmul.u32 %v5665, %v5667
        %v5672 = vshll.u32 %v5669, 16
        %v5673 = vshrl.u32 %v5669, 16
        %v5674 = vshll.u32 %v5670, 16
        %v5675 = vshrl.u32 %v5670, 16
        %vm5676 = vc.u32 %v5668, %v5672
        %v5677 = vsel %vm5676, 1, 0
        %v5678 = vadd.s32 %v5668, %v5672
        %v5679 = vadd.s32 %v5671, %v5677
        %vm5680 = vc.u32 %v5678, %v5674
        %v5681 = vsel %vm5680, 1, 0
        %v5682 = vadd.s32 %v5678, %v5674
        %v5683 = vadd.s32 %v5679, %v5681
        %v5684 = vadd.s32 %v5683, %v5673
        %v5685 = vadd.s32 %v5684, %v5675
        %v5686 = vmul.u32 %v5641, %v5632
        %v5687 = vadd.s32 %v5663, %v5682
        %vm5688 = vc.u32 %v5663, %v5682
        %v5689 = vadd.s32 %v5685, 1
        %v5690 = vsel %vm5688, %v5689, %v5685
        %v5691 = vadd.s32 %v5686, %v5690
        %v5692 = vadd.s32 %v5691, 536870912
        %v5693 = vshrl.u32 %v5692, 30
        %v5694 = vshll.u32 %v5693, 30
        %v5695 = vsub.s32 %v5691, %v5694
        %vm5696 = vcmp.lt.s32.totalorder %v5695, 0
        %v5697 = vsub.s32 0, %v5695
        %v5698 = vsel %vm5696, %v5697, %v5695
        %v5699 = vclz %v5698
        %v5700 = vsub.s32 %v5699, 2
        %vm5701 = vcmp.gt.s32.totalorder 0, %v5700
        %v5702 = vsel %vm5701, 0, %v5700
        %v5703 = vsub.s32 32, %v5702
        %v5704 = vshll.u32 %v5695, %v5702
        %v5705 = vshrl.u32 %v5687, %v5703
        %v5706 = vor.u32 %v5704, %v5705
        %v5707 = vsub.s32 4294967266, %v5702
        %v5708 = vadd.s32 %v5707, 127
        %v5709 = vshll.u32 %v5708, 23
        %v5710 = vor.u32 4788187, %v5709
        %v5711 = vand.u32 2147483647, %v5710
        %v5713 = vcvt.s32.f32 %v5706
        %v5714 = vmul.f32 %v5713, %v5711
        %v5715 = vxor.u32 %v5714, 2147483648
        %v5716 = vsel %vm5595, %v5715, %v5714
        %v5717 = vsub.s32 4, %v5693
        %v5718 = vsel %vm5595, %v5717, %v5693
        %v5719 = vsel %vm5594, %v1047, %v5716
        %v5720 = vsel %vm5594, 0, %v5718
        %v5721 = vmul.f32 %v5719, %v5719
        %v5722 = vmul.f32 %v5721, -0.001358992
        %v5723 = vadd.f32 %v5722, 0.041655596
        %v5724 = vmul.f32 %v5721, %v5723
        %v5725 = vadd.f32 %v5724, -0.4999988
        %v5726 = vmul.f32 %v5721, %v5725
        %v5727 = vadd.f32 1.0, %v5726
        %v5728 = vmul.f32 %v5719, %v5719
        %v5729 = vmul.f32 %v5728, -0.00019511016
        %v5730 = vadd.f32 %v5729, 0.008332121
        %v5731 = vmul.f32 %v5728, %v5730
        %v5732 = vadd.f32 %v5731, -0.16666654
        %v5733 = vmul.f32 %v5728, %v5732
        %v5734 = vadd.f32 %v5733, 1.0
        %v5735 = vmul.f32 %v5734, %v5719
        %vm5736 = vweird.f32 %v1047
        %v5737 = vadd.s32 %v5720, 3
        %v5738 = vand.u32 %v5737, 3
        %vm5739 = vcmp.lt.s32.totalorder %v5738, 2
        %vm5740 = vcmp.eq.s32.totalorder %v5738, 0
        %v5741 = vxor.u32 %v5735, 2147483648
        %v5742 = vsel %vm5740, %v5727, %v5741
        %vm5743 = vcmp.eq.s32.totalorder %v5738, 2
        %v5744 = vxor.u32 %v5727, 2147483648
        %v5745 = vsel %vm5743, %v5744, %v5735
        %v5746 = vsel %vm5739, %v5742, %v5745
        %v5747 = vsel %vm5736, nan, %v5746
        %v5748 = vand.u32 2147483647, %v1048
        %vm5749 = vcmp.le.f32.partialorder %v5748, 0.7853982
        %vm5750 = vcmp.lt.s32.totalorder %v1048, 0
        %v5751 = vand.u32 %v1048, 2139095040
        %v5752 = vshrl.u32 %v5751, 23
        %v5753 = vsub.s32 %v5752, 127
        %v5754 = vand.u32 2147483647, %v1048
        %v5755 = vand.u32 %v5754, 8388607
        %v5756 = vor.u32 %v5755, 8388608
        %v5757 = vsub.s32 0, %v5756
        %v5758 = vadd.s32 %v5753, 1
        %vm5759 = vcmp.gt.s32.totalorder %v5758, 0
        %v5760 = vsel %vm5759, %v5758, 0
        %v5761 = vshrl.u32 %v5760, 5
        %v5762 = vand.u32 %v5760, 31
        %v5763 = vsub.s32 32, %v5762
        %v5764 = vshrl.u32 683565275, %v5763
        %v5765 = vshll.u32 683565275, %v5762
        %v5766 = vshrl.u32 2475754826, %v5763
        %v5767 = vor.u32 %v5765, %v5766
        %v5768 = vshll.u32 2475754826, %v5762
        %v5769 = vshrl.u32 2131351028, %v5763
        %v5770 = vor.u32 %v5768, %v5769
        %v5771 = vshll.u32 2131351028, %v5762
        %v5772 = vshrl.u32 2102212464, %v5763
        %v5773 = vor.u32 %v5771, %v5772
        %v5774 = vshll.u32 2102212464, %v5762
        %v5775 = vshrl.u32 920167782, %v5763
        %v5776 = vor.u32 %v5774, %v5775
        %v5777 = vshll.u32 920167782, %v5762
        %v5778 = vshrl.u32 1326507024, %v5763
        %v5779 = vor.u32 %v5777, %v5778
        %vm5780 = vcmp.lt.s32.totalorder %v5761, 1
        %vm5781 = vcmp.lt.s32.totalorder %v5761, 2
        %vm5782 = vcmp.lt.s32.totalorder %v5761, 3
        %vm5783 = vcmp.lt.s32.totalorder %v5761, 4
        %v5784 = vsel %vm5780, %v5764, %v5767
        %v5785 = vsel %vm5783, %v5773, 2102212464
        %v5786 = vsel %vm5782, %v5770, %v5785
        %v5787 = vsel %vm5781, %v5784, %v5786
        %v5788 = vsel %vm5780, %v5767, %v5770
        %v5789 = vsel %vm5783, %v5776, 920167782
        %v5790 = vsel %vm5782, %v5773, %v5789
        %v5791 = vsel %vm5781, %v5788, %v5790
        %v5792 = vsel %vm5780, %v5770, %v5773
        %v5793 = vsel %vm5783, %v5779, 1326507024
        %v5794 = vsel %vm5782, %v5776, %v5793
        %v5795 = vsel %vm5781, %v5792, %v5794
        %v5796 = vshll.u32 %v5756, 8
        %v5797 = vand.u32 %v5796, 65535
        %v5798 = vshrl.u32 %v5796, 16
        %v5799 = vand.u32 %v5795, 65535
        %v5800 = vshrl.u32 %v5795, 16
        %v5801 = vmul.u32 %v5797, %v5799
        %v5802 = vmul.u32 %v5797, %v5800
        %v5803 = vmul.u32 %v5798, %v5799
        %v5804 = vmul.u32 %v5798, %v5800
        %v5805 = vshll.u32 %v5802, 16
        %v5806 = vshrl.u32 %v5802, 16
        %v5807 = vshll.u32 %v5803, 16
        %v5808 = vshrl.u32 %v5803, 16
        %vm5809 = vc.u32 %v5801, %v5805
        %v5810 = vsel %vm5809, 1, 0
        %v5811 = vadd.s32 %v5801, %v5805
        %v5812 = vadd.s32 %v5804, %v5810
        %vm5813 = vc.u32 %v5811, %v5807
        %v5814 = vsel %vm5813, 1, 0
        %v5815 = vadd.s32 %v5811, %v5807
        %v5816 = vadd.s32 %v5812, %v5814
        %v5817 = vadd.s32 %v5816, %v5806
        %v5818 = vadd.s32 %v5817, %v5808
        %v5819 = vand.u32 %v5796, 65535
        %v5820 = vshrl.u32 %v5796, 16
        %v5821 = vand.u32 %v5791, 65535
        %v5822 = vshrl.u32 %v5791, 16
        %v5823 = vmul.u32 %v5819, %v5821
        %v5824 = vmul.u32 %v5819, %v5822
        %v5825 = vmul.u32 %v5820, %v5821
        %v5826 = vmul.u32 %v5820, %v5822
        %v5827 = vshll.u32 %v5824, 16
        %v5828 = vshrl.u32 %v5824, 16
        %v5829 = vshll.u32 %v5825, 16
        %v5830 = vshrl.u32 %v5825, 16
        %vm5831 = vc.u32 %v5823, %v5827
        %v5832 = vsel %vm5831, 1, 0
        %v5833 = vadd.s32 %v5823, %v5827
        %v5834 = vadd.s32 %v5826, %v5832
        %vm5835 = vc.u32 %v5833, %v5829
        %v5836 = vsel %vm5835, 1, 0
        %v5837 = vadd.s32 %v5833, %v5829
        %v5838 = vadd.s32 %v5834, %v5836
        %v5839 = vadd.s32 %v5838, %v5828
        %v5840 = vadd.s32 %v5839, %v5830
        %v5841 = vmul.u32 %v5796, %v5787
        %v5842 = vadd.s32 %v5818, %v5837
        %vm5843 = vc.u32 %v5818, %v5837
        %v5844 = vadd.s32 %v5840, 1
        %v5845 = vsel %vm5843, %v5844, %v5840
        %v5846 = vadd.s32 %v5841, %v5845
        %v5847 = vadd.s32 %v5846, 536870912
        %v5848 = vshrl.u32 %v5847, 30
        %v5849 = vshll.u32 %v5848, 30
        %v5850 = vsub.s32 %v5846, %v5849
        %vm5851 = vcmp.lt.s32.totalorder %v5850, 0
        %v5852 = vsub.s32 0, %v5850
        %v5853 = vsel %vm5851, %v5852, %v5850
        %v5854 = vclz %v5853
        %v5855 = vsub.s32 %v5854, 2
        %vm5856 = vcmp.gt.s32.totalorder 0, %v5855
        %v5857 = vsel %vm5856, 0, %v5855
        %v5858 = vsub.s32 32, %v5857
        %v5859 = vshll.u32 %v5850, %v5857
        %v5860 = vshrl.u32 %v5842, %v5858
        %v5861 = vor.u32 %v5859, %v5860
        %v5862 = vsub.s32 4294967266, %v5857
        %v5863 = vadd.s32 %v5862, 127
        %v5864 = vshll.u32 %v5863, 23
        %v5865 = vor.u32 4788187, %v5864
        %v5866 = vand.u32 2147483647, %v5865
        %v5868 = vcvt.s32.f32 %v5861
        %v5869 = vmul.f32 %v5868, %v5866
        %v5870 = vxor.u32 %v5869, 2147483648
        %v5871 = vsel %vm5750, %v5870, %v5869
        %v5872 = vsub.s32 4, %v5848
        %v5873 = vsel %vm5750, %v5872, %v5848
        %v5874 = vsel %vm5749, %v1048, %v5871
        %v5875 = vsel %vm5749, 0, %v5873
        %v5876 = vmul.f32 %v5874, %v5874
        %v5877 = vmul.f32 %v5876, -0.001358992
        %v5878 = vadd.f32 %v5877, 0.041655596
        %v5879 = vmul.f32 %v5876, %v5878
        %v5880 = vadd.f32 %v5879, -0.4999988
        %v5881 = vmul.f32 %v5876, %v5880
        %v5882 = vadd.f32 1.0, %v5881
        %v5883 = vmul.f32 %v5874, %v5874
        %v5884 = vmul.f32 %v5883, -0.00019511016
        %v5885 = vadd.f32 %v5884, 0.008332121
        %v5886 = vmul.f32 %v5883, %v5885
        %v5887 = vadd.f32 %v5886, -0.16666654
        %v5888 = vmul.f32 %v5883, %v5887
        %v5889 = vadd.f32 %v5888, 1.0
        %v5890 = vmul.f32 %v5889, %v5874
        %vm5891 = vweird.f32 %v1048
        %v5892 = vadd.s32 %v5875, 3
        %v5893 = vand.u32 %v5892, 3
        %vm5894 = vcmp.lt.s32.totalorder %v5893, 2
        %vm5895 = vcmp.eq.s32.totalorder %v5893, 0
        %v5896 = vxor.u32 %v5890, 2147483648
        %v5897 = vsel %vm5895, %v5882, %v5896
        %vm5898 = vcmp.eq.s32.totalorder %v5893, 2
        %v5899 = vxor.u32 %v5882, 2147483648
        %v5900 = vsel %vm5898, %v5899, %v5890
        %v5901 = vsel %vm5894, %v5897, %v5900
        %v5902 = vsel %vm5891, nan, %v5901
        %v5903 = vand.u32 2147483647, %v1049
        %vm5904 = vcmp.le.f32.partialorder %v5903, 0.7853982
        %vm5905 = vcmp.lt.s32.totalorder %v1049, 0
        %v5906 = vand.u32 %v1049, 2139095040
        %v5907 = vshrl.u32 %v5906, 23
        %v5908 = vsub.s32 %v5907, 127
        %v5909 = vand.u32 2147483647, %v1049
        %v5910 = vand.u32 %v5909, 8388607
        %v5911 = vor.u32 %v5910, 8388608
        %v5912 = vsub.s32 0, %v5911
        %v5913 = vadd.s32 %v5908, 1
        %vm5914 = vcmp.gt.s32.totalorder %v5913, 0
        %v5915 = vsel %vm5914, %v5913, 0
        %v5916 = vshrl.u32 %v5915, 5
        %v5917 = vand.u32 %v5915, 31
        %v5918 = vsub.s32 32, %v5917
        %v5919 = vshrl.u32 683565275, %v5918
        %v5920 = vshll.u32 683565275, %v5917
        %v5921 = vshrl.u32 2475754826, %v5918
        %v5922 = vor.u32 %v5920, %v5921
        %v5923 = vshll.u32 2475754826, %v5917
        %v5924 = vshrl.u32 2131351028, %v5918
        %v5925 = vor.u32 %v5923, %v5924
        %v5926 = vshll.u32 2131351028, %v5917
        %v5927 = vshrl.u32 2102212464, %v5918
        %v5928 = vor.u32 %v5926, %v5927
        %v5929 = vshll.u32 2102212464, %v5917
        %v5930 = vshrl.u32 920167782, %v5918
        %v5931 = vor.u32 %v5929, %v5930
        %v5932 = vshll.u32 920167782, %v5917
        %v5933 = vshrl.u32 1326507024, %v5918
        %v5934 = vor.u32 %v5932, %v5933
        %vm5935 = vcmp.lt.s32.totalorder %v5916, 1
        %vm5936 = vcmp.lt.s32.totalorder %v5916, 2
        %vm5937 = vcmp.lt.s32.totalorder %v5916, 3
        %vm5938 = vcmp.lt.s32.totalorder %v5916, 4
        %v5939 = vsel %vm5935, %v5919, %v5922
        %v5940 = vsel %vm5938, %v5928, 2102212464
        %v5941 = vsel %vm5937, %v5925, %v5940
        %v5942 = vsel %vm5936, %v5939, %v5941
        %v5943 = vsel %vm5935, %v5922, %v5925
        %v5944 = vsel %vm5938, %v5931, 920167782
        %v5945 = vsel %vm5937, %v5928, %v5944
        %v5946 = vsel %vm5936, %v5943, %v5945
        %v5947 = vsel %vm5935, %v5925, %v5928
        %v5948 = vsel %vm5938, %v5934, 1326507024
        %v5949 = vsel %vm5937, %v5931, %v5948
        %v5950 = vsel %vm5936, %v5947, %v5949
        %v5951 = vshll.u32 %v5911, 8
        %v5952 = vand.u32 %v5951, 65535
        %v5953 = vshrl.u32 %v5951, 16
        %v5954 = vand.u32 %v5950, 65535
        %v5955 = vshrl.u32 %v5950, 16
        %v5956 = vmul.u32 %v5952, %v5954
        %v5957 = vmul.u32 %v5952, %v5955
        %v5958 = vmul.u32 %v5953, %v5954
        %v5959 = vmul.u32 %v5953, %v5955
        %v5960 = vshll.u32 %v5957, 16
        %v5961 = vshrl.u32 %v5957, 16
        %v5962 = vshll.u32 %v5958, 16
        %v5963 = vshrl.u32 %v5958, 16
        %vm5964 = vc.u32 %v5956, %v5960
        %v5965 = vsel %vm5964, 1, 0
        %v5966 = vadd.s32 %v5956, %v5960
        %v5967 = vadd.s32 %v5959, %v5965
        %vm5968 = vc.u32 %v5966, %v5962
        %v5969 = vsel %vm5968, 1, 0
        %v5970 = vadd.s32 %v5966, %v5962
        %v5971 = vadd.s32 %v5967, %v5969
        %v5972 = vadd.s32 %v5971, %v5961
        %v5973 = vadd.s32 %v5972, %v5963
        %v5974 = vand.u32 %v5951, 65535
        %v5975 = vshrl.u32 %v5951, 16
        %v5976 = vand.u32 %v5946, 65535
        %v5977 = vshrl.u32 %v5946, 16
        %v5978 = vmul.u32 %v5974, %v5976
        %v5979 = vmul.u32 %v5974, %v5977
        %v5980 = vmul.u32 %v5975, %v5976
        %v5981 = vmul.u32 %v5975, %v5977
        %v5982 = vshll.u32 %v5979, 16
        %v5983 = vshrl.u32 %v5979, 16
        %v5984 = vshll.u32 %v5980, 16
        %v5985 = vshrl.u32 %v5980, 16
        %vm5986 = vc.u32 %v5978, %v5982
        %v5987 = vsel %vm5986, 1, 0
        %v5988 = vadd.s32 %v5978, %v5982
        %v5989 = vadd.s32 %v5981, %v5987
        %vm5990 = vc.u32 %v5988, %v5984
        %v5991 = vsel %vm5990, 1, 0
        %v5992 = vadd.s32 %v5988, %v5984
        %v5993 = vadd.s32 %v5989, %v5991
        %v5994 = vadd.s32 %v5993, %v5983
        %v5995 = vadd.s32 %v5994, %v5985
        %v5996 = vmul.u32 %v5951, %v5942
        %v5997 = vadd.s32 %v5973, %v5992
        %vm5998 = vc.u32 %v5973, %v5992
        %v5999 = vadd.s32 %v5995, 1
        %v6000 = vsel %vm5998, %v5999, %v5995
        %v6001 = vadd.s32 %v5996, %v6000
        %v6002 = vadd.s32 %v6001, 536870912
        %v6003 = vshrl.u32 %v6002, 30
        %v6004 = vshll.u32 %v6003, 30
        %v6005 = vsub.s32 %v6001, %v6004
        %vm6006 = vcmp.lt.s32.totalorder %v6005, 0
        %v6007 = vsub.s32 0, %v6005
        %v6008 = vsel %vm6006, %v6007, %v6005
        %v6009 = vclz %v6008
        %v6010 = vsub.s32 %v6009, 2
        %vm6011 = vcmp.gt.s32.totalorder 0, %v6010
        %v6012 = vsel %vm6011, 0, %v6010
        %v6013 = vsub.s32 32, %v6012
        %v6014 = vshll.u32 %v6005, %v6012
        %v6015 = vshrl.u32 %v5997, %v6013
        %v6016 = vor.u32 %v6014, %v6015
        %v6017 = vsub.s32 4294967266, %v6012
        %v6018 = vadd.s32 %v6017, 127
        %v6019 = vshll.u32 %v6018, 23
        %v6020 = vor.u32 4788187, %v6019
        %v6021 = vand.u32 2147483647, %v6020
        %v6023 = vcvt.s32.f32 %v6016
        %v6024 = vmul.f32 %v6023, %v6021
        %v6025 = vxor.u32 %v6024, 2147483648
        %v6026 = vsel %vm5905, %v6025, %v6024
        %v6027 = vsub.s32 4, %v6003
        %v6028 = vsel %vm5905, %v6027, %v6003
        %v6029 = vsel %vm5904, %v1049, %v6026
        %v6030 = vsel %vm5904, 0, %v6028
        %v6031 = vmul.f32 %v6029, %v6029
        %v6032 = vmul.f32 %v6031, -0.001358992
        %v6033 = vadd.f32 %v6032, 0.041655596
        %v6034 = vmul.f32 %v6031, %v6033
        %v6035 = vadd.f32 %v6034, -0.4999988
        %v6036 = vmul.f32 %v6031, %v6035
        %v6037 = vadd.f32 1.0, %v6036
        %v6038 = vmul.f32 %v6029, %v6029
        %v6039 = vmul.f32 %v6038, -0.00019511016
        %v6040 = vadd.f32 %v6039, 0.008332121
        %v6041 = vmul.f32 %v6038, %v6040
        %v6042 = vadd.f32 %v6041, -0.16666654
        %v6043 = vmul.f32 %v6038, %v6042
        %v6044 = vadd.f32 %v6043, 1.0
        %v6045 = vmul.f32 %v6044, %v6029
        %vm6046 = vweird.f32 %v1049
        %v6047 = vadd.s32 %v6030, 3
        %v6048 = vand.u32 %v6047, 3
        %vm6049 = vcmp.lt.s32.totalorder %v6048, 2
        %vm6050 = vcmp.eq.s32.totalorder %v6048, 0
        %v6051 = vxor.u32 %v6045, 2147483648
        %v6052 = vsel %vm6050, %v6037, %v6051
        %vm6053 = vcmp.eq.s32.totalorder %v6048, 2
        %v6054 = vxor.u32 %v6037, 2147483648
        %v6055 = vsel %vm6053, %v6054, %v6045
        %v6056 = vsel %vm6049, %v6052, %v6055
        %v6057 = vsel %vm6046, nan, %v6056
        %v6058 = vmul.f32 %v1267, %v1050
        %v6059 = vmul.f32 %v1421, %v1051
        %v6060 = vmul.f32 %v1575, %v1052
        %v6061 = vmul.f32 %v1729, %v1053
        %v6062 = vmul.f32 %v1883, %v1054
        %v6063 = vmul.f32 %v2037, %v1055
        %v6064 = vmul.f32 %v2191, %v1056
        %v6065 = vmul.f32 %v2345, %v1057
        %v6066 = vmul.f32 %v2499, %v1058
        %v6067 = vmul.f32 %v2653, %v1059
        %v6068 = vmul.f32 %v2807, %v1060
        %v6069 = vmul.f32 %v2961, %v1061
        %v6070 = vmul.f32 %v3115, %v1062
        %v6071 = vmul.f32 %v3269, %v1063
        %v6072 = vmul.f32 %v3423, %v1064
        %v6073 = vmul.f32 %v3577, %v1065
        %v6074 = vmul.f32 %v3732, %v1066
        %v6075 = vmul.f32 %v3887, %v1067
        %v6076 = vmul.f32 %v4042, %v1068
        %v6077 = vmul.f32 %v4197, %v1069
        %v6078 = vmul.f32 %v4352, %v1070
        %v6079 = vmul.f32 %v4507, %v1071
        %v6080 = vmul.f32 %v4662, %v1072
        %v6081 = vmul.f32 %v4817, %v1073
        %v6082 = vmul.f32 %v4972, %v1074
        %v6083 = vmul.f32 %v5127, %v1075
        %v6084 = vmul.f32 %v5282, %v1076
        %v6085 = vmul.f32 %v5437, %v1077
        %v6086 = vmul.f32 %v5592, %v1078
        %v6087 = vmul.f32 %v5747, %v1079
        %v6088 = vmul.f32 %v5902, %v1080
        %v6089 = vmul.f32 %v6057, %v1081
        %v6090 = vsub.f32 %v6058, %v6074
        %v6091 = vsub.f32 %v6059, %v6075
        %v6092 = vsub.f32 %v6060, %v6076
        %v6093 = vsub.f32 %v6061, %v6077
        %v6094 = vsub.f32 %v6062, %v6078
        %v6095 = vsub.f32 %v6063, %v6079
        %v6096 = vsub.f32 %v6064, %v6080
        %v6097 = vsub.f32 %v6065, %v6081
        %v6098 = vsub.f32 %v6066, %v6082
        %v6099 = vsub.f32 %v6067, %v6083
        %v6100 = vsub.f32 %v6068, %v6084
        %v6101 = vsub.f32 %v6069, %v6085
        %v6102 = vsub.f32 %v6070, %v6086
        %v6103 = vsub.f32 %v6071, %v6087
        %v6104 = vsub.f32 %v6072, %v6088
        %v6105 = vsub.f32 %v6073, %v6089
        %v6106 = vmul.f32 %v1018, %v6090
        %v6107 = vmul.f32 %v1019, %v6091
        %v6108 = vmul.f32 %v1020, %v6092
        %v6109 = vmul.f32 %v1021, %v6093
        %v6110 = vmul.f32 %v1022, %v6094
        %v6111 = vmul.f32 %v1023, %v6095
        %v6112 = vmul.f32 %v1024, %v6096
        %v6113 = vmul.f32 %v1025, %v6097
        %v6114 = vmul.f32 %v1026, %v6098
        %v6115 = vmul.f32 %v1027, %v6099
        %v6116 = vmul.f32 %v1028, %v6100
        %v6117 = vmul.f32 %v1029, %v6101
        %v6118 = vmul.f32 %v1030, %v6102
        %v6119 = vmul.f32 %v1031, %v6103
        %v6120 = vmul.f32 %v1032, %v6104
        %v6121 = vmul.f32 %v1033, %v6105
        %v6122 = vmul.f32 %v1267, %v1066
        %v6123 = vmul.f32 %v1421, %v1067
        %v6124 = vmul.f32 %v1575, %v1068
        %v6125 = vmul.f32 %v1729, %v1069
        %v6126 = vmul.f32 %v1883, %v1070
        %v6127 = vmul.f32 %v2037, %v1071
        %v6128 = vmul.f32 %v2191, %v1072
        %v6129 = vmul.f32 %v2345, %v1073
        %v6130 = vmul.f32 %v2499, %v1074
        %v6131 = vmul.f32 %v2653, %v1075
        %v6132 = vmul.f32 %v2807, %v1076
        %v6133 = vmul.f32 %v2961, %v1077
        %v6134 = vmul.f32 %v3115, %v1078
        %v6135 = vmul.f32 %v3269, %v1079
        %v6136 = vmul.f32 %v3423, %v1080
        %v6137 = vmul.f32 %v3577, %v1081
        %v6138 = vmul.f32 %v3732, %v1050
        %v6139 = vmul.f32 %v3887, %v1051
        %v6140 = vmul.f32 %v4042, %v1052
        %v6141 = vmul.f32 %v4197, %v1053
        %v6142 = vmul.f32 %v4352, %v1054
        %v6143 = vmul.f32 %v4507, %v1055
        %v6144 = vmul.f32 %v4662, %v1056
        %v6145 = vmul.f32 %v4817, %v1057
        %v6146 = vmul.f32 %v4972, %v1058
        %v6147 = vmul.f32 %v5127, %v1059
        %v6148 = vmul.f32 %v5282, %v1060
        %v6149 = vmul.f32 %v5437, %v1061
        %v6150 = vmul.f32 %v5592, %v1062
        %v6151 = vmul.f32 %v5747, %v1063
        %v6152 = vmul.f32 %v5902, %v1064
        %v6153 = vmul.f32 %v6057, %v1065
        %v6154 = vadd.f32 %v6122, %v6138
        %v6155 = vadd.f32 %v6123, %v6139
        %v6156 = vadd.f32 %v6124, %v6140
        %v6157 = vadd.f32 %v6125, %v6141
        %v6158 = vadd.f32 %v6126, %v6142
        %v6159 = vadd.f32 %v6127, %v6143
        %v6160 = vadd.f32 %v6128, %v6144
        %v6161 = vadd.f32 %v6129, %v6145
        %v6162 = vadd.f32 %v6130, %v6146
        %v6163 = vadd.f32 %v6131, %v6147
        %v6164 = vadd.f32 %v6132, %v6148
        %v6165 = vadd.f32 %v6133, %v6149
        %v6166 = vadd.f32 %v6134, %v6150
        %v6167 = vadd.f32 %v6135, %v6151
        %v6168 = vadd.f32 %v6136, %v6152
        %v6169 = vadd.f32 %v6137, %v6153
        %v6170 = vmul.f32 %v1018, %v6154
        %v6171 = vmul.f32 %v1019, %v6155
        %v6172 = vmul.f32 %v1020, %v6156
        %v6173 = vmul.f32 %v1021, %v6157
        %v6174 = vmul.f32 %v1022, %v6158
        %v6175 = vmul.f32 %v1023, %v6159
        %v6176 = vmul.f32 %v1024, %v6160
        %v6177 = vmul.f32 %v1025, %v6161
        %v6178 = vmul.f32 %v1026, %v6162
        %v6179 = vmul.f32 %v1027, %v6163
        %v6180 = vmul.f32 %v1028, %v6164
        %v6181 = vmul.f32 %v1029, %v6165
        %v6182 = vmul.f32 %v1030, %v6166
        %v6183 = vmul.f32 %v1031, %v6167
        %v6184 = vmul.f32 %v1032, %v6168
        %v6185 = vmul.f32 %v1033, %v6169
        %v6186 = vld [vmem:[#allocation13] sm:$0xf]
        %v6187 = vld [vmem:[#allocation13 + $0x4] sm:$0xf]
        %v6188 = vld [vmem:[#allocation13 + $0x8] sm:$0xf]
        %v6189 = vld [vmem:[#allocation13 + $0xc] sm:$0xf]
        %v6190 = vld [vmem:[#allocation13 + $0x10] sm:$0xf]
        %v6191 = vld [vmem:[#allocation13 + $0x14] sm:$0xf]
        %v6192 = vld [vmem:[#allocation13 + $0x18] sm:$0xf]
        %v6193 = vld [vmem:[#allocation13 + $0x1c] sm:$0xf]
        %v6194 = vld [vmem:[#allocation13 + $0x20] sm:$0xf]
        %v6195 = vld [vmem:[#allocation13 + $0x24] sm:$0xf]
        %v6196 = vld [vmem:[#allocation13 + $0x28] sm:$0xf]
        %v6197 = vld [vmem:[#allocation13 + $0x2c] sm:$0xf]
        %v6198 = vld [vmem:[#allocation13 + $0x30] sm:$0xf]
        %v6199 = vld [vmem:[#allocation13 + $0x34] sm:$0xf]
        %v6200 = vld [vmem:[#allocation13 + $0x38] sm:$0xf]
        %v6201 = vld [vmem:[#allocation13 + $0x3c] sm:$0xf]
        %v6202 = vpack.c.bf16 %v6107, %v6106
        %v6203 = vpack.c.bf16 %v6109, %v6108
        %v6204 = vpack.c.bf16 %v6111, %v6110
        %v6205 = vpack.c.bf16 %v6113, %v6112
        %v6206 = vpack.c.bf16 %v6115, %v6114
        %v6207 = vpack.c.bf16 %v6117, %v6116
        %v6208 = vpack.c.bf16 %v6119, %v6118
        %v6209 = vpack.c.bf16 %v6121, %v6120
        %v6226 = vunpack.c.l.b16 %v6186
        %v6227 = vunpack.c.l.b16 %v6187
        %v6228 = vunpack.c.l.b16 %v6188
        %v6229 = vunpack.c.l.b16 %v6189
        %v6230 = vunpack.c.l.b16 %v6190
        %v6231 = vunpack.c.l.b16 %v6191
        %v6232 = vunpack.c.l.b16 %v6192
        %v6233 = vunpack.c.l.b16 %v6193
        %v6234 = vunpack.c.l.b16 %v6194
        %v6235 = vunpack.c.l.b16 %v6195
        %v6236 = vunpack.c.l.b16 %v6196
        %v6237 = vunpack.c.l.b16 %v6197
        %v6238 = vunpack.c.l.b16 %v6198
        %v6239 = vunpack.c.l.b16 %v6199
        %v6240 = vunpack.c.l.b16 %v6200
        %v6241 = vunpack.c.l.b16 %v6201
        %v6242 = vpack.c.b16 %v6227, %v6226
        %v6243 = vpack.c.b16 %v6229, %v6228
        %v6244 = vpack.c.b16 %v6231, %v6230
        %v6245 = vpack.c.b16 %v6233, %v6232
        %v6246 = vpack.c.b16 %v6235, %v6234
        %v6247 = vpack.c.b16 %v6237, %v6236
        %v6248 = vpack.c.b16 %v6239, %v6238
        %v6249 = vpack.c.b16 %v6241, %v6240
        %6258 = vmatpush.bf16.msra.mxu0 %v6209
        %6259 = vmatpush.bf16.msra.mxu0 %v6208
        %6260 = vmatpush.bf16.msra.mxu0 %v6207
        %6261 = vmatpush.bf16.msra.mxu0 %v6206
        %6262 = vmatpush.bf16.msra.mxu0 %v6205
        %6263 = vmatpush.bf16.msra.mxu0 %v6204
        %6264 = vmatpush.bf16.msra.mxu0 %v6203
        %6265 = vmatpush.bf16.msra.mxu0 %v6202
        %6266 = vmatmul.bf16.gmra.mxu0 %v6242
        %v6267 = vpop.f32.mrf.mxu0
        %v6268 = vadd.f32 0.0, %v6267
        %v6269 = vpop.f32.mrf.mxu0
        %v6270 = vadd.f32 0.0, %v6269
        %6271 = vmatmul.bf16.gmra.mxu0 %v6243
        %v6272 = vpop.f32.mrf.mxu0
        %v6273 = vadd.f32 0.0, %v6272
        %v6274 = vpop.f32.mrf.mxu0
        %v6275 = vadd.f32 0.0, %v6274
        %6276 = vmatmul.bf16.gmra.mxu0 %v6244
        %v6277 = vpop.f32.mrf.mxu0
        %v6278 = vadd.f32 0.0, %v6277
        %v6279 = vpop.f32.mrf.mxu0
        %v6280 = vadd.f32 0.0, %v6279
        %6281 = vmatmul.bf16.gmra.mxu0 %v6245
        %v6282 = vpop.f32.mrf.mxu0
        %v6283 = vadd.f32 0.0, %v6282
        %v6284 = vpop.f32.mrf.mxu0
        %v6285 = vadd.f32 0.0, %v6284
        %6286 = vmatmul.bf16.gmra.mxu0 %v6246
        %v6287 = vpop.f32.mrf.mxu0
        %v6288 = vadd.f32 0.0, %v6287
        %v6289 = vpop.f32.mrf.mxu0
        %v6290 = vadd.f32 0.0, %v6289
        %6291 = vmatmul.bf16.gmra.mxu0 %v6247
        %v6292 = vpop.f32.mrf.mxu0
        %v6293 = vadd.f32 0.0, %v6292
        %v6294 = vpop.f32.mrf.mxu0
        %v6295 = vadd.f32 0.0, %v6294
        %6296 = vmatmul.bf16.gmra.mxu0 %v6248
        %v6297 = vpop.f32.mrf.mxu0
        %v6298 = vadd.f32 0.0, %v6297
        %v6299 = vpop.f32.mrf.mxu0
        %v6300 = vadd.f32 0.0, %v6299
        %6301 = vmatmul.bf16.gmra.mxu0 %v6249
        %v6302 = vpop.f32.mrf.mxu0
        %v6303 = vadd.f32 0.0, %v6302
        %v6304 = vpop.f32.mrf.mxu0
        %v6305 = vadd.f32 0.0, %v6304
        %6306 = vdwg.mxu0
        %v6307 = vld [vmem:[#allocation14] sm:$0xf]
        %v6308 = vld [vmem:[#allocation14 + $0x4] sm:$0xf]
        %v6309 = vld [vmem:[#allocation14 + $0x8] sm:$0xf]
        %v6310 = vld [vmem:[#allocation14 + $0xc] sm:$0xf]
        %v6311 = vld [vmem:[#allocation14 + $0x10] sm:$0xf]
        %v6312 = vld [vmem:[#allocation14 + $0x14] sm:$0xf]
        %v6313 = vld [vmem:[#allocation14 + $0x18] sm:$0xf]
        %v6314 = vld [vmem:[#allocation14 + $0x1c] sm:$0xf]
        %v6315 = vld [vmem:[#allocation14 + $0x20] sm:$0xf]
        %v6316 = vld [vmem:[#allocation14 + $0x24] sm:$0xf]
        %v6317 = vld [vmem:[#allocation14 + $0x28] sm:$0xf]
        %v6318 = vld [vmem:[#allocation14 + $0x2c] sm:$0xf]
        %v6319 = vld [vmem:[#allocation14 + $0x30] sm:$0xf]
        %v6320 = vld [vmem:[#allocation14 + $0x34] sm:$0xf]
        %v6321 = vld [vmem:[#allocation14 + $0x38] sm:$0xf]
        %v6322 = vld [vmem:[#allocation14 + $0x3c] sm:$0xf]
        %v6323 = vpack.c.bf16 %v6171, %v6170
        %v6324 = vpack.c.bf16 %v6173, %v6172
        %v6325 = vpack.c.bf16 %v6175, %v6174
        %v6326 = vpack.c.bf16 %v6177, %v6176
        %v6327 = vpack.c.bf16 %v6179, %v6178
        %v6328 = vpack.c.bf16 %v6181, %v6180
        %v6329 = vpack.c.bf16 %v6183, %v6182
        %v6330 = vpack.c.bf16 %v6185, %v6184
        %v6347 = vunpack.c.l.b16 %v6307
        %v6348 = vunpack.c.l.b16 %v6308
        %v6349 = vunpack.c.l.b16 %v6309
        %v6350 = vunpack.c.l.b16 %v6310
        %v6351 = vunpack.c.l.b16 %v6311
        %v6352 = vunpack.c.l.b16 %v6312
        %v6353 = vunpack.c.l.b16 %v6313
        %v6354 = vunpack.c.l.b16 %v6314
        %v6355 = vunpack.c.l.b16 %v6315
        %v6356 = vunpack.c.l.b16 %v6316
        %v6357 = vunpack.c.l.b16 %v6317
        %v6358 = vunpack.c.l.b16 %v6318
        %v6359 = vunpack.c.l.b16 %v6319
        %v6360 = vunpack.c.l.b16 %v6320
        %v6361 = vunpack.c.l.b16 %v6321
        %v6362 = vunpack.c.l.b16 %v6322
        %v6363 = vpack.c.b16 %v6348, %v6347
        %v6364 = vpack.c.b16 %v6350, %v6349
        %v6365 = vpack.c.b16 %v6352, %v6351
        %v6366 = vpack.c.b16 %v6354, %v6353
        %v6367 = vpack.c.b16 %v6356, %v6355
        %v6368 = vpack.c.b16 %v6358, %v6357
        %v6369 = vpack.c.b16 %v6360, %v6359
        %v6370 = vpack.c.b16 %v6362, %v6361
        %6379 = vmatpush.bf16.msra.mxu0 %v6330
        %6380 = vmatpush.bf16.msra.mxu0 %v6329
        %6381 = vmatpush.bf16.msra.mxu0 %v6328
        %6382 = vmatpush.bf16.msra.mxu0 %v6327
        %6383 = vmatpush.bf16.msra.mxu0 %v6326
        %6384 = vmatpush.bf16.msra.mxu0 %v6325
        %6385 = vmatpush.bf16.msra.mxu0 %v6324
        %6386 = vmatpush.bf16.msra.mxu0 %v6323
        %6387 = vmatmul.bf16.gmra.mxu0 %v6363
        %v6388 = vpop.f32.mrf.mxu0
        %v6389 = vadd.f32 0.0, %v6388
        %v6390 = vpop.f32.mrf.mxu0
        %v6391 = vadd.f32 0.0, %v6390
        %6392 = vmatmul.bf16.gmra.mxu0 %v6364
        %v6393 = vpop.f32.mrf.mxu0
        %v6394 = vadd.f32 0.0, %v6393
        %v6395 = vpop.f32.mrf.mxu0
        %v6396 = vadd.f32 0.0, %v6395
        %6397 = vmatmul.bf16.gmra.mxu0 %v6365
        %v6398 = vpop.f32.mrf.mxu0
        %v6399 = vadd.f32 0.0, %v6398
        %v6400 = vpop.f32.mrf.mxu0
        %v6401 = vadd.f32 0.0, %v6400
        %6402 = vmatmul.bf16.gmra.mxu0 %v6366
        %v6403 = vpop.f32.mrf.mxu0
        %v6404 = vadd.f32 0.0, %v6403
        %v6405 = vpop.f32.mrf.mxu0
        %v6406 = vadd.f32 0.0, %v6405
        %6407 = vmatmul.bf16.gmra.mxu0 %v6367
        %v6408 = vpop.f32.mrf.mxu0
        %v6409 = vadd.f32 0.0, %v6408
        %v6410 = vpop.f32.mrf.mxu0
        %v6411 = vadd.f32 0.0, %v6410
        %6412 = vmatmul.bf16.gmra.mxu0 %v6368
        %v6413 = vpop.f32.mrf.mxu0
        %v6414 = vadd.f32 0.0, %v6413
        %v6415 = vpop.f32.mrf.mxu0
        %v6416 = vadd.f32 0.0, %v6415
        %6417 = vmatmul.bf16.gmra.mxu0 %v6369
        %v6418 = vpop.f32.mrf.mxu0
        %v6419 = vadd.f32 0.0, %v6418
        %v6420 = vpop.f32.mrf.mxu0
        %v6421 = vadd.f32 0.0, %v6420
        %6422 = vmatmul.bf16.gmra.mxu0 %v6370
        %v6423 = vpop.f32.mrf.mxu0
        %v6424 = vadd.f32 0.0, %v6423
        %v6425 = vpop.f32.mrf.mxu0
        %v6426 = vadd.f32 0.0, %v6425
        %6427 = vdwg.mxu0
        %v6428 = vld [vmem:[#allocation16] sm:$0xf]
        %v6429 = vld [vmem:[#allocation16 + $0x4] sm:$0xf]
        %v6430 = vld [vmem:[#allocation16 + $0x8] sm:$0xf]
        %v6431 = vld [vmem:[#allocation16 + $0xc] sm:$0xf]
        %v6432 = vld [vmem:[#allocation16 + $0x10] sm:$0xf]
        %v6433 = vld [vmem:[#allocation16 + $0x14] sm:$0xf]
        %v6434 = vld [vmem:[#allocation16 + $0x18] sm:$0xf]
        %v6435 = vld [vmem:[#allocation16 + $0x1c] sm:$0xf]
        %v6436 = vld [vmem:[#allocation16 + $0x20] sm:$0xf]
        %v6437 = vld [vmem:[#allocation16 + $0x24] sm:$0xf]
        %v6438 = vld [vmem:[#allocation16 + $0x28] sm:$0xf]
        %v6439 = vld [vmem:[#allocation16 + $0x2c] sm:$0xf]
        %v6440 = vld [vmem:[#allocation16 + $0x30] sm:$0xf]
        %v6441 = vld [vmem:[#allocation16 + $0x34] sm:$0xf]
        %v6442 = vld [vmem:[#allocation16 + $0x38] sm:$0xf]
        %v6443 = vld [vmem:[#allocation16 + $0x3c] sm:$0xf]
        %v6444 = vadd.f32 %v6106, %v6170
        %v6445 = vadd.f32 %v6107, %v6171
        %v6446 = vadd.f32 %v6108, %v6172
        %v6447 = vadd.f32 %v6109, %v6173
        %v6448 = vadd.f32 %v6110, %v6174
        %v6449 = vadd.f32 %v6111, %v6175
        %v6450 = vadd.f32 %v6112, %v6176
        %v6451 = vadd.f32 %v6113, %v6177
        %v6452 = vadd.f32 %v6114, %v6178
        %v6453 = vadd.f32 %v6115, %v6179
        %v6454 = vadd.f32 %v6116, %v6180
        %v6455 = vadd.f32 %v6117, %v6181
        %v6456 = vadd.f32 %v6118, %v6182
        %v6457 = vadd.f32 %v6119, %v6183
        %v6458 = vadd.f32 %v6120, %v6184
        %v6459 = vadd.f32 %v6121, %v6185
        %v6460 = vpack.c.bf16 %v6445, %v6444
        %v6461 = vpack.c.bf16 %v6447, %v6446
        %v6462 = vpack.c.bf16 %v6449, %v6448
        %v6463 = vpack.c.bf16 %v6451, %v6450
        %v6464 = vpack.c.bf16 %v6453, %v6452
        %v6465 = vpack.c.bf16 %v6455, %v6454
        %v6466 = vpack.c.bf16 %v6457, %v6456
        %v6467 = vpack.c.bf16 %v6459, %v6458
        %v6468 = vadd.f32 %v6268, %v6389
        %v6469 = vadd.f32 %v6270, %v6391
        %v6470 = vadd.f32 %v6273, %v6394
        %v6471 = vadd.f32 %v6275, %v6396
        %v6472 = vadd.f32 %v6278, %v6399
        %v6473 = vadd.f32 %v6280, %v6401
        %v6474 = vadd.f32 %v6283, %v6404
        %v6475 = vadd.f32 %v6285, %v6406
        %v6476 = vadd.f32 %v6288, %v6409
        %v6477 = vadd.f32 %v6290, %v6411
        %v6478 = vadd.f32 %v6293, %v6414
        %v6479 = vadd.f32 %v6295, %v6416
        %v6480 = vadd.f32 %v6298, %v6419
        %v6481 = vadd.f32 %v6300, %v6421
        %v6482 = vadd.f32 %v6303, %v6424
        %v6483 = vadd.f32 %v6305, %v6426
        %v6500 = vunpack.c.l.b16 %v6428
        %v6501 = vunpack.c.l.b16 %v6429
        %v6502 = vunpack.c.l.b16 %v6430
        %v6503 = vunpack.c.l.b16 %v6431
        %v6504 = vunpack.c.l.b16 %v6432
        %v6505 = vunpack.c.l.b16 %v6433
        %v6506 = vunpack.c.l.b16 %v6434
        %v6507 = vunpack.c.l.b16 %v6435
        %v6508 = vunpack.c.l.b16 %v6436
        %v6509 = vunpack.c.l.b16 %v6437
        %v6510 = vunpack.c.l.b16 %v6438
        %v6511 = vunpack.c.l.b16 %v6439
        %v6512 = vunpack.c.l.b16 %v6440
        %v6513 = vunpack.c.l.b16 %v6441
        %v6514 = vunpack.c.l.b16 %v6442
        %v6515 = vunpack.c.l.b16 %v6443
        %v6516 = vpack.c.b16 %v6501, %v6500
        %v6517 = vpack.c.b16 %v6503, %v6502
        %v6518 = vpack.c.b16 %v6505, %v6504
        %v6519 = vpack.c.b16 %v6507, %v6506
        %v6520 = vpack.c.b16 %v6509, %v6508
        %v6521 = vpack.c.b16 %v6511, %v6510
        %v6522 = vpack.c.b16 %v6513, %v6512
        %v6523 = vpack.c.b16 %v6515, %v6514
        %6532 = vmatpush.bf16.msra.mxu0 %v6467
        %6533 = vmatpush.bf16.msra.mxu0 %v6466
        %6534 = vmatpush.bf16.msra.mxu0 %v6465
        %6535 = vmatpush.bf16.msra.mxu0 %v6464
        %6536 = vmatpush.bf16.msra.mxu0 %v6463
        %6537 = vmatpush.bf16.msra.mxu0 %v6462
        %6538 = vmatpush.bf16.msra.mxu0 %v6461
        %6539 = vmatpush.bf16.msra.mxu0 %v6460
        %6540 = vmatmul.bf16.gmra.mxu0 %v6516
        %v6541 = vpop.f32.mrf.mxu0
        %v6542 = vadd.f32 %v6389, %v6541
        %v6543 = vpop.f32.mrf.mxu0
        %v6544 = vadd.f32 %v6391, %v6543
        %6545 = vmatmul.bf16.gmra.mxu0 %v6517
        %v6546 = vpop.f32.mrf.mxu0
        %v6547 = vadd.f32 %v6394, %v6546
        %v6548 = vpop.f32.mrf.mxu0
        %v6549 = vadd.f32 %v6396, %v6548
        %6550 = vmatmul.bf16.gmra.mxu0 %v6518
        %v6551 = vpop.f32.mrf.mxu0
        %v6552 = vadd.f32 %v6399, %v6551
        %v6553 = vpop.f32.mrf.mxu0
        %v6554 = vadd.f32 %v6401, %v6553
        %6555 = vmatmul.bf16.gmra.mxu0 %v6519
        %v6556 = vpop.f32.mrf.mxu0
        %v6557 = vadd.f32 %v6404, %v6556
        %v6558 = vpop.f32.mrf.mxu0
        %v6559 = vadd.f32 %v6406, %v6558
        %6560 = vmatmul.bf16.gmra.mxu0 %v6520
        %v6561 = vpop.f32.mrf.mxu0
        %v6562 = vadd.f32 %v6409, %v6561
        %v6563 = vpop.f32.mrf.mxu0
        %v6564 = vadd.f32 %v6411, %v6563
        %6565 = vmatmul.bf16.gmra.mxu0 %v6521
        %v6566 = vpop.f32.mrf.mxu0
        %v6567 = vadd.f32 %v6414, %v6566
        %v6568 = vpop.f32.mrf.mxu0
        %v6569 = vadd.f32 %v6416, %v6568
        %6570 = vmatmul.bf16.gmra.mxu0 %v6522
        %v6571 = vpop.f32.mrf.mxu0
        %v6572 = vadd.f32 %v6419, %v6571
        %v6573 = vpop.f32.mrf.mxu0
        %v6574 = vadd.f32 %v6421, %v6573
        %6575 = vmatmul.bf16.gmra.mxu0 %v6523
        %v6576 = vpop.f32.mrf.mxu0
        %v6577 = vadd.f32 %v6424, %v6576
        %v6578 = vpop.f32.mrf.mxu0
        %v6579 = vadd.f32 %v6426, %v6578
        %6580 = vdwg.mxu0
        %v6581 = vsub.f32 %v6542, %v6268
        %v6582 = vsub.f32 %v6544, %v6270
        %v6583 = vsub.f32 %v6547, %v6273
        %v6584 = vsub.f32 %v6549, %v6275
        %v6585 = vsub.f32 %v6552, %v6278
        %v6586 = vsub.f32 %v6554, %v6280
        %v6587 = vsub.f32 %v6557, %v6283
        %v6588 = vsub.f32 %v6559, %v6285
        %v6589 = vsub.f32 %v6562, %v6288
        %v6590 = vsub.f32 %v6564, %v6290
        %v6591 = vsub.f32 %v6567, %v6293
        %v6592 = vsub.f32 %v6569, %v6295
        %v6593 = vsub.f32 %v6572, %v6298
        %v6594 = vsub.f32 %v6574, %v6300
        %v6595 = vsub.f32 %v6577, %v6303
        %v6596 = vsub.f32 %v6579, %v6305
        %v6597 = vld [vmem:[#allocation17] sm:$0xf]
        %v6598 = vld [vmem:[#allocation17 + $0x4] sm:$0xf]
        %v6599 = vld [vmem:[#allocation17 + $0x8] sm:$0xf]
        %v6600 = vld [vmem:[#allocation17 + $0xc] sm:$0xf]
        %v6601 = vld [vmem:[#allocation17 + $0x10] sm:$0xf]
        %v6602 = vld [vmem:[#allocation17 + $0x14] sm:$0xf]
        %v6603 = vld [vmem:[#allocation17 + $0x18] sm:$0xf]
        %v6604 = vld [vmem:[#allocation17 + $0x1c] sm:$0xf]
        %v6605 = vld [vmem:[#allocation17 + $0x20] sm:$0xf]
        %v6606 = vld [vmem:[#allocation17 + $0x24] sm:$0xf]
        %v6607 = vld [vmem:[#allocation17 + $0x28] sm:$0xf]
        %v6608 = vld [vmem:[#allocation17 + $0x2c] sm:$0xf]
        %v6609 = vld [vmem:[#allocation17 + $0x30] sm:$0xf]
        %v6610 = vld [vmem:[#allocation17 + $0x34] sm:$0xf]
        %v6611 = vld [vmem:[#allocation17 + $0x38] sm:$0xf]
        %v6612 = vld [vmem:[#allocation17 + $0x3c] sm:$0xf]
        %v6613 = vpack.c.bf16 %v6469, %v6468
        %v6614 = vpack.c.bf16 %v6471, %v6470
        %v6615 = vpack.c.bf16 %v6473, %v6472
        %v6616 = vpack.c.bf16 %v6475, %v6474
        %v6617 = vpack.c.bf16 %v6477, %v6476
        %v6618 = vpack.c.bf16 %v6479, %v6478
        %v6619 = vpack.c.bf16 %v6481, %v6480
        %v6620 = vpack.c.bf16 %v6483, %v6482
        %v6637 = vunpack.c.l.b16 %v6597
        %v6638 = vunpack.c.l.b16 %v6598
        %v6639 = vunpack.c.l.b16 %v6599
        %v6640 = vunpack.c.l.b16 %v6600
        %v6641 = vunpack.c.l.b16 %v6601
        %v6642 = vunpack.c.l.b16 %v6602
        %v6643 = vunpack.c.l.b16 %v6603
        %v6644 = vunpack.c.l.b16 %v6604
        %v6645 = vunpack.c.l.b16 %v6605
        %v6646 = vunpack.c.l.b16 %v6606
        %v6647 = vunpack.c.l.b16 %v6607
        %v6648 = vunpack.c.l.b16 %v6608
        %v6649 = vunpack.c.l.b16 %v6609
        %v6650 = vunpack.c.l.b16 %v6610
        %v6651 = vunpack.c.l.b16 %v6611
        %v6652 = vunpack.c.l.b16 %v6612
        %v6653 = vpack.c.b16 %v6638, %v6637
        %v6654 = vpack.c.b16 %v6640, %v6639
        %v6655 = vpack.c.b16 %v6642, %v6641
        %v6656 = vpack.c.b16 %v6644, %v6643
        %v6657 = vpack.c.b16 %v6646, %v6645
        %v6658 = vpack.c.b16 %v6648, %v6647
        %v6659 = vpack.c.b16 %v6650, %v6649
        %v6660 = vpack.c.b16 %v6652, %v6651
        %6669 = vmatpush.bf16.msra.mxu0 %v6660
        %6670 = vmatpush.bf16.msra.mxu0 %v6659
        %6671 = vmatpush.bf16.msra.mxu0 %v6658
        %6672 = vmatpush.bf16.msra.mxu0 %v6657
        %6673 = vmatpush.bf16.msra.mxu0 %v6656
        %6674 = vmatpush.bf16.msra.mxu0 %v6655
        %6675 = vmatpush.bf16.msra.mxu0 %v6654
        %6676 = vmatpush.bf16.msra.mxu0 %v6653
        %6677 = vmatmul.bf16.gmra.mxu0 %v6613
        %v6678 = vpop.f32.mrf.mxu0
        %v6679 = vadd.f32 0.0, %v6678
        %v6680 = vpop.f32.mrf.mxu0
        %v6681 = vadd.f32 0.0, %v6680
        %6682 = vmatmul.bf16.gmra.mxu0 %v6614
        %v6683 = vpop.f32.mrf.mxu0
        %v6684 = vadd.f32 0.0, %v6683
        %v6685 = vpop.f32.mrf.mxu0
        %v6686 = vadd.f32 0.0, %v6685
        %6687 = vmatmul.bf16.gmra.mxu0 %v6615
        %v6688 = vpop.f32.mrf.mxu0
        %v6689 = vadd.f32 0.0, %v6688
        %v6690 = vpop.f32.mrf.mxu0
        %v6691 = vadd.f32 0.0, %v6690
        %6692 = vmatmul.bf16.gmra.mxu0 %v6616
        %v6693 = vpop.f32.mrf.mxu0
        %v6694 = vadd.f32 0.0, %v6693
        %v6695 = vpop.f32.mrf.mxu0
        %v6696 = vadd.f32 0.0, %v6695
        %6697 = vmatmul.bf16.gmra.mxu0 %v6617
        %v6698 = vpop.f32.mrf.mxu0
        %v6699 = vadd.f32 0.0, %v6698
        %v6700 = vpop.f32.mrf.mxu0
        %v6701 = vadd.f32 0.0, %v6700
        %6702 = vmatmul.bf16.gmra.mxu0 %v6618
        %v6703 = vpop.f32.mrf.mxu0
        %v6704 = vadd.f32 0.0, %v6703
        %v6705 = vpop.f32.mrf.mxu0
        %v6706 = vadd.f32 0.0, %v6705
        %6707 = vmatmul.bf16.gmra.mxu0 %v6619
        %v6708 = vpop.f32.mrf.mxu0
        %v6709 = vadd.f32 0.0, %v6708
        %v6710 = vpop.f32.mrf.mxu0
        %v6711 = vadd.f32 0.0, %v6710
        %6712 = vmatmul.bf16.gmra.mxu0 %v6620
        %v6713 = vpop.f32.mrf.mxu0
        %v6714 = vadd.f32 0.0, %v6713
        %v6715 = vpop.f32.mrf.mxu0
        %v6716 = vadd.f32 0.0, %v6715
        %6717 = vdwg.mxu0
        %v6718 = vld [vmem:[#allocation19] sm:$0xf]
        %v6719 = vld [vmem:[#allocation19 + $0x4] sm:$0xf]
        %v6720 = vld [vmem:[#allocation19 + $0x8] sm:$0xf]
        %v6721 = vld [vmem:[#allocation19 + $0xc] sm:$0xf]
        %v6722 = vld [vmem:[#allocation19 + $0x10] sm:$0xf]
        %v6723 = vld [vmem:[#allocation19 + $0x14] sm:$0xf]
        %v6724 = vld [vmem:[#allocation19 + $0x18] sm:$0xf]
        %v6725 = vld [vmem:[#allocation19 + $0x1c] sm:$0xf]
        %v6726 = vld [vmem:[#allocation19 + $0x20] sm:$0xf]
        %v6727 = vld [vmem:[#allocation19 + $0x24] sm:$0xf]
        %v6728 = vld [vmem:[#allocation19 + $0x28] sm:$0xf]
        %v6729 = vld [vmem:[#allocation19 + $0x2c] sm:$0xf]
        %v6730 = vld [vmem:[#allocation19 + $0x30] sm:$0xf]
        %v6731 = vld [vmem:[#allocation19 + $0x34] sm:$0xf]
        %v6732 = vld [vmem:[#allocation19 + $0x38] sm:$0xf]
        %v6733 = vld [vmem:[#allocation19 + $0x3c] sm:$0xf]
        %v6734 = vpack.c.bf16 %v6582, %v6581
        %v6735 = vpack.c.bf16 %v6584, %v6583
        %v6736 = vpack.c.bf16 %v6586, %v6585
        %v6737 = vpack.c.bf16 %v6588, %v6587
        %v6738 = vpack.c.bf16 %v6590, %v6589
        %v6739 = vpack.c.bf16 %v6592, %v6591
        %v6740 = vpack.c.bf16 %v6594, %v6593
        %v6741 = vpack.c.bf16 %v6596, %v6595
        %v6758 = vunpack.c.l.b16 %v6718
        %v6759 = vunpack.c.l.b16 %v6719
        %v6760 = vunpack.c.l.b16 %v6720
        %v6761 = vunpack.c.l.b16 %v6721
        %v6762 = vunpack.c.l.b16 %v6722
        %v6763 = vunpack.c.l.b16 %v6723
        %v6764 = vunpack.c.l.b16 %v6724
        %v6765 = vunpack.c.l.b16 %v6725
        %v6766 = vunpack.c.l.b16 %v6726
        %v6767 = vunpack.c.l.b16 %v6727
        %v6768 = vunpack.c.l.b16 %v6728
        %v6769 = vunpack.c.l.b16 %v6729
        %v6770 = vunpack.c.l.b16 %v6730
        %v6771 = vunpack.c.l.b16 %v6731
        %v6772 = vunpack.c.l.b16 %v6732
        %v6773 = vunpack.c.l.b16 %v6733
        %v6774 = vpack.c.b16 %v6759, %v6758
        %v6775 = vpack.c.b16 %v6761, %v6760
        %v6776 = vpack.c.b16 %v6763, %v6762
        %v6777 = vpack.c.b16 %v6765, %v6764
        %v6778 = vpack.c.b16 %v6767, %v6766
        %v6779 = vpack.c.b16 %v6769, %v6768
        %v6780 = vpack.c.b16 %v6771, %v6770
        %v6781 = vpack.c.b16 %v6773, %v6772
        %6790 = vmatpush.bf16.msra.mxu0 %v6781
        %6791 = vmatpush.bf16.msra.mxu0 %v6780
        %6792 = vmatpush.bf16.msra.mxu0 %v6779
        %6793 = vmatpush.bf16.msra.mxu0 %v6778
        %6794 = vmatpush.bf16.msra.mxu0 %v6777
        %6795 = vmatpush.bf16.msra.mxu0 %v6776
        %6796 = vmatpush.bf16.msra.mxu0 %v6775
        %6797 = vmatpush.bf16.msra.mxu0 %v6774
        %6798 = vmatmul.bf16.gmra.mxu0 %v6734
        %v6799 = vpop.f32.mrf.mxu0
        %v6800 = vadd.f32 0.0, %v6799
        %v6801 = vpop.f32.mrf.mxu0
        %v6802 = vadd.f32 0.0, %v6801
        %6803 = vmatmul.bf16.gmra.mxu0 %v6735
        %v6804 = vpop.f32.mrf.mxu0
        %v6805 = vadd.f32 0.0, %v6804
        %v6806 = vpop.f32.mrf.mxu0
        %v6807 = vadd.f32 0.0, %v6806
        %6808 = vmatmul.bf16.gmra.mxu0 %v6736
        %v6809 = vpop.f32.mrf.mxu0
        %v6810 = vadd.f32 0.0, %v6809
        %v6811 = vpop.f32.mrf.mxu0
        %v6812 = vadd.f32 0.0, %v6811
        %6813 = vmatmul.bf16.gmra.mxu0 %v6737
        %v6814 = vpop.f32.mrf.mxu0
        %v6815 = vadd.f32 0.0, %v6814
        %v6816 = vpop.f32.mrf.mxu0
        %v6817 = vadd.f32 0.0, %v6816
        %6818 = vmatmul.bf16.gmra.mxu0 %v6738
        %v6819 = vpop.f32.mrf.mxu0
        %v6820 = vadd.f32 0.0, %v6819
        %v6821 = vpop.f32.mrf.mxu0
        %v6822 = vadd.f32 0.0, %v6821
        %6823 = vmatmul.bf16.gmra.mxu0 %v6739
        %v6824 = vpop.f32.mrf.mxu0
        %v6825 = vadd.f32 0.0, %v6824
        %v6826 = vpop.f32.mrf.mxu0
        %v6827 = vadd.f32 0.0, %v6826
        %6828 = vmatmul.bf16.gmra.mxu0 %v6740
        %v6829 = vpop.f32.mrf.mxu0
        %v6830 = vadd.f32 0.0, %v6829
        %v6831 = vpop.f32.mrf.mxu0
        %v6832 = vadd.f32 0.0, %v6831
        %6833 = vmatmul.bf16.gmra.mxu0 %v6741
        %v6834 = vpop.f32.mrf.mxu0
        %v6835 = vadd.f32 0.0, %v6834
        %v6836 = vpop.f32.mrf.mxu0
        %v6837 = vadd.f32 0.0, %v6836
        %6838 = vdwg.mxu0
        %v6839 = vadd.f32 %v6468, %v6581
        %v6840 = vadd.f32 %v6469, %v6582
        %v6841 = vadd.f32 %v6470, %v6583
        %v6842 = vadd.f32 %v6471, %v6584
        %v6843 = vadd.f32 %v6472, %v6585
        %v6844 = vadd.f32 %v6473, %v6586
        %v6845 = vadd.f32 %v6474, %v6587
        %v6846 = vadd.f32 %v6475, %v6588
        %v6847 = vadd.f32 %v6476, %v6589
        %v6848 = vadd.f32 %v6477, %v6590
        %v6849 = vadd.f32 %v6478, %v6591
        %v6850 = vadd.f32 %v6479, %v6592
        %v6851 = vadd.f32 %v6480, %v6593
        %v6852 = vadd.f32 %v6481, %v6594
        %v6853 = vadd.f32 %v6482, %v6595
        %v6854 = vadd.f32 %v6483, %v6596
        %v6855 = vld [vmem:[#allocation20] sm:$0xf]
        %v6856 = vld [vmem:[#allocation20 + $0x4] sm:$0xf]
        %v6857 = vld [vmem:[#allocation20 + $0x8] sm:$0xf]
        %v6858 = vld [vmem:[#allocation20 + $0xc] sm:$0xf]
        %v6859 = vld [vmem:[#allocation20 + $0x10] sm:$0xf]
        %v6860 = vld [vmem:[#allocation20 + $0x14] sm:$0xf]
        %v6861 = vld [vmem:[#allocation20 + $0x18] sm:$0xf]
        %v6862 = vld [vmem:[#allocation20 + $0x1c] sm:$0xf]
        %v6863 = vld [vmem:[#allocation20 + $0x20] sm:$0xf]
        %v6864 = vld [vmem:[#allocation20 + $0x24] sm:$0xf]
        %v6865 = vld [vmem:[#allocation20 + $0x28] sm:$0xf]
        %v6866 = vld [vmem:[#allocation20 + $0x2c] sm:$0xf]
        %v6867 = vld [vmem:[#allocation20 + $0x30] sm:$0xf]
        %v6868 = vld [vmem:[#allocation20 + $0x34] sm:$0xf]
        %v6869 = vld [vmem:[#allocation20 + $0x38] sm:$0xf]
        %v6870 = vld [vmem:[#allocation20 + $0x3c] sm:$0xf]
        %v6871 = vpack.c.bf16 %v6840, %v6839
        %v6872 = vpack.c.bf16 %v6842, %v6841
        %v6873 = vpack.c.bf16 %v6844, %v6843
        %v6874 = vpack.c.bf16 %v6846, %v6845
        %v6875 = vpack.c.bf16 %v6848, %v6847
        %v6876 = vpack.c.bf16 %v6850, %v6849
        %v6877 = vpack.c.bf16 %v6852, %v6851
        %v6878 = vpack.c.bf16 %v6854, %v6853
        %v6879 = vadd.f32 %v6679, %v6800
        %v6880 = vadd.f32 %v6681, %v6802
        %v6881 = vadd.f32 %v6684, %v6805
        %v6882 = vadd.f32 %v6686, %v6807
        %v6883 = vadd.f32 %v6689, %v6810
        %v6884 = vadd.f32 %v6691, %v6812
        %v6885 = vadd.f32 %v6694, %v6815
        %v6886 = vadd.f32 %v6696, %v6817
        %v6887 = vadd.f32 %v6699, %v6820
        %v6888 = vadd.f32 %v6701, %v6822
        %v6889 = vadd.f32 %v6704, %v6825
        %v6890 = vadd.f32 %v6706, %v6827
        %v6891 = vadd.f32 %v6709, %v6830
        %v6892 = vadd.f32 %v6711, %v6832
        %v6893 = vadd.f32 %v6714, %v6835
        %v6894 = vadd.f32 %v6716, %v6837
        %v6911 = vunpack.c.l.b16 %v6855
        %v6912 = vunpack.c.l.b16 %v6856
        %v6913 = vunpack.c.l.b16 %v6857
        %v6914 = vunpack.c.l.b16 %v6858
        %v6915 = vunpack.c.l.b16 %v6859
        %v6916 = vunpack.c.l.b16 %v6860
        %v6917 = vunpack.c.l.b16 %v6861
        %v6918 = vunpack.c.l.b16 %v6862
        %v6919 = vunpack.c.l.b16 %v6863
        %v6920 = vunpack.c.l.b16 %v6864
        %v6921 = vunpack.c.l.b16 %v6865
        %v6922 = vunpack.c.l.b16 %v6866
        %v6923 = vunpack.c.l.b16 %v6867
        %v6924 = vunpack.c.l.b16 %v6868
        %v6925 = vunpack.c.l.b16 %v6869
        %v6926 = vunpack.c.l.b16 %v6870
        %v6927 = vpack.c.b16 %v6912, %v6911
        %v6928 = vpack.c.b16 %v6914, %v6913
        %v6929 = vpack.c.b16 %v6916, %v6915
        %v6930 = vpack.c.b16 %v6918, %v6917
        %v6931 = vpack.c.b16 %v6920, %v6919
        %v6932 = vpack.c.b16 %v6922, %v6921
        %v6933 = vpack.c.b16 %v6924, %v6923
        %v6934 = vpack.c.b16 %v6926, %v6925
        %6943 = vmatpush.bf16.msra.mxu0 %v6934
        %6944 = vmatpush.bf16.msra.mxu0 %v6933
        %6945 = vmatpush.bf16.msra.mxu0 %v6932
        %6946 = vmatpush.bf16.msra.mxu0 %v6931
        %6947 = vmatpush.bf16.msra.mxu0 %v6930
        %6948 = vmatpush.bf16.msra.mxu0 %v6929
        %6949 = vmatpush.bf16.msra.mxu0 %v6928
        %6950 = vmatpush.bf16.msra.mxu0 %v6927
        %6951 = vmatmul.bf16.gmra.mxu0 %v6871
        %v6952 = vpop.f32.mrf.mxu0
        %v6953 = vadd.f32 %v6800, %v6952
        %v6954 = vpop.f32.mrf.mxu0
        %v6955 = vadd.f32 %v6802, %v6954
        %6956 = vmatmul.bf16.gmra.mxu0 %v6872
        %v6957 = vpop.f32.mrf.mxu0
        %v6958 = vadd.f32 %v6805, %v6957
        %v6959 = vpop.f32.mrf.mxu0
        %v6960 = vadd.f32 %v6807, %v6959
        %6961 = vmatmul.bf16.gmra.mxu0 %v6873
        %v6962 = vpop.f32.mrf.mxu0
        %v6963 = vadd.f32 %v6810, %v6962
        %v6964 = vpop.f32.mrf.mxu0
        %v6965 = vadd.f32 %v6812, %v6964
        %6966 = vmatmul.bf16.gmra.mxu0 %v6874
        %v6967 = vpop.f32.mrf.mxu0
        %v6968 = vadd.f32 %v6815, %v6967
        %v6969 = vpop.f32.mrf.mxu0
        %v6970 = vadd.f32 %v6817, %v6969
        %6971 = vmatmul.bf16.gmra.mxu0 %v6875
        %v6972 = vpop.f32.mrf.mxu0
        %v6973 = vadd.f32 %v6820, %v6972
        %v6974 = vpop.f32.mrf.mxu0
        %v6975 = vadd.f32 %v6822, %v6974
        %6976 = vmatmul.bf16.gmra.mxu0 %v6876
        %v6977 = vpop.f32.mrf.mxu0
        %v6978 = vadd.f32 %v6825, %v6977
        %v6979 = vpop.f32.mrf.mxu0
        %v6980 = vadd.f32 %v6827, %v6979
        %6981 = vmatmul.bf16.gmra.mxu0 %v6877
        %v6982 = vpop.f32.mrf.mxu0
        %v6983 = vadd.f32 %v6830, %v6982
        %v6984 = vpop.f32.mrf.mxu0
        %v6985 = vadd.f32 %v6832, %v6984
        %6986 = vmatmul.bf16.gmra.mxu0 %v6878
        %v6987 = vpop.f32.mrf.mxu0
        %v6988 = vadd.f32 %v6835, %v6987
        %v6989 = vpop.f32.mrf.mxu0
        %v6990 = vadd.f32 %v6837, %v6989
        %6991 = vdwg.mxu0
        %v6992 = vsub.f32 %v6953, %v6679
        %v6993 = vsub.f32 %v6955, %v6681
        %v6994 = vsub.f32 %v6958, %v6684
        %v6995 = vsub.f32 %v6960, %v6686
        %v6996 = vsub.f32 %v6963, %v6689
        %v6997 = vsub.f32 %v6965, %v6691
        %v6998 = vsub.f32 %v6968, %v6694
        %v6999 = vsub.f32 %v6970, %v6696
        %v7000 = vsub.f32 %v6973, %v6699
        %v7001 = vsub.f32 %v6975, %v6701
        %v7002 = vsub.f32 %v6978, %v6704
        %v7003 = vsub.f32 %v6980, %v6706
        %v7004 = vsub.f32 %v6983, %v6709
        %v7005 = vsub.f32 %v6985, %v6711
        %v7006 = vsub.f32 %v6988, %v6714
        %v7007 = vsub.f32 %v6990, %v6716
        %v7008 = vmul.f32 %v6879, %v1082
        %v7009 = vmul.f32 %v6880, %v1083
        %v7010 = vmul.f32 %v6881, %v1084
        %v7011 = vmul.f32 %v6882, %v1085
        %v7012 = vmul.f32 %v6883, %v1086
        %v7013 = vmul.f32 %v6884, %v1087
        %v7014 = vmul.f32 %v6885, %v1088
        %v7015 = vmul.f32 %v6886, %v1089
        %v7016 = vmul.f32 %v6887, %v1090
        %v7017 = vmul.f32 %v6888, %v1091
        %v7018 = vmul.f32 %v6889, %v1092
        %v7019 = vmul.f32 %v6890, %v1093
        %v7020 = vmul.f32 %v6891, %v1094
        %v7021 = vmul.f32 %v6892, %v1095
        %v7022 = vmul.f32 %v6893, %v1096
        %v7023 = vmul.f32 %v6894, %v1097
        %v7024 = vmul.f32 %v6992, %v1098
        %v7025 = vmul.f32 %v6993, %v1099
        %v7026 = vmul.f32 %v6994, %v1100
        %v7027 = vmul.f32 %v6995, %v1101
        %v7028 = vmul.f32 %v6996, %v1102
        %v7029 = vmul.f32 %v6997, %v1103
        %v7030 = vmul.f32 %v6998, %v1104
        %v7031 = vmul.f32 %v6999, %v1105
        %v7032 = vmul.f32 %v7000, %v1106
        %v7033 = vmul.f32 %v7001, %v1107
        %v7034 = vmul.f32 %v7002, %v1108
        %v7035 = vmul.f32 %v7003, %v1109
        %v7036 = vmul.f32 %v7004, %v1110
        %v7037 = vmul.f32 %v7005, %v1111
        %v7038 = vmul.f32 %v7006, %v1112
        %v7039 = vmul.f32 %v7007, %v1113
        %v7040 = vsub.f32 %v7008, %v7024
        %v7041 = vsub.f32 %v7009, %v7025
        %v7042 = vsub.f32 %v7010, %v7026
        %v7043 = vsub.f32 %v7011, %v7027
        %v7044 = vsub.f32 %v7012, %v7028
        %v7045 = vsub.f32 %v7013, %v7029
        %v7046 = vsub.f32 %v7014, %v7030
        %v7047 = vsub.f32 %v7015, %v7031
        %v7048 = vsub.f32 %v7016, %v7032
        %v7049 = vsub.f32 %v7017, %v7033
        %v7050 = vsub.f32 %v7018, %v7034
        %v7051 = vsub.f32 %v7019, %v7035
        %v7052 = vsub.f32 %v7020, %v7036
        %v7053 = vsub.f32 %v7021, %v7037
        %v7054 = vsub.f32 %v7022, %v7038
        %v7055 = vsub.f32 %v7023, %v7039
        %v7056 = vmul.f32 %v6879, %v1098
        %v7057 = vmul.f32 %v6880, %v1099
        %v7058 = vmul.f32 %v6881, %v1100
        %v7059 = vmul.f32 %v6882, %v1101
        %v7060 = vmul.f32 %v6883, %v1102
        %v7061 = vmul.f32 %v6884, %v1103
        %v7062 = vmul.f32 %v6885, %v1104
        %v7063 = vmul.f32 %v6886, %v1105
        %v7064 = vmul.f32 %v6887, %v1106
        %v7065 = vmul.f32 %v6888, %v1107
        %v7066 = vmul.f32 %v6889, %v1108
        %v7067 = vmul.f32 %v6890, %v1109
        %v7068 = vmul.f32 %v6891, %v1110
        %v7069 = vmul.f32 %v6892, %v1111
        %v7070 = vmul.f32 %v6893, %v1112
        %v7071 = vmul.f32 %v6894, %v1113
        %v7072 = vmul.f32 %v6992, %v1082
        %v7073 = vmul.f32 %v6993, %v1083
        %v7074 = vmul.f32 %v6994, %v1084
        %v7075 = vmul.f32 %v6995, %v1085
        %v7076 = vmul.f32 %v6996, %v1086
        %v7077 = vmul.f32 %v6997, %v1087
        %v7078 = vmul.f32 %v6998, %v1088
        %v7079 = vmul.f32 %v6999, %v1089
        %v7080 = vmul.f32 %v7000, %v1090
        %v7081 = vmul.f32 %v7001, %v1091
        %v7082 = vmul.f32 %v7002, %v1092
        %v7083 = vmul.f32 %v7003, %v1093
        %v7084 = vmul.f32 %v7004, %v1094
        %v7085 = vmul.f32 %v7005, %v1095
        %v7086 = vmul.f32 %v7006, %v1096
        %v7087 = vmul.f32 %v7007, %v1097
        %v7088 = vadd.f32 %v7056, %v7072
        %v7089 = vadd.f32 %v7057, %v7073
        %v7090 = vadd.f32 %v7058, %v7074
        %v7091 = vadd.f32 %v7059, %v7075
        %v7092 = vadd.f32 %v7060, %v7076
        %v7093 = vadd.f32 %v7061, %v7077
        %v7094 = vadd.f32 %v7062, %v7078
        %v7095 = vadd.f32 %v7063, %v7079
        %v7096 = vadd.f32 %v7064, %v7080
        %v7097 = vadd.f32 %v7065, %v7081
        %v7098 = vadd.f32 %v7066, %v7082
        %v7099 = vadd.f32 %v7067, %v7083
        %v7100 = vadd.f32 %v7068, %v7084
        %v7101 = vadd.f32 %v7069, %v7085
        %v7102 = vadd.f32 %v7070, %v7086
        %v7103 = vadd.f32 %v7071, %v7087
        %v7104 = vand.u32 2147483647, %v7040
        %v7105 = vand.u32 2147483647, %v7041
        %v7106 = vand.u32 2147483647, %v7042
        %v7107 = vand.u32 2147483647, %v7043
        %v7108 = vand.u32 2147483647, %v7044
        %v7109 = vand.u32 2147483647, %v7045
        %v7110 = vand.u32 2147483647, %v7046
        %v7111 = vand.u32 2147483647, %v7047
        %v7112 = vand.u32 2147483647, %v7048
        %v7113 = vand.u32 2147483647, %v7049
        %v7114 = vand.u32 2147483647, %v7050
        %v7115 = vand.u32 2147483647, %v7051
        %v7116 = vand.u32 2147483647, %v7052
        %v7117 = vand.u32 2147483647, %v7053
        %v7118 = vand.u32 2147483647, %v7054
        %v7119 = vand.u32 2147483647, %v7055
        %v7120 = vand.u32 2147483647, %v7088
        %v7121 = vand.u32 2147483647, %v7089
        %v7122 = vand.u32 2147483647, %v7090
        %v7123 = vand.u32 2147483647, %v7091
        %v7124 = vand.u32 2147483647, %v7092
        %v7125 = vand.u32 2147483647, %v7093
        %v7126 = vand.u32 2147483647, %v7094
        %v7127 = vand.u32 2147483647, %v7095
        %v7128 = vand.u32 2147483647, %v7096
        %v7129 = vand.u32 2147483647, %v7097
        %v7130 = vand.u32 2147483647, %v7098
        %v7131 = vand.u32 2147483647, %v7099
        %v7132 = vand.u32 2147483647, %v7100
        %v7133 = vand.u32 2147483647, %v7101
        %v7134 = vand.u32 2147483647, %v7102
        %v7135 = vand.u32 2147483647, %v7103
        %v7136 = vmax.f32 %v7104, %v7120
        %v7137 = vmax.f32 %v7105, %v7121
        %v7138 = vmax.f32 %v7106, %v7122
        %v7139 = vmax.f32 %v7107, %v7123
        %v7140 = vmax.f32 %v7108, %v7124
        %v7141 = vmax.f32 %v7109, %v7125
        %v7142 = vmax.f32 %v7110, %v7126
        %v7143 = vmax.f32 %v7111, %v7127
        %v7144 = vmax.f32 %v7112, %v7128
        %v7145 = vmax.f32 %v7113, %v7129
        %v7146 = vmax.f32 %v7114, %v7130
        %v7147 = vmax.f32 %v7115, %v7131
        %v7148 = vmax.f32 %v7116, %v7132
        %v7149 = vmax.f32 %v7117, %v7133
        %v7150 = vmax.f32 %v7118, %v7134
        %v7151 = vmax.f32 %v7119, %v7135
        %v7152 = vmin.f32 %v7104, %v7120
        %v7153 = vmin.f32 %v7105, %v7121
        %v7154 = vmin.f32 %v7106, %v7122
        %v7155 = vmin.f32 %v7107, %v7123
        %v7156 = vmin.f32 %v7108, %v7124
        %v7157 = vmin.f32 %v7109, %v7125
        %v7158 = vmin.f32 %v7110, %v7126
        %v7159 = vmin.f32 %v7111, %v7127
        %v7160 = vmin.f32 %v7112, %v7128
        %v7161 = vmin.f32 %v7113, %v7129
        %v7162 = vmin.f32 %v7114, %v7130
        %v7163 = vmin.f32 %v7115, %v7131
        %v7164 = vmin.f32 %v7116, %v7132
        %v7165 = vmin.f32 %v7117, %v7133
        %v7166 = vmin.f32 %v7118, %v7134
        %v7167 = vmin.f32 %v7119, %v7135
        %v7168 = vmax.f32 %v7136, 1e-30
        %v7169 = vmax.f32 %v7137, 1e-30
        %v7170 = vmax.f32 %v7138, 1e-30
        %v7171 = vmax.f32 %v7139, 1e-30
        %v7172 = vmax.f32 %v7140, 1e-30
        %v7173 = vmax.f32 %v7141, 1e-30
        %v7174 = vmax.f32 %v7142, 1e-30
        %v7175 = vmax.f32 %v7143, 1e-30
        %v7176 = vmax.f32 %v7144, 1e-30
        %v7177 = vmax.f32 %v7145, 1e-30
        %v7178 = vmax.f32 %v7146, 1e-30
        %v7179 = vmax.f32 %v7147, 1e-30
        %v7180 = vmax.f32 %v7148, 1e-30
        %v7181 = vmax.f32 %v7149, 1e-30
        %v7182 = vmax.f32 %v7150, 1e-30
        %v7183 = vmax.f32 %v7151, 1e-30
        %v7184 = vrcp.pop %v7168
        %v7185 = vmul.f32 %v7168, %v7184
        %v7186 = vsub.f32 1.0, %v7185
        %v7187 = vmul.f32 %v7184, %v7186
        %v7188 = vadd.f32 %v7184, %v7187
        %vm7189 = vweird.f32 %v7168
        %vm7190 = vweird.f32 %v7184
        %vm7191 = vmor %vm7189, %vm7190
        %v7192 = vsel %vm7191, %v7184, %v7188
        %v7193 = vand.u32 2147483647, %v7168
        %vm7194 = vcmp.eq.f32.partialorder %v7193, 8.507059e+37
        %v7195 = vand.u32 %v7168, 2147483648
        %v7196 = vor.u32 1.1754944e-38, %v7195
        %v7197 = vsel %vm7194, %v7196, %v7192
        %v7198 = vmul.f32 %v7152, %v7197
        %v7199 = vrcp.pop %v7169
        %v7200 = vmul.f32 %v7169, %v7199
        %v7201 = vsub.f32 1.0, %v7200
        %v7202 = vmul.f32 %v7199, %v7201
        %v7203 = vadd.f32 %v7199, %v7202
        %vm7204 = vweird.f32 %v7169
        %vm7205 = vweird.f32 %v7199
        %vm7206 = vmor %vm7204, %vm7205
        %v7207 = vsel %vm7206, %v7199, %v7203
        %v7208 = vand.u32 2147483647, %v7169
        %vm7209 = vcmp.eq.f32.partialorder %v7208, 8.507059e+37
        %v7210 = vand.u32 %v7169, 2147483648
        %v7211 = vor.u32 1.1754944e-38, %v7210
        %v7212 = vsel %vm7209, %v7211, %v7207
        %v7213 = vmul.f32 %v7153, %v7212
        %v7214 = vrcp.pop %v7170
        %v7215 = vmul.f32 %v7170, %v7214
        %v7216 = vsub.f32 1.0, %v7215
        %v7217 = vmul.f32 %v7214, %v7216
        %v7218 = vadd.f32 %v7214, %v7217
        %vm7219 = vweird.f32 %v7170
        %vm7220 = vweird.f32 %v7214
        %vm7221 = vmor %vm7219, %vm7220
        %v7222 = vsel %vm7221, %v7214, %v7218
        %v7223 = vand.u32 2147483647, %v7170
        %vm7224 = vcmp.eq.f32.partialorder %v7223, 8.507059e+37
        %v7225 = vand.u32 %v7170, 2147483648
        %v7226 = vor.u32 1.1754944e-38, %v7225
        %v7227 = vsel %vm7224, %v7226, %v7222
        %v7228 = vmul.f32 %v7154, %v7227
        %v7229 = vrcp.pop %v7171
        %v7230 = vmul.f32 %v7171, %v7229
        %v7231 = vsub.f32 1.0, %v7230
        %v7232 = vmul.f32 %v7229, %v7231
        %v7233 = vadd.f32 %v7229, %v7232
        %vm7234 = vweird.f32 %v7171
        %vm7235 = vweird.f32 %v7229
        %vm7236 = vmor %vm7234, %vm7235
        %v7237 = vsel %vm7236, %v7229, %v7233
        %v7238 = vand.u32 2147483647, %v7171
        %vm7239 = vcmp.eq.f32.partialorder %v7238, 8.507059e+37
        %v7240 = vand.u32 %v7171, 2147483648
        %v7241 = vor.u32 1.1754944e-38, %v7240
        %v7242 = vsel %vm7239, %v7241, %v7237
        %v7243 = vmul.f32 %v7155, %v7242
        %v7244 = vrcp.pop %v7172
        %v7245 = vmul.f32 %v7172, %v7244
        %v7246 = vsub.f32 1.0, %v7245
        %v7247 = vmul.f32 %v7244, %v7246
        %v7248 = vadd.f32 %v7244, %v7247
        %vm7249 = vweird.f32 %v7172
        %vm7250 = vweird.f32 %v7244
        %vm7251 = vmor %vm7249, %vm7250
        %v7252 = vsel %vm7251, %v7244, %v7248
        %v7253 = vand.u32 2147483647, %v7172
        %vm7254 = vcmp.eq.f32.partialorder %v7253, 8.507059e+37
        %v7255 = vand.u32 %v7172, 2147483648
        %v7256 = vor.u32 1.1754944e-38, %v7255
        %v7257 = vsel %vm7254, %v7256, %v7252
        %v7258 = vmul.f32 %v7156, %v7257
        %v7259 = vrcp.pop %v7173
        %v7260 = vmul.f32 %v7173, %v7259
        %v7261 = vsub.f32 1.0, %v7260
        %v7262 = vmul.f32 %v7259, %v7261
        %v7263 = vadd.f32 %v7259, %v7262
        %vm7264 = vweird.f32 %v7173
        %vm7265 = vweird.f32 %v7259
        %vm7266 = vmor %vm7264, %vm7265
        %v7267 = vsel %vm7266, %v7259, %v7263
        %v7268 = vand.u32 2147483647, %v7173
        %vm7269 = vcmp.eq.f32.partialorder %v7268, 8.507059e+37
        %v7270 = vand.u32 %v7173, 2147483648
        %v7271 = vor.u32 1.1754944e-38, %v7270
        %v7272 = vsel %vm7269, %v7271, %v7267
        %v7273 = vmul.f32 %v7157, %v7272
        %v7274 = vrcp.pop %v7174
        %v7275 = vmul.f32 %v7174, %v7274
        %v7276 = vsub.f32 1.0, %v7275
        %v7277 = vmul.f32 %v7274, %v7276
        %v7278 = vadd.f32 %v7274, %v7277
        %vm7279 = vweird.f32 %v7174
        %vm7280 = vweird.f32 %v7274
        %vm7281 = vmor %vm7279, %vm7280
        %v7282 = vsel %vm7281, %v7274, %v7278
        %v7283 = vand.u32 2147483647, %v7174
        %vm7284 = vcmp.eq.f32.partialorder %v7283, 8.507059e+37
        %v7285 = vand.u32 %v7174, 2147483648
        %v7286 = vor.u32 1.1754944e-38, %v7285
        %v7287 = vsel %vm7284, %v7286, %v7282
        %v7288 = vmul.f32 %v7158, %v7287
        %v7289 = vrcp.pop %v7175
        %v7290 = vmul.f32 %v7175, %v7289
        %v7291 = vsub.f32 1.0, %v7290
        %v7292 = vmul.f32 %v7289, %v7291
        %v7293 = vadd.f32 %v7289, %v7292
        %vm7294 = vweird.f32 %v7175
        %vm7295 = vweird.f32 %v7289
        %vm7296 = vmor %vm7294, %vm7295
        %v7297 = vsel %vm7296, %v7289, %v7293
        %v7298 = vand.u32 2147483647, %v7175
        %vm7299 = vcmp.eq.f32.partialorder %v7298, 8.507059e+37
        %v7300 = vand.u32 %v7175, 2147483648
        %v7301 = vor.u32 1.1754944e-38, %v7300
        %v7302 = vsel %vm7299, %v7301, %v7297
        %v7303 = vmul.f32 %v7159, %v7302
        %v7304 = vrcp.pop %v7176
        %v7305 = vmul.f32 %v7176, %v7304
        %v7306 = vsub.f32 1.0, %v7305
        %v7307 = vmul.f32 %v7304, %v7306
        %v7308 = vadd.f32 %v7304, %v7307
        %vm7309 = vweird.f32 %v7176
        %vm7310 = vweird.f32 %v7304
        %vm7311 = vmor %vm7309, %vm7310
        %v7312 = vsel %vm7311, %v7304, %v7308
        %v7313 = vand.u32 2147483647, %v7176
        %vm7314 = vcmp.eq.f32.partialorder %v7313, 8.507059e+37
        %v7315 = vand.u32 %v7176, 2147483648
        %v7316 = vor.u32 1.1754944e-38, %v7315
        %v7317 = vsel %vm7314, %v7316, %v7312
        %v7318 = vmul.f32 %v7160, %v7317
        %v7319 = vrcp.pop %v7177
        %v7320 = vmul.f32 %v7177, %v7319
        %v7321 = vsub.f32 1.0, %v7320
        %v7322 = vmul.f32 %v7319, %v7321
        %v7323 = vadd.f32 %v7319, %v7322
        %vm7324 = vweird.f32 %v7177
        %vm7325 = vweird.f32 %v7319
        %vm7326 = vmor %vm7324, %vm7325
        %v7327 = vsel %vm7326, %v7319, %v7323
        %v7328 = vand.u32 2147483647, %v7177
        %vm7329 = vcmp.eq.f32.partialorder %v7328, 8.507059e+37
        %v7330 = vand.u32 %v7177, 2147483648
        %v7331 = vor.u32 1.1754944e-38, %v7330
        %v7332 = vsel %vm7329, %v7331, %v7327
        %v7333 = vmul.f32 %v7161, %v7332
        %v7334 = vrcp.pop %v7178
        %v7335 = vmul.f32 %v7178, %v7334
        %v7336 = vsub.f32 1.0, %v7335
        %v7337 = vmul.f32 %v7334, %v7336
        %v7338 = vadd.f32 %v7334, %v7337
        %vm7339 = vweird.f32 %v7178
        %vm7340 = vweird.f32 %v7334
        %vm7341 = vmor %vm7339, %vm7340
        %v7342 = vsel %vm7341, %v7334, %v7338
        %v7343 = vand.u32 2147483647, %v7178
        %vm7344 = vcmp.eq.f32.partialorder %v7343, 8.507059e+37
        %v7345 = vand.u32 %v7178, 2147483648
        %v7346 = vor.u32 1.1754944e-38, %v7345
        %v7347 = vsel %vm7344, %v7346, %v7342
        %v7348 = vmul.f32 %v7162, %v7347
        %v7349 = vrcp.pop %v7179
        %v7350 = vmul.f32 %v7179, %v7349
        %v7351 = vsub.f32 1.0, %v7350
        %v7352 = vmul.f32 %v7349, %v7351
        %v7353 = vadd.f32 %v7349, %v7352
        %vm7354 = vweird.f32 %v7179
        %vm7355 = vweird.f32 %v7349
        %vm7356 = vmor %vm7354, %vm7355
        %v7357 = vsel %vm7356, %v7349, %v7353
        %v7358 = vand.u32 2147483647, %v7179
        %vm7359 = vcmp.eq.f32.partialorder %v7358, 8.507059e+37
        %v7360 = vand.u32 %v7179, 2147483648
        %v7361 = vor.u32 1.1754944e-38, %v7360
        %v7362 = vsel %vm7359, %v7361, %v7357
        %v7363 = vmul.f32 %v7163, %v7362
        %v7364 = vrcp.pop %v7180
        %v7365 = vmul.f32 %v7180, %v7364
        %v7366 = vsub.f32 1.0, %v7365
        %v7367 = vmul.f32 %v7364, %v7366
        %v7368 = vadd.f32 %v7364, %v7367
        %vm7369 = vweird.f32 %v7180
        %vm7370 = vweird.f32 %v7364
        %vm7371 = vmor %vm7369, %vm7370
        %v7372 = vsel %vm7371, %v7364, %v7368
        %v7373 = vand.u32 2147483647, %v7180
        %vm7374 = vcmp.eq.f32.partialorder %v7373, 8.507059e+37
        %v7375 = vand.u32 %v7180, 2147483648
        %v7376 = vor.u32 1.1754944e-38, %v7375
        %v7377 = vsel %vm7374, %v7376, %v7372
        %v7378 = vmul.f32 %v7164, %v7377
        %v7379 = vrcp.pop %v7181
        %v7380 = vmul.f32 %v7181, %v7379
        %v7381 = vsub.f32 1.0, %v7380
        %v7382 = vmul.f32 %v7379, %v7381
        %v7383 = vadd.f32 %v7379, %v7382
        %vm7384 = vweird.f32 %v7181
        %vm7385 = vweird.f32 %v7379
        %vm7386 = vmor %vm7384, %vm7385
        %v7387 = vsel %vm7386, %v7379, %v7383
        %v7388 = vand.u32 2147483647, %v7181
        %vm7389 = vcmp.eq.f32.partialorder %v7388, 8.507059e+37
        %v7390 = vand.u32 %v7181, 2147483648
        %v7391 = vor.u32 1.1754944e-38, %v7390
        %v7392 = vsel %vm7389, %v7391, %v7387
        %v7393 = vmul.f32 %v7165, %v7392
        %v7394 = vrcp.pop %v7182
        %v7395 = vmul.f32 %v7182, %v7394
        %v7396 = vsub.f32 1.0, %v7395
        %v7397 = vmul.f32 %v7394, %v7396
        %v7398 = vadd.f32 %v7394, %v7397
        %vm7399 = vweird.f32 %v7182
        %vm7400 = vweird.f32 %v7394
        %vm7401 = vmor %vm7399, %vm7400
        %v7402 = vsel %vm7401, %v7394, %v7398
        %v7403 = vand.u32 2147483647, %v7182
        %vm7404 = vcmp.eq.f32.partialorder %v7403, 8.507059e+37
        %v7405 = vand.u32 %v7182, 2147483648
        %v7406 = vor.u32 1.1754944e-38, %v7405
        %v7407 = vsel %vm7404, %v7406, %v7402
        %v7408 = vmul.f32 %v7166, %v7407
        %v7409 = vrcp.pop %v7183
        %v7410 = vmul.f32 %v7183, %v7409
        %v7411 = vsub.f32 1.0, %v7410
        %v7412 = vmul.f32 %v7409, %v7411
        %v7413 = vadd.f32 %v7409, %v7412
        %vm7414 = vweird.f32 %v7183
        %vm7415 = vweird.f32 %v7409
        %vm7416 = vmor %vm7414, %vm7415
        %v7417 = vsel %vm7416, %v7409, %v7413
        %v7418 = vand.u32 2147483647, %v7183
        %vm7419 = vcmp.eq.f32.partialorder %v7418, 8.507059e+37
        %v7420 = vand.u32 %v7183, 2147483648
        %v7421 = vor.u32 1.1754944e-38, %v7420
        %v7422 = vsel %vm7419, %v7421, %v7417
        %v7423 = vmul.f32 %v7167, %v7422
        %v7424 = vmul.f32 %v7198, %v7198
        %v7425 = vmul.f32 %v7213, %v7213
        %v7426 = vmul.f32 %v7228, %v7228
        %v7427 = vmul.f32 %v7243, %v7243
        %v7428 = vmul.f32 %v7258, %v7258
        %v7429 = vmul.f32 %v7273, %v7273
        %v7430 = vmul.f32 %v7288, %v7288
        %v7431 = vmul.f32 %v7303, %v7303
        %v7432 = vmul.f32 %v7318, %v7318
        %v7433 = vmul.f32 %v7333, %v7333
        %v7434 = vmul.f32 %v7348, %v7348
        %v7435 = vmul.f32 %v7363, %v7363
        %v7436 = vmul.f32 %v7378, %v7378
        %v7437 = vmul.f32 %v7393, %v7393
        %v7438 = vmul.f32 %v7408, %v7408
        %v7439 = vmul.f32 %v7423, %v7423
        %v7440 = vmul.f32 %v7424, 0.002823639
        %v7441 = vmul.f32 %v7425, 0.002823639
        %v7442 = vmul.f32 %v7426, 0.002823639
        %v7443 = vmul.f32 %v7427, 0.002823639
        %v7444 = vmul.f32 %v7428, 0.002823639
        %v7445 = vmul.f32 %v7429, 0.002823639
        %v7446 = vmul.f32 %v7430, 0.002823639
        %v7447 = vmul.f32 %v7431, 0.002823639
        %v7448 = vmul.f32 %v7432, 0.002823639
        %v7449 = vmul.f32 %v7433, 0.002823639
        %v7450 = vmul.f32 %v7434, 0.002823639
        %v7451 = vmul.f32 %v7435, 0.002823639
        %v7452 = vmul.f32 %v7436, 0.002823639
        %v7453 = vmul.f32 %v7437, 0.002823639
        %v7454 = vmul.f32 %v7438, 0.002823639
        %v7455 = vmul.f32 %v7439, 0.002823639
        %v7456 = vadd.f32 %v7440, -0.015956903
        %v7457 = vadd.f32 %v7441, -0.015956903
        %v7458 = vadd.f32 %v7442, -0.015956903
        %v7459 = vadd.f32 %v7443, -0.015956903
        %v7460 = vadd.f32 %v7444, -0.015956903
        %v7461 = vadd.f32 %v7445, -0.015956903
        %v7462 = vadd.f32 %v7446, -0.015956903
        %v7463 = vadd.f32 %v7447, -0.015956903
        %v7464 = vadd.f32 %v7448, -0.015956903
        %v7465 = vadd.f32 %v7449, -0.015956903
        %v7466 = vadd.f32 %v7450, -0.015956903
        %v7467 = vadd.f32 %v7451, -0.015956903
        %v7468 = vadd.f32 %v7452, -0.015956903
        %v7469 = vadd.f32 %v7453, -0.015956903
        %v7470 = vadd.f32 %v7454, -0.015956903
        %v7471 = vadd.f32 %v7455, -0.015956903
        %v7472 = vmul.f32 %v7456, %v7424
        %v7473 = vmul.f32 %v7457, %v7425
        %v7474 = vmul.f32 %v7458, %v7426
        %v7475 = vmul.f32 %v7459, %v7427
        %v7476 = vmul.f32 %v7460, %v7428
        %v7477 = vmul.f32 %v7461, %v7429
        %v7478 = vmul.f32 %v7462, %v7430
        %v7479 = vmul.f32 %v7463, %v7431
        %v7480 = vmul.f32 %v7464, %v7432
        %v7481 = vmul.f32 %v7465, %v7433
        %v7482 = vmul.f32 %v7466, %v7434
        %v7483 = vmul.f32 %v7467, %v7435
        %v7484 = vmul.f32 %v7468, %v7436
        %v7485 = vmul.f32 %v7469, %v7437
        %v7486 = vmul.f32 %v7470, %v7438
        %v7487 = vmul.f32 %v7471, %v7439
        %v7488 = vadd.f32 %v7472, 0.04250499
        %v7489 = vadd.f32 %v7473, 0.04250499
        %v7490 = vadd.f32 %v7474, 0.04250499
        %v7491 = vadd.f32 %v7475, 0.04250499
        %v7492 = vadd.f32 %v7476, 0.04250499
        %v7493 = vadd.f32 %v7477, 0.04250499
        %v7494 = vadd.f32 %v7478, 0.04250499
        %v7495 = vadd.f32 %v7479, 0.04250499
        %v7496 = vadd.f32 %v7480, 0.04250499
        %v7497 = vadd.f32 %v7481, 0.04250499
        %v7498 = vadd.f32 %v7482, 0.04250499
        %v7499 = vadd.f32 %v7483, 0.04250499
        %v7500 = vadd.f32 %v7484, 0.04250499
        %v7501 = vadd.f32 %v7485, 0.04250499
        %v7502 = vadd.f32 %v7486, 0.04250499
        %v7503 = vadd.f32 %v7487, 0.04250499
        %v7504 = vmul.f32 %v7488, %v7424
        %v7505 = vmul.f32 %v7489, %v7425
        %v7506 = vmul.f32 %v7490, %v7426
        %v7507 = vmul.f32 %v7491, %v7427
        %v7508 = vmul.f32 %v7492, %v7428
        %v7509 = vmul.f32 %v7493, %v7429
        %v7510 = vmul.f32 %v7494, %v7430
        %v7511 = vmul.f32 %v7495, %v7431
        %v7512 = vmul.f32 %v7496, %v7432
        %v7513 = vmul.f32 %v7497, %v7433
        %v7514 = vmul.f32 %v7498, %v7434
        %v7515 = vmul.f32 %v7499, %v7435
        %v7516 = vmul.f32 %v7500, %v7436
        %v7517 = vmul.f32 %v7501, %v7437
        %v7518 = vmul.f32 %v7502, %v7438
        %v7519 = vmul.f32 %v7503, %v7439
        %v7520 = vadd.f32 %v7504, -0.07489009
        %v7521 = vadd.f32 %v7505, -0.07489009
        %v7522 = vadd.f32 %v7506, -0.07489009
        %v7523 = vadd.f32 %v7507, -0.07489009
        %v7524 = vadd.f32 %v7508, -0.07489009
        %v7525 = vadd.f32 %v7509, -0.07489009
        %v7526 = vadd.f32 %v7510, -0.07489009
        %v7527 = vadd.f32 %v7511, -0.07489009
        %v7528 = vadd.f32 %v7512, -0.07489009
        %v7529 = vadd.f32 %v7513, -0.07489009
        %v7530 = vadd.f32 %v7514, -0.07489009
        %v7531 = vadd.f32 %v7515, -0.07489009
        %v7532 = vadd.f32 %v7516, -0.07489009
        %v7533 = vadd.f32 %v7517, -0.07489009
        %v7534 = vadd.f32 %v7518, -0.07489009
        %v7535 = vadd.f32 %v7519, -0.07489009
        %v7536 = vmul.f32 %v7520, %v7424
        %v7537 = vmul.f32 %v7521, %v7425
        %v7538 = vmul.f32 %v7522, %v7426
        %v7539 = vmul.f32 %v7523, %v7427
        %v7540 = vmul.f32 %v7524, %v7428
        %v7541 = vmul.f32 %v7525, %v7429
        %v7542 = vmul.f32 %v7526, %v7430
        %v7543 = vmul.f32 %v7527, %v7431
        %v7544 = vmul.f32 %v7528, %v7432
        %v7545 = vmul.f32 %v7529, %v7433
        %v7546 = vmul.f32 %v7530, %v7434
        %v7547 = vmul.f32 %v7531, %v7435
        %v7548 = vmul.f32 %v7532, %v7436
        %v7549 = vmul.f32 %v7533, %v7437
        %v7550 = vmul.f32 %v7534, %v7438
        %v7551 = vmul.f32 %v7535, %v7439
        %v7552 = vadd.f32 %v7536, 0.10634793
        %v7553 = vadd.f32 %v7537, 0.10634793
        %v7554 = vadd.f32 %v7538, 0.10634793
        %v7555 = vadd.f32 %v7539, 0.10634793
        %v7556 = vadd.f32 %v7540, 0.10634793
        %v7557 = vadd.f32 %v7541, 0.10634793
        %v7558 = vadd.f32 %v7542, 0.10634793
        %v7559 = vadd.f32 %v7543, 0.10634793
        %v7560 = vadd.f32 %v7544, 0.10634793
        %v7561 = vadd.f32 %v7545, 0.10634793
        %v7562 = vadd.f32 %v7546, 0.10634793
        %v7563 = vadd.f32 %v7547, 0.10634793
        %v7564 = vadd.f32 %v7548, 0.10634793
        %v7565 = vadd.f32 %v7549, 0.10634793
        %v7566 = vadd.f32 %v7550, 0.10634793
        %v7567 = vadd.f32 %v7551, 0.10634793
        %v7568 = vmul.f32 %v7552, %v7424
        %v7569 = vmul.f32 %v7553, %v7425
        %v7570 = vmul.f32 %v7554, %v7426
        %v7571 = vmul.f32 %v7555, %v7427
        %v7572 = vmul.f32 %v7556, %v7428
        %v7573 = vmul.f32 %v7557, %v7429
        %v7574 = vmul.f32 %v7558, %v7430
        %v7575 = vmul.f32 %v7559, %v7431
        %v7576 = vmul.f32 %v7560, %v7432
        %v7577 = vmul.f32 %v7561, %v7433
        %v7578 = vmul.f32 %v7562, %v7434
        %v7579 = vmul.f32 %v7563, %v7435
        %v7580 = vmul.f32 %v7564, %v7436
        %v7581 = vmul.f32 %v7565, %v7437
        %v7582 = vmul.f32 %v7566, %v7438
        %v7583 = vmul.f32 %v7567, %v7439
        %v7584 = vadd.f32 %v7568, -0.14202736
        %v7585 = vadd.f32 %v7569, -0.14202736
        %v7586 = vadd.f32 %v7570, -0.14202736
        %v7587 = vadd.f32 %v7571, -0.14202736
        %v7588 = vadd.f32 %v7572, -0.14202736
        %v7589 = vadd.f32 %v7573, -0.14202736
        %v7590 = vadd.f32 %v7574, -0.14202736
        %v7591 = vadd.f32 %v7575, -0.14202736
        %v7592 = vadd.f32 %v7576, -0.14202736
        %v7593 = vadd.f32 %v7577, -0.14202736
        %v7594 = vadd.f32 %v7578, -0.14202736
        %v7595 = vadd.f32 %v7579, -0.14202736
        %v7596 = vadd.f32 %v7580, -0.14202736
        %v7597 = vadd.f32 %v7581, -0.14202736
        %v7598 = vadd.f32 %v7582, -0.14202736
        %v7599 = vadd.f32 %v7583, -0.14202736
        %v7600 = vmul.f32 %v7584, %v7424
        %v7601 = vmul.f32 %v7585, %v7425
        %v7602 = vmul.f32 %v7586, %v7426
        %v7603 = vmul.f32 %v7587, %v7427
        %v7604 = vmul.f32 %v7588, %v7428
        %v7605 = vmul.f32 %v7589, %v7429
        %v7606 = vmul.f32 %v7590, %v7430
        %v7607 = vmul.f32 %v7591, %v7431
        %v7608 = vmul.f32 %v7592, %v7432
        %v7609 = vmul.f32 %v7593, %v7433
        %v7610 = vmul.f32 %v7594, %v7434
        %v7611 = vmul.f32 %v7595, %v7435
        %v7612 = vmul.f32 %v7596, %v7436
        %v7613 = vmul.f32 %v7597, %v7437
        %v7614 = vmul.f32 %v7598, %v7438
        %v7615 = vmul.f32 %v7599, %v7439
        %v7616 = vadd.f32 %v7600, 0.19992696
        %v7617 = vadd.f32 %v7601, 0.19992696
        %v7618 = vadd.f32 %v7602, 0.19992696
        %v7619 = vadd.f32 %v7603, 0.19992696
        %v7620 = vadd.f32 %v7604, 0.19992696
        %v7621 = vadd.f32 %v7605, 0.19992696
        %v7622 = vadd.f32 %v7606, 0.19992696
        %v7623 = vadd.f32 %v7607, 0.19992696
        %v7624 = vadd.f32 %v7608, 0.19992696
        %v7625 = vadd.f32 %v7609, 0.19992696
        %v7626 = vadd.f32 %v7610, 0.19992696
        %v7627 = vadd.f32 %v7611, 0.19992696
        %v7628 = vadd.f32 %v7612, 0.19992696
        %v7629 = vadd.f32 %v7613, 0.19992696
        %v7630 = vadd.f32 %v7614, 0.19992696
        %v7631 = vadd.f32 %v7615, 0.19992696
        %v7632 = vmul.f32 %v7616, %v7424
        %v7633 = vmul.f32 %v7617, %v7425
        %v7634 = vmul.f32 %v7618, %v7426
        %v7635 = vmul.f32 %v7619, %v7427
        %v7636 = vmul.f32 %v7620, %v7428
        %v7637 = vmul.f32 %v7621, %v7429
        %v7638 = vmul.f32 %v7622, %v7430
        %v7639 = vmul.f32 %v7623, %v7431
        %v7640 = vmul.f32 %v7624, %v7432
        %v7641 = vmul.f32 %v7625, %v7433
        %v7642 = vmul.f32 %v7626, %v7434
        %v7643 = vmul.f32 %v7627, %v7435
        %v7644 = vmul.f32 %v7628, %v7436
        %v7645 = vmul.f32 %v7629, %v7437
        %v7646 = vmul.f32 %v7630, %v7438
        %v7647 = vmul.f32 %v7631, %v7439
        %v7648 = vadd.f32 %v7632, -0.33333102
        %v7649 = vadd.f32 %v7633, -0.33333102
        %v7650 = vadd.f32 %v7634, -0.33333102
        %v7651 = vadd.f32 %v7635, -0.33333102
        %v7652 = vadd.f32 %v7636, -0.33333102
        %v7653 = vadd.f32 %v7637, -0.33333102
        %v7654 = vadd.f32 %v7638, -0.33333102
        %v7655 = vadd.f32 %v7639, -0.33333102
        %v7656 = vadd.f32 %v7640, -0.33333102
        %v7657 = vadd.f32 %v7641, -0.33333102
        %v7658 = vadd.f32 %v7642, -0.33333102
        %v7659 = vadd.f32 %v7643, -0.33333102
        %v7660 = vadd.f32 %v7644, -0.33333102
        %v7661 = vadd.f32 %v7645, -0.33333102
        %v7662 = vadd.f32 %v7646, -0.33333102
        %v7663 = vadd.f32 %v7647, -0.33333102
        %v7664 = vmul.f32 %v7424, %v7648
        %v7665 = vmul.f32 %v7425, %v7649
        %v7666 = vmul.f32 %v7426, %v7650
        %v7667 = vmul.f32 %v7427, %v7651
        %v7668 = vmul.f32 %v7428, %v7652
        %v7669 = vmul.f32 %v7429, %v7653
        %v7670 = vmul.f32 %v7430, %v7654
        %v7671 = vmul.f32 %v7431, %v7655
        %v7672 = vmul.f32 %v7432, %v7656
        %v7673 = vmul.f32 %v7433, %v7657
        %v7674 = vmul.f32 %v7434, %v7658
        %v7675 = vmul.f32 %v7435, %v7659
        %v7676 = vmul.f32 %v7436, %v7660
        %v7677 = vmul.f32 %v7437, %v7661
        %v7678 = vmul.f32 %v7438, %v7662
        %v7679 = vmul.f32 %v7439, %v7663
        %v7680 = vmul.f32 %v7198, %v7664
        %v7681 = vmul.f32 %v7213, %v7665
        %v7682 = vmul.f32 %v7228, %v7666
        %v7683 = vmul.f32 %v7243, %v7667
        %v7684 = vmul.f32 %v7258, %v7668
        %v7685 = vmul.f32 %v7273, %v7669
        %v7686 = vmul.f32 %v7288, %v7670
        %v7687 = vmul.f32 %v7303, %v7671
        %v7688 = vmul.f32 %v7318, %v7672
        %v7689 = vmul.f32 %v7333, %v7673
        %v7690 = vmul.f32 %v7348, %v7674
        %v7691 = vmul.f32 %v7363, %v7675
        %v7692 = vmul.f32 %v7378, %v7676
        %v7693 = vmul.f32 %v7393, %v7677
        %v7694 = vmul.f32 %v7408, %v7678
        %v7695 = vmul.f32 %v7423, %v7679
        %v7696 = vadd.f32 %v7198, %v7680
        %v7697 = vadd.f32 %v7213, %v7681
        %v7698 = vadd.f32 %v7228, %v7682
        %v7699 = vadd.f32 %v7243, %v7683
        %v7700 = vadd.f32 %v7258, %v7684
        %v7701 = vadd.f32 %v7273, %v7685
        %v7702 = vadd.f32 %v7288, %v7686
        %v7703 = vadd.f32 %v7303, %v7687
        %v7704 = vadd.f32 %v7318, %v7688
        %v7705 = vadd.f32 %v7333, %v7689
        %v7706 = vadd.f32 %v7348, %v7690
        %v7707 = vadd.f32 %v7363, %v7691
        %v7708 = vadd.f32 %v7378, %v7692
        %v7709 = vadd.f32 %v7393, %v7693
        %v7710 = vadd.f32 %v7408, %v7694
        %v7711 = vadd.f32 %v7423, %v7695
        %vm7712 = vcmp.gt.f32.partialorder %v7120, %v7104
        %vm7713 = vcmp.gt.f32.partialorder %v7121, %v7105
        %vm7714 = vcmp.gt.f32.partialorder %v7122, %v7106
        %vm7715 = vcmp.gt.f32.partialorder %v7123, %v7107
        %vm7716 = vcmp.gt.f32.partialorder %v7124, %v7108
        %vm7717 = vcmp.gt.f32.partialorder %v7125, %v7109
        %vm7718 = vcmp.gt.f32.partialorder %v7126, %v7110
        %vm7719 = vcmp.gt.f32.partialorder %v7127, %v7111
        %vm7720 = vcmp.gt.f32.partialorder %v7128, %v7112
        %vm7721 = vcmp.gt.f32.partialorder %v7129, %v7113
        %vm7722 = vcmp.gt.f32.partialorder %v7130, %v7114
        %vm7723 = vcmp.gt.f32.partialorder %v7131, %v7115
        %vm7724 = vcmp.gt.f32.partialorder %v7132, %v7116
        %vm7725 = vcmp.gt.f32.partialorder %v7133, %v7117
        %vm7726 = vcmp.gt.f32.partialorder %v7134, %v7118
        %vm7727 = vcmp.gt.f32.partialorder %v7135, %v7119
        %v7728 = vsub.f32 1.5707964, %v7696
        %v7729 = vsub.f32 1.5707964, %v7697
        %v7730 = vsub.f32 1.5707964, %v7698
        %v7731 = vsub.f32 1.5707964, %v7699
        %v7732 = vsub.f32 1.5707964, %v7700
        %v7733 = vsub.f32 1.5707964, %v7701
        %v7734 = vsub.f32 1.5707964, %v7702
        %v7735 = vsub.f32 1.5707964, %v7703
        %v7736 = vsub.f32 1.5707964, %v7704
        %v7737 = vsub.f32 1.5707964, %v7705
        %v7738 = vsub.f32 1.5707964, %v7706
        %v7739 = vsub.f32 1.5707964, %v7707
        %v7740 = vsub.f32 1.5707964, %v7708
        %v7741 = vsub.f32 1.5707964, %v7709
        %v7742 = vsub.f32 1.5707964, %v7710
        %v7743 = vsub.f32 1.5707964, %v7711
        %v7744 = vsel %vm7712, %v7728, %v7696
        %v7745 = vsel %vm7713, %v7729, %v7697
        %v7746 = vsel %vm7714, %v7730, %v7698
        %v7747 = vsel %vm7715, %v7731, %v7699
        %v7748 = vsel %vm7716, %v7732, %v7700
        %v7749 = vsel %vm7717, %v7733, %v7701
        %v7750 = vsel %vm7718, %v7734, %v7702
        %v7751 = vsel %vm7719, %v7735, %v7703
        %v7752 = vsel %vm7720, %v7736, %v7704
        %v7753 = vsel %vm7721, %v7737, %v7705
        %v7754 = vsel %vm7722, %v7738, %v7706
        %v7755 = vsel %vm7723, %v7739, %v7707
        %v7756 = vsel %vm7724, %v7740, %v7708
        %v7757 = vsel %vm7725, %v7741, %v7709
        %v7758 = vsel %vm7726, %v7742, %v7710
        %v7759 = vsel %vm7727, %v7743, %v7711
        %vm7760 = vcmp.lt.f32.partialorder %v7040, 0.0
        %vm7761 = vcmp.lt.f32.partialorder %v7041, 0.0
        %vm7762 = vcmp.lt.f32.partialorder %v7042, 0.0
        %vm7763 = vcmp.lt.f32.partialorder %v7043, 0.0
        %vm7764 = vcmp.lt.f32.partialorder %v7044, 0.0
        %vm7765 = vcmp.lt.f32.partialorder %v7045, 0.0
        %vm7766 = vcmp.lt.f32.partialorder %v7046, 0.0
        %vm7767 = vcmp.lt.f32.partialorder %v7047, 0.0
        %vm7768 = vcmp.lt.f32.partialorder %v7048, 0.0
        %vm7769 = vcmp.lt.f32.partialorder %v7049, 0.0
        %vm7770 = vcmp.lt.f32.partialorder %v7050, 0.0
        %vm7771 = vcmp.lt.f32.partialorder %v7051, 0.0
        %vm7772 = vcmp.lt.f32.partialorder %v7052, 0.0
        %vm7773 = vcmp.lt.f32.partialorder %v7053, 0.0
        %vm7774 = vcmp.lt.f32.partialorder %v7054, 0.0
        %vm7775 = vcmp.lt.f32.partialorder %v7055, 0.0
        %v7776 = vsub.f32 3.1415927, %v7744
        %v7777 = vsub.f32 3.1415927, %v7745
        %v7778 = vsub.f32 3.1415927, %v7746
        %v7779 = vsub.f32 3.1415927, %v7747
        %v7780 = vsub.f32 3.1415927, %v7748
        %v7781 = vsub.f32 3.1415927, %v7749
        %v7782 = vsub.f32 3.1415927, %v7750
        %v7783 = vsub.f32 3.1415927, %v7751
        %v7784 = vsub.f32 3.1415927, %v7752
        %v7785 = vsub.f32 3.1415927, %v7753
        %v7786 = vsub.f32 3.1415927, %v7754
        %v7787 = vsub.f32 3.1415927, %v7755
        %v7788 = vsub.f32 3.1415927, %v7756
        %v7789 = vsub.f32 3.1415927, %v7757
        %v7790 = vsub.f32 3.1415927, %v7758
        %v7791 = vsub.f32 3.1415927, %v7759
        %v7792 = vsel %vm7760, %v7776, %v7744
        %v7793 = vsel %vm7761, %v7777, %v7745
        %v7794 = vsel %vm7762, %v7778, %v7746
        %v7795 = vsel %vm7763, %v7779, %v7747
        %v7796 = vsel %vm7764, %v7780, %v7748
        %v7797 = vsel %vm7765, %v7781, %v7749
        %v7798 = vsel %vm7766, %v7782, %v7750
        %v7799 = vsel %vm7767, %v7783, %v7751
        %v7800 = vsel %vm7768, %v7784, %v7752
        %v7801 = vsel %vm7769, %v7785, %v7753
        %v7802 = vsel %vm7770, %v7786, %v7754
        %v7803 = vsel %vm7771, %v7787, %v7755
        %v7804 = vsel %vm7772, %v7788, %v7756
        %v7805 = vsel %vm7773, %v7789, %v7757
        %v7806 = vsel %vm7774, %v7790, %v7758
        %v7807 = vsel %vm7775, %v7791, %v7759
        %vm7808 = vcmp.lt.f32.partialorder %v7088, 0.0
        %vm7809 = vcmp.lt.f32.partialorder %v7089, 0.0
        %vm7810 = vcmp.lt.f32.partialorder %v7090, 0.0
        %vm7811 = vcmp.lt.f32.partialorder %v7091, 0.0
        %vm7812 = vcmp.lt.f32.partialorder %v7092, 0.0
        %vm7813 = vcmp.lt.f32.partialorder %v7093, 0.0
        %vm7814 = vcmp.lt.f32.partialorder %v7094, 0.0
        %vm7815 = vcmp.lt.f32.partialorder %v7095, 0.0
        %vm7816 = vcmp.lt.f32.partialorder %v7096, 0.0
        %vm7817 = vcmp.lt.f32.partialorder %v7097, 0.0
        %vm7818 = vcmp.lt.f32.partialorder %v7098, 0.0
        %vm7819 = vcmp.lt.f32.partialorder %v7099, 0.0
        %vm7820 = vcmp.lt.f32.partialorder %v7100, 0.0
        %vm7821 = vcmp.lt.f32.partialorder %v7101, 0.0
        %vm7822 = vcmp.lt.f32.partialorder %v7102, 0.0
        %vm7823 = vcmp.lt.f32.partialorder %v7103, 0.0
        %v7824 = vsub.f32 0.0, %v7792
        %v7825 = vsub.f32 0.0, %v7793
        %v7826 = vsub.f32 0.0, %v7794
        %v7827 = vsub.f32 0.0, %v7795
        %v7828 = vsub.f32 0.0, %v7796
        %v7829 = vsub.f32 0.0, %v7797
        %v7830 = vsub.f32 0.0, %v7798
        %v7831 = vsub.f32 0.0, %v7799
        %v7832 = vsub.f32 0.0, %v7800
        %v7833 = vsub.f32 0.0, %v7801
        %v7834 = vsub.f32 0.0, %v7802
        %v7835 = vsub.f32 0.0, %v7803
        %v7836 = vsub.f32 0.0, %v7804
        %v7837 = vsub.f32 0.0, %v7805
        %v7838 = vsub.f32 0.0, %v7806
        %v7839 = vsub.f32 0.0, %v7807
        %v7840 = vsel %vm7808, %v7824, %v7792
        %v7841 = vsel %vm7809, %v7825, %v7793
        %v7842 = vsel %vm7810, %v7826, %v7794
        %v7843 = vsel %vm7811, %v7827, %v7795
        %v7844 = vsel %vm7812, %v7828, %v7796
        %v7845 = vsel %vm7813, %v7829, %v7797
        %v7846 = vsel %vm7814, %v7830, %v7798
        %v7847 = vsel %vm7815, %v7831, %v7799
        %v7848 = vsel %vm7816, %v7832, %v7800
        %v7849 = vsel %vm7817, %v7833, %v7801
        %v7850 = vsel %vm7818, %v7834, %v7802
        %v7851 = vsel %vm7819, %v7835, %v7803
        %v7852 = vsel %vm7820, %v7836, %v7804
        %v7853 = vsel %vm7821, %v7837, %v7805
        %v7854 = vsel %vm7822, %v7838, %v7806
        %v7855 = vsel %vm7823, %v7839, %v7807
        %7856 = vst [vmem:[%s984] sm:$0xff] %v7840
        %7857 = vst [vmem:[%s984 + $0x8] sm:$0xff] %v7841
        %7858 = vst [vmem:[%s984 + $0x10] sm:$0xff] %v7842
        %7859 = vst [vmem:[%s984 + $0x18] sm:$0xff] %v7843
        %7860 = vst [vmem:[%s984 + $0x20] sm:$0xff] %v7844
        %7861 = vst [vmem:[%s984 + $0x28] sm:$0xff] %v7845
        %7862 = vst [vmem:[%s984 + $0x30] sm:$0xff] %v7846
        %7863 = vst [vmem:[%s984 + $0x38] sm:$0xff] %v7847
        %7864 = vst [vmem:[%s984 + $0x40] sm:$0xff] %v7848
        %7865 = vst [vmem:[%s984 + $0x48] sm:$0xff] %v7849
        %7866 = vst [vmem:[%s984 + $0x50] sm:$0xff] %v7850
        %7867 = vst [vmem:[%s984 + $0x58] sm:$0xff] %v7851
        %7868 = vst [vmem:[%s984 + $0x60] sm:$0xff] %v7852
        %7869 = vst [vmem:[%s984 + $0x68] sm:$0xff] %v7853
        %7870 = vst [vmem:[%s984 + $0x70] sm:$0xff] %v7854
        %7871 = vst [vmem:[%s984 + $0x78] sm:$0xff] %v7855
        %v7872 = vmul.f32 %v6879, %v6879
        %v7873 = vmul.f32 %v6880, %v6880
        %v7874 = vmul.f32 %v6881, %v6881
        %v7875 = vmul.f32 %v6882, %v6882
        %v7876 = vmul.f32 %v6883, %v6883
        %v7877 = vmul.f32 %v6884, %v6884
        %v7878 = vmul.f32 %v6885, %v6885
        %v7879 = vmul.f32 %v6886, %v6886
        %v7880 = vmul.f32 %v6887, %v6887
        %v7881 = vmul.f32 %v6888, %v6888
        %v7882 = vmul.f32 %v6889, %v6889
        %v7883 = vmul.f32 %v6890, %v6890
        %v7884 = vmul.f32 %v6891, %v6891
        %v7885 = vmul.f32 %v6892, %v6892
        %v7886 = vmul.f32 %v6893, %v6893
        %v7887 = vmul.f32 %v6894, %v6894
        %v7888 = vmul.f32 %v6992, %v6992
        %v7889 = vmul.f32 %v6993, %v6993
        %v7890 = vmul.f32 %v6994, %v6994
        %v7891 = vmul.f32 %v6995, %v6995
        %v7892 = vmul.f32 %v6996, %v6996
        %v7893 = vmul.f32 %v6997, %v6997
        %v7894 = vmul.f32 %v6998, %v6998
        %v7895 = vmul.f32 %v6999, %v6999
        %v7896 = vmul.f32 %v7000, %v7000
        %v7897 = vmul.f32 %v7001, %v7001
        %v7898 = vmul.f32 %v7002, %v7002
        %v7899 = vmul.f32 %v7003, %v7003
        %v7900 = vmul.f32 %v7004, %v7004
        %v7901 = vmul.f32 %v7005, %v7005
        %v7902 = vmul.f32 %v7006, %v7006
        %v7903 = vmul.f32 %v7007, %v7007
        %v7904 = vadd.f32 %v7872, %v7888
        %v7905 = vadd.f32 %v7873, %v7889
        %v7906 = vadd.f32 %v7874, %v7890
        %v7907 = vadd.f32 %v7875, %v7891
        %v7908 = vadd.f32 %v7876, %v7892
        %v7909 = vadd.f32 %v7877, %v7893
        %v7910 = vadd.f32 %v7878, %v7894
        %v7911 = vadd.f32 %v7879, %v7895
        %v7912 = vadd.f32 %v7880, %v7896
        %v7913 = vadd.f32 %v7881, %v7897
        %v7914 = vadd.f32 %v7882, %v7898
        %v7915 = vadd.f32 %v7883, %v7899
        %v7916 = vadd.f32 %v7884, %v7900
        %v7917 = vadd.f32 %v7885, %v7901
        %v7918 = vadd.f32 %v7886, %v7902
        %v7919 = vadd.f32 %v7887, %v7903
        %v7920 = vmax.f32 %v7904, 1e-30
        %v7921 = vmax.f32 %v7905, 1e-30
        %v7922 = vmax.f32 %v7906, 1e-30
        %v7923 = vmax.f32 %v7907, 1e-30
        %v7924 = vmax.f32 %v7908, 1e-30
        %v7925 = vmax.f32 %v7909, 1e-30
        %v7926 = vmax.f32 %v7910, 1e-30
        %v7927 = vmax.f32 %v7911, 1e-30
        %v7928 = vmax.f32 %v7912, 1e-30
        %v7929 = vmax.f32 %v7913, 1e-30
        %v7930 = vmax.f32 %v7914, 1e-30
        %v7931 = vmax.f32 %v7915, 1e-30
        %v7932 = vmax.f32 %v7916, 1e-30
        %v7933 = vmax.f32 %v7917, 1e-30
        %v7934 = vmax.f32 %v7918, 1e-30
        %v7935 = vmax.f32 %v7919, 1e-30
        %v7936 = vrsqrt.pop %v7920
        %v7937 = vmul.f32 %v7936, %v7920
        %v7938 = vmul.f32 %v7937, %v7936
        %v7939 = vmul.f32 0.5, %v7938
        %v7940 = vsub.f32 1.5, %v7939
        %v7941 = vmul.f32 %v7936, %v7940
        %vm7942 = vweird.f32 %v7920
        %vm7943 = vweird.f32 %v7936
        %vm7944 = vmor %vm7942, %vm7943
        %v7945 = vsel %vm7944, %v7936, %v7941
        %v7946 = vrsqrt.pop %v7921
        %v7947 = vmul.f32 %v7946, %v7921
        %v7948 = vmul.f32 %v7947, %v7946
        %v7949 = vmul.f32 0.5, %v7948
        %v7950 = vsub.f32 1.5, %v7949
        %v7951 = vmul.f32 %v7946, %v7950
        %vm7952 = vweird.f32 %v7921
        %vm7953 = vweird.f32 %v7946
        %vm7954 = vmor %vm7952, %vm7953
        %v7955 = vsel %vm7954, %v7946, %v7951
        %v7956 = vrsqrt.pop %v7922
        %v7957 = vmul.f32 %v7956, %v7922
        %v7958 = vmul.f32 %v7957, %v7956
        %v7959 = vmul.f32 0.5, %v7958
        %v7960 = vsub.f32 1.5, %v7959
        %v7961 = vmul.f32 %v7956, %v7960
        %vm7962 = vweird.f32 %v7922
        %vm7963 = vweird.f32 %v7956
        %vm7964 = vmor %vm7962, %vm7963
        %v7965 = vsel %vm7964, %v7956, %v7961
        %v7966 = vrsqrt.pop %v7923
        %v7967 = vmul.f32 %v7966, %v7923
        %v7968 = vmul.f32 %v7967, %v7966
        %v7969 = vmul.f32 0.5, %v7968
        %v7970 = vsub.f32 1.5, %v7969
        %v7971 = vmul.f32 %v7966, %v7970
        %vm7972 = vweird.f32 %v7923
        %vm7973 = vweird.f32 %v7966
        %vm7974 = vmor %vm7972, %vm7973
        %v7975 = vsel %vm7974, %v7966, %v7971
        %v7976 = vrsqrt.pop %v7924
        %v7977 = vmul.f32 %v7976, %v7924
        %v7978 = vmul.f32 %v7977, %v7976
        %v7979 = vmul.f32 0.5, %v7978
        %v7980 = vsub.f32 1.5, %v7979
        %v7981 = vmul.f32 %v7976, %v7980
        %vm7982 = vweird.f32 %v7924
        %vm7983 = vweird.f32 %v7976
        %vm7984 = vmor %vm7982, %vm7983
        %v7985 = vsel %vm7984, %v7976, %v7981
        %v7986 = vrsqrt.pop %v7925
        %v7987 = vmul.f32 %v7986, %v7925
        %v7988 = vmul.f32 %v7987, %v7986
        %v7989 = vmul.f32 0.5, %v7988
        %v7990 = vsub.f32 1.5, %v7989
        %v7991 = vmul.f32 %v7986, %v7990
        %vm7992 = vweird.f32 %v7925
        %vm7993 = vweird.f32 %v7986
        %vm7994 = vmor %vm7992, %vm7993
        %v7995 = vsel %vm7994, %v7986, %v7991
        %v7996 = vrsqrt.pop %v7926
        %v7997 = vmul.f32 %v7996, %v7926
        %v7998 = vmul.f32 %v7997, %v7996
        %v7999 = vmul.f32 0.5, %v7998
        %v8000 = vsub.f32 1.5, %v7999
        %v8001 = vmul.f32 %v7996, %v8000
        %vm8002 = vweird.f32 %v7926
        %vm8003 = vweird.f32 %v7996
        %vm8004 = vmor %vm8002, %vm8003
        %v8005 = vsel %vm8004, %v7996, %v8001
        %v8006 = vrsqrt.pop %v7927
        %v8007 = vmul.f32 %v8006, %v7927
        %v8008 = vmul.f32 %v8007, %v8006
        %v8009 = vmul.f32 0.5, %v8008
        %v8010 = vsub.f32 1.5, %v8009
        %v8011 = vmul.f32 %v8006, %v8010
        %vm8012 = vweird.f32 %v7927
        %vm8013 = vweird.f32 %v8006
        %vm8014 = vmor %vm8012, %vm8013
        %v8015 = vsel %vm8014, %v8006, %v8011
        %v8016 = vrsqrt.pop %v7928
        %v8017 = vmul.f32 %v8016, %v7928
        %v8018 = vmul.f32 %v8017, %v8016
        %v8019 = vmul.f32 0.5, %v8018
        %v8020 = vsub.f32 1.5, %v8019
        %v8021 = vmul.f32 %v8016, %v8020
        %vm8022 = vweird.f32 %v7928
        %vm8023 = vweird.f32 %v8016
        %vm8024 = vmor %vm8022, %vm8023
        %v8025 = vsel %vm8024, %v8016, %v8021
        %v8026 = vrsqrt.pop %v7929
        %v8027 = vmul.f32 %v8026, %v7929
        %v8028 = vmul.f32 %v8027, %v8026
        %v8029 = vmul.f32 0.5, %v8028
        %v8030 = vsub.f32 1.5, %v8029
        %v8031 = vmul.f32 %v8026, %v8030
        %vm8032 = vweird.f32 %v7929
        %vm8033 = vweird.f32 %v8026
        %vm8034 = vmor %vm8032, %vm8033
        %v8035 = vsel %vm8034, %v8026, %v8031
        %v8036 = vrsqrt.pop %v7930
        %v8037 = vmul.f32 %v8036, %v7930
        %v8038 = vmul.f32 %v8037, %v8036
        %v8039 = vmul.f32 0.5, %v8038
        %v8040 = vsub.f32 1.5, %v8039
        %v8041 = vmul.f32 %v8036, %v8040
        %vm8042 = vweird.f32 %v7930
        %vm8043 = vweird.f32 %v8036
        %vm8044 = vmor %vm8042, %vm8043
        %v8045 = vsel %vm8044, %v8036, %v8041
        %v8046 = vrsqrt.pop %v7931
        %v8047 = vmul.f32 %v8046, %v7931
        %v8048 = vmul.f32 %v8047, %v8046
        %v8049 = vmul.f32 0.5, %v8048
        %v8050 = vsub.f32 1.5, %v8049
        %v8051 = vmul.f32 %v8046, %v8050
        %vm8052 = vweird.f32 %v7931
        %vm8053 = vweird.f32 %v8046
        %vm8054 = vmor %vm8052, %vm8053
        %v8055 = vsel %vm8054, %v8046, %v8051
        %v8056 = vrsqrt.pop %v7932
        %v8057 = vmul.f32 %v8056, %v7932
        %v8058 = vmul.f32 %v8057, %v8056
        %v8059 = vmul.f32 0.5, %v8058
        %v8060 = vsub.f32 1.5, %v8059
        %v8061 = vmul.f32 %v8056, %v8060
        %vm8062 = vweird.f32 %v7932
        %vm8063 = vweird.f32 %v8056
        %vm8064 = vmor %vm8062, %vm8063
        %v8065 = vsel %vm8064, %v8056, %v8061
        %v8066 = vrsqrt.pop %v7933
        %v8067 = vmul.f32 %v8066, %v7933
        %v8068 = vmul.f32 %v8067, %v8066
        %v8069 = vmul.f32 0.5, %v8068
        %v8070 = vsub.f32 1.5, %v8069
        %v8071 = vmul.f32 %v8066, %v8070
        %vm8072 = vweird.f32 %v7933
        %vm8073 = vweird.f32 %v8066
        %vm8074 = vmor %vm8072, %vm8073
        %v8075 = vsel %vm8074, %v8066, %v8071
        %v8076 = vrsqrt.pop %v7934
        %v8077 = vmul.f32 %v8076, %v7934
        %v8078 = vmul.f32 %v8077, %v8076
        %v8079 = vmul.f32 0.5, %v8078
        %v8080 = vsub.f32 1.5, %v8079
        %v8081 = vmul.f32 %v8076, %v8080
        %vm8082 = vweird.f32 %v7934
        %vm8083 = vweird.f32 %v8076
        %vm8084 = vmor %vm8082, %vm8083
        %v8085 = vsel %vm8084, %v8076, %v8081
        %v8086 = vrsqrt.pop %v7935
        %v8087 = vmul.f32 %v8086, %v7935
        %v8088 = vmul.f32 %v8087, %v8086
        %v8089 = vmul.f32 0.5, %v8088
        %v8090 = vsub.f32 1.5, %v8089
        %v8091 = vmul.f32 %v8086, %v8090
        %vm8092 = vweird.f32 %v7935
        %vm8093 = vweird.f32 %v8086
        %vm8094 = vmor %vm8092, %vm8093
        %v8095 = vsel %vm8094, %v8086, %v8091
        %vm8096 = vcmp.eq.f32.partialorder %v7904, 0.0
        %vm8097 = vcmp.eq.f32.partialorder %v7905, 0.0
        %vm8098 = vcmp.eq.f32.partialorder %v7906, 0.0
        %vm8099 = vcmp.eq.f32.partialorder %v7907, 0.0
        %vm8100 = vcmp.eq.f32.partialorder %v7908, 0.0
        %vm8101 = vcmp.eq.f32.partialorder %v7909, 0.0
        %vm8102 = vcmp.eq.f32.partialorder %v7910, 0.0
        %vm8103 = vcmp.eq.f32.partialorder %v7911, 0.0
        %vm8104 = vcmp.eq.f32.partialorder %v7912, 0.0
        %vm8105 = vcmp.eq.f32.partialorder %v7913, 0.0
        %vm8106 = vcmp.eq.f32.partialorder %v7914, 0.0
        %vm8107 = vcmp.eq.f32.partialorder %v7915, 0.0
        %vm8108 = vcmp.eq.f32.partialorder %v7916, 0.0
        %vm8109 = vcmp.eq.f32.partialorder %v7917, 0.0
        %vm8110 = vcmp.eq.f32.partialorder %v7918, 0.0
        %vm8111 = vcmp.eq.f32.partialorder %v7919, 0.0
        %v8112 = vmul.f32 %v6879, %v7945
        %v8113 = vmul.f32 %v6880, %v7955
        %v8114 = vmul.f32 %v6881, %v7965
        %v8115 = vmul.f32 %v6882, %v7975
        %v8116 = vmul.f32 %v6883, %v7985
        %v8117 = vmul.f32 %v6884, %v7995
        %v8118 = vmul.f32 %v6885, %v8005
        %v8119 = vmul.f32 %v6886, %v8015
        %v8120 = vmul.f32 %v6887, %v8025
        %v8121 = vmul.f32 %v6888, %v8035
        %v8122 = vmul.f32 %v6889, %v8045
        %v8123 = vmul.f32 %v6890, %v8055
        %v8124 = vmul.f32 %v6891, %v8065
        %v8125 = vmul.f32 %v6892, %v8075
        %v8126 = vmul.f32 %v6893, %v8085
        %v8127 = vmul.f32 %v6894, %v8095
        %v8128 = vsel %vm8096, %v1082, %v8112
        %v8129 = vsel %vm8097, %v1083, %v8113
        %v8130 = vsel %vm8098, %v1084, %v8114
        %v8131 = vsel %vm8099, %v1085, %v8115
        %v8132 = vsel %vm8100, %v1086, %v8116
        %v8133 = vsel %vm8101, %v1087, %v8117
        %v8134 = vsel %vm8102, %v1088, %v8118
        %v8135 = vsel %vm8103, %v1089, %v8119
        %v8136 = vsel %vm8104, %v1090, %v8120
        %v8137 = vsel %vm8105, %v1091, %v8121
        %v8138 = vsel %vm8106, %v1092, %v8122
        %v8139 = vsel %vm8107, %v1093, %v8123
        %v8140 = vsel %vm8108, %v1094, %v8124
        %v8141 = vsel %vm8109, %v1095, %v8125
        %v8142 = vsel %vm8110, %v1096, %v8126
        %v8143 = vsel %vm8111, %v1097, %v8127
        %v8144 = vsub.f32 0.0, %v1098
        %v8145 = vsub.f32 0.0, %v1099
        %v8146 = vsub.f32 0.0, %v1100
        %v8147 = vsub.f32 0.0, %v1101
        %v8148 = vsub.f32 0.0, %v1102
        %v8149 = vsub.f32 0.0, %v1103
        %v8150 = vsub.f32 0.0, %v1104
        %v8151 = vsub.f32 0.0, %v1105
        %v8152 = vsub.f32 0.0, %v1106
        %v8153 = vsub.f32 0.0, %v1107
        %v8154 = vsub.f32 0.0, %v1108
        %v8155 = vsub.f32 0.0, %v1109
        %v8156 = vsub.f32 0.0, %v1110
        %v8157 = vsub.f32 0.0, %v1111
        %v8158 = vsub.f32 0.0, %v1112
        %v8159 = vsub.f32 0.0, %v1113
        %v8160 = vmul.f32 %v6992, %v7945
        %v8161 = vmul.f32 %v6993, %v7955
        %v8162 = vmul.f32 %v6994, %v7965
        %v8163 = vmul.f32 %v6995, %v7975
        %v8164 = vmul.f32 %v6996, %v7985
        %v8165 = vmul.f32 %v6997, %v7995
        %v8166 = vmul.f32 %v6998, %v8005
        %v8167 = vmul.f32 %v6999, %v8015
        %v8168 = vmul.f32 %v7000, %v8025
        %v8169 = vmul.f32 %v7001, %v8035
        %v8170 = vmul.f32 %v7002, %v8045
        %v8171 = vmul.f32 %v7003, %v8055
        %v8172 = vmul.f32 %v7004, %v8065
        %v8173 = vmul.f32 %v7005, %v8075
        %v8174 = vmul.f32 %v7006, %v8085
        %v8175 = vmul.f32 %v7007, %v8095
        %v8176 = vsel %vm8096, %v8144, %v8160
        %v8177 = vsel %vm8097, %v8145, %v8161
        %v8178 = vsel %vm8098, %v8146, %v8162
        %v8179 = vsel %vm8099, %v8147, %v8163
        %v8180 = vsel %vm8100, %v8148, %v8164
        %v8181 = vsel %vm8101, %v8149, %v8165
        %v8182 = vsel %vm8102, %v8150, %v8166
        %v8183 = vsel %vm8103, %v8151, %v8167
        %v8184 = vsel %vm8104, %v8152, %v8168
        %v8185 = vsel %vm8105, %v8153, %v8169
        %v8186 = vsel %vm8106, %v8154, %v8170
        %v8187 = vsel %vm8107, %v8155, %v8171
        %v8188 = vsel %vm8108, %v8156, %v8172
        %v8189 = vsel %vm8109, %v8157, %v8173
        %v8190 = vsel %vm8110, %v8158, %v8174
        %v8191 = vsel %vm8111, %v8159, %v8175
        %v8192 = vld [vmem:[#allocation22] sm:$0xf]
        %v8193 = vld [vmem:[#allocation22 + $0x4] sm:$0xf]
        %v8194 = vld [vmem:[#allocation22 + $0x8] sm:$0xf]
        %v8195 = vld [vmem:[#allocation22 + $0xc] sm:$0xf]
        %v8196 = vld [vmem:[#allocation22 + $0x10] sm:$0xf]
        %v8197 = vld [vmem:[#allocation22 + $0x14] sm:$0xf]
        %v8198 = vld [vmem:[#allocation22 + $0x18] sm:$0xf]
        %v8199 = vld [vmem:[#allocation22 + $0x1c] sm:$0xf]
        %v8200 = vld [vmem:[#allocation22 + $0x20] sm:$0xf]
        %v8201 = vld [vmem:[#allocation22 + $0x24] sm:$0xf]
        %v8202 = vld [vmem:[#allocation22 + $0x28] sm:$0xf]
        %v8203 = vld [vmem:[#allocation22 + $0x2c] sm:$0xf]
        %v8204 = vld [vmem:[#allocation22 + $0x30] sm:$0xf]
        %v8205 = vld [vmem:[#allocation22 + $0x34] sm:$0xf]
        %v8206 = vld [vmem:[#allocation22 + $0x38] sm:$0xf]
        %v8207 = vld [vmem:[#allocation22 + $0x3c] sm:$0xf]
        %v8208 = vpack.c.bf16 %v8129, %v8128
        %v8209 = vpack.c.bf16 %v8131, %v8130
        %v8210 = vpack.c.bf16 %v8133, %v8132
        %v8211 = vpack.c.bf16 %v8135, %v8134
        %v8212 = vpack.c.bf16 %v8137, %v8136
        %v8213 = vpack.c.bf16 %v8139, %v8138
        %v8214 = vpack.c.bf16 %v8141, %v8140
        %v8215 = vpack.c.bf16 %v8143, %v8142
        %v8232 = vunpack.c.l.b16 %v8192
        %v8233 = vunpack.c.l.b16 %v8193
        %v8234 = vunpack.c.l.b16 %v8194
        %v8235 = vunpack.c.l.b16 %v8195
        %v8236 = vunpack.c.l.b16 %v8196
        %v8237 = vunpack.c.l.b16 %v8197
        %v8238 = vunpack.c.l.b16 %v8198
        %v8239 = vunpack.c.l.b16 %v8199
        %v8240 = vunpack.c.l.b16 %v8200
        %v8241 = vunpack.c.l.b16 %v8201
        %v8242 = vunpack.c.l.b16 %v8202
        %v8243 = vunpack.c.l.b16 %v8203
        %v8244 = vunpack.c.l.b16 %v8204
        %v8245 = vunpack.c.l.b16 %v8205
        %v8246 = vunpack.c.l.b16 %v8206
        %v8247 = vunpack.c.l.b16 %v8207
        %v8248 = vpack.c.b16 %v8233, %v8232
        %v8249 = vpack.c.b16 %v8235, %v8234
        %v8250 = vpack.c.b16 %v8237, %v8236
        %v8251 = vpack.c.b16 %v8239, %v8238
        %v8252 = vpack.c.b16 %v8241, %v8240
        %v8253 = vpack.c.b16 %v8243, %v8242
        %v8254 = vpack.c.b16 %v8245, %v8244
        %v8255 = vpack.c.b16 %v8247, %v8246
        %8264 = vmatpush.bf16.msra.mxu0 %v8215
        %8265 = vmatpush.bf16.msra.mxu0 %v8214
        %8266 = vmatpush.bf16.msra.mxu0 %v8213
        %8267 = vmatpush.bf16.msra.mxu0 %v8212
        %8268 = vmatpush.bf16.msra.mxu0 %v8211
        %8269 = vmatpush.bf16.msra.mxu0 %v8210
        %8270 = vmatpush.bf16.msra.mxu0 %v8209
        %8271 = vmatpush.bf16.msra.mxu0 %v8208
        %8272 = vmatmul.bf16.gmra.mxu0 %v8248
        %v8273 = vpop.f32.mrf.mxu0
        %v8274 = vadd.f32 0.0, %v8273
        %v8275 = vpop.f32.mrf.mxu0
        %v8276 = vadd.f32 0.0, %v8275
        %8277 = vmatmul.bf16.gmra.mxu0 %v8249
        %v8278 = vpop.f32.mrf.mxu0
        %v8279 = vadd.f32 0.0, %v8278
        %v8280 = vpop.f32.mrf.mxu0
        %v8281 = vadd.f32 0.0, %v8280
        %8282 = vmatmul.bf16.gmra.mxu0 %v8250
        %v8283 = vpop.f32.mrf.mxu0
        %v8284 = vadd.f32 0.0, %v8283
        %v8285 = vpop.f32.mrf.mxu0
        %v8286 = vadd.f32 0.0, %v8285
        %8287 = vmatmul.bf16.gmra.mxu0 %v8251
        %v8288 = vpop.f32.mrf.mxu0
        %v8289 = vadd.f32 0.0, %v8288
        %v8290 = vpop.f32.mrf.mxu0
        %v8291 = vadd.f32 0.0, %v8290
        %8292 = vmatmul.bf16.gmra.mxu0 %v8252
        %v8293 = vpop.f32.mrf.mxu0
        %v8294 = vadd.f32 0.0, %v8293
        %v8295 = vpop.f32.mrf.mxu0
        %v8296 = vadd.f32 0.0, %v8295
        %8297 = vmatmul.bf16.gmra.mxu0 %v8253
        %v8298 = vpop.f32.mrf.mxu0
        %v8299 = vadd.f32 0.0, %v8298
        %v8300 = vpop.f32.mrf.mxu0
        %v8301 = vadd.f32 0.0, %v8300
        %8302 = vmatmul.bf16.gmra.mxu0 %v8254
        %v8303 = vpop.f32.mrf.mxu0
        %v8304 = vadd.f32 0.0, %v8303
        %v8305 = vpop.f32.mrf.mxu0
        %v8306 = vadd.f32 0.0, %v8305
        %8307 = vmatmul.bf16.gmra.mxu0 %v8255
        %v8308 = vpop.f32.mrf.mxu0
        %v8309 = vadd.f32 0.0, %v8308
        %v8310 = vpop.f32.mrf.mxu0
        %v8311 = vadd.f32 0.0, %v8310
        %8312 = vdwg.mxu0
        %v8313 = vld [vmem:[#allocation23] sm:$0xf]
        %v8314 = vld [vmem:[#allocation23 + $0x4] sm:$0xf]
        %v8315 = vld [vmem:[#allocation23 + $0x8] sm:$0xf]
        %v8316 = vld [vmem:[#allocation23 + $0xc] sm:$0xf]
        %v8317 = vld [vmem:[#allocation23 + $0x10] sm:$0xf]
        %v8318 = vld [vmem:[#allocation23 + $0x14] sm:$0xf]
        %v8319 = vld [vmem:[#allocation23 + $0x18] sm:$0xf]
        %v8320 = vld [vmem:[#allocation23 + $0x1c] sm:$0xf]
        %v8321 = vld [vmem:[#allocation23 + $0x20] sm:$0xf]
        %v8322 = vld [vmem:[#allocation23 + $0x24] sm:$0xf]
        %v8323 = vld [vmem:[#allocation23 + $0x28] sm:$0xf]
        %v8324 = vld [vmem:[#allocation23 + $0x2c] sm:$0xf]
        %v8325 = vld [vmem:[#allocation23 + $0x30] sm:$0xf]
        %v8326 = vld [vmem:[#allocation23 + $0x34] sm:$0xf]
        %v8327 = vld [vmem:[#allocation23 + $0x38] sm:$0xf]
        %v8328 = vld [vmem:[#allocation23 + $0x3c] sm:$0xf]
        %v8329 = vpack.c.bf16 %v8177, %v8176
        %v8330 = vpack.c.bf16 %v8179, %v8178
        %v8331 = vpack.c.bf16 %v8181, %v8180
        %v8332 = vpack.c.bf16 %v8183, %v8182
        %v8333 = vpack.c.bf16 %v8185, %v8184
        %v8334 = vpack.c.bf16 %v8187, %v8186
        %v8335 = vpack.c.bf16 %v8189, %v8188
        %v8336 = vpack.c.bf16 %v8191, %v8190
        %v8353 = vunpack.c.l.b16 %v8313
        %v8354 = vunpack.c.l.b16 %v8314
        %v8355 = vunpack.c.l.b16 %v8315
        %v8356 = vunpack.c.l.b16 %v8316
        %v8357 = vunpack.c.l.b16 %v8317
        %v8358 = vunpack.c.l.b16 %v8318
        %v8359 = vunpack.c.l.b16 %v8319
        %v8360 = vunpack.c.l.b16 %v8320
        %v8361 = vunpack.c.l.b16 %v8321
        %v8362 = vunpack.c.l.b16 %v8322
        %v8363 = vunpack.c.l.b16 %v8323
        %v8364 = vunpack.c.l.b16 %v8324
        %v8365 = vunpack.c.l.b16 %v8325
        %v8366 = vunpack.c.l.b16 %v8326
        %v8367 = vunpack.c.l.b16 %v8327
        %v8368 = vunpack.c.l.b16 %v8328
        %v8369 = vpack.c.b16 %v8354, %v8353
        %v8370 = vpack.c.b16 %v8356, %v8355
        %v8371 = vpack.c.b16 %v8358, %v8357
        %v8372 = vpack.c.b16 %v8360, %v8359
        %v8373 = vpack.c.b16 %v8362, %v8361
        %v8374 = vpack.c.b16 %v8364, %v8363
        %v8375 = vpack.c.b16 %v8366, %v8365
        %v8376 = vpack.c.b16 %v8368, %v8367
        %8385 = vmatpush.bf16.msra.mxu0 %v8336
        %8386 = vmatpush.bf16.msra.mxu0 %v8335
        %8387 = vmatpush.bf16.msra.mxu0 %v8334
        %8388 = vmatpush.bf16.msra.mxu0 %v8333
        %8389 = vmatpush.bf16.msra.mxu0 %v8332
        %8390 = vmatpush.bf16.msra.mxu0 %v8331
        %8391 = vmatpush.bf16.msra.mxu0 %v8330
        %8392 = vmatpush.bf16.msra.mxu0 %v8329
        %8393 = vmatmul.bf16.gmra.mxu0 %v8369
        %v8394 = vpop.f32.mrf.mxu0
        %v8395 = vadd.f32 0.0, %v8394
        %v8396 = vpop.f32.mrf.mxu0
        %v8397 = vadd.f32 0.0, %v8396
        %8398 = vmatmul.bf16.gmra.mxu0 %v8370
        %v8399 = vpop.f32.mrf.mxu0
        %v8400 = vadd.f32 0.0, %v8399
        %v8401 = vpop.f32.mrf.mxu0
        %v8402 = vadd.f32 0.0, %v8401
        %8403 = vmatmul.bf16.gmra.mxu0 %v8371
        %v8404 = vpop.f32.mrf.mxu0
        %v8405 = vadd.f32 0.0, %v8404
        %v8406 = vpop.f32.mrf.mxu0
        %v8407 = vadd.f32 0.0, %v8406
        %8408 = vmatmul.bf16.gmra.mxu0 %v8372
        %v8409 = vpop.f32.mrf.mxu0
        %v8410 = vadd.f32 0.0, %v8409
        %v8411 = vpop.f32.mrf.mxu0
        %v8412 = vadd.f32 0.0, %v8411
        %8413 = vmatmul.bf16.gmra.mxu0 %v8373
        %v8414 = vpop.f32.mrf.mxu0
        %v8415 = vadd.f32 0.0, %v8414
        %v8416 = vpop.f32.mrf.mxu0
        %v8417 = vadd.f32 0.0, %v8416
        %8418 = vmatmul.bf16.gmra.mxu0 %v8374
        %v8419 = vpop.f32.mrf.mxu0
        %v8420 = vadd.f32 0.0, %v8419
        %v8421 = vpop.f32.mrf.mxu0
        %v8422 = vadd.f32 0.0, %v8421
        %8423 = vmatmul.bf16.gmra.mxu0 %v8375
        %v8424 = vpop.f32.mrf.mxu0
        %v8425 = vadd.f32 0.0, %v8424
        %v8426 = vpop.f32.mrf.mxu0
        %v8427 = vadd.f32 0.0, %v8426
        %8428 = vmatmul.bf16.gmra.mxu0 %v8376
        %v8429 = vpop.f32.mrf.mxu0
        %v8430 = vadd.f32 0.0, %v8429
        %v8431 = vpop.f32.mrf.mxu0
        %v8432 = vadd.f32 0.0, %v8431
        %8433 = vdwg.mxu0
        %v8434 = vld [vmem:[#allocation25] sm:$0xf]
        %v8435 = vld [vmem:[#allocation25 + $0x4] sm:$0xf]
        %v8436 = vld [vmem:[#allocation25 + $0x8] sm:$0xf]
        %v8437 = vld [vmem:[#allocation25 + $0xc] sm:$0xf]
        %v8438 = vld [vmem:[#allocation25 + $0x10] sm:$0xf]
        %v8439 = vld [vmem:[#allocation25 + $0x14] sm:$0xf]
        %v8440 = vld [vmem:[#allocation25 + $0x18] sm:$0xf]
        %v8441 = vld [vmem:[#allocation25 + $0x1c] sm:$0xf]
        %v8442 = vld [vmem:[#allocation25 + $0x20] sm:$0xf]
        %v8443 = vld [vmem:[#allocation25 + $0x24] sm:$0xf]
        %v8444 = vld [vmem:[#allocation25 + $0x28] sm:$0xf]
        %v8445 = vld [vmem:[#allocation25 + $0x2c] sm:$0xf]
        %v8446 = vld [vmem:[#allocation25 + $0x30] sm:$0xf]
        %v8447 = vld [vmem:[#allocation25 + $0x34] sm:$0xf]
        %v8448 = vld [vmem:[#allocation25 + $0x38] sm:$0xf]
        %v8449 = vld [vmem:[#allocation25 + $0x3c] sm:$0xf]
        %v8450 = vadd.f32 %v8128, %v8176
        %v8451 = vadd.f32 %v8129, %v8177
        %v8452 = vadd.f32 %v8130, %v8178
        %v8453 = vadd.f32 %v8131, %v8179
        %v8454 = vadd.f32 %v8132, %v8180
        %v8455 = vadd.f32 %v8133, %v8181
        %v8456 = vadd.f32 %v8134, %v8182
        %v8457 = vadd.f32 %v8135, %v8183
        %v8458 = vadd.f32 %v8136, %v8184
        %v8459 = vadd.f32 %v8137, %v8185
        %v8460 = vadd.f32 %v8138, %v8186
        %v8461 = vadd.f32 %v8139, %v8187
        %v8462 = vadd.f32 %v8140, %v8188
        %v8463 = vadd.f32 %v8141, %v8189
        %v8464 = vadd.f32 %v8142, %v8190
        %v8465 = vadd.f32 %v8143, %v8191
        %v8466 = vpack.c.bf16 %v8451, %v8450
        %v8467 = vpack.c.bf16 %v8453, %v8452
        %v8468 = vpack.c.bf16 %v8455, %v8454
        %v8469 = vpack.c.bf16 %v8457, %v8456
        %v8470 = vpack.c.bf16 %v8459, %v8458
        %v8471 = vpack.c.bf16 %v8461, %v8460
        %v8472 = vpack.c.bf16 %v8463, %v8462
        %v8473 = vpack.c.bf16 %v8465, %v8464
        %v8474 = vadd.f32 %v8274, %v8395
        %v8475 = vadd.f32 %v8276, %v8397
        %v8476 = vadd.f32 %v8279, %v8400
        %v8477 = vadd.f32 %v8281, %v8402
        %v8478 = vadd.f32 %v8284, %v8405
        %v8479 = vadd.f32 %v8286, %v8407
        %v8480 = vadd.f32 %v8289, %v8410
        %v8481 = vadd.f32 %v8291, %v8412
        %v8482 = vadd.f32 %v8294, %v8415
        %v8483 = vadd.f32 %v8296, %v8417
        %v8484 = vadd.f32 %v8299, %v8420
        %v8485 = vadd.f32 %v8301, %v8422
        %v8486 = vadd.f32 %v8304, %v8425
        %v8487 = vadd.f32 %v8306, %v8427
        %v8488 = vadd.f32 %v8309, %v8430
        %v8489 = vadd.f32 %v8311, %v8432
        %v8506 = vunpack.c.l.b16 %v8434
        %v8507 = vunpack.c.l.b16 %v8435
        %v8508 = vunpack.c.l.b16 %v8436
        %v8509 = vunpack.c.l.b16 %v8437
        %v8510 = vunpack.c.l.b16 %v8438
        %v8511 = vunpack.c.l.b16 %v8439
        %v8512 = vunpack.c.l.b16 %v8440
        %v8513 = vunpack.c.l.b16 %v8441
        %v8514 = vunpack.c.l.b16 %v8442
        %v8515 = vunpack.c.l.b16 %v8443
        %v8516 = vunpack.c.l.b16 %v8444
        %v8517 = vunpack.c.l.b16 %v8445
        %v8518 = vunpack.c.l.b16 %v8446
        %v8519 = vunpack.c.l.b16 %v8447
        %v8520 = vunpack.c.l.b16 %v8448
        %v8521 = vunpack.c.l.b16 %v8449
        %v8522 = vpack.c.b16 %v8507, %v8506
        %v8523 = vpack.c.b16 %v8509, %v8508
        %v8524 = vpack.c.b16 %v8511, %v8510
        %v8525 = vpack.c.b16 %v8513, %v8512
        %v8526 = vpack.c.b16 %v8515, %v8514
        %v8527 = vpack.c.b16 %v8517, %v8516
        %v8528 = vpack.c.b16 %v8519, %v8518
        %v8529 = vpack.c.b16 %v8521, %v8520
        %8538 = vmatpush.bf16.msra.mxu0 %v8473
        %8539 = vmatpush.bf16.msra.mxu0 %v8472
        %8540 = vmatpush.bf16.msra.mxu0 %v8471
        %8541 = vmatpush.bf16.msra.mxu0 %v8470
        %8542 = vmatpush.bf16.msra.mxu0 %v8469
        %8543 = vmatpush.bf16.msra.mxu0 %v8468
        %8544 = vmatpush.bf16.msra.mxu0 %v8467
        %8545 = vmatpush.bf16.msra.mxu0 %v8466
        %8546 = vmatmul.bf16.gmra.mxu0 %v8522
        %v8547 = vpop.f32.mrf.mxu0
        %v8548 = vadd.f32 %v8395, %v8547
        %v8549 = vpop.f32.mrf.mxu0
        %v8550 = vadd.f32 %v8397, %v8549
        %8551 = vmatmul.bf16.gmra.mxu0 %v8523
        %v8552 = vpop.f32.mrf.mxu0
        %v8553 = vadd.f32 %v8400, %v8552
        %v8554 = vpop.f32.mrf.mxu0
        %v8555 = vadd.f32 %v8402, %v8554
        %8556 = vmatmul.bf16.gmra.mxu0 %v8524
        %v8557 = vpop.f32.mrf.mxu0
        %v8558 = vadd.f32 %v8405, %v8557
        %v8559 = vpop.f32.mrf.mxu0
        %v8560 = vadd.f32 %v8407, %v8559
        %8561 = vmatmul.bf16.gmra.mxu0 %v8525
        %v8562 = vpop.f32.mrf.mxu0
        %v8563 = vadd.f32 %v8410, %v8562
        %v8564 = vpop.f32.mrf.mxu0
        %v8565 = vadd.f32 %v8412, %v8564
        %8566 = vmatmul.bf16.gmra.mxu0 %v8526
        %v8567 = vpop.f32.mrf.mxu0
        %v8568 = vadd.f32 %v8415, %v8567
        %v8569 = vpop.f32.mrf.mxu0
        %v8570 = vadd.f32 %v8417, %v8569
        %8571 = vmatmul.bf16.gmra.mxu0 %v8527
        %v8572 = vpop.f32.mrf.mxu0
        %v8573 = vadd.f32 %v8420, %v8572
        %v8574 = vpop.f32.mrf.mxu0
        %v8575 = vadd.f32 %v8422, %v8574
        %8576 = vmatmul.bf16.gmra.mxu0 %v8528
        %v8577 = vpop.f32.mrf.mxu0
        %v8578 = vadd.f32 %v8425, %v8577
        %v8579 = vpop.f32.mrf.mxu0
        %v8580 = vadd.f32 %v8427, %v8579
        %8581 = vmatmul.bf16.gmra.mxu0 %v8529
        %v8582 = vpop.f32.mrf.mxu0
        %v8583 = vadd.f32 %v8430, %v8582
        %v8584 = vpop.f32.mrf.mxu0
        %v8585 = vadd.f32 %v8432, %v8584
        %8586 = vdwg.mxu0
        %v8587 = vsub.f32 %v8548, %v8274
        %v8588 = vsub.f32 %v8550, %v8276
        %v8589 = vsub.f32 %v8553, %v8279
        %v8590 = vsub.f32 %v8555, %v8281
        %v8591 = vsub.f32 %v8558, %v8284
        %v8592 = vsub.f32 %v8560, %v8286
        %v8593 = vsub.f32 %v8563, %v8289
        %v8594 = vsub.f32 %v8565, %v8291
        %v8595 = vsub.f32 %v8568, %v8294
        %v8596 = vsub.f32 %v8570, %v8296
        %v8597 = vsub.f32 %v8573, %v8299
        %v8598 = vsub.f32 %v8575, %v8301
        %v8599 = vsub.f32 %v8578, %v8304
        %v8600 = vsub.f32 %v8580, %v8306
        %v8601 = vsub.f32 %v8583, %v8309
        %v8602 = vsub.f32 %v8585, %v8311
        %v8603 = vld [vmem:[#allocation26] sm:$0xf]
        %v8604 = vld [vmem:[#allocation26 + $0x4] sm:$0xf]
        %v8605 = vld [vmem:[#allocation26 + $0x8] sm:$0xf]
        %v8606 = vld [vmem:[#allocation26 + $0xc] sm:$0xf]
        %v8607 = vld [vmem:[#allocation26 + $0x10] sm:$0xf]
        %v8608 = vld [vmem:[#allocation26 + $0x14] sm:$0xf]
        %v8609 = vld [vmem:[#allocation26 + $0x18] sm:$0xf]
        %v8610 = vld [vmem:[#allocation26 + $0x1c] sm:$0xf]
        %v8611 = vld [vmem:[#allocation26 + $0x20] sm:$0xf]
        %v8612 = vld [vmem:[#allocation26 + $0x24] sm:$0xf]
        %v8613 = vld [vmem:[#allocation26 + $0x28] sm:$0xf]
        %v8614 = vld [vmem:[#allocation26 + $0x2c] sm:$0xf]
        %v8615 = vld [vmem:[#allocation26 + $0x30] sm:$0xf]
        %v8616 = vld [vmem:[#allocation26 + $0x34] sm:$0xf]
        %v8617 = vld [vmem:[#allocation26 + $0x38] sm:$0xf]
        %v8618 = vld [vmem:[#allocation26 + $0x3c] sm:$0xf]
        %v8619 = vpack.c.bf16 %v8475, %v8474
        %v8620 = vpack.c.bf16 %v8477, %v8476
        %v8621 = vpack.c.bf16 %v8479, %v8478
        %v8622 = vpack.c.bf16 %v8481, %v8480
        %v8623 = vpack.c.bf16 %v8483, %v8482
        %v8624 = vpack.c.bf16 %v8485, %v8484
        %v8625 = vpack.c.bf16 %v8487, %v8486
        %v8626 = vpack.c.bf16 %v8489, %v8488
        %v8643 = vunpack.c.l.b16 %v8603
        %v8644 = vunpack.c.l.b16 %v8604
        %v8645 = vunpack.c.l.b16 %v8605
        %v8646 = vunpack.c.l.b16 %v8606
        %v8647 = vunpack.c.l.b16 %v8607
        %v8648 = vunpack.c.l.b16 %v8608
        %v8649 = vunpack.c.l.b16 %v8609
        %v8650 = vunpack.c.l.b16 %v8610
        %v8651 = vunpack.c.l.b16 %v8611
        %v8652 = vunpack.c.l.b16 %v8612
        %v8653 = vunpack.c.l.b16 %v8613
        %v8654 = vunpack.c.l.b16 %v8614
        %v8655 = vunpack.c.l.b16 %v8615
        %v8656 = vunpack.c.l.b16 %v8616
        %v8657 = vunpack.c.l.b16 %v8617
        %v8658 = vunpack.c.l.b16 %v8618
        %v8659 = vpack.c.b16 %v8644, %v8643
        %v8660 = vpack.c.b16 %v8646, %v8645
        %v8661 = vpack.c.b16 %v8648, %v8647
        %v8662 = vpack.c.b16 %v8650, %v8649
        %v8663 = vpack.c.b16 %v8652, %v8651
        %v8664 = vpack.c.b16 %v8654, %v8653
        %v8665 = vpack.c.b16 %v8656, %v8655
        %v8666 = vpack.c.b16 %v8658, %v8657
        %8675 = vmatpush.bf16.msra.mxu0 %v8666
        %8676 = vmatpush.bf16.msra.mxu0 %v8665
        %8677 = vmatpush.bf16.msra.mxu0 %v8664
        %8678 = vmatpush.bf16.msra.mxu0 %v8663
        %8679 = vmatpush.bf16.msra.mxu0 %v8662
        %8680 = vmatpush.bf16.msra.mxu0 %v8661
        %8681 = vmatpush.bf16.msra.mxu0 %v8660
        %8682 = vmatpush.bf16.msra.mxu0 %v8659
        %8683 = vmatmul.bf16.gmra.mxu0 %v8619
        %v8684 = vpop.f32.mrf.mxu0
        %v8685 = vadd.f32 0.0, %v8684
        %v8686 = vpop.f32.mrf.mxu0
        %v8687 = vadd.f32 0.0, %v8686
        %8688 = vmatmul.bf16.gmra.mxu0 %v8620
        %v8689 = vpop.f32.mrf.mxu0
        %v8690 = vadd.f32 0.0, %v8689
        %v8691 = vpop.f32.mrf.mxu0
        %v8692 = vadd.f32 0.0, %v8691
        %8693 = vmatmul.bf16.gmra.mxu0 %v8621
        %v8694 = vpop.f32.mrf.mxu0
        %v8695 = vadd.f32 0.0, %v8694
        %v8696 = vpop.f32.mrf.mxu0
        %v8697 = vadd.f32 0.0, %v8696
        %8698 = vmatmul.bf16.gmra.mxu0 %v8622
        %v8699 = vpop.f32.mrf.mxu0
        %v8700 = vadd.f32 0.0, %v8699
        %v8701 = vpop.f32.mrf.mxu0
        %v8702 = vadd.f32 0.0, %v8701
        %8703 = vmatmul.bf16.gmra.mxu0 %v8623
        %v8704 = vpop.f32.mrf.mxu0
        %v8705 = vadd.f32 0.0, %v8704
        %v8706 = vpop.f32.mrf.mxu0
        %v8707 = vadd.f32 0.0, %v8706
        %8708 = vmatmul.bf16.gmra.mxu0 %v8624
        %v8709 = vpop.f32.mrf.mxu0
        %v8710 = vadd.f32 0.0, %v8709
        %v8711 = vpop.f32.mrf.mxu0
        %v8712 = vadd.f32 0.0, %v8711
        %8713 = vmatmul.bf16.gmra.mxu0 %v8625
        %v8714 = vpop.f32.mrf.mxu0
        %v8715 = vadd.f32 0.0, %v8714
        %v8716 = vpop.f32.mrf.mxu0
        %v8717 = vadd.f32 0.0, %v8716
        %8718 = vmatmul.bf16.gmra.mxu0 %v8626
        %v8719 = vpop.f32.mrf.mxu0
        %v8720 = vadd.f32 0.0, %v8719
        %v8721 = vpop.f32.mrf.mxu0
        %v8722 = vadd.f32 0.0, %v8721
        %8723 = vdwg.mxu0
        %v8724 = vld [vmem:[#allocation28] sm:$0xf]
        %v8725 = vld [vmem:[#allocation28 + $0x4] sm:$0xf]
        %v8726 = vld [vmem:[#allocation28 + $0x8] sm:$0xf]
        %v8727 = vld [vmem:[#allocation28 + $0xc] sm:$0xf]
        %v8728 = vld [vmem:[#allocation28 + $0x10] sm:$0xf]
        %v8729 = vld [vmem:[#allocation28 + $0x14] sm:$0xf]
        %v8730 = vld [vmem:[#allocation28 + $0x18] sm:$0xf]
        %v8731 = vld [vmem:[#allocation28 + $0x1c] sm:$0xf]
        %v8732 = vld [vmem:[#allocation28 + $0x20] sm:$0xf]
        %v8733 = vld [vmem:[#allocation28 + $0x24] sm:$0xf]
        %v8734 = vld [vmem:[#allocation28 + $0x28] sm:$0xf]
        %v8735 = vld [vmem:[#allocation28 + $0x2c] sm:$0xf]
        %v8736 = vld [vmem:[#allocation28 + $0x30] sm:$0xf]
        %v8737 = vld [vmem:[#allocation28 + $0x34] sm:$0xf]
        %v8738 = vld [vmem:[#allocation28 + $0x38] sm:$0xf]
        %v8739 = vld [vmem:[#allocation28 + $0x3c] sm:$0xf]
        %v8740 = vpack.c.bf16 %v8588, %v8587
        %v8741 = vpack.c.bf16 %v8590, %v8589
        %v8742 = vpack.c.bf16 %v8592, %v8591
        %v8743 = vpack.c.bf16 %v8594, %v8593
        %v8744 = vpack.c.bf16 %v8596, %v8595
        %v8745 = vpack.c.bf16 %v8598, %v8597
        %v8746 = vpack.c.bf16 %v8600, %v8599
        %v8747 = vpack.c.bf16 %v8602, %v8601
        %v8764 = vunpack.c.l.b16 %v8724
        %v8765 = vunpack.c.l.b16 %v8725
        %v8766 = vunpack.c.l.b16 %v8726
        %v8767 = vunpack.c.l.b16 %v8727
        %v8768 = vunpack.c.l.b16 %v8728
        %v8769 = vunpack.c.l.b16 %v8729
        %v8770 = vunpack.c.l.b16 %v8730
        %v8771 = vunpack.c.l.b16 %v8731
        %v8772 = vunpack.c.l.b16 %v8732
        %v8773 = vunpack.c.l.b16 %v8733
        %v8774 = vunpack.c.l.b16 %v8734
        %v8775 = vunpack.c.l.b16 %v8735
        %v8776 = vunpack.c.l.b16 %v8736
        %v8777 = vunpack.c.l.b16 %v8737
        %v8778 = vunpack.c.l.b16 %v8738
        %v8779 = vunpack.c.l.b16 %v8739
        %v8780 = vpack.c.b16 %v8765, %v8764
        %v8781 = vpack.c.b16 %v8767, %v8766
        %v8782 = vpack.c.b16 %v8769, %v8768
        %v8783 = vpack.c.b16 %v8771, %v8770
        %v8784 = vpack.c.b16 %v8773, %v8772
        %v8785 = vpack.c.b16 %v8775, %v8774
        %v8786 = vpack.c.b16 %v8777, %v8776
        %v8787 = vpack.c.b16 %v8779, %v8778
        %8796 = vmatpush.bf16.msra.mxu0 %v8787
        %8797 = vmatpush.bf16.msra.mxu0 %v8786
        %8798 = vmatpush.bf16.msra.mxu0 %v8785
        %8799 = vmatpush.bf16.msra.mxu0 %v8784
        %8800 = vmatpush.bf16.msra.mxu0 %v8783
        %8801 = vmatpush.bf16.msra.mxu0 %v8782
        %8802 = vmatpush.bf16.msra.mxu0 %v8781
        %8803 = vmatpush.bf16.msra.mxu0 %v8780
        %8804 = vmatmul.bf16.gmra.mxu0 %v8740
        %v8805 = vpop.f32.mrf.mxu0
        %v8806 = vadd.f32 0.0, %v8805
        %v8807 = vpop.f32.mrf.mxu0
        %v8808 = vadd.f32 0.0, %v8807
        %8809 = vmatmul.bf16.gmra.mxu0 %v8741
        %v8810 = vpop.f32.mrf.mxu0
        %v8811 = vadd.f32 0.0, %v8810
        %v8812 = vpop.f32.mrf.mxu0
        %v8813 = vadd.f32 0.0, %v8812
        %8814 = vmatmul.bf16.gmra.mxu0 %v8742
        %v8815 = vpop.f32.mrf.mxu0
        %v8816 = vadd.f32 0.0, %v8815
        %v8817 = vpop.f32.mrf.mxu0
        %v8818 = vadd.f32 0.0, %v8817
        %8819 = vmatmul.bf16.gmra.mxu0 %v8743
        %v8820 = vpop.f32.mrf.mxu0
        %v8821 = vadd.f32 0.0, %v8820
        %v8822 = vpop.f32.mrf.mxu0
        %v8823 = vadd.f32 0.0, %v8822
        %8824 = vmatmul.bf16.gmra.mxu0 %v8744
        %v8825 = vpop.f32.mrf.mxu0
        %v8826 = vadd.f32 0.0, %v8825
        %v8827 = vpop.f32.mrf.mxu0
        %v8828 = vadd.f32 0.0, %v8827
        %8829 = vmatmul.bf16.gmra.mxu0 %v8745
        %v8830 = vpop.f32.mrf.mxu0
        %v8831 = vadd.f32 0.0, %v8830
        %v8832 = vpop.f32.mrf.mxu0
        %v8833 = vadd.f32 0.0, %v8832
        %8834 = vmatmul.bf16.gmra.mxu0 %v8746
        %v8835 = vpop.f32.mrf.mxu0
        %v8836 = vadd.f32 0.0, %v8835
        %v8837 = vpop.f32.mrf.mxu0
        %v8838 = vadd.f32 0.0, %v8837
        %8839 = vmatmul.bf16.gmra.mxu0 %v8747
        %v8840 = vpop.f32.mrf.mxu0
        %v8841 = vadd.f32 0.0, %v8840
        %v8842 = vpop.f32.mrf.mxu0
        %v8843 = vadd.f32 0.0, %v8842
        %8844 = vdwg.mxu0
        %v8845 = vadd.f32 %v8474, %v8587
        %v8846 = vadd.f32 %v8475, %v8588
        %v8847 = vadd.f32 %v8476, %v8589
        %v8848 = vadd.f32 %v8477, %v8590
        %v8849 = vadd.f32 %v8478, %v8591
        %v8850 = vadd.f32 %v8479, %v8592
        %v8851 = vadd.f32 %v8480, %v8593
        %v8852 = vadd.f32 %v8481, %v8594
        %v8853 = vadd.f32 %v8482, %v8595
        %v8854 = vadd.f32 %v8483, %v8596
        %v8855 = vadd.f32 %v8484, %v8597
        %v8856 = vadd.f32 %v8485, %v8598
        %v8857 = vadd.f32 %v8486, %v8599
        %v8858 = vadd.f32 %v8487, %v8600
        %v8859 = vadd.f32 %v8488, %v8601
        %v8860 = vadd.f32 %v8489, %v8602
        %v8861 = vld [vmem:[#allocation29] sm:$0xf]
        %v8862 = vld [vmem:[#allocation29 + $0x4] sm:$0xf]
        %v8863 = vld [vmem:[#allocation29 + $0x8] sm:$0xf]
        %v8864 = vld [vmem:[#allocation29 + $0xc] sm:$0xf]
        %v8865 = vld [vmem:[#allocation29 + $0x10] sm:$0xf]
        %v8866 = vld [vmem:[#allocation29 + $0x14] sm:$0xf]
        %v8867 = vld [vmem:[#allocation29 + $0x18] sm:$0xf]
        %v8868 = vld [vmem:[#allocation29 + $0x1c] sm:$0xf]
        %v8869 = vld [vmem:[#allocation29 + $0x20] sm:$0xf]
        %v8870 = vld [vmem:[#allocation29 + $0x24] sm:$0xf]
        %v8871 = vld [vmem:[#allocation29 + $0x28] sm:$0xf]
        %v8872 = vld [vmem:[#allocation29 + $0x2c] sm:$0xf]
        %v8873 = vld [vmem:[#allocation29 + $0x30] sm:$0xf]
        %v8874 = vld [vmem:[#allocation29 + $0x34] sm:$0xf]
        %v8875 = vld [vmem:[#allocation29 + $0x38] sm:$0xf]
        %v8876 = vld [vmem:[#allocation29 + $0x3c] sm:$0xf]
        %v8877 = vpack.c.bf16 %v8846, %v8845
        %v8878 = vpack.c.bf16 %v8848, %v8847
        %v8879 = vpack.c.bf16 %v8850, %v8849
        %v8880 = vpack.c.bf16 %v8852, %v8851
        %v8881 = vpack.c.bf16 %v8854, %v8853
        %v8882 = vpack.c.bf16 %v8856, %v8855
        %v8883 = vpack.c.bf16 %v8858, %v8857
        %v8884 = vpack.c.bf16 %v8860, %v8859
        %v8885 = vadd.f32 %v8685, %v8806
        %v8886 = vadd.f32 %v8687, %v8808
        %v8887 = vadd.f32 %v8690, %v8811
        %v8888 = vadd.f32 %v8692, %v8813
        %v8889 = vadd.f32 %v8695, %v8816
        %v8890 = vadd.f32 %v8697, %v8818
        %v8891 = vadd.f32 %v8700, %v8821
        %v8892 = vadd.f32 %v8702, %v8823
        %v8893 = vadd.f32 %v8705, %v8826
        %v8894 = vadd.f32 %v8707, %v8828
        %v8895 = vadd.f32 %v8710, %v8831
        %v8896 = vadd.f32 %v8712, %v8833
        %v8897 = vadd.f32 %v8715, %v8836
        %v8898 = vadd.f32 %v8717, %v8838
        %v8899 = vadd.f32 %v8720, %v8841
        %v8900 = vadd.f32 %v8722, %v8843
        %v8917 = vunpack.c.l.b16 %v8861
        %v8918 = vunpack.c.l.b16 %v8862
        %v8919 = vunpack.c.l.b16 %v8863
        %v8920 = vunpack.c.l.b16 %v8864
        %v8921 = vunpack.c.l.b16 %v8865
        %v8922 = vunpack.c.l.b16 %v8866
        %v8923 = vunpack.c.l.b16 %v8867
        %v8924 = vunpack.c.l.b16 %v8868
        %v8925 = vunpack.c.l.b16 %v8869
        %v8926 = vunpack.c.l.b16 %v8870
        %v8927 = vunpack.c.l.b16 %v8871
        %v8928 = vunpack.c.l.b16 %v8872
        %v8929 = vunpack.c.l.b16 %v8873
        %v8930 = vunpack.c.l.b16 %v8874
        %v8931 = vunpack.c.l.b16 %v8875
        %v8932 = vunpack.c.l.b16 %v8876
        %v8933 = vpack.c.b16 %v8918, %v8917
        %v8934 = vpack.c.b16 %v8920, %v8919
        %v8935 = vpack.c.b16 %v8922, %v8921
        %v8936 = vpack.c.b16 %v8924, %v8923
        %v8937 = vpack.c.b16 %v8926, %v8925
        %v8938 = vpack.c.b16 %v8928, %v8927
        %v8939 = vpack.c.b16 %v8930, %v8929
        %v8940 = vpack.c.b16 %v8932, %v8931
        %8949 = vmatpush.bf16.msra.mxu0 %v8940
        %8950 = vmatpush.bf16.msra.mxu0 %v8939
        %8951 = vmatpush.bf16.msra.mxu0 %v8938
        %8952 = vmatpush.bf16.msra.mxu0 %v8937
        %8953 = vmatpush.bf16.msra.mxu0 %v8936
        %8954 = vmatpush.bf16.msra.mxu0 %v8935
        %8955 = vmatpush.bf16.msra.mxu0 %v8934
        %8956 = vmatpush.bf16.msra.mxu0 %v8933
        %8957 = vmatmul.bf16.gmra.mxu0 %v8877
        %v8958 = vpop.f32.mrf.mxu0
        %v8959 = vadd.f32 %v8806, %v8958
        %v8960 = vpop.f32.mrf.mxu0
        %v8961 = vadd.f32 %v8808, %v8960
        %8962 = vmatmul.bf16.gmra.mxu0 %v8878
        %v8963 = vpop.f32.mrf.mxu0
        %v8964 = vadd.f32 %v8811, %v8963
        %v8965 = vpop.f32.mrf.mxu0
        %v8966 = vadd.f32 %v8813, %v8965
        %8967 = vmatmul.bf16.gmra.mxu0 %v8879
        %v8968 = vpop.f32.mrf.mxu0
        %v8969 = vadd.f32 %v8816, %v8968
        %v8970 = vpop.f32.mrf.mxu0
        %v8971 = vadd.f32 %v8818, %v8970
        %8972 = vmatmul.bf16.gmra.mxu0 %v8880
        %v8973 = vpop.f32.mrf.mxu0
        %v8974 = vadd.f32 %v8821, %v8973
        %v8975 = vpop.f32.mrf.mxu0
        %v8976 = vadd.f32 %v8823, %v8975
        %8977 = vmatmul.bf16.gmra.mxu0 %v8881
        %v8978 = vpop.f32.mrf.mxu0
        %v8979 = vadd.f32 %v8826, %v8978
        %v8980 = vpop.f32.mrf.mxu0
        %v8981 = vadd.f32 %v8828, %v8980
        %8982 = vmatmul.bf16.gmra.mxu0 %v8882
        %v8983 = vpop.f32.mrf.mxu0
        %v8984 = vadd.f32 %v8831, %v8983
        %v8985 = vpop.f32.mrf.mxu0
        %v8986 = vadd.f32 %v8833, %v8985
        %8987 = vmatmul.bf16.gmra.mxu0 %v8883
        %v8988 = vpop.f32.mrf.mxu0
        %v8989 = vadd.f32 %v8836, %v8988
        %v8990 = vpop.f32.mrf.mxu0
        %v8991 = vadd.f32 %v8838, %v8990
        %8992 = vmatmul.bf16.gmra.mxu0 %v8884
        %v8993 = vpop.f32.mrf.mxu0
        %v8994 = vadd.f32 %v8841, %v8993
        %v8995 = vpop.f32.mrf.mxu0
        %v8996 = vadd.f32 %v8843, %v8995
        %8997 = vdwg.mxu0
        %v8998 = vsub.f32 %v8959, %v8685
        %v8999 = vsub.f32 %v8961, %v8687
        %v9000 = vsub.f32 %v8964, %v8690
        %v9001 = vsub.f32 %v8966, %v8692
        %v9002 = vsub.f32 %v8969, %v8695
        %v9003 = vsub.f32 %v8971, %v8697
        %v9004 = vsub.f32 %v8974, %v8700
        %v9005 = vsub.f32 %v8976, %v8702
        %v9006 = vsub.f32 %v8979, %v8705
        %v9007 = vsub.f32 %v8981, %v8707
        %v9008 = vsub.f32 %v8984, %v8710
        %v9009 = vsub.f32 %v8986, %v8712
        %v9010 = vsub.f32 %v8989, %v8715
        %v9011 = vsub.f32 %v8991, %v8717
        %v9012 = vsub.f32 %v8994, %v8720
        %v9013 = vsub.f32 %v8996, %v8722
        %v9014 = vmul.f32 %v8885, %v8885
        %v9015 = vmul.f32 %v8886, %v8886
        %v9016 = vmul.f32 %v8887, %v8887
        %v9017 = vmul.f32 %v8888, %v8888
        %v9018 = vmul.f32 %v8889, %v8889
        %v9019 = vmul.f32 %v8890, %v8890
        %v9020 = vmul.f32 %v8891, %v8891
        %v9021 = vmul.f32 %v8892, %v8892
        %v9022 = vmul.f32 %v8893, %v8893
        %v9023 = vmul.f32 %v8894, %v8894
        %v9024 = vmul.f32 %v8895, %v8895
        %v9025 = vmul.f32 %v8896, %v8896
        %v9026 = vmul.f32 %v8897, %v8897
        %v9027 = vmul.f32 %v8898, %v8898
        %v9028 = vmul.f32 %v8899, %v8899
        %v9029 = vmul.f32 %v8900, %v8900
        %v9030 = vmul.f32 %v8998, %v8998
        %v9031 = vmul.f32 %v8999, %v8999
        %v9032 = vmul.f32 %v9000, %v9000
        %v9033 = vmul.f32 %v9001, %v9001
        %v9034 = vmul.f32 %v9002, %v9002
        %v9035 = vmul.f32 %v9003, %v9003
        %v9036 = vmul.f32 %v9004, %v9004
        %v9037 = vmul.f32 %v9005, %v9005
        %v9038 = vmul.f32 %v9006, %v9006
        %v9039 = vmul.f32 %v9007, %v9007
        %v9040 = vmul.f32 %v9008, %v9008
        %v9041 = vmul.f32 %v9009, %v9009
        %v9042 = vmul.f32 %v9010, %v9010
        %v9043 = vmul.f32 %v9011, %v9011
        %v9044 = vmul.f32 %v9012, %v9012
        %v9045 = vmul.f32 %v9013, %v9013
        %v9046 = vadd.f32 %v9014, %v9030
        %v9047 = vadd.f32 %v9015, %v9031
        %v9048 = vadd.f32 %v9016, %v9032
        %v9049 = vadd.f32 %v9017, %v9033
        %v9050 = vadd.f32 %v9018, %v9034
        %v9051 = vadd.f32 %v9019, %v9035
        %v9052 = vadd.f32 %v9020, %v9036
        %v9053 = vadd.f32 %v9021, %v9037
        %v9054 = vadd.f32 %v9022, %v9038
        %v9055 = vadd.f32 %v9023, %v9039
        %v9056 = vadd.f32 %v9024, %v9040
        %v9057 = vadd.f32 %v9025, %v9041
        %v9058 = vadd.f32 %v9026, %v9042
        %v9059 = vadd.f32 %v9027, %v9043
        %v9060 = vadd.f32 %v9028, %v9044
        %v9061 = vadd.f32 %v9029, %v9045
        %v9062 = vrsqrt.pop %v9046
        %v9063 = vmul.f32 %v9062, %v9046
        %v9064 = vmul.f32 %v9063, %v9062
        %v9065 = vmul.f32 0.5, %v9064
        %v9066 = vsub.f32 1.5, %v9065
        %v9067 = vmul.f32 %v9062, %v9066
        %v9068 = vmul.f32 %v9046, %v9067
        %vm9069 = vcmp.eq.f32.partialorder %v9046, inf
        %v9070 = vsel %vm9069, %v9046, %v9068
        %vm9071 = vcmp.eq.f32.partialorder %v9046, 0.0
        %v9072 = vand.u32 %v9046, 2147483648
        %v9073 = vsel %vm9071, %v9072, %v9070
        %v9074 = vrsqrt.pop %v9047
        %v9075 = vmul.f32 %v9074, %v9047
        %v9076 = vmul.f32 %v9075, %v9074
        %v9077 = vmul.f32 0.5, %v9076
        %v9078 = vsub.f32 1.5, %v9077
        %v9079 = vmul.f32 %v9074, %v9078
        %v9080 = vmul.f32 %v9047, %v9079
        %vm9081 = vcmp.eq.f32.partialorder %v9047, inf
        %v9082 = vsel %vm9081, %v9047, %v9080
        %vm9083 = vcmp.eq.f32.partialorder %v9047, 0.0
        %v9084 = vand.u32 %v9047, 2147483648
        %v9085 = vsel %vm9083, %v9084, %v9082
        %v9086 = vrsqrt.pop %v9048
        %v9087 = vmul.f32 %v9086, %v9048
        %v9088 = vmul.f32 %v9087, %v9086
        %v9089 = vmul.f32 0.5, %v9088
        %v9090 = vsub.f32 1.5, %v9089
        %v9091 = vmul.f32 %v9086, %v9090
        %v9092 = vmul.f32 %v9048, %v9091
        %vm9093 = vcmp.eq.f32.partialorder %v9048, inf
        %v9094 = vsel %vm9093, %v9048, %v9092
        %vm9095 = vcmp.eq.f32.partialorder %v9048, 0.0
        %v9096 = vand.u32 %v9048, 2147483648
        %v9097 = vsel %vm9095, %v9096, %v9094
        %v9098 = vrsqrt.pop %v9049
        %v9099 = vmul.f32 %v9098, %v9049
        %v9100 = vmul.f32 %v9099, %v9098
        %v9101 = vmul.f32 0.5, %v9100
        %v9102 = vsub.f32 1.5, %v9101
        %v9103 = vmul.f32 %v9098, %v9102
        %v9104 = vmul.f32 %v9049, %v9103
        %vm9105 = vcmp.eq.f32.partialorder %v9049, inf
        %v9106 = vsel %vm9105, %v9049, %v9104
        %vm9107 = vcmp.eq.f32.partialorder %v9049, 0.0
        %v9108 = vand.u32 %v9049, 2147483648
        %v9109 = vsel %vm9107, %v9108, %v9106
        %v9110 = vrsqrt.pop %v9050
        %v9111 = vmul.f32 %v9110, %v9050
        %v9112 = vmul.f32 %v9111, %v9110
        %v9113 = vmul.f32 0.5, %v9112
        %v9114 = vsub.f32 1.5, %v9113
        %v9115 = vmul.f32 %v9110, %v9114
        %v9116 = vmul.f32 %v9050, %v9115
        %vm9117 = vcmp.eq.f32.partialorder %v9050, inf
        %v9118 = vsel %vm9117, %v9050, %v9116
        %vm9119 = vcmp.eq.f32.partialorder %v9050, 0.0
        %v9120 = vand.u32 %v9050, 2147483648
        %v9121 = vsel %vm9119, %v9120, %v9118
        %v9122 = vrsqrt.pop %v9051
        %v9123 = vmul.f32 %v9122, %v9051
        %v9124 = vmul.f32 %v9123, %v9122
        %v9125 = vmul.f32 0.5, %v9124
        %v9126 = vsub.f32 1.5, %v9125
        %v9127 = vmul.f32 %v9122, %v9126
        %v9128 = vmul.f32 %v9051, %v9127
        %vm9129 = vcmp.eq.f32.partialorder %v9051, inf
        %v9130 = vsel %vm9129, %v9051, %v9128
        %vm9131 = vcmp.eq.f32.partialorder %v9051, 0.0
        %v9132 = vand.u32 %v9051, 2147483648
        %v9133 = vsel %vm9131, %v9132, %v9130
        %v9134 = vrsqrt.pop %v9052
        %v9135 = vmul.f32 %v9134, %v9052
        %v9136 = vmul.f32 %v9135, %v9134
        %v9137 = vmul.f32 0.5, %v9136
        %v9138 = vsub.f32 1.5, %v9137
        %v9139 = vmul.f32 %v9134, %v9138
        %v9140 = vmul.f32 %v9052, %v9139
        %vm9141 = vcmp.eq.f32.partialorder %v9052, inf
        %v9142 = vsel %vm9141, %v9052, %v9140
        %vm9143 = vcmp.eq.f32.partialorder %v9052, 0.0
        %v9144 = vand.u32 %v9052, 2147483648
        %v9145 = vsel %vm9143, %v9144, %v9142
        %v9146 = vrsqrt.pop %v9053
        %v9147 = vmul.f32 %v9146, %v9053
        %v9148 = vmul.f32 %v9147, %v9146
        %v9149 = vmul.f32 0.5, %v9148
        %v9150 = vsub.f32 1.5, %v9149
        %v9151 = vmul.f32 %v9146, %v9150
        %v9152 = vmul.f32 %v9053, %v9151
        %vm9153 = vcmp.eq.f32.partialorder %v9053, inf
        %v9154 = vsel %vm9153, %v9053, %v9152
        %vm9155 = vcmp.eq.f32.partialorder %v9053, 0.0
        %v9156 = vand.u32 %v9053, 2147483648
        %v9157 = vsel %vm9155, %v9156, %v9154
        %v9158 = vrsqrt.pop %v9054
        %v9159 = vmul.f32 %v9158, %v9054
        %v9160 = vmul.f32 %v9159, %v9158
        %v9161 = vmul.f32 0.5, %v9160
        %v9162 = vsub.f32 1.5, %v9161
        %v9163 = vmul.f32 %v9158, %v9162
        %v9164 = vmul.f32 %v9054, %v9163
        %vm9165 = vcmp.eq.f32.partialorder %v9054, inf
        %v9166 = vsel %vm9165, %v9054, %v9164
        %vm9167 = vcmp.eq.f32.partialorder %v9054, 0.0
        %v9168 = vand.u32 %v9054, 2147483648
        %v9169 = vsel %vm9167, %v9168, %v9166
        %v9170 = vrsqrt.pop %v9055
        %v9171 = vmul.f32 %v9170, %v9055
        %v9172 = vmul.f32 %v9171, %v9170
        %v9173 = vmul.f32 0.5, %v9172
        %v9174 = vsub.f32 1.5, %v9173
        %v9175 = vmul.f32 %v9170, %v9174
        %v9176 = vmul.f32 %v9055, %v9175
        %vm9177 = vcmp.eq.f32.partialorder %v9055, inf
        %v9178 = vsel %vm9177, %v9055, %v9176
        %vm9179 = vcmp.eq.f32.partialorder %v9055, 0.0
        %v9180 = vand.u32 %v9055, 2147483648
        %v9181 = vsel %vm9179, %v9180, %v9178
        %v9182 = vrsqrt.pop %v9056
        %v9183 = vmul.f32 %v9182, %v9056
        %v9184 = vmul.f32 %v9183, %v9182
        %v9185 = vmul.f32 0.5, %v9184
        %v9186 = vsub.f32 1.5, %v9185
        %v9187 = vmul.f32 %v9182, %v9186
        %v9188 = vmul.f32 %v9056, %v9187
        %vm9189 = vcmp.eq.f32.partialorder %v9056, inf
        %v9190 = vsel %vm9189, %v9056, %v9188
        %vm9191 = vcmp.eq.f32.partialorder %v9056, 0.0
        %v9192 = vand.u32 %v9056, 2147483648
        %v9193 = vsel %vm9191, %v9192, %v9190
        %v9194 = vrsqrt.pop %v9057
        %v9195 = vmul.f32 %v9194, %v9057
        %v9196 = vmul.f32 %v9195, %v9194
        %v9197 = vmul.f32 0.5, %v9196
        %v9198 = vsub.f32 1.5, %v9197
        %v9199 = vmul.f32 %v9194, %v9198
        %v9200 = vmul.f32 %v9057, %v9199
        %vm9201 = vcmp.eq.f32.partialorder %v9057, inf
        %v9202 = vsel %vm9201, %v9057, %v9200
        %vm9203 = vcmp.eq.f32.partialorder %v9057, 0.0
        %v9204 = vand.u32 %v9057, 2147483648
        %v9205 = vsel %vm9203, %v9204, %v9202
        %v9206 = vrsqrt.pop %v9058
        %v9207 = vmul.f32 %v9206, %v9058
        %v9208 = vmul.f32 %v9207, %v9206
        %v9209 = vmul.f32 0.5, %v9208
        %v9210 = vsub.f32 1.5, %v9209
        %v9211 = vmul.f32 %v9206, %v9210
        %v9212 = vmul.f32 %v9058, %v9211
        %vm9213 = vcmp.eq.f32.partialorder %v9058, inf
        %v9214 = vsel %vm9213, %v9058, %v9212
        %vm9215 = vcmp.eq.f32.partialorder %v9058, 0.0
        %v9216 = vand.u32 %v9058, 2147483648
        %v9217 = vsel %vm9215, %v9216, %v9214
        %v9218 = vrsqrt.pop %v9059
        %v9219 = vmul.f32 %v9218, %v9059
        %v9220 = vmul.f32 %v9219, %v9218
        %v9221 = vmul.f32 0.5, %v9220
        %v9222 = vsub.f32 1.5, %v9221
        %v9223 = vmul.f32 %v9218, %v9222
        %v9224 = vmul.f32 %v9059, %v9223
        %vm9225 = vcmp.eq.f32.partialorder %v9059, inf
        %v9226 = vsel %vm9225, %v9059, %v9224
        %vm9227 = vcmp.eq.f32.partialorder %v9059, 0.0
        %v9228 = vand.u32 %v9059, 2147483648
        %v9229 = vsel %vm9227, %v9228, %v9226
        %v9230 = vrsqrt.pop %v9060
        %v9231 = vmul.f32 %v9230, %v9060
        %v9232 = vmul.f32 %v9231, %v9230
        %v9233 = vmul.f32 0.5, %v9232
        %v9234 = vsub.f32 1.5, %v9233
        %v9235 = vmul.f32 %v9230, %v9234
        %v9236 = vmul.f32 %v9060, %v9235
        %vm9237 = vcmp.eq.f32.partialorder %v9060, inf
        %v9238 = vsel %vm9237, %v9060, %v9236
        %vm9239 = vcmp.eq.f32.partialorder %v9060, 0.0
        %v9240 = vand.u32 %v9060, 2147483648
        %v9241 = vsel %vm9239, %v9240, %v9238
        %v9242 = vrsqrt.pop %v9061
        %v9243 = vmul.f32 %v9242, %v9061
        %v9244 = vmul.f32 %v9243, %v9242
        %v9245 = vmul.f32 0.5, %v9244
        %v9246 = vsub.f32 1.5, %v9245
        %v9247 = vmul.f32 %v9242, %v9246
        %v9248 = vmul.f32 %v9061, %v9247
        %vm9249 = vcmp.eq.f32.partialorder %v9061, inf
        %v9250 = vsel %vm9249, %v9061, %v9248
        %vm9251 = vcmp.eq.f32.partialorder %v9061, 0.0
        %v9252 = vand.u32 %v9061, 2147483648
        %v9253 = vsel %vm9251, %v9252, %v9250
        %9254 = vst [vmem:[%s991] sm:$0xff] %v9073
        %9255 = vst [vmem:[%s991 + $0x8] sm:$0xff] %v9085
        %9256 = vst [vmem:[%s991 + $0x10] sm:$0xff] %v9097
        %9257 = vst [vmem:[%s991 + $0x18] sm:$0xff] %v9109
        %9258 = vst [vmem:[%s991 + $0x20] sm:$0xff] %v9121
        %9259 = vst [vmem:[%s991 + $0x28] sm:$0xff] %v9133
        %9260 = vst [vmem:[%s991 + $0x30] sm:$0xff] %v9145
        %9261 = vst [vmem:[%s991 + $0x38] sm:$0xff] %v9157
        %9262 = vst [vmem:[%s991 + $0x40] sm:$0xff] %v9169
        %9263 = vst [vmem:[%s991 + $0x48] sm:$0xff] %v9181
        %9264 = vst [vmem:[%s991 + $0x50] sm:$0xff] %v9193
        %9265 = vst [vmem:[%s991 + $0x58] sm:$0xff] %v9205
        %9266 = vst [vmem:[%s991 + $0x60] sm:$0xff] %v9217
        %9267 = vst [vmem:[%s991 + $0x68] sm:$0xff] %v9229
        %9268 = vst [vmem:[%s991 + $0x70] sm:$0xff] %v9241
        %9269 = vst [vmem:[%s991 + $0x78] sm:$0xff] %v9253
        %s9270 = sand.u32 %s473, 1
        %s9271 = scalar_lea.sflag [#allocation4], %s9270
        %s9272 = sand.u32 %s473, 1
        %s9273 = smul.addr %s9272, 128
        %s9274 = scalar_lea.vmem [#allocation31], %s9273
        %s9275 = sand.u32 %s525, 1
        %s9276 = scalar_lea.sflag [#allocation33], %s9275
        %s9277 = sand.u32 %s525, 1
        %s9278 = smul.addr %s9277, 128
        %s9279 = scalar_lea.vmem [#allocation32], %s9278
        // Predicated region
        $region165: #{_lambda_.1} parent=91 // pred_check
          %p9280 = pneg %p483
        $region166: #{_lambda_.1} parent=91 // pred_check_branch
          %9282 = sbr.rel (%p9280) target = $region168
        $region167: #{_lambda_.1} parent=91 // pred_region
          %s9283 = sadd.s32 %s51, 2
          %p9284 = scmp.lt.s32.totalorder %s9283, 0
          %s9285 = ssub.s32 0, %s9283
          %s9286 = scalar_select %p9284, %s9285, %s9283
          %s9287 = sand.u32 %s9286, 3
          %s9288 = ssub.s32 0, %s9287
          %s9289 = scalar_select %p9284, %s9288, %s9287
          %p9290 = scmp.ne.s32.totalorder %s9289, 0
          %p9291 = scmp.lt.s32.totalorder %s9289, 0
          %p9292 = pnand %p9291, %p9290
          %p9293 = pneg %p9292
          %s9294 = sadd.s32 %s9289, 4
          %s9295 = scalar_select %p9293, %s9294, %s9289
          %9297 = vsyncadd %s9271, 0
          %s9298 = smul.addr %s9295, 16
          %s9299 = smul.addr %s9298, 8
          %s9300 = scalar_lea.hbm %s18, %s9299
          %s9301 = sshll.u32 %s9274, 4
          %s9302 = int_to_ptr.vmem [resolvable:$true] %s9301
          %s9303 = sshll.u32 %s9300, 4
          %s9304 = int_to_ptr.hbm [resolvable:$true] %s9303
          %9309 = dma.vmem_to_hbm [thread:$0]  %s9302, 2048, %s9304, %s9271, 128, 128, 8
        $region168: #{_lambda_.1} parent=91 // pred_fallthru
          _
        // Predicated region
        $region169: #{_lambda_.1} parent=91 // pred_check
          %p9310 = pneg %p535
        $region170: #{_lambda_.1} parent=91 // pred_check_branch
          %9312 = sbr.rel (%p9310) target = $region172
        $region171: #{_lambda_.1} parent=91 // pred_region
          %s9313 = sadd.s32 %s51, 2
          %p9314 = scmp.lt.s32.totalorder %s9313, 0
          %s9315 = ssub.s32 0, %s9313
          %s9316 = scalar_select %p9314, %s9315, %s9313
          %s9317 = sand.u32 %s9316, 3
          %s9318 = ssub.s32 0, %s9317
          %s9319 = scalar_select %p9314, %s9318, %s9317
          %p9320 = scmp.ne.s32.totalorder %s9319, 0
          %p9321 = scmp.lt.s32.totalorder %s9319, 0
          %p9322 = pnand %p9321, %p9320
          %p9323 = pneg %p9322
          %s9324 = sadd.s32 %s9319, 4
          %s9325 = scalar_select %p9323, %s9324, %s9319
          %9327 = vsyncadd %s9276, 0
          %s9328 = smul.addr %s9325, 16
          %s9329 = smul.addr %s9328, 8
          %s9330 = scalar_lea.hbm %s19, %s9329
          %s9331 = sshll.u32 %s9279, 4
          %s9332 = int_to_ptr.vmem [resolvable:$true] %s9331
          %s9333 = sshll.u32 %s9330, 4
          %s9334 = int_to_ptr.hbm [resolvable:$true] %s9333
          %9339 = dma.vmem_to_hbm [thread:$0]  %s9332, 2048, %s9334, %s9276, 128, 128, 8
        $region172: #{_lambda_.1} parent=91 // pred_fallthru
          _
      $region92: #{_lambda_.1} parent=5 // pred_fallthru
        _
      %p9340 = scmp.le.s32.totalorder 2, %s46
      // Predicated region
      $region173: #{_lambda_.1} parent=5 // pred_check
        %p9341 = pneg %p9340
      $region174: #{_lambda_.1} parent=5 // pred_check_branch
        %9343 = sbr.rel (%p9341) target = $region176
      $region175: #{_lambda_.1} parent=5 // pred_region
        %s9344 = ssub.s32 %s46, 2
        // Predicated region
        $region177: #{_lambda_.1} parent=175 // pred_check
          %p9345 = pneg %p489
        $region178: #{_lambda_.1} parent=175 // pred_check_branch
          %9347 = sbr.rel (%p9345) target = $region180
        $region179: #{_lambda_.1} parent=175 // pred_region
          %s9348 = sand.u32 %s474, 1
          %s9349 = scalar_lea.sflag [#allocation4], %s9348
          %s9350 = sand.u32 %s474, 1
          %s9351 = smul.addr %s9350, 128
          %s9352 = scalar_lea.vmem [#allocation31], %s9351
          %9354 = dma.done %s9349, 2048
        $region180: #{_lambda_.1} parent=175 // pred_fallthru
          _
        // Predicated region
        $region181: #{_lambda_.1} parent=175 // pred_check
          %p9355 = pneg %p541
        $region182: #{_lambda_.1} parent=175 // pred_check_branch
          %9357 = sbr.rel (%p9355) target = $region184
        $region183: #{_lambda_.1} parent=175 // pred_region
          %s9358 = sand.u32 %s526, 1
          %s9359 = scalar_lea.sflag [#allocation33], %s9358
          %s9360 = sand.u32 %s526, 1
          %s9361 = smul.addr %s9360, 128
          %s9362 = scalar_lea.vmem [#allocation32], %s9361
          %9364 = dma.done %s9359, 2048
        $region184: #{_lambda_.1} parent=175 // pred_fallthru
          _
      $region176: #{_lambda_.1} parent=5 // pred_fallthru
        _
    $region6: #{_lambda_.1} parent=1 // loop_footer
      %s50 = sadd.s32 1, %s46
    $region7: #{_lambda_.1} parent=1 // loop_footer_branch
      %45 = sbr.rel target = $region3
    $region8: #{_lambda_.1} parent=1 // loop_exit
      _
    %9365 = vsyncpa [#allocation3], 1
    %s9366 = scalar_lea.sflag [#allocation3], 1
    %9367 = vsyncpa %s9366, 1
    %9368 = vsyncpa [#allocation6], 1
    %s9369 = scalar_lea.sflag [#allocation6], 1
    %9370 = vsyncpa %s9369, 1
    %9371 = vsyncpa [#allocation9], 1
    %9372 = vsyncpa [#allocation12], 1
    %9373 = vsyncpa [#allocation15], 1
    %9374 = vsyncpa [#allocation18], 1
    %9375 = vsyncpa [#allocation21], 1
    %9376 = vsyncpa [#allocation24], 1
    %9377 = vsyncpa [#allocation27], 1
    %9378 = vsyncpa [#allocation30], 1
    %9379 = vsyncpa [#allocation4], 1
    %s9380 = scalar_lea.sflag [#allocation4], 1
    %9381 = vsyncpa %s9380, 1
    %9382 = vsyncpa [#allocation33], 1
    %s9383 = scalar_lea.sflag [#allocation33], 1
    %9384 = vsyncpa %s9383, 1

</llo_original>
